<compile_context>
chip_gen: v7x
topology: tpu7x:2x2x1
jax: 0.10.0
libtpu: 0.0.40
codegen_flags: <defaults>
</compile_context>

<pallas_src>
import jax
import jax.numpy as jnp
from jax.experimental import pallas as pl
from jax.experimental.pallas import tpu as pltpu


# ---------------- fused conv (transposed matmul) + bias + 2x2 max-pool -------

def _conv_pool_kernel(w_ref, b_ref, x_ref, o_ref):
    # w_ref: (tc, K)     bf16  -- conv weights for tc output channels
    # b_ref: (tc, 1)     f32
    # x_ref: (4, K, tp)  bf16  -- im2col patches; leading axis = 2x2 window
    #                             element (dh*2+dw), lanes = pooled positions
    # o_ref: (tc, tp)          -- lane-dense pooled conv output
    y0 = jnp.dot(w_ref[...], x_ref[0], preferred_element_type=jnp.float32)
    y1 = jnp.dot(w_ref[...], x_ref[1], preferred_element_type=jnp.float32)
    y2 = jnp.dot(w_ref[...], x_ref[2], preferred_element_type=jnp.float32)
    y3 = jnp.dot(w_ref[...], x_ref[3], preferred_element_type=jnp.float32)
    pooled = jnp.maximum(jnp.maximum(y0, y1), jnp.maximum(y2, y3))
    o_ref[...] = (pooled + b_ref[...]).astype(o_ref.dtype)


def conv_pool_matmul(x4, w_t, b_col, out_dtype=jnp.bfloat16):
    """out[c, p] = max_j (w_t @ x4[j])[c, p] + b[c]   (conv + 2x2 max-pool).

    x4:    (4, K, P) bf16, w_t: (C, K) bf16, b_col: (C, 1) f32 -> (C, P).
    """
    four, K, P = x4.shape
    C, K2 = w_t.shape
    assert four == 4 and K == K2
    # Lane tile over pooled positions: multiple of 128, or the full (small) P.
    tp = 256 if (P % 256 == 0 and P >= 512) else P
    assert tp == P or (tp % 128 == 0 and P % tp == 0)
    # Keep >= 2 parallel grid steps overall (v7x has 2 TensorCores).
    tc = C if P // tp >= 2 else max(C // 2, 8)
    assert C % tc == 0 and tc % 8 == 0
    grid = (C // tc, P // tp)
    return pl.pallas_call(
        _conv_pool_kernel,
        out_shape=jax.ShapeDtypeStruct((C, P), out_dtype),
        grid=grid,
        in_specs=[
            pl.BlockSpec((tc, K), lambda i, j: (i, 0)),
            pl.BlockSpec((tc, 1), lambda i, j: (i, 0)),
            pl.BlockSpec((4, K, tp), lambda i, j: (0, 0, j)),
        ],
        out_specs=pl.BlockSpec((tc, tp), lambda i, j: (i, j)),
        compiler_params=pltpu.CompilerParams(
            dimension_semantics=("parallel", "parallel")),
    )(w_t, b_col, x4)


def conv_pool_stage(x_nhwc, w_t, b_col, *, KH=5, KW=5, pad=2):
    """Conv2d(stride=1, padding=pad) + MaxPool2d(2) on bf16 NHWC input.

    Returns channel-major (Cout, N, Ho, Wo) bf16 (lane-dense kernel layout).
    """
    N, H, W, Cin = x_nhwc.shape
    assert H % 2 == 0 and W % 2 == 0, "MaxPool2d(2) expects even spatial dims"
    Cout, K = w_t.shape
    Ho, Wo = H // 2, W // 2
    xp = jnp.pad(x_nhwc, ((0, 0), (pad, pad), (pad, pad), (0, 0)))
    # im2col (XLA glue, bf16): patch features ordered (kh, kw, cin).
    patches = []
    for kh in range(KH):
        for kw in range(KW):
            patches.append(xp[:, kh:kh + H, kw:kw + W, :])
    pat = jnp.concatenate(patches, axis=-1)               # (N, H, W, KH*KW*Cin)
    k0 = KH * KW * Cin
    if K > k0:                                            # zero-pad features
        pat = jnp.pad(pat, ((0, 0), (0, 0), (0, 0), (0, K - k0)))
    # Regroup: the 4 elements of each 2x2 pool window go on the leading axis;
    # pooled positions (n, ho, wo) become the lane-dense trailing axis.
    x4 = (pat.reshape(N, Ho, 2, Wo, 2, K)
             .transpose(2, 4, 5, 0, 1, 3)
             .reshape(4, K, N * Ho * Wo))
    out = conv_pool_matmul(x4, w_t, b_col)                # (Cout, N*Ho*Wo)
    return out.reshape(Cout, N, Ho, Wo)


# ------------------------ fused Linear(1024,64)+Linear(64,10) ----------------

def _mlp_kernel(x_ref, w1_ref, b1_ref, w2_ref, b2_ref, o_ref):
    h = jnp.dot(x_ref[...], w1_ref[...], preferred_element_type=jnp.float32)
    h = h + b1_ref[...]
    y = jnp.dot(h.astype(jnp.bfloat16), w2_ref[...],
                preferred_element_type=jnp.float32) + b2_ref[...]
    o_ref[...] = y.astype(o_ref.dtype)


def mlp_head(x, w1, b1, w2, b2):
    """y = (x @ w1 + b1) @ w2 + b2 in a single pallas_call (weights ~260 KB)."""
    N = x.shape[0]
    n_out = w2.shape[1]
    return pl.pallas_call(
        _mlp_kernel,
        out_shape=jax.ShapeDtypeStruct((N, n_out), jnp.float32),
    )(x, w1, b1, w2, b2)


# ------------------------------- parameters ---------------------------------

def init_params():
    key = jax.random.PRNGKey(0)
    ks = jax.random.split(key, 10)
    s = 0.05
    return {  # PyTorch-native layouts: OIHW conv weights, (out, in) Linear.
        "c1w": s * jax.random.normal(ks[0], (32, 3, 5, 5), jnp.float32),
        "c1b": s * jax.random.normal(ks[1], (32,), jnp.float32),
        "c2w": s * jax.random.normal(ks[2], (32, 32, 5, 5), jnp.float32),
        "c2b": s * jax.random.normal(ks[3], (32,), jnp.float32),
        "c3w": s * jax.random.normal(ks[4], (64, 32, 5, 5), jnp.float32),
        "c3b": s * jax.random.normal(ks[5], (64,), jnp.float32),
        "f1w": s * jax.random.normal(ks[6], (64, 1024), jnp.float32),
        "f1b": s * jax.random.normal(ks[7], (64,), jnp.float32),
        "f2w": s * jax.random.normal(ks[8], (10, 64), jnp.float32),
        "f2b": s * jax.random.normal(ks[9], (10,), jnp.float32),
    }


def _round_up(v, m):
    return (v + m - 1) // m * m


def prepare_params(p):
    """One-time conversion to kernel-ready layouts/dtypes (outside the jit)."""
    def conv(w, b):
        Cout, Cin, KH, KW = w.shape
        k0 = KH * KW * Cin
        K = _round_up(k0, 8)
        w_t = w.transpose(0, 2, 3, 1).reshape(Cout, k0)   # (Cout, kh*kw*cin)
        w_t = jnp.pad(w_t, ((0, 0), (0, K - k0))).astype(jnp.bfloat16)
        return w_t, b.reshape(Cout, 1).astype(jnp.float32)

    c1w, c1b = conv(p["c1w"], p["c1b"])
    c2w, c2b = conv(p["c2w"], p["c2b"])
    c3w, c3b = conv(p["c3w"], p["c3b"])
    return {
        "c1w": c1w, "c1b": c1b, "c2w": c2w, "c2b": c2b, "c3w": c3w, "c3b": c3b,
        "f1w": p["f1w"].T.astype(jnp.bfloat16), "f1b": p["f1b"].reshape(1, -1),
        "f2w": p["f2w"].T.astype(jnp.bfloat16), "f2b": p["f2b"].reshape(1, -1),
    }


# ------------------------------- Cx forward ---------------------------------

@jax.jit
def cx_forward(x_nchw, kp):
    N = x_nchw.shape[0]
    # NCHW -> NHWC, bf16 operands for the MXU (f32 accumulation in-kernel).
    x = jnp.transpose(x_nchw, (0, 2, 3, 1)).astype(jnp.bfloat16)
    y = conv_pool_stage(x, kp["c1w"], kp["c1b"])                    # (32,N,16,16)
    y = conv_pool_stage(y.transpose(1, 2, 3, 0), kp["c2w"], kp["c2b"])  # (32,N,8,8)
    y = conv_pool_stage(y.transpose(1, 2, 3, 0), kp["c3w"], kp["c3b"])  # (64,N,4,4)
    # Channel-major kernel layout matches PyTorch's Flatten (N, C*H*W) order.
    feat = y.transpose(1, 0, 2, 3).reshape(N, -1)                   # (N, 1024)
    return mlp_head(feat, kp["f1w"], kp["f1b"], kp["f2w"], kp["f2b"])  # (N, 10)


if __name__ == "__main__":
    params = init_params()
    kparams = prepare_params(params)
    # Cx implies CIFAR-10 shaped input: 3x32x32 (64*4*4 = 1024 after 3 pools).
    x = jax.random.normal(jax.random.PRNGKey(0), (2, 3, 32, 32), jnp.float32)
    out = cx_forward(x, kparams)
    out = jax.block_until_ready(out)
    assert out.shape == (2, 10) and out.dtype == jnp.float32
    print("KERNEL_OK")
</pallas_src>

<mosaic_0001>
module attributes {stable_mosaic.version = 11 : i64} {
  func.func @_conv_pool_kernel(%arg0: i32, %arg1: i32, %arg2: memref<32x80xbf16, #tpu.memory_space<vmem>>, %arg3: memref<32x1xf32, #tpu.memory_space<vmem>>, %arg4: memref<4x80x256xbf16, #tpu.memory_space<vmem>>, %arg5: memref<32x256xbf16, #tpu.memory_space<vmem>>) attributes {dimension_semantics = [#tpu.dimension_semantics<parallel>, #tpu.dimension_semantics<parallel>], iteration_bounds = array<i64: 1, 2>, scalar_prefetch = 0 : i64, scratch_operands = 0 : i64, tpu.core_type = #tpu.core_type<tc>, window_params = [{transform_indices = @transform_0, window_bounds = array<i64: 32, 80>}, {transform_indices = @transform_1, window_bounds = array<i64: 32, 1>}, {transform_indices = @transform_2, window_bounds = array<i64: 4, 80, 256>}, {transform_indices = @transform_3, window_bounds = array<i64: 32, 256>}]} {
    %c0 = arith.constant 0 : index
    %c0_0 = arith.constant 0 : index
    %0 = vector.load %arg2[%c0, %c0_0] : memref<32x80xbf16, #tpu.memory_space<vmem>>, vector<32x80xbf16>
    %c0_1 = arith.constant 0 : index
    %c0_2 = arith.constant 0 : index
    %c0_3 = arith.constant 0 : index
    %1 = vector.load %arg4[%c0_1, %c0_2, %c0_3] : memref<4x80x256xbf16, #tpu.memory_space<vmem>>, vector<1x80x256xbf16>
    %2 = vector.shape_cast %1 : vector<1x80x256xbf16> to vector<80x256xbf16>
    %cst = arith.constant dense<0.000000e+00> : vector<32x256xf32>
    %3 = tpu.matmul %0, %2, %cst {dimension_numbers = #tpu.dot_dimension_numbers<[1], [0], [0], [1], [0, 0, 1, 1], [], []>} : vector<32x80xbf16>, vector<80x256xbf16>, vector<32x256xf32> -> vector<32x256xf32>
    %c0_4 = arith.constant 0 : index
    %c0_5 = arith.constant 0 : index
    %4 = vector.load %arg2[%c0_4, %c0_5] : memref<32x80xbf16, #tpu.memory_space<vmem>>, vector<32x80xbf16>
    %c1 = arith.constant 1 : index
    %c0_6 = arith.constant 0 : index
    %c0_7 = arith.constant 0 : index
    %5 = vector.load %arg4[%c1, %c0_6, %c0_7] : memref<4x80x256xbf16, #tpu.memory_space<vmem>>, vector<1x80x256xbf16>
    %6 = vector.shape_cast %5 : vector<1x80x256xbf16> to vector<80x256xbf16>
    %cst_8 = arith.constant dense<0.000000e+00> : vector<32x256xf32>
    %7 = tpu.matmul %4, %6, %cst_8 {dimension_numbers = #tpu.dot_dimension_numbers<[1], [0], [0], [1], [0, 0, 1, 1], [], []>} : vector<32x80xbf16>, vector<80x256xbf16>, vector<32x256xf32> -> vector<32x256xf32>
    %c0_9 = arith.constant 0 : index
    %c0_10 = arith.constant 0 : index
    %8 = vector.load %arg2[%c0_9, %c0_10] : memref<32x80xbf16, #tpu.memory_space<vmem>>, vector<32x80xbf16>
    %c2 = arith.constant 2 : index
    %c0_11 = arith.constant 0 : index
    %c0_12 = arith.constant 0 : index
    %9 = vector.load %arg4[%c2, %c0_11, %c0_12] : memref<4x80x256xbf16, #tpu.memory_space<vmem>>, vector<1x80x256xbf16>
    %10 = vector.shape_cast %9 : vector<1x80x256xbf16> to vector<80x256xbf16>
    %cst_13 = arith.constant dense<0.000000e+00> : vector<32x256xf32>
    %11 = tpu.matmul %8, %10, %cst_13 {dimension_numbers = #tpu.dot_dimension_numbers<[1], [0], [0], [1], [0, 0, 1, 1], [], []>} : vector<32x80xbf16>, vector<80x256xbf16>, vector<32x256xf32> -> vector<32x256xf32>
    %c0_14 = arith.constant 0 : index
    %c0_15 = arith.constant 0 : index
    %12 = vector.load %arg2[%c0_14, %c0_15] : memref<32x80xbf16, #tpu.memory_space<vmem>>, vector<32x80xbf16>
    %c3 = arith.constant 3 : index
    %c0_16 = arith.constant 0 : index
    %c0_17 = arith.constant 0 : index
    %13 = vector.load %arg4[%c3, %c0_16, %c0_17] : memref<4x80x256xbf16, #tpu.memory_space<vmem>>, vector<1x80x256xbf16>
    %14 = vector.shape_cast %13 : vector<1x80x256xbf16> to vector<80x256xbf16>
    %cst_18 = arith.constant dense<0.000000e+00> : vector<32x256xf32>
    %15 = tpu.matmul %12, %14, %cst_18 {dimension_numbers = #tpu.dot_dimension_numbers<[1], [0], [0], [1], [0, 0, 1, 1], [], []>} : vector<32x80xbf16>, vector<80x256xbf16>, vector<32x256xf32> -> vector<32x256xf32>
    %16 = arith.maximumf %3, %7 : vector<32x256xf32>
    %17 = arith.maximumf %11, %15 : vector<32x256xf32>
    %18 = arith.maximumf %16, %17 : vector<32x256xf32>
    %c0_19 = arith.constant 0 : index
    %c0_20 = arith.constant 0 : index
    %19 = vector.load %arg3[%c0_19, %c0_20] : memref<32x1xf32, #tpu.memory_space<vmem>>, vector<32x1xf32>
    %20 = vector.broadcast %19 : vector<32x1xf32> to vector<32x256xf32>
    %21 = arith.addf %18, %20 : vector<32x256xf32>
    %22 = arith.truncf %21 : vector<32x256xf32> to vector<32x256xbf16>
    %c0_21 = arith.constant 0 : index
    %c0_22 = arith.constant 0 : index
    %23 = vector.load %arg5[%c0_21, %c0_22] : memref<32x256xbf16, #tpu.memory_space<vmem>>, vector<32x256xbf16>
    tpu.vector_store %arg5[%c0_21, %c0_22], %22 {strides = array<i32>} : memref<32x256xbf16, #tpu.memory_space<vmem>>, vector<32x256xbf16>,
    return
  }
  func.func @transform_0(%arg0: i32, %arg1: i32) -> (i32, i32) {
    %c0_i32 = arith.constant 0 : i32
    %c0_i32_0 = arith.constant 0 : i32
    return %arg0, %c0_i32 : i32, i32
  }
  func.func @transform_1(%arg0: i32, %arg1: i32) -> (i32, i32) {
    %c0_i32 = arith.constant 0 : i32
    %c0_i32_0 = arith.constant 0 : i32
    return %arg0, %c0_i32 : i32, i32
  }
  func.func @transform_2(%arg0: i32, %arg1: i32) -> (i32, i32, i32) {
    %c0_i32 = arith.constant 0 : i32
    %c0_i32_0 = arith.constant 0 : i32
    %c0_i32_1 = arith.constant 0 : i32
    return %c0_i32, %c0_i32_0, %arg1 : i32, i32, i32
  }
  func.func @transform_3(%arg0: i32, %arg1: i32) -> (i32, i32) {
    %c0_i32 = arith.constant 0 : i32
    return %arg0, %arg1 : i32, i32
  }
}

module attributes {stable_mosaic.version = 11 : i64} {
  func.func @_conv_pool_kernel(%arg0: i32, %arg1: i32, %arg2: memref<16x800xbf16, #tpu.memory_space<vmem>>, %arg3: memref<16x1xf32, #tpu.memory_space<vmem>>, %arg4: memref<4x800x128xbf16, #tpu.memory_space<vmem>>, %arg5: memref<16x128xbf16, #tpu.memory_space<vmem>>) attributes {dimension_semantics = [#tpu.dimension_semantics<parallel>, #tpu.dimension_semantics<parallel>], iteration_bounds = array<i64: 2, 1>, scalar_prefetch = 0 : i64, scratch_operands = 0 : i64, tpu.core_type = #tpu.core_type<tc>, window_params = [{transform_indices = @transform_0, window_bounds = array<i64: 16, 800>}, {transform_indices = @transform_1, window_bounds = array<i64: 16, 1>}, {transform_indices = @transform_2, window_bounds = array<i64: 4, 800, 128>}, {transform_indices = @transform_3, window_bounds = array<i64: 16, 128>}]} {
    %c0 = arith.constant 0 : index
    %c0_0 = arith.constant 0 : index
    %0 = vector.load %arg2[%c0, %c0_0] : memref<16x800xbf16, #tpu.memory_space<vmem>>, vector<16x800xbf16>
    %c0_1 = arith.constant 0 : index
    %c0_2 = arith.constant 0 : index
    %c0_3 = arith.constant 0 : index
    %1 = vector.load %arg4[%c0_1, %c0_2, %c0_3] : memref<4x800x128xbf16, #tpu.memory_space<vmem>>, vector<1x800x128xbf16>
    %2 = vector.shape_cast %1 : vector<1x800x128xbf16> to vector<800x128xbf16>
    %cst = arith.constant dense<0.000000e+00> : vector<16x128xf32>
    %3 = tpu.matmul %0, %2, %cst {dimension_numbers = #tpu.dot_dimension_numbers<[1], [0], [0], [1], [0, 0, 1, 1], [], []>} : vector<16x800xbf16>, vector<800x128xbf16>, vector<16x128xf32> -> vector<16x128xf32>
    %c0_4 = arith.constant 0 : index
    %c0_5 = arith.constant 0 : index
    %4 = vector.load %arg2[%c0_4, %c0_5] : memref<16x800xbf16, #tpu.memory_space<vmem>>, vector<16x800xbf16>
    %c1 = arith.constant 1 : index
    %c0_6 = arith.constant 0 : index
    %c0_7 = arith.constant 0 : index
    %5 = vector.load %arg4[%c1, %c0_6, %c0_7] : memref<4x800x128xbf16, #tpu.memory_space<vmem>>, vector<1x800x128xbf16>
    %6 = vector.shape_cast %5 : vector<1x800x128xbf16> to vector<800x128xbf16>
    %cst_8 = arith.constant dense<0.000000e+00> : vector<16x128xf32>
    %7 = tpu.matmul %4, %6, %cst_8 {dimension_numbers = #tpu.dot_dimension_numbers<[1], [0], [0], [1], [0, 0, 1, 1], [], []>} : vector<16x800xbf16>, vector<800x128xbf16>, vector<16x128xf32> -> vector<16x128xf32>
    %c0_9 = arith.constant 0 : index
    %c0_10 = arith.constant 0 : index
    %8 = vector.load %arg2[%c0_9, %c0_10] : memref<16x800xbf16, #tpu.memory_space<vmem>>, vector<16x800xbf16>
    %c2 = arith.constant 2 : index
    %c0_11 = arith.constant 0 : index
    %c0_12 = arith.constant 0 : index
    %9 = vector.load %arg4[%c2, %c0_11, %c0_12] : memref<4x800x128xbf16, #tpu.memory_space<vmem>>, vector<1x800x128xbf16>
    %10 = vector.shape_cast %9 : vector<1x800x128xbf16> to vector<800x128xbf16>
    %cst_13 = arith.constant dense<0.000000e+00> : vector<16x128xf32>
    %11 = tpu.matmul %8, %10, %cst_13 {dimension_numbers = #tpu.dot_dimension_numbers<[1], [0], [0], [1], [0, 0, 1, 1], [], []>} : vector<16x800xbf16>, vector<800x128xbf16>, vector<16x128xf32> -> vector<16x128xf32>
    %c0_14 = arith.constant 0 : index
    %c0_15 = arith.constant 0 : index
    %12 = vector.load %arg2[%c0_14, %c0_15] : memref<16x800xbf16, #tpu.memory_space<vmem>>, vector<16x800xbf16>
    %c3 = arith.constant 3 : index
    %c0_16 = arith.constant 0 : index
    %c0_17 = arith.constant 0 : index
    %13 = vector.load %arg4[%c3, %c0_16, %c0_17] : memref<4x800x128xbf16, #tpu.memory_space<vmem>>, vector<1x800x128xbf16>
    %14 = vector.shape_cast %13 : vector<1x800x128xbf16> to vector<800x128xbf16>
    %cst_18 = arith.constant dense<0.000000e+00> : vector<16x128xf32>
    %15 = tpu.matmul %12, %14, %cst_18 {dimension_numbers = #tpu.dot_dimension_numbers<[1], [0], [0], [1], [0, 0, 1, 1], [], []>} : vector<16x800xbf16>, vector<800x128xbf16>, vector<16x128xf32> -> vector<16x128xf32>
    %16 = arith.maximumf %3, %7 : vector<16x128xf32>
    %17 = arith.maximumf %11, %15 : vector<16x128xf32>
    %18 = arith.maximumf %16, %17 : vector<16x128xf32>
    %c0_19 = arith.constant 0 : index
    %c0_20 = arith.constant 0 : index
    %19 = vector.load %arg3[%c0_19, %c0_20] : memref<16x1xf32, #tpu.memory_space<vmem>>, vector<16x1xf32>
    %20 = vector.broadcast %19 : vector<16x1xf32> to vector<16x128xf32>
    %21 = arith.addf %18, %20 : vector<16x128xf32>
    %22 = arith.truncf %21 : vector<16x128xf32> to vector<16x128xbf16>
    %c0_21 = arith.constant 0 : index
    %c0_22 = arith.constant 0 : index
    %23 = vector.load %arg5[%c0_21, %c0_22] : memref<16x128xbf16, #tpu.memory_space<vmem>>, vector<16x128xbf16>
    tpu.vector_store %arg5[%c0_21, %c0_22], %22 {strides = array<i32>} : memref<16x128xbf16, #tpu.memory_space<vmem>>, vector<16x128xbf16>,
    return
  }
  func.func @transform_0(%arg0: i32, %arg1: i32) -> (i32, i32) {
    %c0_i32 = arith.constant 0 : i32
    %c0_i32_0 = arith.constant 0 : i32
    return %arg0, %c0_i32 : i32, i32
  }
  func.func @transform_1(%arg0: i32, %arg1: i32) -> (i32, i32) {
    %c0_i32 = arith.constant 0 : i32
    %c0_i32_0 = arith.constant 0 : i32
    return %arg0, %c0_i32 : i32, i32
  }
  func.func @transform_2(%arg0: i32, %arg1: i32) -> (i32, i32, i32) {
    %c0_i32 = arith.constant 0 : i32
    %c0_i32_0 = arith.constant 0 : i32
    %c0_i32_1 = arith.constant 0 : i32
    return %c0_i32, %c0_i32_0, %arg1 : i32, i32, i32
  }
  func.func @transform_3(%arg0: i32, %arg1: i32) -> (i32, i32) {
    %c0_i32 = arith.constant 0 : i32
    return %arg0, %arg1 : i32, i32
  }
}

module attributes {stable_mosaic.version = 11 : i64} {
  func.func @_conv_pool_kernel(%arg0: i32, %arg1: i32, %arg2: memref<32x800xbf16, #tpu.memory_space<vmem>>, %arg3: memref<32x1xf32, #tpu.memory_space<vmem>>, %arg4: memref<4x800x32xbf16, #tpu.memory_space<vmem>>, %arg5: memref<32x32xbf16, #tpu.memory_space<vmem>>) attributes {dimension_semantics = [#tpu.dimension_semantics<parallel>, #tpu.dimension_semantics<parallel>], iteration_bounds = array<i64: 2, 1>, scalar_prefetch = 0 : i64, scratch_operands = 0 : i64, tpu.core_type = #tpu.core_type<tc>, window_params = [{transform_indices = @transform_0, window_bounds = array<i64: 32, 800>}, {transform_indices = @transform_1, window_bounds = array<i64: 32, 1>}, {transform_indices = @transform_2, window_bounds = array<i64: 4, 800, 32>}, {transform_indices = @transform_3, window_bounds = array<i64: 32, 32>}]} {
    %c0 = arith.constant 0 : index
    %c0_0 = arith.constant 0 : index
    %0 = vector.load %arg2[%c0, %c0_0] : memref<32x800xbf16, #tpu.memory_space<vmem>>, vector<32x800xbf16>
    %c0_1 = arith.constant 0 : index
    %c0_2 = arith.constant 0 : index
    %c0_3 = arith.constant 0 : index
    %1 = vector.load %arg4[%c0_1, %c0_2, %c0_3] : memref<4x800x32xbf16, #tpu.memory_space<vmem>>, vector<1x800x32xbf16>
    %2 = vector.shape_cast %1 : vector<1x800x32xbf16> to vector<800x32xbf16>
    %cst = arith.constant dense<0.000000e+00> : vector<32x32xf32>
    %3 = tpu.matmul %0, %2, %cst {dimension_numbers = #tpu.dot_dimension_numbers<[1], [0], [0], [1], [0, 0, 1, 1], [], []>} : vector<32x800xbf16>, vector<800x32xbf16>, vector<32x32xf32> -> vector<32x32xf32>
    %c0_4 = arith.constant 0 : index
    %c0_5 = arith.constant 0 : index
    %4 = vector.load %arg2[%c0_4, %c0_5] : memref<32x800xbf16, #tpu.memory_space<vmem>>, vector<32x800xbf16>
    %c1 = arith.constant 1 : index
    %c0_6 = arith.constant 0 : index
    %c0_7 = arith.constant 0 : index
    %5 = vector.load %arg4[%c1, %c0_6, %c0_7] : memref<4x800x32xbf16, #tpu.memory_space<vmem>>, vector<1x800x32xbf16>
    %6 = vector.shape_cast %5 : vector<1x800x32xbf16> to vector<800x32xbf16>
    %cst_8 = arith.constant dense<0.000000e+00> : vector<32x32xf32>
    %7 = tpu.matmul %4, %6, %cst_8 {dimension_numbers = #tpu.dot_dimension_numbers<[1], [0], [0], [1], [0, 0, 1, 1], [], []>} : vector<32x800xbf16>, vector<800x32xbf16>, vector<32x32xf32> -> vector<32x32xf32>
    %c0_9 = arith.constant 0 : index
    %c0_10 = arith.constant 0 : index
    %8 = vector.load %arg2[%c0_9, %c0_10] : memref<32x800xbf16, #tpu.memory_space<vmem>>, vector<32x800xbf16>
    %c2 = arith.constant 2 : index
    %c0_11 = arith.constant 0 : index
    %c0_12 = arith.constant 0 : index
    %9 = vector.load %arg4[%c2, %c0_11, %c0_12] : memref<4x800x32xbf16, #tpu.memory_space<vmem>>, vector<1x800x32xbf16>
    %10 = vector.shape_cast %9 : vector<1x800x32xbf16> to vector<800x32xbf16>
    %cst_13 = arith.constant dense<0.000000e+00> : vector<32x32xf32>
    %11 = tpu.matmul %8, %10, %cst_13 {dimension_numbers = #tpu.dot_dimension_numbers<[1], [0], [0], [1], [0, 0, 1, 1], [], []>} : vector<32x800xbf16>, vector<800x32xbf16>, vector<32x32xf32> -> vector<32x32xf32>
    %c0_14 = arith.constant 0 : index
    %c0_15 = arith.constant 0 : index
    %12 = vector.load %arg2[%c0_14, %c0_15] : memref<32x800xbf16, #tpu.memory_space<vmem>>, vector<32x800xbf16>
    %c3 = arith.constant 3 : index
    %c0_16 = arith.constant 0 : index
    %c0_17 = arith.constant 0 : index
    %13 = vector.load %arg4[%c3, %c0_16, %c0_17] : memref<4x800x32xbf16, #tpu.memory_space<vmem>>, vector<1x800x32xbf16>
    %14 = vector.shape_cast %13 : vector<1x800x32xbf16> to vector<800x32xbf16>
    %cst_18 = arith.constant dense<0.000000e+00> : vector<32x32xf32>
    %15 = tpu.matmul %12, %14, %cst_18 {dimension_numbers = #tpu.dot_dimension_numbers<[1], [0], [0], [1], [0, 0, 1, 1], [], []>} : vector<32x800xbf16>, vector<800x32xbf16>, vector<32x32xf32> -> vector<32x32xf32>
    %16 = arith.maximumf %3, %7 : vector<32x32xf32>
    %17 = arith.maximumf %11, %15 : vector<32x32xf32>
    %18 = arith.maximumf %16, %17 : vector<32x32xf32>
    %c0_19 = arith.constant 0 : index
    %c0_20 = arith.constant 0 : index
    %19 = vector.load %arg3[%c0_19, %c0_20] : memref<32x1xf32, #tpu.memory_space<vmem>>, vector<32x1xf32>
    %20 = vector.broadcast %19 : vector<32x1xf32> to vector<32x32xf32>
    %21 = arith.addf %18, %20 : vector<32x32xf32>
    %22 = arith.truncf %21 : vector<32x32xf32> to vector<32x32xbf16>
    %c0_21 = arith.constant 0 : index
    %c0_22 = arith.constant 0 : index
    %23 = vector.load %arg5[%c0_21, %c0_22] : memref<32x32xbf16, #tpu.memory_space<vmem>>, vector<32x32xbf16>
    tpu.vector_store %arg5[%c0_21, %c0_22], %22 {strides = array<i32>} : memref<32x32xbf16, #tpu.memory_space<vmem>>, vector<32x32xbf16>,
    return
  }
  func.func @transform_0(%arg0: i32, %arg1: i32) -> (i32, i32) {
    %c0_i32 = arith.constant 0 : i32
    %c0_i32_0 = arith.constant 0 : i32
    return %arg0, %c0_i32 : i32, i32
  }
  func.func @transform_1(%arg0: i32, %arg1: i32) -> (i32, i32) {
    %c0_i32 = arith.constant 0 : i32
    %c0_i32_0 = arith.constant 0 : i32
    return %arg0, %c0_i32 : i32, i32
  }
  func.func @transform_2(%arg0: i32, %arg1: i32) -> (i32, i32, i32) {
    %c0_i32 = arith.constant 0 : i32
    %c0_i32_0 = arith.constant 0 : i32
    %c0_i32_1 = arith.constant 0 : i32
    return %c0_i32, %c0_i32_0, %arg1 : i32, i32, i32
  }
  func.func @transform_3(%arg0: i32, %arg1: i32) -> (i32, i32) {
    %c0_i32 = arith.constant 0 : i32
    return %arg0, %arg1 : i32, i32
  }
}

module attributes {stable_mosaic.version = 11 : i64} {
  func.func @_mlp_kernel(%arg0: memref<2x1024xbf16, #tpu.memory_space<vmem>>, %arg1: memref<1024x64xbf16, #tpu.memory_space<vmem>>, %arg2: memref<1x64xf32, #tpu.memory_space<vmem>>, %arg3: memref<64x10xbf16, #tpu.memory_space<vmem>>, %arg4: memref<1x10xf32, #tpu.memory_space<vmem>>, %arg5: memref<2x10xf32, #tpu.memory_space<vmem>>) attributes {dimension_semantics = [], scalar_prefetch = 0 : i64, scratch_operands = 0 : i64, tpu.core_type = #tpu.core_type<tc>} {
    %c0 = arith.constant 0 : index
    %c0_0 = arith.constant 0 : index
    %0 = vector.load %arg0[%c0, %c0_0] : memref<2x1024xbf16, #tpu.memory_space<vmem>>, vector<2x1024xbf16>
    %c0_1 = arith.constant 0 : index
    %c0_2 = arith.constant 0 : index
    %1 = vector.load %arg1[%c0_1, %c0_2] : memref<1024x64xbf16, #tpu.memory_space<vmem>>, vector<1024x64xbf16>
    %cst = arith.constant dense<0.000000e+00> : vector<2x64xf32>
    %2 = tpu.matmul %0, %1, %cst {dimension_numbers = #tpu.dot_dimension_numbers<[1], [0], [0], [1], [0, 0, 1, 1], [], []>} : vector<2x1024xbf16>, vector<1024x64xbf16>, vector<2x64xf32> -> vector<2x64xf32>
    %c0_3 = arith.constant 0 : index
    %c0_4 = arith.constant 0 : index
    %3 = vector.load %arg2[%c0_3, %c0_4] : memref<1x64xf32, #tpu.memory_space<vmem>>, vector<1x64xf32>
    %4 = vector.broadcast %3 : vector<1x64xf32> to vector<2x64xf32>
    %5 = arith.addf %2, %4 : vector<2x64xf32>
    %6 = arith.truncf %5 : vector<2x64xf32> to vector<2x64xbf16>
    %c0_5 = arith.constant 0 : index
    %c0_6 = arith.constant 0 : index
    %7 = vector.load %arg3[%c0_5, %c0_6] : memref<64x10xbf16, #tpu.memory_space<vmem>>, vector<64x10xbf16>
    %cst_7 = arith.constant dense<0.000000e+00> : vector<2x10xf32>
    %8 = tpu.matmul %6, %7, %cst_7 {dimension_numbers = #tpu.dot_dimension_numbers<[1], [0], [0], [1], [0, 0, 1, 1], [], []>} : vector<2x64xbf16>, vector<64x10xbf16>, vector<2x10xf32> -> vector<2x10xf32>
    %c0_8 = arith.constant 0 : index
    %c0_9 = arith.constant 0 : index
    %9 = vector.load %arg4[%c0_8, %c0_9] : memref<1x10xf32, #tpu.memory_space<vmem>>, vector<1x10xf32>
    %10 = vector.broadcast %9 : vector<1x10xf32> to vector<2x10xf32>
    %11 = arith.addf %8, %10 : vector<2x10xf32>
    %c0_10 = arith.constant 0 : index
    %c0_11 = arith.constant 0 : index
    %12 = vector.load %arg5[%c0_10, %c0_11] : memref<2x10xf32, #tpu.memory_space<vmem>>, vector<2x10xf32>
    tpu.vector_store %arg5[%c0_10, %c0_11], %11 {strides = array<i32>} : memref<2x10xf32, #tpu.memory_space<vmem>>, vector<2x10xf32>,
    return
  }
}

</mosaic_0001>

<llo_original>
// kernel: cx_forward.4
$region0: #{cx_forward.4}
  #allocation0 [shape = 'u32[]', space=smem, size = 0x4, offset = 0x4, fixed_abs, tag = 'smem constant byte address 0x4 - core index']
  #allocation1 [shape = 'u32[144,128]{1,0:T(1,128)}', space=vmem, size = 0x12000, scoped, tag = 'internal scratch']
  %s0 = inlined_call_operand.vmem [shape: bf16[32,80], index: 0, kind: input, shape index: {}]
  %s1 = inlined_call_operand.vmem [shape: f32[32,1], index: 1, kind: input, shape index: {}]
  %s2 = inlined_call_operand.vmem [shape: bf16[4,80,512], index: 2, kind: input, shape index: {}]
  %s3 = inlined_call_operand.vmem [shape: bf16[32,512], index: 3, kind: output, shape index: {}]
  %s4 = sld [smem:[#allocation0]]
  $region117: #{cx_forward.4} parent=0
    _
  %s6 = ssub.s32 1, %s4
  %s7 = scalar_select 0, %s6, %s4
  $region1: #{cx_forward.4} parent=0
    #allocation2 [shape = 'u8[327680]{0}', space=vmem, size = 0x50000, scoped, tag = 'input window, operand 2']
    #allocation3 [shape = 'u8[32768]{0}', space=vmem, size = 0x8000, scoped, tag = 'output window, operand 0']
    loop: start=0, step=1, limit=4
    $region2: #{cx_forward.4} parent=1 // loop_pre_header
      _
    $region3: #{cx_forward.4} parent=1 // loop_header
      %s9 = sphi 0, %s13
      %p10 = scmp.ge.s32.totalorder %s9, 4
      %s16 = sphi 0, %s28
      %s17 = sphi 0, %s24
      %s18 = sphi 0, %s16
      %s19 = sphi 0, %s17
      %s20 = sphi 0, %s18
      %s21 = sphi 0, %s19
      %s31 = sphi 0, %s33
      %s34 = sphi 0, %s31
      %s35 = sphi 0, %s34
      %s51 = sphi 0, %s35
      %s57 = sphi 0, %s59
      %s60 = sphi 0, %s57
      %s61 = sphi 0, %s60
      %s77 = sphi 0, %s61
      %s83 = sphi 0, %s85
      %s86 = sphi 0, %s83
      %s87 = sphi 0, %s86
      %s103 = sphi 0, %s87
      %s111 = sphi 0, %s113
      %s114 = sphi 0, %s111
      %s115 = sphi 0, %s114
      %s131 = sphi 0, %s115
    $region4: #{cx_forward.4} parent=1 // loop_header_branch
      %12 = sbr.rel (%p10) target = $region8
    $region5: #{cx_forward.4} parent=1 // loop_body
      %s14 = ssub.s32 %s9, 1
      %s15 = ssub.s32 %s9, 2
      %s22 = sadd.s32 1, %s17
      %p23 = scmp.ge.s32.totalorder %s22, 2
      %s24 = scalar_select %p23, 0, %s22
      %s25 = sadd.s32 1, %s16
      %s26 = scalar_select %p23, %s25, %s16
      %p27 = scmp.ge.s32.totalorder %s26, 1
      %s28 = scalar_select %p27, 0, %s26
      %s29 = ssub.s32 %s16, %s28
      %p30 = scmp.eq.s32.totalorder %s29, 0
      %s32 = sadd.s32 %s31, 1
      %s33 = scalar_select %p30, %s31, %s32
      %p36 = pneg %p30
      %p37 = scmp.eq.s32.totalorder %s9, 1
      %p38 = por %p36, %p37
      %p39 = scmp.ne.s32.totalorder %s31, %s34
      %p40 = scmp.eq.s32.totalorder %s9, 0
      %p41 = por %p39, %p40
      %p42 = scmp.ne.s32.totalorder %s31, %s34
      %p43 = scmp.eq.s32.totalorder %s14, 1
      %p44 = por %p42, %p43
      %p45 = scmp.ne.s32.totalorder %s34, %s35
      %p46 = scmp.eq.s32.totalorder %s14, 0
      %p47 = por %p45, %p46
      %p48 = scmp.ne.s32.totalorder %s34, %s35
      %p49 = scmp.eq.s32.totalorder %s15, 1
      %p50 = por %p48, %p49
      %p52 = scmp.ne.s32.totalorder %s35, %s51
      %p53 = scmp.eq.s32.totalorder %s15, 0
      %p54 = por %p52, %p53
      %s55 = ssub.s32 %s16, %s28
      %p56 = scmp.eq.s32.totalorder %s55, 0
      %s58 = sadd.s32 %s57, 1
      %s59 = scalar_select %p56, %s57, %s58
      %p62 = pneg %p56
      %p63 = scmp.eq.s32.totalorder %s9, 1
      %p64 = por %p62, %p63
      %p65 = scmp.ne.s32.totalorder %s57, %s60
      %p66 = scmp.eq.s32.totalorder %s9, 0
      %p67 = por %p65, %p66
      %p68 = scmp.ne.s32.totalorder %s57, %s60
      %p69 = scmp.eq.s32.totalorder %s14, 1
      %p70 = por %p68, %p69
      %p71 = scmp.ne.s32.totalorder %s60, %s61
      %p72 = scmp.eq.s32.totalorder %s14, 0
      %p73 = por %p71, %p72
      %p74 = scmp.ne.s32.totalorder %s60, %s61
      %p75 = scmp.eq.s32.totalorder %s15, 1
      %p76 = por %p74, %p75
      %p78 = scmp.ne.s32.totalorder %s61, %s77
      %p79 = scmp.eq.s32.totalorder %s15, 0
      %p80 = por %p78, %p79
      %s81 = ssub.s32 %s17, %s24
      %p82 = scmp.eq.s32.totalorder %s81, 0
      %s84 = sadd.s32 %s83, 1
      %s85 = scalar_select %p82, %s83, %s84
      %p88 = pneg %p82
      %p89 = scmp.eq.s32.totalorder %s9, 1
      %p90 = por %p88, %p89
      %p91 = scmp.ne.s32.totalorder %s83, %s86
      %p92 = scmp.eq.s32.totalorder %s9, 0
      %p93 = por %p91, %p92
      %p94 = scmp.ne.s32.totalorder %s83, %s86
      %p95 = scmp.eq.s32.totalorder %s14, 1
      %p96 = por %p94, %p95
      %p97 = scmp.ne.s32.totalorder %s86, %s87
      %p98 = scmp.eq.s32.totalorder %s14, 0
      %p99 = por %p97, %p98
      %p100 = scmp.ne.s32.totalorder %s86, %s87
      %p101 = scmp.eq.s32.totalorder %s15, 1
      %p102 = por %p100, %p101
      %p104 = scmp.ne.s32.totalorder %s87, %s103
      %p105 = scmp.eq.s32.totalorder %s15, 0
      %p106 = por %p104, %p105
      %s107 = ssub.s32 %s16, %s28
      %s108 = ssub.s32 %s17, %s24
      %s109 = sor.u32 %s107, %s108
      %p110 = scmp.eq.s32.totalorder %s109, 0
      %s112 = sadd.s32 %s111, 1
      %s113 = scalar_select %p110, %s111, %s112
      %p116 = pneg %p110
      %p117 = scmp.eq.s32.totalorder %s9, 1
      %p118 = por %p116, %p117
      %p119 = scmp.ne.s32.totalorder %s111, %s114
      %p120 = scmp.eq.s32.totalorder %s9, 0
      %p121 = por %p119, %p120
      %p122 = scmp.ne.s32.totalorder %s111, %s114
      %p123 = scmp.eq.s32.totalorder %s14, 1
      %p124 = por %p122, %p123
      %p125 = scmp.ne.s32.totalorder %s114, %s115
      %p126 = scmp.eq.s32.totalorder %s14, 0
      %p127 = por %p125, %p126
      %p128 = scmp.ne.s32.totalorder %s114, %s115
      %p129 = scmp.eq.s32.totalorder %s15, 1
      %p130 = por %p128, %p129
      %p132 = scmp.ne.s32.totalorder %s115, %s131
      %p133 = scmp.eq.s32.totalorder %s15, 0
      %p134 = por %p132, %p133
      %p135 = scmp.le.s32.totalorder 1, %s9
      %p136 = scmp.lt.s32.totalorder %s9, 3
      %p137 = pnand %p135, %p136
      %p138 = pneg %p137
      // Predicated region
      $region9: #{cx_forward.4} parent=5 // pred_check
        _
      $region10: #{cx_forward.4} parent=5 // pred_check_branch
        %140 = sbr.rel (%p137) target = $region12
      $region11: #{cx_forward.4} parent=5 // pred_region
        %s141 = ssub.s32 %s9, 1
        // Predicated region
        $region13: #{cx_forward.4} parent=11 // pred_check
          %p142 = pneg %p47
        $region14: #{cx_forward.4} parent=11 // pred_check_branch
          %144 = sbr.rel (%p142) target = $region16
        $region15: #{cx_forward.4} parent=11 // pred_region
          %s145 = smul.u32 4, %s18
          %p146 = scmp.lt.s32.totalorder %s145, 3
          %s147 = scalar_select %p146, %s145, 3
          %s148 = smul.addr %s147, 4
          %s149 = scalar_lea.vmem %s0, %s148
          %s150 = smul.u32 4, %s18
        $region16: #{cx_forward.4} parent=11 // pred_fallthru
          _
        // Predicated region
        $region17: #{cx_forward.4} parent=11 // pred_check
          %p151 = pneg %p73
        $region18: #{cx_forward.4} parent=11 // pred_check_branch
          %153 = sbr.rel (%p151) target = $region20
        $region19: #{cx_forward.4} parent=11 // pred_region
          %s154 = smul.u32 4, %s18
          %p155 = scmp.lt.s32.totalorder %s154, 3
          %s156 = scalar_select %p155, %s154, 3
          %s157 = smul.addr %s156, 8
          %s158 = scalar_lea.vmem %s1, %s157
          %s159 = smul.u32 4, %s18
        $region20: #{cx_forward.4} parent=11 // pred_fallthru
          _
      $region12: #{cx_forward.4} parent=5 // pred_fallthru
        _
      %p160 = scmp.lt.s32.totalorder %s9, 2
      // Predicated region
      $region21: #{cx_forward.4} parent=5 // pred_check
        %p161 = pneg %p160
      $region22: #{cx_forward.4} parent=5 // pred_check_branch
        %163 = sbr.rel (%p161) target = $region24
      $region23: #{cx_forward.4} parent=5 // pred_region
        // Predicated region
        $region25: #{cx_forward.4} parent=23 // pred_check
          %p164 = pneg %p93
        $region26: #{cx_forward.4} parent=23 // pred_check_branch
          %166 = sbr.rel (%p164) target = $region28
        $region27: #{cx_forward.4} parent=23 // pred_region
          %s167 = sand.u32 %s83, 1
          %s168 = sand.u32 %s83, 1
          %s169 = smul.addr %s168, 320
          %s170 = scalar_lea.vmem [#allocation2], %s169
          %s171 = smul.u32 2, %s17
          %s172 = smul.addr %s171, 4
          %s173 = scalar_lea.vmem %s2, %s172
          // Predicated region
          $region29: #{cx_forward.4} parent=27 // pred_check
            _
          $region30: #{cx_forward.4} parent=27 // pred_check_branch
            %175 = sbr.rel (0) target = $region32
          $region31: #{cx_forward.4} parent=27 // pred_region
            // Predicated region
            $region33: #{cx_forward.4} parent=31 // pred_check
              _
            $region34: #{cx_forward.4} parent=31 // pred_check_branch
              %177 = sbr.rel (0) target = $region36
            $region35: #{cx_forward.4} parent=31 // pred_region
              // Predicated region
              $region48: #{cx_forward.4} parent=35 // pred_check
                _
              $region49: #{cx_forward.4} parent=35 // pred_check_branch
                %270 = sbr.rel (0) target = $region51
              $region50: #{cx_forward.4} parent=35 // pred_region
                loop: start=0, step=1, limit=1
                $region52: #{cx_forward.4} parent=50 // loop_pre_header
                  _
                $region53: #{cx_forward.4} parent=50 // loop_header
                  %s272 = sphi 0, %s276
                  %p273 = scmp.ge.s32.totalorder %s272, 1
                  %s277 = sphi %s173, %s173
                  %s278 = sphi %s170, %s170
                $region54: #{cx_forward.4} parent=50 // loop_header_branch
                  %275 = sbr.rel (%p273) target = $region58
                $region55: #{cx_forward.4} parent=50 // loop_body
                  %v279 = vld [vmem:[%s277] sm:$0xff]
                  %280 = vst [vmem:[%s278] sm:$0xff] %v279
                  %v281 = vld [vmem:[%s277 + $0x10] sm:$0xff]
                  %282 = vst [vmem:[%s278 + $0x8] sm:$0xff] %v281
                  %v283 = vld [vmem:[%s277 + $0x20] sm:$0xff]
                  %284 = vst [vmem:[%s278 + $0x10] sm:$0xff] %v283
                  %v285 = vld [vmem:[%s277 + $0x30] sm:$0xff]
                  %286 = vst [vmem:[%s278 + $0x18] sm:$0xff] %v285
                  %v287 = vld [vmem:[%s277 + $0x40] sm:$0xff]
                  %288 = vst [vmem:[%s278 + $0x20] sm:$0xff] %v287
                  %v289 = vld [vmem:[%s277 + $0x50] sm:$0xff]
                  %290 = vst [vmem:[%s278 + $0x28] sm:$0xff] %v289
                  %v291 = vld [vmem:[%s277 + $0x60] sm:$0xff]
                  %292 = vst [vmem:[%s278 + $0x30] sm:$0xff] %v291
                  %v293 = vld [vmem:[%s277 + $0x70] sm:$0xff]
                  %294 = vst [vmem:[%s278 + $0x38] sm:$0xff] %v293
                  %v295 = vld [vmem:[%s277 + $0x80] sm:$0xff]
                  %296 = vst [vmem:[%s278 + $0x40] sm:$0xff] %v295
                  %v297 = vld [vmem:[%s277 + $0x90] sm:$0xff]
                  %298 = vst [vmem:[%s278 + $0x48] sm:$0xff] %v297
                  %v299 = vld [vmem:[%s277 + $0xa0] sm:$0xff]
                  %300 = vst [vmem:[%s278 + $0x50] sm:$0xff] %v299
                  %v301 = vld [vmem:[%s277 + $0xb0] sm:$0xff]
                  %302 = vst [vmem:[%s278 + $0x58] sm:$0xff] %v301
                  %v303 = vld [vmem:[%s277 + $0xc0] sm:$0xff]
                  %304 = vst [vmem:[%s278 + $0x60] sm:$0xff] %v303
                  %v305 = vld [vmem:[%s277 + $0xd0] sm:$0xff]
                  %306 = vst [vmem:[%s278 + $0x68] sm:$0xff] %v305
                  %v307 = vld [vmem:[%s277 + $0xe0] sm:$0xff]
                  %308 = vst [vmem:[%s278 + $0x70] sm:$0xff] %v307
                  %v309 = vld [vmem:[%s277 + $0xf0] sm:$0xff]
                  %310 = vst [vmem:[%s278 + $0x78] sm:$0xff] %v309
                  %v311 = vld [vmem:[%s277 + $0x100] sm:$0xff]
                  %312 = vst [vmem:[%s278 + $0x80] sm:$0xff] %v311
                  %v313 = vld [vmem:[%s277 + $0x110] sm:$0xff]
                  %314 = vst [vmem:[%s278 + $0x88] sm:$0xff] %v313
                  %v315 = vld [vmem:[%s277 + $0x120] sm:$0xff]
                  %316 = vst [vmem:[%s278 + $0x90] sm:$0xff] %v315
                  %v317 = vld [vmem:[%s277 + $0x130] sm:$0xff]
                  %318 = vst [vmem:[%s278 + $0x98] sm:$0xff] %v317
                  %v319 = vld [vmem:[%s277 + $0x140] sm:$0xff]
                  %320 = vst [vmem:[%s278 + $0xa0] sm:$0xff] %v319
                  %v321 = vld [vmem:[%s277 + $0x150] sm:$0xff]
                  %322 = vst [vmem:[%s278 + $0xa8] sm:$0xff] %v321
                  %v323 = vld [vmem:[%s277 + $0x160] sm:$0xff]
                  %324 = vst [vmem:[%s278 + $0xb0] sm:$0xff] %v323
                  %v325 = vld [vmem:[%s277 + $0x170] sm:$0xff]
                  %326 = vst [vmem:[%s278 + $0xb8] sm:$0xff] %v325
                  %v327 = vld [vmem:[%s277 + $0x180] sm:$0xff]
                  %328 = vst [vmem:[%s278 + $0xc0] sm:$0xff] %v327
                  %v329 = vld [vmem:[%s277 + $0x190] sm:$0xff]
                  %330 = vst [vmem:[%s278 + $0xc8] sm:$0xff] %v329
                  %v331 = vld [vmem:[%s277 + $0x1a0] sm:$0xff]
                  %332 = vst [vmem:[%s278 + $0xd0] sm:$0xff] %v331
                  %v333 = vld [vmem:[%s277 + $0x1b0] sm:$0xff]
                  %334 = vst [vmem:[%s278 + $0xd8] sm:$0xff] %v333
                  %v335 = vld [vmem:[%s277 + $0x1c0] sm:$0xff]
                  %336 = vst [vmem:[%s278 + $0xe0] sm:$0xff] %v335
                  %v337 = vld [vmem:[%s277 + $0x1d0] sm:$0xff]
                  %338 = vst [vmem:[%s278 + $0xe8] sm:$0xff] %v337
                  %v339 = vld [vmem:[%s277 + $0x1e0] sm:$0xff]
                  %340 = vst [vmem:[%s278 + $0xf0] sm:$0xff] %v339
                  %v341 = vld [vmem:[%s277 + $0x1f0] sm:$0xff]
                  %342 = vst [vmem:[%s278 + $0xf8] sm:$0xff] %v341
                  %v343 = vld [vmem:[%s277 + $0x200] sm:$0xff]
                  %344 = vst [vmem:[%s278 + $0x100] sm:$0xff] %v343
                  %v345 = vld [vmem:[%s277 + $0x210] sm:$0xff]
                  %346 = vst [vmem:[%s278 + $0x108] sm:$0xff] %v345
                  %v347 = vld [vmem:[%s277 + $0x220] sm:$0xff]
                  %348 = vst [vmem:[%s278 + $0x110] sm:$0xff] %v347
                  %v349 = vld [vmem:[%s277 + $0x230] sm:$0xff]
                  %350 = vst [vmem:[%s278 + $0x118] sm:$0xff] %v349
                  %v351 = vld [vmem:[%s277 + $0x240] sm:$0xff]
                  %352 = vst [vmem:[%s278 + $0x120] sm:$0xff] %v351
                  %v353 = vld [vmem:[%s277 + $0x250] sm:$0xff]
                  %354 = vst [vmem:[%s278 + $0x128] sm:$0xff] %v353
                  %v355 = vld [vmem:[%s277 + $0x260] sm:$0xff]
                  %356 = vst [vmem:[%s278 + $0x130] sm:$0xff] %v355
                  %v357 = vld [vmem:[%s277 + $0x270] sm:$0xff]
                  %358 = vst [vmem:[%s278 + $0x138] sm:$0xff] %v357
                $region56: #{cx_forward.4} parent=50 // loop_footer
                  %s276 = sadd.s32 1, %s272
                $region57: #{cx_forward.4} parent=50 // loop_footer_branch
                  %271 = sbr.rel target = $region53
                $region58: #{cx_forward.4} parent=50 // loop_exit
                  _
              $region51: #{cx_forward.4} parent=35 // pred_fallthru
                _
              // Predicated region
              $region59: #{cx_forward.4} parent=35 // pred_check
                _
              $region60: #{cx_forward.4} parent=35 // pred_check_branch
                %360 = sbr.rel target = $region62
              $region61: #{cx_forward.4} parent=35 // pred_region
                _
              $region62: #{cx_forward.4} parent=35 // pred_fallthru
                _
            $region36: #{cx_forward.4} parent=31 // pred_fallthru
              _
            // Predicated region
            $region37: #{cx_forward.4} parent=31 // pred_check
              _
            $region38: #{cx_forward.4} parent=31 // pred_check_branch
              %179 = sbr.rel target = $region40
            $region39: #{cx_forward.4} parent=31 // pred_region
              loop: start=0, step=1, limit=1
              $region41: #{cx_forward.4} parent=39 // loop_pre_header
                _
              $region42: #{cx_forward.4} parent=39 // loop_header
                %s182 = sphi 0, %s186
                %p183 = scmp.ge.s32.totalorder %s182, 1
                %s187 = sphi %s173, %s173
                %s188 = sphi %s170, %s170
              $region43: #{cx_forward.4} parent=39 // loop_header_branch
                %185 = sbr.rel (%p183) target = $region47
              $region44: #{cx_forward.4} parent=39 // loop_body
                %v189 = vld [vmem:[%s187] sm:$0xff]
                %190 = vst [vmem:[%s188] sm:$0xff] %v189
                %v191 = vld [vmem:[%s187 + $0x10] sm:$0xff]
                %192 = vst [vmem:[%s188 + $0x8] sm:$0xff] %v191
                %v193 = vld [vmem:[%s187 + $0x20] sm:$0xff]
                %194 = vst [vmem:[%s188 + $0x10] sm:$0xff] %v193
                %v195 = vld [vmem:[%s187 + $0x30] sm:$0xff]
                %196 = vst [vmem:[%s188 + $0x18] sm:$0xff] %v195
                %v197 = vld [vmem:[%s187 + $0x40] sm:$0xff]
                %198 = vst [vmem:[%s188 + $0x20] sm:$0xff] %v197
                %v199 = vld [vmem:[%s187 + $0x50] sm:$0xff]
                %200 = vst [vmem:[%s188 + $0x28] sm:$0xff] %v199
                %v201 = vld [vmem:[%s187 + $0x60] sm:$0xff]
                %202 = vst [vmem:[%s188 + $0x30] sm:$0xff] %v201
                %v203 = vld [vmem:[%s187 + $0x70] sm:$0xff]
                %204 = vst [vmem:[%s188 + $0x38] sm:$0xff] %v203
                %v205 = vld [vmem:[%s187 + $0x80] sm:$0xff]
                %206 = vst [vmem:[%s188 + $0x40] sm:$0xff] %v205
                %v207 = vld [vmem:[%s187 + $0x90] sm:$0xff]
                %208 = vst [vmem:[%s188 + $0x48] sm:$0xff] %v207
                %v209 = vld [vmem:[%s187 + $0xa0] sm:$0xff]
                %210 = vst [vmem:[%s188 + $0x50] sm:$0xff] %v209
                %v211 = vld [vmem:[%s187 + $0xb0] sm:$0xff]
                %212 = vst [vmem:[%s188 + $0x58] sm:$0xff] %v211
                %v213 = vld [vmem:[%s187 + $0xc0] sm:$0xff]
                %214 = vst [vmem:[%s188 + $0x60] sm:$0xff] %v213
                %v215 = vld [vmem:[%s187 + $0xd0] sm:$0xff]
                %216 = vst [vmem:[%s188 + $0x68] sm:$0xff] %v215
                %v217 = vld [vmem:[%s187 + $0xe0] sm:$0xff]
                %218 = vst [vmem:[%s188 + $0x70] sm:$0xff] %v217
                %v219 = vld [vmem:[%s187 + $0xf0] sm:$0xff]
                %220 = vst [vmem:[%s188 + $0x78] sm:$0xff] %v219
                %v221 = vld [vmem:[%s187 + $0x100] sm:$0xff]
                %222 = vst [vmem:[%s188 + $0x80] sm:$0xff] %v221
                %v223 = vld [vmem:[%s187 + $0x110] sm:$0xff]
                %224 = vst [vmem:[%s188 + $0x88] sm:$0xff] %v223
                %v225 = vld [vmem:[%s187 + $0x120] sm:$0xff]
                %226 = vst [vmem:[%s188 + $0x90] sm:$0xff] %v225
                %v227 = vld [vmem:[%s187 + $0x130] sm:$0xff]
                %228 = vst [vmem:[%s188 + $0x98] sm:$0xff] %v227
                %v229 = vld [vmem:[%s187 + $0x140] sm:$0xff]
                %230 = vst [vmem:[%s188 + $0xa0] sm:$0xff] %v229
                %v231 = vld [vmem:[%s187 + $0x150] sm:$0xff]
                %232 = vst [vmem:[%s188 + $0xa8] sm:$0xff] %v231
                %v233 = vld [vmem:[%s187 + $0x160] sm:$0xff]
                %234 = vst [vmem:[%s188 + $0xb0] sm:$0xff] %v233
                %v235 = vld [vmem:[%s187 + $0x170] sm:$0xff]
                %236 = vst [vmem:[%s188 + $0xb8] sm:$0xff] %v235
                %v237 = vld [vmem:[%s187 + $0x180] sm:$0xff]
                %238 = vst [vmem:[%s188 + $0xc0] sm:$0xff] %v237
                %v239 = vld [vmem:[%s187 + $0x190] sm:$0xff]
                %240 = vst [vmem:[%s188 + $0xc8] sm:$0xff] %v239
                %v241 = vld [vmem:[%s187 + $0x1a0] sm:$0xff]
                %242 = vst [vmem:[%s188 + $0xd0] sm:$0xff] %v241
                %v243 = vld [vmem:[%s187 + $0x1b0] sm:$0xff]
                %244 = vst [vmem:[%s188 + $0xd8] sm:$0xff] %v243
                %v245 = vld [vmem:[%s187 + $0x1c0] sm:$0xff]
                %246 = vst [vmem:[%s188 + $0xe0] sm:$0xff] %v245
                %v247 = vld [vmem:[%s187 + $0x1d0] sm:$0xff]
                %248 = vst [vmem:[%s188 + $0xe8] sm:$0xff] %v247
                %v249 = vld [vmem:[%s187 + $0x1e0] sm:$0xff]
                %250 = vst [vmem:[%s188 + $0xf0] sm:$0xff] %v249
                %v251 = vld [vmem:[%s187 + $0x1f0] sm:$0xff]
                %252 = vst [vmem:[%s188 + $0xf8] sm:$0xff] %v251
                %v253 = vld [vmem:[%s187 + $0x200] sm:$0xff]
                %254 = vst [vmem:[%s188 + $0x100] sm:$0xff] %v253
                %v255 = vld [vmem:[%s187 + $0x210] sm:$0xff]
                %256 = vst [vmem:[%s188 + $0x108] sm:$0xff] %v255
                %v257 = vld [vmem:[%s187 + $0x220] sm:$0xff]
                %258 = vst [vmem:[%s188 + $0x110] sm:$0xff] %v257
                %v259 = vld [vmem:[%s187 + $0x230] sm:$0xff]
                %260 = vst [vmem:[%s188 + $0x118] sm:$0xff] %v259
                %v261 = vld [vmem:[%s187 + $0x240] sm:$0xff]
                %262 = vst [vmem:[%s188 + $0x120] sm:$0xff] %v261
                %v263 = vld [vmem:[%s187 + $0x250] sm:$0xff]
                %264 = vst [vmem:[%s188 + $0x128] sm:$0xff] %v263
                %v265 = vld [vmem:[%s187 + $0x260] sm:$0xff]
                %266 = vst [vmem:[%s188 + $0x130] sm:$0xff] %v265
                %v267 = vld [vmem:[%s187 + $0x270] sm:$0xff]
                %268 = vst [vmem:[%s188 + $0x138] sm:$0xff] %v267
              $region45: #{cx_forward.4} parent=39 // loop_footer
                %s186 = sadd.s32 1, %s182
              $region46: #{cx_forward.4} parent=39 // loop_footer_branch
                %181 = sbr.rel target = $region42
              $region47: #{cx_forward.4} parent=39 // loop_exit
                _
            $region40: #{cx_forward.4} parent=31 // pred_fallthru
              _
          $region32: #{cx_forward.4} parent=27 // pred_fallthru
            _
          %361 = vnop
        $region28: #{cx_forward.4} parent=23 // pred_fallthru
          _
      $region24: #{cx_forward.4} parent=5 // pred_fallthru
        _
      %p362 = scmp.le.s32.totalorder 1, %s9
      %p363 = scmp.lt.s32.totalorder %s9, 3
      %p364 = pnand %p362, %p363
      %p365 = pneg %p364
      // Predicated region
      $region63: #{cx_forward.4} parent=5 // pred_check
        _
      $region64: #{cx_forward.4} parent=5 // pred_check_branch
        %367 = sbr.rel (%p364) target = $region66
      $region65: #{cx_forward.4} parent=5 // pred_region
        %s368 = ssub.s32 %s9, 1
        %s369 = sand.u32 %s86, 1
        %s370 = sand.u32 %s86, 1
        %s371 = smul.addr %s370, 320
        %s372 = scalar_lea.vmem [#allocation2], %s371
        // Predicated region
        $region67: #{cx_forward.4} parent=65 // pred_check
          %p373 = pneg %p99
        $region68: #{cx_forward.4} parent=65 // pred_check_branch
          %375 = sbr.rel (%p373) target = $region70
        $region69: #{cx_forward.4} parent=65 // pred_region
          _
        $region70: #{cx_forward.4} parent=65 // pred_fallthru
          _
        %s376 = smul.u32 4, %s18
        %p377 = scmp.lt.s32.totalorder %s376, 3
        %s378 = scalar_select %p377, %s376, 3
        %s379 = smul.addr %s378, 4
        %s380 = scalar_lea.vmem %s0, %s379
        %p381 = pneg %p47
        %p382 = pneg %p44
        %s383 = smul.u32 4, %s18
        %p384 = scmp.lt.s32.totalorder %s383, 3
        %s385 = scalar_select %p384, %s383, 3
        %s386 = smul.addr %s385, 8
        %s387 = scalar_lea.vmem %s1, %s386
        %p388 = pneg %p73
        %p389 = pneg %p70
        %s390 = sand.u32 %s86, 1
        %s391 = sand.u32 %s86, 1
        %s392 = smul.addr %s391, 320
        %s393 = scalar_lea.vmem [#allocation2], %s392
        %p394 = pneg %p99
        %p395 = pneg %p96
        %p396 = pneg %p127
        %p397 = pneg %p124
        %s398 = sand.u32 %s114, 1
        %s399 = sand.u32 %s114, 1
        %s400 = smul.addr %s399, 32
        %s401 = scalar_lea.vmem [#allocation3], %s400
        %s402 = smul.u32 4, %s18
        %p403 = scmp.lt.s32.totalorder %s402, 3
        %s404 = scalar_select %p403, %s402, 3
        %s405 = smul.addr %s404, 4
        %s406 = scalar_lea.vmem %s0, %s405
        %s407 = smul.u32 4, %s18
        %s408 = smul.u32 4, %s18
        %p409 = scmp.lt.s32.totalorder %s408, 3
        %s410 = scalar_select %p409, %s408, 3
        %s411 = smul.addr %s410, 8
        %s412 = scalar_lea.vmem %s1, %s411
        %s413 = smul.u32 4, %s18
        %s414 = smul.u32 2, %s19
        %s415 = smul.u32 4, %s18
        %s416 = smul.u32 2, %s19
        %v418 = vld [vmem:[%s406] sm:$0xf]
        %v419 = vld [vmem:[%s406 + $0x4] sm:$0xf]
        %v420 = vld [vmem:[%s406 + $0x8] sm:$0xf]
        %v421 = vld [vmem:[%s406 + $0xc] sm:$0xf]
        %v422 = vld [vmem:[%s372] sm:$0xff]
        %v423 = vld [vmem:[%s372 + $0x8] sm:$0xff]
        %v424 = vld [vmem:[%s372 + $0x10] sm:$0xff]
        %v425 = vld [vmem:[%s372 + $0x18] sm:$0xff]
        %v426 = vld [vmem:[%s372 + $0x20] sm:$0xff]
        %v427 = vld [vmem:[%s372 + $0x28] sm:$0xff]
        %v428 = vld [vmem:[%s372 + $0x30] sm:$0xff]
        %v429 = vld [vmem:[%s372 + $0x38] sm:$0xff]
        %v430 = vld [vmem:[%s372 + $0x40] sm:$0xff]
        %v431 = vld [vmem:[%s372 + $0x48] sm:$0xff]
        %v436 = vunpack.c.l.b16 %v418
        %v437 = vunpack.c.l.b16 %v419
        %v438 = vunpack.c.l.b16 %v420
        %v439 = vunpack.c.l.b16 %v421
        %v440 = vpack.c.b16 %v437, %v436
        %v441 = vpack.c.b16 %v439, %v438
        %v452 = vunpack.c.l.b16 %v422
        %v453 = vunpack.c.h.b16 %v422
        %v454 = vunpack.c.l.b16 %v423
        %v455 = vunpack.c.h.b16 %v423
        %v456 = vunpack.c.l.b16 %v424
        %v457 = vunpack.c.h.b16 %v424
        %v458 = vunpack.c.l.b16 %v425
        %v459 = vunpack.c.h.b16 %v425
        %v460 = vunpack.c.l.b16 %v426
        %v461 = vunpack.c.h.b16 %v426
        %v462 = vunpack.c.l.b16 %v427
        %v463 = vunpack.c.h.b16 %v427
        %v464 = vunpack.c.l.b16 %v428
        %v465 = vunpack.c.h.b16 %v428
        %v466 = vunpack.c.l.b16 %v429
        %v467 = vunpack.c.h.b16 %v429
        %v468 = vunpack.c.l.b16 %v430
        %v469 = vunpack.c.h.b16 %v430
        %v470 = vunpack.c.l.b16 %v431
        %v471 = vunpack.c.h.b16 %v431
        %v472 = vpack.c.b16 %v454, %v452
        %v473 = vpack.c.b16 %v455, %v453
        %v474 = vpack.c.b16 %v458, %v456
        %v475 = vpack.c.b16 %v459, %v457
        %v476 = vpack.c.b16 %v462, %v460
        %v477 = vpack.c.b16 %v463, %v461
        %v478 = vpack.c.b16 %v466, %v464
        %v479 = vpack.c.b16 %v467, %v465
        %v480 = vpack.c.b16 %v470, %v468
        %v481 = vpack.c.b16 %v471, %v469
        %vm492 = vcmask 654336
        %v494 = vsel %vm492, %v440, 0
        %v497 = vsel %vm492, %v441, 0
        %499 = vmatprep.subr.bf16.mxu0 %v473
        %500 = vmatpush1.bf16.msra.mxu0 %v472
        %501 = vmatprep.subr.bf16.mxu0 %v475
        %502 = vmatpush1.bf16.msra.mxu0 %v474
        %503 = vmatprep.subr.bf16.mxu0 %v477
        %504 = vmatpush1.bf16.msra.mxu0 %v476
        %505 = vmatprep.subr.bf16.mxu0 %v479
        %506 = vmatpush1.bf16.msra.mxu0 %v478
        %507 = vmatprep.subr.bf16.mxu0 %v481
        %508 = vmatpush1.bf16.msra.mxu0 %v480
        %509 = vmatprep.subr.bf16.mxu0 0
        %510 = vmatpush1.bf16.msra.mxu0 0
        %511 = vmatprep.subr.bf16.mxu0 0
        %512 = vmatpush1.bf16.msra.mxu0 0
        %513 = vmatprep.subr.bf16.mxu0 0
        %514 = vmatpush1.bf16.msra.mxu0 0
        %515 = vmatprep.subr.bf16.mxu0 0
        %516 = vmatpush1.bf16.msra.mxu0 0
        %517 = vmatprep.subr.bf16.mxu0 0
        %518 = vmatpush1.bf16.msra.mxu0 0
        %519 = vmatprep.subr.bf16.mxu0 0
        %520 = vmatpush1.bf16.msra.mxu0 0
        %521 = vmatprep.subr.bf16.mxu0 0
        %522 = vmatpush1.bf16.msra.mxu0 0
        %523 = vmatprep.subr.bf16.mxu0 0
        %524 = vmatpush1.bf16.msra.mxu0 0
        %525 = vmatprep.subr.bf16.mxu0 0
        %526 = vmatpush1.bf16.msra.mxu0 0
        %527 = vmatprep.subr.bf16.mxu0 0
        %528 = vmatpush1.bf16.msra.mxu0 0
        %529 = vmatprep.subr.bf16.mxu0 0
        %530 = vmatpush1.bf16.msra.mxu0 0
        %531 = vmatprep.mubr.bf16.mxu0 0
        %532 = vmatmul.mubr.bf16.gmra.mrb[0].mxu0 %v494
        %v533 = vpop.f32.mrb[0].mxu0
        %v534 = vadd.f32 0.0, %v533
        %v535 = vpop.f32.mrb[0].mxu0
        %v536 = vadd.f32 0.0, %v535
        %v537 = vpop.f32.mrb[0].mxu0
        %v538 = vadd.f32 0.0, %v537
        %v539 = vpop.f32.mrb[0].mxu0
        %v540 = vadd.f32 0.0, %v539
        %541 = vmatprep.mubr.bf16.mxu0 0
        %542 = vmatmul.mubr.bf16.gmra.mrb[0].mxu0 %v497
        %v543 = vpop.f32.mrb[0].mxu0
        %v544 = vadd.f32 0.0, %v543
        %v545 = vpop.f32.mrb[0].mxu0
        %v546 = vadd.f32 0.0, %v545
        %v547 = vpop.f32.mrb[0].mxu0
        %v548 = vadd.f32 0.0, %v547
        %v549 = vpop.f32.mrb[0].mxu0
        %v550 = vadd.f32 0.0, %v549
        %551 = vdwg.mxu0
        %s552 = scalar_lea.vmem %s372, 80 [#allocation2]
        %v553 = vld [vmem:[%s552] sm:$0xff]
        %v554 = vld [vmem:[%s552 + $0x8] sm:$0xff]
        %v555 = vld [vmem:[%s552 + $0x10] sm:$0xff]
        %v556 = vld [vmem:[%s552 + $0x18] sm:$0xff]
        %v557 = vld [vmem:[%s552 + $0x20] sm:$0xff]
        %v558 = vld [vmem:[%s552 + $0x28] sm:$0xff]
        %v559 = vld [vmem:[%s552 + $0x30] sm:$0xff]
        %v560 = vld [vmem:[%s552 + $0x38] sm:$0xff]
        %v561 = vld [vmem:[%s552 + $0x40] sm:$0xff]
        %v562 = vld [vmem:[%s552 + $0x48] sm:$0xff]
        %v573 = vunpack.c.l.b16 %v553
        %v574 = vunpack.c.h.b16 %v553
        %v575 = vunpack.c.l.b16 %v554
        %v576 = vunpack.c.h.b16 %v554
        %v577 = vunpack.c.l.b16 %v555
        %v578 = vunpack.c.h.b16 %v555
        %v579 = vunpack.c.l.b16 %v556
        %v580 = vunpack.c.h.b16 %v556
        %v581 = vunpack.c.l.b16 %v557
        %v582 = vunpack.c.h.b16 %v557
        %v583 = vunpack.c.l.b16 %v558
        %v584 = vunpack.c.h.b16 %v558
        %v585 = vunpack.c.l.b16 %v559
        %v586 = vunpack.c.h.b16 %v559
        %v587 = vunpack.c.l.b16 %v560
        %v588 = vunpack.c.h.b16 %v560
        %v589 = vunpack.c.l.b16 %v561
        %v590 = vunpack.c.h.b16 %v561
        %v591 = vunpack.c.l.b16 %v562
        %v592 = vunpack.c.h.b16 %v562
        %v593 = vpack.c.b16 %v575, %v573
        %v594 = vpack.c.b16 %v576, %v574
        %v595 = vpack.c.b16 %v579, %v577
        %v596 = vpack.c.b16 %v580, %v578
        %v597 = vpack.c.b16 %v583, %v581
        %v598 = vpack.c.b16 %v584, %v582
        %v599 = vpack.c.b16 %v587, %v585
        %v600 = vpack.c.b16 %v588, %v586
        %v601 = vpack.c.b16 %v591, %v589
        %v602 = vpack.c.b16 %v592, %v590
        %613 = vmatprep.subr.bf16.mxu0 %v594
        %614 = vmatpush1.bf16.msra.mxu0 %v593
        %615 = vmatprep.subr.bf16.mxu0 %v596
        %616 = vmatpush1.bf16.msra.mxu0 %v595
        %617 = vmatprep.subr.bf16.mxu0 %v598
        %618 = vmatpush1.bf16.msra.mxu0 %v597
        %619 = vmatprep.subr.bf16.mxu0 %v600
        %620 = vmatpush1.bf16.msra.mxu0 %v599
        %621 = vmatprep.subr.bf16.mxu0 %v602
        %622 = vmatpush1.bf16.msra.mxu0 %v601
        %623 = vmatprep.subr.bf16.mxu0 0
        %624 = vmatpush1.bf16.msra.mxu0 0
        %625 = vmatprep.subr.bf16.mxu0 0
        %626 = vmatpush1.bf16.msra.mxu0 0
        %627 = vmatprep.subr.bf16.mxu0 0
        %628 = vmatpush1.bf16.msra.mxu0 0
        %629 = vmatprep.subr.bf16.mxu0 0
        %630 = vmatpush1.bf16.msra.mxu0 0
        %631 = vmatprep.subr.bf16.mxu0 0
        %632 = vmatpush1.bf16.msra.mxu0 0
        %633 = vmatprep.subr.bf16.mxu0 0
        %634 = vmatpush1.bf16.msra.mxu0 0
        %635 = vmatprep.subr.bf16.mxu0 0
        %636 = vmatpush1.bf16.msra.mxu0 0
        %637 = vmatprep.subr.bf16.mxu0 0
        %638 = vmatpush1.bf16.msra.mxu0 0
        %639 = vmatprep.subr.bf16.mxu0 0
        %640 = vmatpush1.bf16.msra.mxu0 0
        %641 = vmatprep.subr.bf16.mxu0 0
        %642 = vmatpush1.bf16.msra.mxu0 0
        %643 = vmatprep.subr.bf16.mxu0 0
        %644 = vmatpush1.bf16.msra.mxu0 0
        %645 = vmatprep.mubr.bf16.mxu0 0
        %646 = vmatmul.mubr.bf16.gmra.mrb[0].mxu0 %v494
        %v647 = vpop.f32.mrb[0].mxu0
        %v648 = vadd.f32 0.0, %v647
        %v649 = vpop.f32.mrb[0].mxu0
        %v650 = vadd.f32 0.0, %v649
        %v651 = vpop.f32.mrb[0].mxu0
        %v652 = vadd.f32 0.0, %v651
        %v653 = vpop.f32.mrb[0].mxu0
        %v654 = vadd.f32 0.0, %v653
        %655 = vmatprep.mubr.bf16.mxu0 0
        %656 = vmatmul.mubr.bf16.gmra.mrb[0].mxu0 %v497
        %v657 = vpop.f32.mrb[0].mxu0
        %v658 = vadd.f32 0.0, %v657
        %v659 = vpop.f32.mrb[0].mxu0
        %v660 = vadd.f32 0.0, %v659
        %v661 = vpop.f32.mrb[0].mxu0
        %v662 = vadd.f32 0.0, %v661
        %v663 = vpop.f32.mrb[0].mxu0
        %v664 = vadd.f32 0.0, %v663
        %665 = vdwg.mxu0
        %s666 = scalar_lea.vmem %s372, 160 [#allocation2]
        %v667 = vld [vmem:[%s666] sm:$0xff]
        %v668 = vld [vmem:[%s666 + $0x8] sm:$0xff]
        %v669 = vld [vmem:[%s666 + $0x10] sm:$0xff]
        %v670 = vld [vmem:[%s666 + $0x18] sm:$0xff]
        %v671 = vld [vmem:[%s666 + $0x20] sm:$0xff]
        %v672 = vld [vmem:[%s666 + $0x28] sm:$0xff]
        %v673 = vld [vmem:[%s666 + $0x30] sm:$0xff]
        %v674 = vld [vmem:[%s666 + $0x38] sm:$0xff]
        %v675 = vld [vmem:[%s666 + $0x40] sm:$0xff]
        %v676 = vld [vmem:[%s666 + $0x48] sm:$0xff]
        %v687 = vunpack.c.l.b16 %v667
        %v688 = vunpack.c.h.b16 %v667
        %v689 = vunpack.c.l.b16 %v668
        %v690 = vunpack.c.h.b16 %v668
        %v691 = vunpack.c.l.b16 %v669
        %v692 = vunpack.c.h.b16 %v669
        %v693 = vunpack.c.l.b16 %v670
        %v694 = vunpack.c.h.b16 %v670
        %v695 = vunpack.c.l.b16 %v671
        %v696 = vunpack.c.h.b16 %v671
        %v697 = vunpack.c.l.b16 %v672
        %v698 = vunpack.c.h.b16 %v672
        %v699 = vunpack.c.l.b16 %v673
        %v700 = vunpack.c.h.b16 %v673
        %v701 = vunpack.c.l.b16 %v674
        %v702 = vunpack.c.h.b16 %v674
        %v703 = vunpack.c.l.b16 %v675
        %v704 = vunpack.c.h.b16 %v675
        %v705 = vunpack.c.l.b16 %v676
        %v706 = vunpack.c.h.b16 %v676
        %v707 = vpack.c.b16 %v689, %v687
        %v708 = vpack.c.b16 %v690, %v688
        %v709 = vpack.c.b16 %v693, %v691
        %v710 = vpack.c.b16 %v694, %v692
        %v711 = vpack.c.b16 %v697, %v695
        %v712 = vpack.c.b16 %v698, %v696
        %v713 = vpack.c.b16 %v701, %v699
        %v714 = vpack.c.b16 %v702, %v700
        %v715 = vpack.c.b16 %v705, %v703
        %v716 = vpack.c.b16 %v706, %v704
        %727 = vmatprep.subr.bf16.mxu0 %v708
        %728 = vmatpush1.bf16.msra.mxu0 %v707
        %729 = vmatprep.subr.bf16.mxu0 %v710
        %730 = vmatpush1.bf16.msra.mxu0 %v709
        %731 = vmatprep.subr.bf16.mxu0 %v712
        %732 = vmatpush1.bf16.msra.mxu0 %v711
        %733 = vmatprep.subr.bf16.mxu0 %v714
        %734 = vmatpush1.bf16.msra.mxu0 %v713
        %735 = vmatprep.subr.bf16.mxu0 %v716
        %736 = vmatpush1.bf16.msra.mxu0 %v715
        %737 = vmatprep.subr.bf16.mxu0 0
        %738 = vmatpush1.bf16.msra.mxu0 0
        %739 = vmatprep.subr.bf16.mxu0 0
        %740 = vmatpush1.bf16.msra.mxu0 0
        %741 = vmatprep.subr.bf16.mxu0 0
        %742 = vmatpush1.bf16.msra.mxu0 0
        %743 = vmatprep.subr.bf16.mxu0 0
        %744 = vmatpush1.bf16.msra.mxu0 0
        %745 = vmatprep.subr.bf16.mxu0 0
        %746 = vmatpush1.bf16.msra.mxu0 0
        %747 = vmatprep.subr.bf16.mxu0 0
        %748 = vmatpush1.bf16.msra.mxu0 0
        %749 = vmatprep.subr.bf16.mxu0 0
        %750 = vmatpush1.bf16.msra.mxu0 0
        %751 = vmatprep.subr.bf16.mxu0 0
        %752 = vmatpush1.bf16.msra.mxu0 0
        %753 = vmatprep.subr.bf16.mxu0 0
        %754 = vmatpush1.bf16.msra.mxu0 0
        %755 = vmatprep.subr.bf16.mxu0 0
        %756 = vmatpush1.bf16.msra.mxu0 0
        %757 = vmatprep.subr.bf16.mxu0 0
        %758 = vmatpush1.bf16.msra.mxu0 0
        %759 = vmatprep.mubr.bf16.mxu0 0
        %760 = vmatmul.mubr.bf16.gmra.mrb[0].mxu0 %v494
        %v761 = vpop.f32.mrb[0].mxu0
        %v762 = vadd.f32 0.0, %v761
        %v763 = vpop.f32.mrb[0].mxu0
        %v764 = vadd.f32 0.0, %v763
        %v765 = vpop.f32.mrb[0].mxu0
        %v766 = vadd.f32 0.0, %v765
        %v767 = vpop.f32.mrb[0].mxu0
        %v768 = vadd.f32 0.0, %v767
        %769 = vmatprep.mubr.bf16.mxu0 0
        %770 = vmatmul.mubr.bf16.gmra.mrb[0].mxu0 %v497
        %v771 = vpop.f32.mrb[0].mxu0
        %v772 = vadd.f32 0.0, %v771
        %v773 = vpop.f32.mrb[0].mxu0
        %v774 = vadd.f32 0.0, %v773
        %v775 = vpop.f32.mrb[0].mxu0
        %v776 = vadd.f32 0.0, %v775
        %v777 = vpop.f32.mrb[0].mxu0
        %v778 = vadd.f32 0.0, %v777
        %779 = vdwg.mxu0
        %s780 = scalar_lea.vmem %s372, 240 [#allocation2]
        %v781 = vld [vmem:[%s780] sm:$0xff]
        %v782 = vld [vmem:[%s780 + $0x8] sm:$0xff]
        %v783 = vld [vmem:[%s780 + $0x10] sm:$0xff]
        %v784 = vld [vmem:[%s780 + $0x18] sm:$0xff]
        %v785 = vld [vmem:[%s780 + $0x20] sm:$0xff]
        %v786 = vld [vmem:[%s780 + $0x28] sm:$0xff]
        %v787 = vld [vmem:[%s780 + $0x30] sm:$0xff]
        %v788 = vld [vmem:[%s780 + $0x38] sm:$0xff]
        %v789 = vld [vmem:[%s780 + $0x40] sm:$0xff]
        %v790 = vld [vmem:[%s780 + $0x48] sm:$0xff]
        %v801 = vunpack.c.l.b16 %v781
        %v802 = vunpack.c.h.b16 %v781
        %v803 = vunpack.c.l.b16 %v782
        %v804 = vunpack.c.h.b16 %v782
        %v805 = vunpack.c.l.b16 %v783
        %v806 = vunpack.c.h.b16 %v783
        %v807 = vunpack.c.l.b16 %v784
        %v808 = vunpack.c.h.b16 %v784
        %v809 = vunpack.c.l.b16 %v785
        %v810 = vunpack.c.h.b16 %v785
        %v811 = vunpack.c.l.b16 %v786
        %v812 = vunpack.c.h.b16 %v786
        %v813 = vunpack.c.l.b16 %v787
        %v814 = vunpack.c.h.b16 %v787
        %v815 = vunpack.c.l.b16 %v788
        %v816 = vunpack.c.h.b16 %v788
        %v817 = vunpack.c.l.b16 %v789
        %v818 = vunpack.c.h.b16 %v789
        %v819 = vunpack.c.l.b16 %v790
        %v820 = vunpack.c.h.b16 %v790
        %v821 = vpack.c.b16 %v803, %v801
        %v822 = vpack.c.b16 %v804, %v802
        %v823 = vpack.c.b16 %v807, %v805
        %v824 = vpack.c.b16 %v808, %v806
        %v825 = vpack.c.b16 %v811, %v809
        %v826 = vpack.c.b16 %v812, %v810
        %v827 = vpack.c.b16 %v815, %v813
        %v828 = vpack.c.b16 %v816, %v814
        %v829 = vpack.c.b16 %v819, %v817
        %v830 = vpack.c.b16 %v820, %v818
        %841 = vmatprep.subr.bf16.mxu0 %v822
        %842 = vmatpush1.bf16.msra.mxu0 %v821
        %843 = vmatprep.subr.bf16.mxu0 %v824
        %844 = vmatpush1.bf16.msra.mxu0 %v823
        %845 = vmatprep.subr.bf16.mxu0 %v826
        %846 = vmatpush1.bf16.msra.mxu0 %v825
        %847 = vmatprep.subr.bf16.mxu0 %v828
        %848 = vmatpush1.bf16.msra.mxu0 %v827
        %849 = vmatprep.subr.bf16.mxu0 %v830
        %850 = vmatpush1.bf16.msra.mxu0 %v829
        %851 = vmatprep.subr.bf16.mxu0 0
        %852 = vmatpush1.bf16.msra.mxu0 0
        %853 = vmatprep.subr.bf16.mxu0 0
        %854 = vmatpush1.bf16.msra.mxu0 0
        %855 = vmatprep.subr.bf16.mxu0 0
        %856 = vmatpush1.bf16.msra.mxu0 0
        %857 = vmatprep.subr.bf16.mxu0 0
        %858 = vmatpush1.bf16.msra.mxu0 0
        %859 = vmatprep.subr.bf16.mxu0 0
        %860 = vmatpush1.bf16.msra.mxu0 0
        %861 = vmatprep.subr.bf16.mxu0 0
        %862 = vmatpush1.bf16.msra.mxu0 0
        %863 = vmatprep.subr.bf16.mxu0 0
        %864 = vmatpush1.bf16.msra.mxu0 0
        %865 = vmatprep.subr.bf16.mxu0 0
        %866 = vmatpush1.bf16.msra.mxu0 0
        %867 = vmatprep.subr.bf16.mxu0 0
        %868 = vmatpush1.bf16.msra.mxu0 0
        %869 = vmatprep.subr.bf16.mxu0 0
        %870 = vmatpush1.bf16.msra.mxu0 0
        %871 = vmatprep.subr.bf16.mxu0 0
        %872 = vmatpush1.bf16.msra.mxu0 0
        %873 = vmatprep.mubr.bf16.mxu0 0
        %874 = vmatmul.mubr.bf16.gmra.mrb[0].mxu0 %v494
        %v875 = vpop.f32.mrb[0].mxu0
        %v876 = vadd.f32 0.0, %v875
        %v877 = vpop.f32.mrb[0].mxu0
        %v878 = vadd.f32 0.0, %v877
        %v879 = vpop.f32.mrb[0].mxu0
        %v880 = vadd.f32 0.0, %v879
        %v881 = vpop.f32.mrb[0].mxu0
        %v882 = vadd.f32 0.0, %v881
        %883 = vmatprep.mubr.bf16.mxu0 0
        %884 = vmatmul.mubr.bf16.gmra.mrb[0].mxu0 %v497
        %v885 = vpop.f32.mrb[0].mxu0
        %v886 = vadd.f32 0.0, %v885
        %v887 = vpop.f32.mrb[0].mxu0
        %v888 = vadd.f32 0.0, %v887
        %v889 = vpop.f32.mrb[0].mxu0
        %v890 = vadd.f32 0.0, %v889
        %v891 = vpop.f32.mrb[0].mxu0
        %v892 = vadd.f32 0.0, %v891
        %893 = vdwg.mxu0
        %v894 = vmax.f32 %v534, %v648
        %v895 = vmax.f32 %v536, %v650
        %v896 = vmax.f32 %v538, %v652
        %v897 = vmax.f32 %v540, %v654
        %v898 = vmax.f32 %v544, %v658
        %v899 = vmax.f32 %v546, %v660
        %v900 = vmax.f32 %v548, %v662
        %v901 = vmax.f32 %v550, %v664
        %v902 = vmax.f32 %v762, %v876
        %v903 = vmax.f32 %v764, %v878
        %v904 = vmax.f32 %v766, %v880
        %v905 = vmax.f32 %v768, %v882
        %v906 = vmax.f32 %v772, %v886
        %v907 = vmax.f32 %v774, %v888
        %v908 = vmax.f32 %v776, %v890
        %v909 = vmax.f32 %v778, %v892
        %v910 = vmax.f32 %v894, %v902
        %v911 = vmax.f32 %v895, %v903
        %v912 = vmax.f32 %v896, %v904
        %v913 = vmax.f32 %v897, %v905
        %v914 = vmax.f32 %v898, %v906
        %v915 = vmax.f32 %v899, %v907
        %v916 = vmax.f32 %v900, %v908
        %v917 = vmax.f32 %v901, %v909
        %v918 = vld [vmem:[%s412] sm:$0xff]
        %v919 = vld [vmem:[%s412 + $0x8] sm:$0xff]
        %v920 = vld [vmem:[%s412 + $0x10] sm:$0xff]
        %v921 = vld [vmem:[%s412 + $0x18] sm:$0xff]
        %923 = vset.pattern.permute.xlu0 0
        %924 = vperm.xlu0 %923, %v918
        %v925 = vpop.permute.xlu0 %924
        %928 = vset.pattern.permute.xlu0 0
        %929 = vperm.xlu0 %928, %v919
        %v930 = vpop.permute.xlu0 %929
        %933 = vset.pattern.permute.xlu0 0
        %934 = vperm.xlu0 %933, %v920
        %v935 = vpop.permute.xlu0 %934
        %938 = vset.pattern.permute.xlu0 0
        %939 = vperm.xlu0 %938, %v921
        %v940 = vpop.permute.xlu0 %939
        %v942 = vadd.f32 %v910, %v925
        %v943 = vadd.f32 %v911, %v925
        %v944 = vadd.f32 %v912, %v930
        %v945 = vadd.f32 %v913, %v930
        %v946 = vadd.f32 %v914, %v935
        %v947 = vadd.f32 %v915, %v935
        %v948 = vadd.f32 %v916, %v940
        %v949 = vadd.f32 %v917, %v940
        %v950 = vpack.c.bf16 %v944, %v942
        %v951 = vpack.c.bf16 %v945, %v943
        %v952 = vpack.c.bf16 %v948, %v946
        %v953 = vpack.c.bf16 %v949, %v947
        %v958 = vunpack.c.l.b16 %v950
        %v959 = vunpack.c.l.b16 %v951
        %v960 = vunpack.c.h.b16 %v950
        %v961 = vunpack.c.h.b16 %v951
        %v962 = vunpack.c.l.b16 %v952
        %v963 = vunpack.c.l.b16 %v953
        %v964 = vunpack.c.h.b16 %v952
        %v965 = vunpack.c.h.b16 %v953
        %v966 = vpack.c.b16 %v959, %v958
        %v967 = vpack.c.b16 %v961, %v960
        %v968 = vpack.c.b16 %v963, %v962
        %v969 = vpack.c.b16 %v965, %v964
        %974 = vst [vmem:[%s401] sm:$0xff] %v966
        %975 = vst [vmem:[%s401 + $0x8] sm:$0xff] %v967
        %976 = vst [vmem:[%s401 + $0x10] sm:$0xff] %v968
        %977 = vst [vmem:[%s401 + $0x18] sm:$0xff] %v969
        %s978 = sand.u32 %s114, 1
        %s979 = sand.u32 %s114, 1
        %s980 = smul.addr %s979, 32
        %s981 = scalar_lea.vmem [#allocation3], %s980
        // Predicated region
        $region71: #{cx_forward.4} parent=65 // pred_check
          %p982 = pneg %p124
        $region72: #{cx_forward.4} parent=65 // pred_check_branch
          %984 = sbr.rel (%p982) target = $region74
        $region73: #{cx_forward.4} parent=65 // pred_region
          %s985 = smul.u32 4, %s18
          %s986 = smul.u32 2, %s19
          %s987 = smul.addr %s985, 4
          %s988 = sadd.s32 %s986, %s987
          %s989 = smul.addr %s988, 4
          %s990 = scalar_lea.vmem %s3, %s989
          // Predicated region
          $region75: #{cx_forward.4} parent=73 // pred_check
            _
          $region76: #{cx_forward.4} parent=73 // pred_check_branch
            %992 = sbr.rel (0) target = $region78
          $region77: #{cx_forward.4} parent=73 // pred_region
            // Predicated region
            $region79: #{cx_forward.4} parent=77 // pred_check
              _
            $region80: #{cx_forward.4} parent=77 // pred_check_branch
              %994 = sbr.rel (0) target = $region82
            $region81: #{cx_forward.4} parent=77 // pred_region
              // Predicated region
              $region94: #{cx_forward.4} parent=81 // pred_check
                _
              $region95: #{cx_forward.4} parent=81 // pred_check_branch
                %1015 = sbr.rel (0) target = $region97
              $region96: #{cx_forward.4} parent=81 // pred_region
                loop: start=0, step=1, limit=1
                $region98: #{cx_forward.4} parent=96 // loop_pre_header
                  _
                $region99: #{cx_forward.4} parent=96 // loop_header
                  %s1017 = sphi 0, %s1021
                  %p1018 = scmp.ge.s32.totalorder %s1017, 1
                  %s1022 = sphi %s981, %s981
                  %s1023 = sphi %s990, %s990
                $region100: #{cx_forward.4} parent=96 // loop_header_branch
                  %1020 = sbr.rel (%p1018) target = $region104
                $region101: #{cx_forward.4} parent=96 // loop_body
                  %v1024 = vld [vmem:[%s1022] sm:$0xff]
                  %1025 = vst [vmem:[%s1023] sm:$0xff] %v1024
                  %v1026 = vld [vmem:[%s1022 + $0x8] sm:$0xff]
                  %1027 = vst [vmem:[%s1023 + $0x10] sm:$0xff] %v1026
                  %v1028 = vld [vmem:[%s1022 + $0x10] sm:$0xff]
                  %1029 = vst [vmem:[%s1023 + $0x20] sm:$0xff] %v1028
                  %v1030 = vld [vmem:[%s1022 + $0x18] sm:$0xff]
                  %1031 = vst [vmem:[%s1023 + $0x30] sm:$0xff] %v1030
                $region102: #{cx_forward.4} parent=96 // loop_footer
                  %s1021 = sadd.s32 1, %s1017
                $region103: #{cx_forward.4} parent=96 // loop_footer_branch
                  %1016 = sbr.rel target = $region99
                $region104: #{cx_forward.4} parent=96 // loop_exit
                  _
              $region97: #{cx_forward.4} parent=81 // pred_fallthru
                _
              // Predicated region
              $region105: #{cx_forward.4} parent=81 // pred_check
                _
              $region106: #{cx_forward.4} parent=81 // pred_check_branch
                %1033 = sbr.rel target = $region108
              $region107: #{cx_forward.4} parent=81 // pred_region
                _
              $region108: #{cx_forward.4} parent=81 // pred_fallthru
                _
            $region82: #{cx_forward.4} parent=77 // pred_fallthru
              _
            // Predicated region
            $region83: #{cx_forward.4} parent=77 // pred_check
              _
            $region84: #{cx_forward.4} parent=77 // pred_check_branch
              %996 = sbr.rel target = $region86
            $region85: #{cx_forward.4} parent=77 // pred_region
              loop: start=0, step=1, limit=1
              $region87: #{cx_forward.4} parent=85 // loop_pre_header
                _
              $region88: #{cx_forward.4} parent=85 // loop_header
                %s999 = sphi 0, %s1003
                %p1000 = scmp.ge.s32.totalorder %s999, 1
                %s1004 = sphi %s981, %s981
                %s1005 = sphi %s990, %s990
              $region89: #{cx_forward.4} parent=85 // loop_header_branch
                %1002 = sbr.rel (%p1000) target = $region93
              $region90: #{cx_forward.4} parent=85 // loop_body
                %v1006 = vld [vmem:[%s1004] sm:$0xff]
                %1007 = vst [vmem:[%s1005] sm:$0xff] %v1006
                %v1008 = vld [vmem:[%s1004 + $0x8] sm:$0xff]
                %1009 = vst [vmem:[%s1005 + $0x10] sm:$0xff] %v1008
                %v1010 = vld [vmem:[%s1004 + $0x10] sm:$0xff]
                %1011 = vst [vmem:[%s1005 + $0x20] sm:$0xff] %v1010
                %v1012 = vld [vmem:[%s1004 + $0x18] sm:$0xff]
                %1013 = vst [vmem:[%s1005 + $0x30] sm:$0xff] %v1012
              $region91: #{cx_forward.4} parent=85 // loop_footer
                %s1003 = sadd.s32 1, %s999
              $region92: #{cx_forward.4} parent=85 // loop_footer_branch
                %998 = sbr.rel target = $region88
              $region93: #{cx_forward.4} parent=85 // loop_exit
                _
            $region86: #{cx_forward.4} parent=77 // pred_fallthru
              _
          $region78: #{cx_forward.4} parent=73 // pred_fallthru
            _
          %1034 = vnop
        $region74: #{cx_forward.4} parent=65 // pred_fallthru
          _
      $region66: #{cx_forward.4} parent=5 // pred_fallthru
        _
      %p1035 = scmp.le.s32.totalorder 2, %s9
      // Predicated region
      $region109: #{cx_forward.4} parent=5 // pred_check
        %p1036 = pneg %p1035
      $region110: #{cx_forward.4} parent=5 // pred_check_branch
        %1038 = sbr.rel (%p1036) target = $region112
      $region111: #{cx_forward.4} parent=5 // pred_region
        %s1039 = ssub.s32 %s9, 2
        // Predicated region
        $region113: #{cx_forward.4} parent=111 // pred_check
          %p1040 = pneg %p130
        $region114: #{cx_forward.4} parent=111 // pred_check_branch
          %1042 = sbr.rel (%p1040) target = $region116
        $region115: #{cx_forward.4} parent=111 // pred_region
          %s1043 = sand.u32 %s115, 1
          %s1044 = sand.u32 %s115, 1
          %s1045 = smul.addr %s1044, 32
          %s1046 = scalar_lea.vmem [#allocation3], %s1045
        $region116: #{cx_forward.4} parent=111 // pred_fallthru
          _
      $region112: #{cx_forward.4} parent=5 // pred_fallthru
        _
    $region6: #{cx_forward.4} parent=1 // loop_footer
      %s13 = sadd.s32 1, %s9
    $region7: #{cx_forward.4} parent=1 // loop_footer_branch
      %8 = sbr.rel target = $region3
    $region8: #{cx_forward.4} parent=1 // loop_exit
      _

// kernel: cx_forward.5
$region0: #{cx_forward.5}
  #allocation0 [shape = 'u32[]', space=smem, size = 0x4, offset = 0x4, fixed_abs, tag = 'smem constant byte address 0x4 - core index']
  #allocation1 [shape = 'u32[144,128]{1,0:T(1,128)}', space=vmem, size = 0x12000, scoped, tag = 'internal scratch']
  %s0 = inlined_call_operand.vmem [shape: bf16[32,800], index: 0, kind: input, shape index: {}]
  %s1 = inlined_call_operand.vmem [shape: f32[32,1], index: 1, kind: input, shape index: {}]
  %s2 = inlined_call_operand.vmem [shape: bf16[4,800,128], index: 2, kind: input, shape index: {}]
  %s3 = inlined_call_operand.vmem [shape: bf16[32,128], index: 3, kind: output, shape index: {}]
  %s4 = sld [smem:[#allocation0]]
  $region45: #{cx_forward.5} parent=0
    _
  %s6 = ssub.s32 1, %s4
  %s7 = scalar_select 0, %s6, %s4
  loop: start=0, step=1, limit=4
  $region2: #{cx_forward.5} parent=0 // loop_pre_header
    _
  $region3: #{cx_forward.5} parent=0 // loop_header
    %s9 = sphi 0, %s13
    %p10 = scmp.ge.s32.totalorder %s9, 4
    %s16 = sphi 0, %s28
    %s17 = sphi 0, %s24
    %s18 = sphi 0, %s16
    %s19 = sphi 0, %s17
    %s20 = sphi 0, %s18
    %s21 = sphi 0, %s19
    %s31 = sphi 0, %s33
    %s34 = sphi 0, %s31
    %s35 = sphi 0, %s34
    %s51 = sphi 0, %s35
    %s57 = sphi 0, %s59
    %s60 = sphi 0, %s57
    %s61 = sphi 0, %s60
    %s77 = sphi 0, %s61
    %s83 = sphi 0, %s85
    %s86 = sphi 0, %s83
    %s87 = sphi 0, %s86
    %s103 = sphi 0, %s87
    %s111 = sphi 0, %s113
    %s114 = sphi 0, %s111
    %s115 = sphi 0, %s114
    %s131 = sphi 0, %s115
  $region4: #{cx_forward.5} parent=0 // loop_header_branch
    %12 = sbr.rel (%p10) target = $region8
  $region5: #{cx_forward.5} parent=0 // loop_body
    %s14 = ssub.s32 %s9, 1
    %s15 = ssub.s32 %s9, 2
    %s22 = sadd.s32 1, %s17
    %p23 = scmp.ge.s32.totalorder %s22, 1
    %s24 = scalar_select %p23, 0, %s22
    %s25 = sadd.s32 1, %s16
    %s26 = scalar_select %p23, %s25, %s16
    %p27 = scmp.ge.s32.totalorder %s26, 2
    %s28 = scalar_select %p27, 0, %s26
    %s29 = ssub.s32 %s16, %s28
    %p30 = scmp.eq.s32.totalorder %s29, 0
    %s32 = sadd.s32 %s31, 1
    %s33 = scalar_select %p30, %s31, %s32
    %p36 = pneg %p30
    %p37 = scmp.eq.s32.totalorder %s9, 1
    %p38 = por %p36, %p37
    %p39 = scmp.ne.s32.totalorder %s31, %s34
    %p40 = scmp.eq.s32.totalorder %s9, 0
    %p41 = por %p39, %p40
    %p42 = scmp.ne.s32.totalorder %s31, %s34
    %p43 = scmp.eq.s32.totalorder %s14, 1
    %p44 = por %p42, %p43
    %p45 = scmp.ne.s32.totalorder %s34, %s35
    %p46 = scmp.eq.s32.totalorder %s14, 0
    %p47 = por %p45, %p46
    %p48 = scmp.ne.s32.totalorder %s34, %s35
    %p49 = scmp.eq.s32.totalorder %s15, 1
    %p50 = por %p48, %p49
    %p52 = scmp.ne.s32.totalorder %s35, %s51
    %p53 = scmp.eq.s32.totalorder %s15, 0
    %p54 = por %p52, %p53
    %s55 = ssub.s32 %s16, %s28
    %p56 = scmp.eq.s32.totalorder %s55, 0
    %s58 = sadd.s32 %s57, 1
    %s59 = scalar_select %p56, %s57, %s58
    %p62 = pneg %p56
    %p63 = scmp.eq.s32.totalorder %s9, 1
    %p64 = por %p62, %p63
    %p65 = scmp.ne.s32.totalorder %s57, %s60
    %p66 = scmp.eq.s32.totalorder %s9, 0
    %p67 = por %p65, %p66
    %p68 = scmp.ne.s32.totalorder %s57, %s60
    %p69 = scmp.eq.s32.totalorder %s14, 1
    %p70 = por %p68, %p69
    %p71 = scmp.ne.s32.totalorder %s60, %s61
    %p72 = scmp.eq.s32.totalorder %s14, 0
    %p73 = por %p71, %p72
    %p74 = scmp.ne.s32.totalorder %s60, %s61
    %p75 = scmp.eq.s32.totalorder %s15, 1
    %p76 = por %p74, %p75
    %p78 = scmp.ne.s32.totalorder %s61, %s77
    %p79 = scmp.eq.s32.totalorder %s15, 0
    %p80 = por %p78, %p79
    %s81 = ssub.s32 %s17, %s24
    %p82 = scmp.eq.s32.totalorder %s81, 0
    %s84 = sadd.s32 %s83, 1
    %s85 = scalar_select %p82, %s83, %s84
    %p88 = pneg %p82
    %p89 = scmp.eq.s32.totalorder %s9, 1
    %p90 = por %p88, %p89
    %p91 = scmp.ne.s32.totalorder %s83, %s86
    %p92 = scmp.eq.s32.totalorder %s9, 0
    %p93 = por %p91, %p92
    %p94 = scmp.ne.s32.totalorder %s83, %s86
    %p95 = scmp.eq.s32.totalorder %s14, 1
    %p96 = por %p94, %p95
    %p97 = scmp.ne.s32.totalorder %s86, %s87
    %p98 = scmp.eq.s32.totalorder %s14, 0
    %p99 = por %p97, %p98
    %p100 = scmp.ne.s32.totalorder %s86, %s87
    %p101 = scmp.eq.s32.totalorder %s15, 1
    %p102 = por %p100, %p101
    %p104 = scmp.ne.s32.totalorder %s87, %s103
    %p105 = scmp.eq.s32.totalorder %s15, 0
    %p106 = por %p104, %p105
    %s107 = ssub.s32 %s16, %s28
    %s108 = ssub.s32 %s17, %s24
    %s109 = sor.u32 %s107, %s108
    %p110 = scmp.eq.s32.totalorder %s109, 0
    %s112 = sadd.s32 %s111, 1
    %s113 = scalar_select %p110, %s111, %s112
    %p116 = pneg %p110
    %p117 = scmp.eq.s32.totalorder %s9, 1
    %p118 = por %p116, %p117
    %p119 = scmp.ne.s32.totalorder %s111, %s114
    %p120 = scmp.eq.s32.totalorder %s9, 0
    %p121 = por %p119, %p120
    %p122 = scmp.ne.s32.totalorder %s111, %s114
    %p123 = scmp.eq.s32.totalorder %s14, 1
    %p124 = por %p122, %p123
    %p125 = scmp.ne.s32.totalorder %s114, %s115
    %p126 = scmp.eq.s32.totalorder %s14, 0
    %p127 = por %p125, %p126
    %p128 = scmp.ne.s32.totalorder %s114, %s115
    %p129 = scmp.eq.s32.totalorder %s15, 1
    %p130 = por %p128, %p129
    %p132 = scmp.ne.s32.totalorder %s115, %s131
    %p133 = scmp.eq.s32.totalorder %s15, 0
    %p134 = por %p132, %p133
    %p135 = scmp.le.s32.totalorder 1, %s9
    %p136 = scmp.lt.s32.totalorder %s9, 3
    %p137 = pnand %p135, %p136
    %p138 = pneg %p137
    // Predicated region
    $region9: #{cx_forward.5} parent=5 // pred_check
      _
    $region10: #{cx_forward.5} parent=5 // pred_check_branch
      %140 = sbr.rel (%p137) target = $region12
    $region11: #{cx_forward.5} parent=5 // pred_region
      %s141 = ssub.s32 %s9, 1
      // Predicated region
      $region13: #{cx_forward.5} parent=11 // pred_check
        %p142 = pneg %p99
      $region14: #{cx_forward.5} parent=11 // pred_check_branch
        %144 = sbr.rel (%p142) target = $region16
      $region15: #{cx_forward.5} parent=11 // pred_region
        %p145 = scmp.lt.s32.totalorder %s19, 0
        %s146 = scalar_select %p145, %s19, 0
        %s147 = smul.addr %s146, 4
        %s148 = scalar_lea.vmem %s2, %s147
      $region16: #{cx_forward.5} parent=11 // pred_fallthru
        _
    $region12: #{cx_forward.5} parent=5 // pred_fallthru
      _
    %p149 = scmp.lt.s32.totalorder %s9, 2
    // Predicated region
    $region17: #{cx_forward.5} parent=5 // pred_check
      %p150 = pneg %p149
    $region18: #{cx_forward.5} parent=5 // pred_check_branch
      %152 = sbr.rel (%p150) target = $region20
    $region19: #{cx_forward.5} parent=5 // pred_region
      // Predicated region
      $region21: #{cx_forward.5} parent=19 // pred_check
        %p153 = pneg %p41
      $region22: #{cx_forward.5} parent=19 // pred_check_branch
        %155 = sbr.rel (%p153) target = $region24
      $region23: #{cx_forward.5} parent=19 // pred_region
        %s156 = smul.u32 2, %s16
        %p157 = scmp.lt.s32.totalorder %s156, 3
        %s158 = scalar_select %p157, %s156, 3
        %s159 = smul.addr %s158, 7
        %s160 = smul.addr %s159, 4
        %s161 = scalar_lea.vmem %s0, %s160
        %s162 = smul.u32 2, %s16
      $region24: #{cx_forward.5} parent=19 // pred_fallthru
        _
      // Predicated region
      $region25: #{cx_forward.5} parent=19 // pred_check
        %p163 = pneg %p67
      $region26: #{cx_forward.5} parent=19 // pred_check_branch
        %165 = sbr.rel (%p163) target = $region28
      $region27: #{cx_forward.5} parent=19 // pred_region
        %s166 = smul.u32 2, %s16
        %p167 = scmp.lt.s32.totalorder %s166, 3
        %s168 = scalar_select %p167, %s166, 3
        %s169 = smul.addr %s168, 8
        %s170 = scalar_lea.vmem %s1, %s169
        %s171 = smul.u32 2, %s16
      $region28: #{cx_forward.5} parent=19 // pred_fallthru
        _
    $region20: #{cx_forward.5} parent=5 // pred_fallthru
      _
    %p172 = scmp.le.s32.totalorder 1, %s9
    %p173 = scmp.lt.s32.totalorder %s9, 3
    %p174 = pnand %p172, %p173
    %p175 = pneg %p174
    // Predicated region
    $region29: #{cx_forward.5} parent=5 // pred_check
      _
    $region30: #{cx_forward.5} parent=5 // pred_check_branch
      %177 = sbr.rel (%p174) target = $region32
    $region31: #{cx_forward.5} parent=5 // pred_region
      %s178 = ssub.s32 %s9, 1
      %s179 = smul.u32 2, %s18
      %p180 = scmp.lt.s32.totalorder %s179, 3
      %s181 = scalar_select %p180, %s179, 3
      %s182 = smul.addr %s181, 7
      %s183 = smul.addr %s182, 4
      %s184 = scalar_lea.vmem %s0, %s183
      %p185 = pneg %p47
      %p186 = pneg %p44
      %s187 = smul.u32 2, %s18
      %p188 = scmp.lt.s32.totalorder %s187, 3
      %s189 = scalar_select %p188, %s187, 3
      %s190 = smul.addr %s189, 8
      %s191 = scalar_lea.vmem %s1, %s190
      %p192 = pneg %p73
      %p193 = pneg %p70
      %p194 = scmp.lt.s32.totalorder %s19, 0
      %s195 = scalar_select %p194, %s19, 0
      %s196 = smul.addr %s195, 4
      %s197 = scalar_lea.vmem %s2, %s196
      %p198 = pneg %p99
      %p199 = pneg %p96
      %p200 = pneg %p127
      %p201 = pneg %p124
      %s202 = smul.u32 2, %s18
      %p203 = scmp.lt.s32.totalorder %s202, 3
      %s204 = scalar_select %p203, %s202, 3
      %p205 = scmp.lt.s32.totalorder %s19, 0
      %s206 = scalar_select %p205, %s19, 0
      %s207 = sadd.s32 %s206, %s204
      %s208 = smul.addr %s207, 4
      %s209 = scalar_lea.vmem %s3, %s208
      %s210 = smul.u32 2, %s18
      %p211 = scmp.lt.s32.totalorder %s210, 3
      %s212 = scalar_select %p211, %s210, 3
      %s213 = smul.addr %s212, 7
      %s214 = smul.addr %s213, 4
      %s215 = scalar_lea.vmem %s0, %s214
      %s216 = smul.u32 2, %s18
      %s217 = smul.u32 2, %s18
      %p218 = scmp.lt.s32.totalorder %s217, 3
      %s219 = scalar_select %p218, %s217, 3
      %s220 = smul.addr %s219, 8
      %s221 = scalar_lea.vmem %s1, %s220
      %s222 = smul.u32 2, %s18
      %p223 = scmp.lt.s32.totalorder %s19, 0
      %s224 = scalar_select %p223, %s19, 0
      %s225 = smul.addr %s224, 4
      %s226 = scalar_lea.vmem %s2, %s225
      %s227 = smul.u32 2, %s18
      %p228 = scmp.lt.s32.totalorder %s227, 3
      %s229 = scalar_select %p228, %s227, 3
      %p230 = scmp.lt.s32.totalorder %s19, 0
      %s231 = scalar_select %p230, %s19, 0
      %s232 = sadd.s32 %s231, %s229
      %s233 = smul.addr %s232, 4
      %s234 = scalar_lea.vmem %s3, %s233
      %s235 = smul.u32 2, %s18
      %v237 = vld [vmem:[%s215] sm:$0xff]
      %v238 = vld [vmem:[%s215 + $0x8] sm:$0xff]
      %v239 = vld [vmem:[%s215 + $0x10] sm:$0xff]
      %v240 = vld [vmem:[%s215 + $0x18] sm:$0xf]
      %v241 = vld [vmem:[%s215 + $0x1c] sm:$0xff]
      %v242 = vld [vmem:[%s215 + $0x24] sm:$0xff]
      %v243 = vld [vmem:[%s215 + $0x2c] sm:$0xff]
      %v244 = vld [vmem:[%s215 + $0x34] sm:$0xf]
      %v245 = vld [vmem:[%s226] sm:$0xf]
      %v246 = vld [vmem:[%s226 + $0x4] sm:$0xf]
      %v247 = vld [vmem:[%s226 + $0x8] sm:$0xf]
      %v248 = vld [vmem:[%s226 + $0xc] sm:$0xf]
      %v249 = vld [vmem:[%s226 + $0x10] sm:$0xf]
      %v250 = vld [vmem:[%s226 + $0x14] sm:$0xf]
      %v251 = vld [vmem:[%s226 + $0x18] sm:$0xf]
      %v252 = vld [vmem:[%s226 + $0x1c] sm:$0xf]
      %v253 = vld [vmem:[%s226 + $0x20] sm:$0xf]
      %v254 = vld [vmem:[%s226 + $0x24] sm:$0xf]
      %v255 = vld [vmem:[%s226 + $0x28] sm:$0xf]
      %v256 = vld [vmem:[%s226 + $0x2c] sm:$0xf]
      %v257 = vld [vmem:[%s226 + $0x30] sm:$0xf]
      %v258 = vld [vmem:[%s226 + $0x34] sm:$0xf]
      %v259 = vld [vmem:[%s226 + $0x38] sm:$0xf]
      %v260 = vld [vmem:[%s226 + $0x3c] sm:$0xf]
      %v261 = vld [vmem:[%s226 + $0x40] sm:$0xf]
      %v262 = vld [vmem:[%s226 + $0x44] sm:$0xf]
      %v263 = vld [vmem:[%s226 + $0x48] sm:$0xf]
      %v264 = vld [vmem:[%s226 + $0x4c] sm:$0xf]
      %v265 = vld [vmem:[%s226 + $0x50] sm:$0xf]
      %v266 = vld [vmem:[%s226 + $0x54] sm:$0xf]
      %v267 = vld [vmem:[%s226 + $0x58] sm:$0xf]
      %v268 = vld [vmem:[%s226 + $0x5c] sm:$0xf]
      %v269 = vld [vmem:[%s226 + $0x60] sm:$0xf]
      %v270 = vld [vmem:[%s226 + $0x64] sm:$0xf]
      %v271 = vld [vmem:[%s226 + $0x68] sm:$0xf]
      %v272 = vld [vmem:[%s226 + $0x6c] sm:$0xf]
      %v273 = vld [vmem:[%s226 + $0x70] sm:$0xf]
      %v274 = vld [vmem:[%s226 + $0x74] sm:$0xf]
      %v275 = vld [vmem:[%s226 + $0x78] sm:$0xf]
      %v276 = vld [vmem:[%s226 + $0x7c] sm:$0xf]
      %v277 = vld [vmem:[%s226 + $0x80] sm:$0xf]
      %v278 = vld [vmem:[%s226 + $0x84] sm:$0xf]
      %v279 = vld [vmem:[%s226 + $0x88] sm:$0xf]
      %v280 = vld [vmem:[%s226 + $0x8c] sm:$0xf]
      %v281 = vld [vmem:[%s226 + $0x90] sm:$0xf]
      %v282 = vld [vmem:[%s226 + $0x94] sm:$0xf]
      %v283 = vld [vmem:[%s226 + $0x98] sm:$0xf]
      %v284 = vld [vmem:[%s226 + $0x9c] sm:$0xf]
      %v285 = vld [vmem:[%s226 + $0xa0] sm:$0xf]
      %v286 = vld [vmem:[%s226 + $0xa4] sm:$0xf]
      %v287 = vld [vmem:[%s226 + $0xa8] sm:$0xf]
      %v288 = vld [vmem:[%s226 + $0xac] sm:$0xf]
      %v289 = vld [vmem:[%s226 + $0xb0] sm:$0xf]
      %v290 = vld [vmem:[%s226 + $0xb4] sm:$0xf]
      %v291 = vld [vmem:[%s226 + $0xb8] sm:$0xf]
      %v292 = vld [vmem:[%s226 + $0xbc] sm:$0xf]
      %v293 = vld [vmem:[%s226 + $0xc0] sm:$0xf]
      %v294 = vld [vmem:[%s226 + $0xc4] sm:$0xf]
      %v295 = vld [vmem:[%s226 + $0xc8] sm:$0xf]
      %v296 = vld [vmem:[%s226 + $0xcc] sm:$0xf]
      %v297 = vld [vmem:[%s226 + $0xd0] sm:$0xf]
      %v298 = vld [vmem:[%s226 + $0xd4] sm:$0xf]
      %v299 = vld [vmem:[%s226 + $0xd8] sm:$0xf]
      %v300 = vld [vmem:[%s226 + $0xdc] sm:$0xf]
      %v301 = vld [vmem:[%s226 + $0xe0] sm:$0xf]
      %v302 = vld [vmem:[%s226 + $0xe4] sm:$0xf]
      %v303 = vld [vmem:[%s226 + $0xe8] sm:$0xf]
      %v304 = vld [vmem:[%s226 + $0xec] sm:$0xf]
      %v305 = vld [vmem:[%s226 + $0xf0] sm:$0xf]
      %v306 = vld [vmem:[%s226 + $0xf4] sm:$0xf]
      %v307 = vld [vmem:[%s226 + $0xf8] sm:$0xf]
      %v308 = vld [vmem:[%s226 + $0xfc] sm:$0xf]
      %v309 = vld [vmem:[%s226 + $0x100] sm:$0xf]
      %v310 = vld [vmem:[%s226 + $0x104] sm:$0xf]
      %v311 = vld [vmem:[%s226 + $0x108] sm:$0xf]
      %v312 = vld [vmem:[%s226 + $0x10c] sm:$0xf]
      %v313 = vld [vmem:[%s226 + $0x110] sm:$0xf]
      %v314 = vld [vmem:[%s226 + $0x114] sm:$0xf]
      %v315 = vld [vmem:[%s226 + $0x118] sm:$0xf]
      %v316 = vld [vmem:[%s226 + $0x11c] sm:$0xf]
      %v317 = vld [vmem:[%s226 + $0x120] sm:$0xf]
      %v318 = vld [vmem:[%s226 + $0x124] sm:$0xf]
      %v319 = vld [vmem:[%s226 + $0x128] sm:$0xf]
      %v320 = vld [vmem:[%s226 + $0x12c] sm:$0xf]
      %v321 = vld [vmem:[%s226 + $0x130] sm:$0xf]
      %v322 = vld [vmem:[%s226 + $0x134] sm:$0xf]
      %v323 = vld [vmem:[%s226 + $0x138] sm:$0xf]
      %v324 = vld [vmem:[%s226 + $0x13c] sm:$0xf]
      %v325 = vld [vmem:[%s226 + $0x140] sm:$0xf]
      %v326 = vld [vmem:[%s226 + $0x144] sm:$0xf]
      %v327 = vld [vmem:[%s226 + $0x148] sm:$0xf]
      %v328 = vld [vmem:[%s226 + $0x14c] sm:$0xf]
      %v329 = vld [vmem:[%s226 + $0x150] sm:$0xf]
      %v330 = vld [vmem:[%s226 + $0x154] sm:$0xf]
      %v331 = vld [vmem:[%s226 + $0x158] sm:$0xf]
      %v332 = vld [vmem:[%s226 + $0x15c] sm:$0xf]
      %v333 = vld [vmem:[%s226 + $0x160] sm:$0xf]
      %v334 = vld [vmem:[%s226 + $0x164] sm:$0xf]
      %v335 = vld [vmem:[%s226 + $0x168] sm:$0xf]
      %v336 = vld [vmem:[%s226 + $0x16c] sm:$0xf]
      %v337 = vld [vmem:[%s226 + $0x170] sm:$0xf]
      %v338 = vld [vmem:[%s226 + $0x174] sm:$0xf]
      %v339 = vld [vmem:[%s226 + $0x178] sm:$0xf]
      %v340 = vld [vmem:[%s226 + $0x17c] sm:$0xf]
      %v341 = vld [vmem:[%s226 + $0x180] sm:$0xf]
      %v342 = vld [vmem:[%s226 + $0x184] sm:$0xf]
      %v343 = vld [vmem:[%s226 + $0x188] sm:$0xf]
      %v344 = vld [vmem:[%s226 + $0x18c] sm:$0xf]
      %v353 = vunpack.c.l.b16 %v237
      %v354 = vunpack.c.h.b16 %v237
      %v355 = vunpack.c.l.b16 %v238
      %v356 = vunpack.c.h.b16 %v238
      %v357 = vunpack.c.l.b16 %v239
      %v358 = vunpack.c.h.b16 %v239
      %v359 = vunpack.c.l.b16 %v240
      %v360 = vunpack.c.l.b16 %v241
      %v361 = vunpack.c.h.b16 %v241
      %v362 = vunpack.c.l.b16 %v242
      %v363 = vunpack.c.h.b16 %v242
      %v364 = vunpack.c.l.b16 %v243
      %v365 = vunpack.c.h.b16 %v243
      %v366 = vunpack.c.l.b16 %v244
      %v367 = vpack.c.b16 %v360, %v353
      %v368 = vpack.c.b16 %v361, %v354
      %v369 = vpack.c.b16 %v362, %v355
      %v370 = vpack.c.b16 %v363, %v356
      %v371 = vpack.c.b16 %v364, %v357
      %v372 = vpack.c.b16 %v365, %v358
      %v373 = vpack.c.b16 %v366, %v359
      %v480 = vunpack.c.l.b16 %v245
      %v481 = vunpack.c.l.b16 %v246
      %v482 = vunpack.c.l.b16 %v247
      %v483 = vunpack.c.l.b16 %v248
      %v484 = vunpack.c.l.b16 %v249
      %v485 = vunpack.c.l.b16 %v250
      %v486 = vunpack.c.l.b16 %v251
      %v487 = vunpack.c.l.b16 %v252
      %v488 = vunpack.c.l.b16 %v253
      %v489 = vunpack.c.l.b16 %v254
      %v490 = vunpack.c.l.b16 %v255
      %v491 = vunpack.c.l.b16 %v256
      %v492 = vunpack.c.l.b16 %v257
      %v493 = vunpack.c.l.b16 %v258
      %v494 = vunpack.c.l.b16 %v259
      %v495 = vunpack.c.l.b16 %v260
      %v496 = vunpack.c.l.b16 %v261
      %v497 = vunpack.c.l.b16 %v262
      %v498 = vunpack.c.l.b16 %v263
      %v499 = vunpack.c.l.b16 %v264
      %v500 = vunpack.c.l.b16 %v265
      %v501 = vunpack.c.l.b16 %v266
      %v502 = vunpack.c.l.b16 %v267
      %v503 = vunpack.c.l.b16 %v268
      %v504 = vunpack.c.l.b16 %v269
      %v505 = vunpack.c.l.b16 %v270
      %v506 = vunpack.c.l.b16 %v271
      %v507 = vunpack.c.l.b16 %v272
      %v508 = vunpack.c.l.b16 %v273
      %v509 = vunpack.c.l.b16 %v274
      %v510 = vunpack.c.l.b16 %v275
      %v511 = vunpack.c.l.b16 %v276
      %v512 = vunpack.c.l.b16 %v277
      %v513 = vunpack.c.l.b16 %v278
      %v514 = vunpack.c.l.b16 %v279
      %v515 = vunpack.c.l.b16 %v280
      %v516 = vunpack.c.l.b16 %v281
      %v517 = vunpack.c.l.b16 %v282
      %v518 = vunpack.c.l.b16 %v283
      %v519 = vunpack.c.l.b16 %v284
      %v520 = vunpack.c.l.b16 %v285
      %v521 = vunpack.c.l.b16 %v286
      %v522 = vunpack.c.l.b16 %v287
      %v523 = vunpack.c.l.b16 %v288
      %v524 = vunpack.c.l.b16 %v289
      %v525 = vunpack.c.l.b16 %v290
      %v526 = vunpack.c.l.b16 %v291
      %v527 = vunpack.c.l.b16 %v292
      %v528 = vunpack.c.l.b16 %v293
      %v529 = vunpack.c.l.b16 %v294
      %v530 = vunpack.c.l.b16 %v295
      %v531 = vunpack.c.l.b16 %v296
      %v532 = vunpack.c.l.b16 %v297
      %v533 = vunpack.c.l.b16 %v298
      %v534 = vunpack.c.l.b16 %v299
      %v535 = vunpack.c.l.b16 %v300
      %v536 = vunpack.c.l.b16 %v301
      %v537 = vunpack.c.l.b16 %v302
      %v538 = vunpack.c.l.b16 %v303
      %v539 = vunpack.c.l.b16 %v304
      %v540 = vunpack.c.l.b16 %v305
      %v541 = vunpack.c.l.b16 %v306
      %v542 = vunpack.c.l.b16 %v307
      %v543 = vunpack.c.l.b16 %v308
      %v544 = vunpack.c.l.b16 %v309
      %v545 = vunpack.c.l.b16 %v310
      %v546 = vunpack.c.l.b16 %v311
      %v547 = vunpack.c.l.b16 %v312
      %v548 = vunpack.c.l.b16 %v313
      %v549 = vunpack.c.l.b16 %v314
      %v550 = vunpack.c.l.b16 %v315
      %v551 = vunpack.c.l.b16 %v316
      %v552 = vunpack.c.l.b16 %v317
      %v553 = vunpack.c.l.b16 %v318
      %v554 = vunpack.c.l.b16 %v319
      %v555 = vunpack.c.l.b16 %v320
      %v556 = vunpack.c.l.b16 %v321
      %v557 = vunpack.c.l.b16 %v322
      %v558 = vunpack.c.l.b16 %v323
      %v559 = vunpack.c.l.b16 %v324
      %v560 = vunpack.c.l.b16 %v325
      %v561 = vunpack.c.l.b16 %v326
      %v562 = vunpack.c.l.b16 %v327
      %v563 = vunpack.c.l.b16 %v328
      %v564 = vunpack.c.l.b16 %v329
      %v565 = vunpack.c.l.b16 %v330
      %v566 = vunpack.c.l.b16 %v331
      %v567 = vunpack.c.l.b16 %v332
      %v568 = vunpack.c.l.b16 %v333
      %v569 = vunpack.c.l.b16 %v334
      %v570 = vunpack.c.l.b16 %v335
      %v571 = vunpack.c.l.b16 %v336
      %v572 = vunpack.c.l.b16 %v337
      %v573 = vunpack.c.l.b16 %v338
      %v574 = vunpack.c.l.b16 %v339
      %v575 = vunpack.c.l.b16 %v340
      %v576 = vunpack.c.l.b16 %v341
      %v577 = vunpack.c.l.b16 %v342
      %v578 = vunpack.c.l.b16 %v343
      %v579 = vunpack.c.l.b16 %v344
      %v580 = vpack.c.b16 %v481, %v480
      %v581 = vpack.c.b16 %v483, %v482
      %v582 = vpack.c.b16 %v485, %v484
      %v583 = vpack.c.b16 %v487, %v486
      %v584 = vpack.c.b16 %v489, %v488
      %v585 = vpack.c.b16 %v491, %v490
      %v586 = vpack.c.b16 %v493, %v492
      %v587 = vpack.c.b16 %v495, %v494
      %v588 = vpack.c.b16 %v497, %v496
      %v589 = vpack.c.b16 %v499, %v498
      %v590 = vpack.c.b16 %v501, %v500
      %v591 = vpack.c.b16 %v503, %v502
      %v592 = vpack.c.b16 %v505, %v504
      %v593 = vpack.c.b16 %v507, %v506
      %v594 = vpack.c.b16 %v509, %v508
      %v595 = vpack.c.b16 %v511, %v510
      %v596 = vpack.c.b16 %v513, %v512
      %v597 = vpack.c.b16 %v515, %v514
      %v598 = vpack.c.b16 %v517, %v516
      %v599 = vpack.c.b16 %v519, %v518
      %v600 = vpack.c.b16 %v521, %v520
      %v601 = vpack.c.b16 %v523, %v522
      %v602 = vpack.c.b16 %v525, %v524
      %v603 = vpack.c.b16 %v527, %v526
      %v604 = vpack.c.b16 %v529, %v528
      %v605 = vpack.c.b16 %v531, %v530
      %v606 = vpack.c.b16 %v533, %v532
      %v607 = vpack.c.b16 %v535, %v534
      %v608 = vpack.c.b16 %v537, %v536
      %v609 = vpack.c.b16 %v539, %v538
      %v610 = vpack.c.b16 %v541, %v540
      %v611 = vpack.c.b16 %v543, %v542
      %v612 = vpack.c.b16 %v545, %v544
      %v613 = vpack.c.b16 %v547, %v546
      %v614 = vpack.c.b16 %v549, %v548
      %v615 = vpack.c.b16 %v551, %v550
      %v616 = vpack.c.b16 %v553, %v552
      %v617 = vpack.c.b16 %v555, %v554
      %v618 = vpack.c.b16 %v557, %v556
      %v619 = vpack.c.b16 %v559, %v558
      %v620 = vpack.c.b16 %v561, %v560
      %v621 = vpack.c.b16 %v563, %v562
      %v622 = vpack.c.b16 %v565, %v564
      %v623 = vpack.c.b16 %v567, %v566
      %v624 = vpack.c.b16 %v569, %v568
      %v625 = vpack.c.b16 %v571, %v570
      %v626 = vpack.c.b16 %v573, %v572
      %v627 = vpack.c.b16 %v575, %v574
      %v628 = vpack.c.b16 %v577, %v576
      %v629 = vpack.c.b16 %v579, %v578
      %vm680 = vcmask 261120
      %v682 = vsel %vm680, %v373, 0
      %684 = vmatprep.subr.bf16.mxu0 0
      %685 = vmatpush1.bf16.msra.mxu0 %v580
      %686 = vmatprep.subr.bf16.mxu0 0
      %687 = vmatpush1.bf16.msra.mxu0 %v581
      %688 = vmatprep.subr.bf16.mxu0 0
      %689 = vmatpush1.bf16.msra.mxu0 %v582
      %690 = vmatprep.subr.bf16.mxu0 0
      %691 = vmatpush1.bf16.msra.mxu0 %v583
      %692 = vmatprep.subr.bf16.mxu0 0
      %693 = vmatpush1.bf16.msra.mxu0 %v584
      %694 = vmatprep.subr.bf16.mxu0 0
      %695 = vmatpush1.bf16.msra.mxu0 %v585
      %696 = vmatprep.subr.bf16.mxu0 0
      %697 = vmatpush1.bf16.msra.mxu0 %v586
      %698 = vmatprep.subr.bf16.mxu0 0
      %699 = vmatpush1.bf16.msra.mxu0 %v587
      %700 = vmatprep.subr.bf16.mxu0 0
      %701 = vmatpush1.bf16.msra.mxu0 %v588
      %702 = vmatprep.subr.bf16.mxu0 0
      %703 = vmatpush1.bf16.msra.mxu0 %v589
      %704 = vmatprep.subr.bf16.mxu0 0
      %705 = vmatpush1.bf16.msra.mxu0 %v590
      %706 = vmatprep.subr.bf16.mxu0 0
      %707 = vmatpush1.bf16.msra.mxu0 %v591
      %708 = vmatprep.subr.bf16.mxu0 0
      %709 = vmatpush1.bf16.msra.mxu0 %v592
      %710 = vmatprep.subr.bf16.mxu0 0
      %711 = vmatpush1.bf16.msra.mxu0 %v593
      %712 = vmatprep.subr.bf16.mxu0 0
      %713 = vmatpush1.bf16.msra.mxu0 %v594
      %714 = vmatprep.subr.bf16.mxu0 0
      %715 = vmatpush1.bf16.msra.mxu0 %v595
      %716 = vmatprep.mubr.bf16.mxu0 %v368
      %717 = vmatmul.mubr.bf16.gmra.mrb[0].mxu0 %v367
      %v718 = vpop.f32.mrb[0].mxu0
      %v719 = vadd.f32 0.0, %v718
      %v720 = vpop.f32.mrb[0].mxu0
      %v721 = vpop.f32.mrb[0].mxu0
      %v722 = vadd.f32 0.0, %v721
      %v723 = vpop.f32.mrb[0].mxu0
      %724 = vdwg.mxu0
      %725 = vmatprep.subr.bf16.mxu0 0
      %726 = vmatpush1.bf16.msra.mxu0 %v596
      %727 = vmatprep.subr.bf16.mxu0 0
      %728 = vmatpush1.bf16.msra.mxu0 %v597
      %729 = vmatprep.subr.bf16.mxu0 0
      %730 = vmatpush1.bf16.msra.mxu0 %v598
      %731 = vmatprep.subr.bf16.mxu0 0
      %732 = vmatpush1.bf16.msra.mxu0 %v599
      %733 = vmatprep.subr.bf16.mxu0 0
      %734 = vmatpush1.bf16.msra.mxu0 %v600
      %735 = vmatprep.subr.bf16.mxu0 0
      %736 = vmatpush1.bf16.msra.mxu0 %v601
      %737 = vmatprep.subr.bf16.mxu0 0
      %738 = vmatpush1.bf16.msra.mxu0 %v602
      %739 = vmatprep.subr.bf16.mxu0 0
      %740 = vmatpush1.bf16.msra.mxu0 %v603
      %741 = vmatprep.subr.bf16.mxu0 0
      %742 = vmatpush1.bf16.msra.mxu0 %v604
      %743 = vmatprep.subr.bf16.mxu0 0
      %744 = vmatpush1.bf16.msra.mxu0 %v605
      %745 = vmatprep.subr.bf16.mxu0 0
      %746 = vmatpush1.bf16.msra.mxu0 %v606
      %747 = vmatprep.subr.bf16.mxu0 0
      %748 = vmatpush1.bf16.msra.mxu0 %v607
      %749 = vmatprep.subr.bf16.mxu0 0
      %750 = vmatpush1.bf16.msra.mxu0 %v608
      %751 = vmatprep.subr.bf16.mxu0 0
      %752 = vmatpush1.bf16.msra.mxu0 %v609
      %753 = vmatprep.subr.bf16.mxu0 0
      %754 = vmatpush1.bf16.msra.mxu0 %v610
      %755 = vmatprep.subr.bf16.mxu0 0
      %756 = vmatpush1.bf16.msra.mxu0 %v611
      %757 = vmatprep.mubr.bf16.mxu0 %v370
      %758 = vmatmul.mubr.bf16.gmra.mrb[0].mxu0 %v369
      %v759 = vpop.f32.mrb[0].mxu0
      %v760 = vadd.f32 %v719, %v759
      %v761 = vpop.f32.mrb[0].mxu0
      %v762 = vpop.f32.mrb[0].mxu0
      %v763 = vadd.f32 %v722, %v762
      %v764 = vpop.f32.mrb[0].mxu0
      %765 = vdwg.mxu0
      %766 = vmatprep.subr.bf16.mxu0 0
      %767 = vmatpush1.bf16.msra.mxu0 %v612
      %768 = vmatprep.subr.bf16.mxu0 0
      %769 = vmatpush1.bf16.msra.mxu0 %v613
      %770 = vmatprep.subr.bf16.mxu0 0
      %771 = vmatpush1.bf16.msra.mxu0 %v614
      %772 = vmatprep.subr.bf16.mxu0 0
      %773 = vmatpush1.bf16.msra.mxu0 %v615
      %774 = vmatprep.subr.bf16.mxu0 0
      %775 = vmatpush1.bf16.msra.mxu0 %v616
      %776 = vmatprep.subr.bf16.mxu0 0
      %777 = vmatpush1.bf16.msra.mxu0 %v617
      %778 = vmatprep.subr.bf16.mxu0 0
      %779 = vmatpush1.bf16.msra.mxu0 %v618
      %780 = vmatprep.subr.bf16.mxu0 0
      %781 = vmatpush1.bf16.msra.mxu0 %v619
      %782 = vmatprep.subr.bf16.mxu0 0
      %783 = vmatpush1.bf16.msra.mxu0 %v620
      %784 = vmatprep.subr.bf16.mxu0 0
      %785 = vmatpush1.bf16.msra.mxu0 %v621
      %786 = vmatprep.subr.bf16.mxu0 0
      %787 = vmatpush1.bf16.msra.mxu0 %v622
      %788 = vmatprep.subr.bf16.mxu0 0
      %789 = vmatpush1.bf16.msra.mxu0 %v623
      %790 = vmatprep.subr.bf16.mxu0 0
      %791 = vmatpush1.bf16.msra.mxu0 %v624
      %792 = vmatprep.subr.bf16.mxu0 0
      %793 = vmatpush1.bf16.msra.mxu0 %v625
      %794 = vmatprep.subr.bf16.mxu0 0
      %795 = vmatpush1.bf16.msra.mxu0 %v626
      %796 = vmatprep.subr.bf16.mxu0 0
      %797 = vmatpush1.bf16.msra.mxu0 %v627
      %798 = vmatprep.mubr.bf16.mxu0 %v372
      %799 = vmatmul.mubr.bf16.gmra.mrb[0].mxu0 %v371
      %v800 = vpop.f32.mrb[0].mxu0
      %v801 = vadd.f32 %v760, %v800
      %v802 = vpop.f32.mrb[0].mxu0
      %v803 = vpop.f32.mrb[0].mxu0
      %v804 = vadd.f32 %v763, %v803
      %v805 = vpop.f32.mrb[0].mxu0
      %806 = vdwg.mxu0
      %807 = vmatprep.subr.bf16.mxu0 0
      %808 = vmatpush1.bf16.msra.mxu0 %v628
      %809 = vmatprep.subr.bf16.mxu0 0
      %810 = vmatpush1.bf16.msra.mxu0 %v629
      %811 = vmatprep.subr.bf16.mxu0 0
      %812 = vmatpush1.bf16.msra.mxu0 0
      %813 = vmatprep.subr.bf16.mxu0 0
      %814 = vmatpush1.bf16.msra.mxu0 0
      %815 = vmatprep.subr.bf16.mxu0 0
      %816 = vmatpush1.bf16.msra.mxu0 0
      %817 = vmatprep.subr.bf16.mxu0 0
      %818 = vmatpush1.bf16.msra.mxu0 0
      %819 = vmatprep.subr.bf16.mxu0 0
      %820 = vmatpush1.bf16.msra.mxu0 0
      %821 = vmatprep.subr.bf16.mxu0 0
      %822 = vmatpush1.bf16.msra.mxu0 0
      %823 = vmatprep.subr.bf16.mxu0 0
      %824 = vmatpush1.bf16.msra.mxu0 0
      %825 = vmatprep.subr.bf16.mxu0 0
      %826 = vmatpush1.bf16.msra.mxu0 0
      %827 = vmatprep.subr.bf16.mxu0 0
      %828 = vmatpush1.bf16.msra.mxu0 0
      %829 = vmatprep.subr.bf16.mxu0 0
      %830 = vmatpush1.bf16.msra.mxu0 0
      %831 = vmatprep.subr.bf16.mxu0 0
      %832 = vmatpush1.bf16.msra.mxu0 0
      %833 = vmatprep.subr.bf16.mxu0 0
      %834 = vmatpush1.bf16.msra.mxu0 0
      %835 = vmatprep.subr.bf16.mxu0 0
      %836 = vmatpush1.bf16.msra.mxu0 0
      %837 = vmatprep.subr.bf16.mxu0 0
      %838 = vmatpush1.bf16.msra.mxu0 0
      %839 = vmatprep.mubr.bf16.mxu0 0
      %840 = vmatmul.mubr.bf16.gmra.mrb[0].mxu0 %v682
      %v841 = vpop.f32.mrb[0].mxu0
      %v842 = vadd.f32 %v801, %v841
      %v843 = vpop.f32.mrb[0].mxu0
      %v844 = vpop.f32.mrb[0].mxu0
      %v845 = vadd.f32 %v804, %v844
      %v846 = vpop.f32.mrb[0].mxu0
      %847 = vdwg.mxu0
      %s848 = scalar_lea.vmem %s226, 400
      %v849 = vld [vmem:[%s848] sm:$0xf]
      %v850 = vld [vmem:[%s848 + $0x4] sm:$0xf]
      %v851 = vld [vmem:[%s848 + $0x8] sm:$0xf]
      %v852 = vld [vmem:[%s848 + $0xc] sm:$0xf]
      %v853 = vld [vmem:[%s848 + $0x10] sm:$0xf]
      %v854 = vld [vmem:[%s848 + $0x14] sm:$0xf]
      %v855 = vld [vmem:[%s848 + $0x18] sm:$0xf]
      %v856 = vld [vmem:[%s848 + $0x1c] sm:$0xf]
      %v857 = vld [vmem:[%s848 + $0x20] sm:$0xf]
      %v858 = vld [vmem:[%s848 + $0x24] sm:$0xf]
      %v859 = vld [vmem:[%s848 + $0x28] sm:$0xf]
      %v860 = vld [vmem:[%s848 + $0x2c] sm:$0xf]
      %v861 = vld [vmem:[%s848 + $0x30] sm:$0xf]
      %v862 = vld [vmem:[%s848 + $0x34] sm:$0xf]
      %v863 = vld [vmem:[%s848 + $0x38] sm:$0xf]
      %v864 = vld [vmem:[%s848 + $0x3c] sm:$0xf]
      %v865 = vld [vmem:[%s848 + $0x40] sm:$0xf]
      %v866 = vld [vmem:[%s848 + $0x44] sm:$0xf]
      %v867 = vld [vmem:[%s848 + $0x48] sm:$0xf]
      %v868 = vld [vmem:[%s848 + $0x4c] sm:$0xf]
      %v869 = vld [vmem:[%s848 + $0x50] sm:$0xf]
      %v870 = vld [vmem:[%s848 + $0x54] sm:$0xf]
      %v871 = vld [vmem:[%s848 + $0x58] sm:$0xf]
      %v872 = vld [vmem:[%s848 + $0x5c] sm:$0xf]
      %v873 = vld [vmem:[%s848 + $0x60] sm:$0xf]
      %v874 = vld [vmem:[%s848 + $0x64] sm:$0xf]
      %v875 = vld [vmem:[%s848 + $0x68] sm:$0xf]
      %v876 = vld [vmem:[%s848 + $0x6c] sm:$0xf]
      %v877 = vld [vmem:[%s848 + $0x70] sm:$0xf]
      %v878 = vld [vmem:[%s848 + $0x74] sm:$0xf]
      %v879 = vld [vmem:[%s848 + $0x78] sm:$0xf]
      %v880 = vld [vmem:[%s848 + $0x7c] sm:$0xf]
      %v881 = vld [vmem:[%s848 + $0x80] sm:$0xf]
      %v882 = vld [vmem:[%s848 + $0x84] sm:$0xf]
      %v883 = vld [vmem:[%s848 + $0x88] sm:$0xf]
      %v884 = vld [vmem:[%s848 + $0x8c] sm:$0xf]
      %v885 = vld [vmem:[%s848 + $0x90] sm:$0xf]
      %v886 = vld [vmem:[%s848 + $0x94] sm:$0xf]
      %v887 = vld [vmem:[%s848 + $0x98] sm:$0xf]
      %v888 = vld [vmem:[%s848 + $0x9c] sm:$0xf]
      %v889 = vld [vmem:[%s848 + $0xa0] sm:$0xf]
      %v890 = vld [vmem:[%s848 + $0xa4] sm:$0xf]
      %v891 = vld [vmem:[%s848 + $0xa8] sm:$0xf]
      %v892 = vld [vmem:[%s848 + $0xac] sm:$0xf]
      %v893 = vld [vmem:[%s848 + $0xb0] sm:$0xf]
      %v894 = vld [vmem:[%s848 + $0xb4] sm:$0xf]
      %v895 = vld [vmem:[%s848 + $0xb8] sm:$0xf]
      %v896 = vld [vmem:[%s848 + $0xbc] sm:$0xf]
      %v897 = vld [vmem:[%s848 + $0xc0] sm:$0xf]
      %v898 = vld [vmem:[%s848 + $0xc4] sm:$0xf]
      %v899 = vld [vmem:[%s848 + $0xc8] sm:$0xf]
      %v900 = vld [vmem:[%s848 + $0xcc] sm:$0xf]
      %v901 = vld [vmem:[%s848 + $0xd0] sm:$0xf]
      %v902 = vld [vmem:[%s848 + $0xd4] sm:$0xf]
      %v903 = vld [vmem:[%s848 + $0xd8] sm:$0xf]
      %v904 = vld [vmem:[%s848 + $0xdc] sm:$0xf]
      %v905 = vld [vmem:[%s848 + $0xe0] sm:$0xf]
      %v906 = vld [vmem:[%s848 + $0xe4] sm:$0xf]
      %v907 = vld [vmem:[%s848 + $0xe8] sm:$0xf]
      %v908 = vld [vmem:[%s848 + $0xec] sm:$0xf]
      %v909 = vld [vmem:[%s848 + $0xf0] sm:$0xf]
      %v910 = vld [vmem:[%s848 + $0xf4] sm:$0xf]
      %v911 = vld [vmem:[%s848 + $0xf8] sm:$0xf]
      %v912 = vld [vmem:[%s848 + $0xfc] sm:$0xf]
      %v913 = vld [vmem:[%s848 + $0x100] sm:$0xf]
      %v914 = vld [vmem:[%s848 + $0x104] sm:$0xf]
      %v915 = vld [vmem:[%s848 + $0x108] sm:$0xf]
      %v916 = vld [vmem:[%s848 + $0x10c] sm:$0xf]
      %v917 = vld [vmem:[%s848 + $0x110] sm:$0xf]
      %v918 = vld [vmem:[%s848 + $0x114] sm:$0xf]
      %v919 = vld [vmem:[%s848 + $0x118] sm:$0xf]
      %v920 = vld [vmem:[%s848 + $0x11c] sm:$0xf]
      %v921 = vld [vmem:[%s848 + $0x120] sm:$0xf]
      %v922 = vld [vmem:[%s848 + $0x124] sm:$0xf]
      %v923 = vld [vmem:[%s848 + $0x128] sm:$0xf]
      %v924 = vld [vmem:[%s848 + $0x12c] sm:$0xf]
      %v925 = vld [vmem:[%s848 + $0x130] sm:$0xf]
      %v926 = vld [vmem:[%s848 + $0x134] sm:$0xf]
      %v927 = vld [vmem:[%s848 + $0x138] sm:$0xf]
      %v928 = vld [vmem:[%s848 + $0x13c] sm:$0xf]
      %v929 = vld [vmem:[%s848 + $0x140] sm:$0xf]
      %v930 = vld [vmem:[%s848 + $0x144] sm:$0xf]
      %v931 = vld [vmem:[%s848 + $0x148] sm:$0xf]
      %v932 = vld [vmem:[%s848 + $0x14c] sm:$0xf]
      %v933 = vld [vmem:[%s848 + $0x150] sm:$0xf]
      %v934 = vld [vmem:[%s848 + $0x154] sm:$0xf]
      %v935 = vld [vmem:[%s848 + $0x158] sm:$0xf]
      %v936 = vld [vmem:[%s848 + $0x15c] sm:$0xf]
      %v937 = vld [vmem:[%s848 + $0x160] sm:$0xf]
      %v938 = vld [vmem:[%s848 + $0x164] sm:$0xf]
      %v939 = vld [vmem:[%s848 + $0x168] sm:$0xf]
      %v940 = vld [vmem:[%s848 + $0x16c] sm:$0xf]
      %v941 = vld [vmem:[%s848 + $0x170] sm:$0xf]
      %v942 = vld [vmem:[%s848 + $0x174] sm:$0xf]
      %v943 = vld [vmem:[%s848 + $0x178] sm:$0xf]
      %v944 = vld [vmem:[%s848 + $0x17c] sm:$0xf]
      %v945 = vld [vmem:[%s848 + $0x180] sm:$0xf]
      %v946 = vld [vmem:[%s848 + $0x184] sm:$0xf]
      %v947 = vld [vmem:[%s848 + $0x188] sm:$0xf]
      %v948 = vld [vmem:[%s848 + $0x18c] sm:$0xf]
      %v1049 = vunpack.c.l.b16 %v849
      %v1050 = vunpack.c.l.b16 %v850
      %v1051 = vunpack.c.l.b16 %v851
      %v1052 = vunpack.c.l.b16 %v852
      %v1053 = vunpack.c.l.b16 %v853
      %v1054 = vunpack.c.l.b16 %v854
      %v1055 = vunpack.c.l.b16 %v855
      %v1056 = vunpack.c.l.b16 %v856
      %v1057 = vunpack.c.l.b16 %v857
      %v1058 = vunpack.c.l.b16 %v858
      %v1059 = vunpack.c.l.b16 %v859
      %v1060 = vunpack.c.l.b16 %v860
      %v1061 = vunpack.c.l.b16 %v861
      %v1062 = vunpack.c.l.b16 %v862
      %v1063 = vunpack.c.l.b16 %v863
      %v1064 = vunpack.c.l.b16 %v864
      %v1065 = vunpack.c.l.b16 %v865
      %v1066 = vunpack.c.l.b16 %v866
      %v1067 = vunpack.c.l.b16 %v867
      %v1068 = vunpack.c.l.b16 %v868
      %v1069 = vunpack.c.l.b16 %v869
      %v1070 = vunpack.c.l.b16 %v870
      %v1071 = vunpack.c.l.b16 %v871
      %v1072 = vunpack.c.l.b16 %v872
      %v1073 = vunpack.c.l.b16 %v873
      %v1074 = vunpack.c.l.b16 %v874
      %v1075 = vunpack.c.l.b16 %v875
      %v1076 = vunpack.c.l.b16 %v876
      %v1077 = vunpack.c.l.b16 %v877
      %v1078 = vunpack.c.l.b16 %v878
      %v1079 = vunpack.c.l.b16 %v879
      %v1080 = vunpack.c.l.b16 %v880
      %v1081 = vunpack.c.l.b16 %v881
      %v1082 = vunpack.c.l.b16 %v882
      %v1083 = vunpack.c.l.b16 %v883
      %v1084 = vunpack.c.l.b16 %v884
      %v1085 = vunpack.c.l.b16 %v885
      %v1086 = vunpack.c.l.b16 %v886
      %v1087 = vunpack.c.l.b16 %v887
      %v1088 = vunpack.c.l.b16 %v888
      %v1089 = vunpack.c.l.b16 %v889
      %v1090 = vunpack.c.l.b16 %v890
      %v1091 = vunpack.c.l.b16 %v891
      %v1092 = vunpack.c.l.b16 %v892
      %v1093 = vunpack.c.l.b16 %v893
      %v1094 = vunpack.c.l.b16 %v894
      %v1095 = vunpack.c.l.b16 %v895
      %v1096 = vunpack.c.l.b16 %v896
      %v1097 = vunpack.c.l.b16 %v897
      %v1098 = vunpack.c.l.b16 %v898
      %v1099 = vunpack.c.l.b16 %v899
      %v1100 = vunpack.c.l.b16 %v900
      %v1101 = vunpack.c.l.b16 %v901
      %v1102 = vunpack.c.l.b16 %v902
      %v1103 = vunpack.c.l.b16 %v903
      %v1104 = vunpack.c.l.b16 %v904
      %v1105 = vunpack.c.l.b16 %v905
      %v1106 = vunpack.c.l.b16 %v906
      %v1107 = vunpack.c.l.b16 %v907
      %v1108 = vunpack.c.l.b16 %v908
      %v1109 = vunpack.c.l.b16 %v909
      %v1110 = vunpack.c.l.b16 %v910
      %v1111 = vunpack.c.l.b16 %v911
      %v1112 = vunpack.c.l.b16 %v912
      %v1113 = vunpack.c.l.b16 %v913
      %v1114 = vunpack.c.l.b16 %v914
      %v1115 = vunpack.c.l.b16 %v915
      %v1116 = vunpack.c.l.b16 %v916
      %v1117 = vunpack.c.l.b16 %v917
      %v1118 = vunpack.c.l.b16 %v918
      %v1119 = vunpack.c.l.b16 %v919
      %v1120 = vunpack.c.l.b16 %v920
      %v1121 = vunpack.c.l.b16 %v921
      %v1122 = vunpack.c.l.b16 %v922
      %v1123 = vunpack.c.l.b16 %v923
      %v1124 = vunpack.c.l.b16 %v924
      %v1125 = vunpack.c.l.b16 %v925
      %v1126 = vunpack.c.l.b16 %v926
      %v1127 = vunpack.c.l.b16 %v927
      %v1128 = vunpack.c.l.b16 %v928
      %v1129 = vunpack.c.l.b16 %v929
      %v1130 = vunpack.c.l.b16 %v930
      %v1131 = vunpack.c.l.b16 %v931
      %v1132 = vunpack.c.l.b16 %v932
      %v1133 = vunpack.c.l.b16 %v933
      %v1134 = vunpack.c.l.b16 %v934
      %v1135 = vunpack.c.l.b16 %v935
      %v1136 = vunpack.c.l.b16 %v936
      %v1137 = vunpack.c.l.b16 %v937
      %v1138 = vunpack.c.l.b16 %v938
      %v1139 = vunpack.c.l.b16 %v939
      %v1140 = vunpack.c.l.b16 %v940
      %v1141 = vunpack.c.l.b16 %v941
      %v1142 = vunpack.c.l.b16 %v942
      %v1143 = vunpack.c.l.b16 %v943
      %v1144 = vunpack.c.l.b16 %v944
      %v1145 = vunpack.c.l.b16 %v945
      %v1146 = vunpack.c.l.b16 %v946
      %v1147 = vunpack.c.l.b16 %v947
      %v1148 = vunpack.c.l.b16 %v948
      %v1149 = vpack.c.b16 %v1050, %v1049
      %v1150 = vpack.c.b16 %v1052, %v1051
      %v1151 = vpack.c.b16 %v1054, %v1053
      %v1152 = vpack.c.b16 %v1056, %v1055
      %v1153 = vpack.c.b16 %v1058, %v1057
      %v1154 = vpack.c.b16 %v1060, %v1059
      %v1155 = vpack.c.b16 %v1062, %v1061
      %v1156 = vpack.c.b16 %v1064, %v1063
      %v1157 = vpack.c.b16 %v1066, %v1065
      %v1158 = vpack.c.b16 %v1068, %v1067
      %v1159 = vpack.c.b16 %v1070, %v1069
      %v1160 = vpack.c.b16 %v1072, %v1071
      %v1161 = vpack.c.b16 %v1074, %v1073
      %v1162 = vpack.c.b16 %v1076, %v1075
      %v1163 = vpack.c.b16 %v1078, %v1077
      %v1164 = vpack.c.b16 %v1080, %v1079
      %v1165 = vpack.c.b16 %v1082, %v1081
      %v1166 = vpack.c.b16 %v1084, %v1083
      %v1167 = vpack.c.b16 %v1086, %v1085
      %v1168 = vpack.c.b16 %v1088, %v1087
      %v1169 = vpack.c.b16 %v1090, %v1089
      %v1170 = vpack.c.b16 %v1092, %v1091
      %v1171 = vpack.c.b16 %v1094, %v1093
      %v1172 = vpack.c.b16 %v1096, %v1095
      %v1173 = vpack.c.b16 %v1098, %v1097
      %v1174 = vpack.c.b16 %v1100, %v1099
      %v1175 = vpack.c.b16 %v1102, %v1101
      %v1176 = vpack.c.b16 %v1104, %v1103
      %v1177 = vpack.c.b16 %v1106, %v1105
      %v1178 = vpack.c.b16 %v1108, %v1107
      %v1179 = vpack.c.b16 %v1110, %v1109
      %v1180 = vpack.c.b16 %v1112, %v1111
      %v1181 = vpack.c.b16 %v1114, %v1113
      %v1182 = vpack.c.b16 %v1116, %v1115
      %v1183 = vpack.c.b16 %v1118, %v1117
      %v1184 = vpack.c.b16 %v1120, %v1119
      %v1185 = vpack.c.b16 %v1122, %v1121
      %v1186 = vpack.c.b16 %v1124, %v1123
      %v1187 = vpack.c.b16 %v1126, %v1125
      %v1188 = vpack.c.b16 %v1128, %v1127
      %v1189 = vpack.c.b16 %v1130, %v1129
      %v1190 = vpack.c.b16 %v1132, %v1131
      %v1191 = vpack.c.b16 %v1134, %v1133
      %v1192 = vpack.c.b16 %v1136, %v1135
      %v1193 = vpack.c.b16 %v1138, %v1137
      %v1194 = vpack.c.b16 %v1140, %v1139
      %v1195 = vpack.c.b16 %v1142, %v1141
      %v1196 = vpack.c.b16 %v1144, %v1143
      %v1197 = vpack.c.b16 %v1146, %v1145
      %v1198 = vpack.c.b16 %v1148, %v1147
      %1249 = vmatprep.subr.bf16.mxu0 0
      %1250 = vmatpush1.bf16.msra.mxu0 %v1149
      %1251 = vmatprep.subr.bf16.mxu0 0
      %1252 = vmatpush1.bf16.msra.mxu0 %v1150
      %1253 = vmatprep.subr.bf16.mxu0 0
      %1254 = vmatpush1.bf16.msra.mxu0 %v1151
      %1255 = vmatprep.subr.bf16.mxu0 0
      %1256 = vmatpush1.bf16.msra.mxu0 %v1152
      %1257 = vmatprep.subr.bf16.mxu0 0
      %1258 = vmatpush1.bf16.msra.mxu0 %v1153
      %1259 = vmatprep.subr.bf16.mxu0 0
      %1260 = vmatpush1.bf16.msra.mxu0 %v1154
      %1261 = vmatprep.subr.bf16.mxu0 0
      %1262 = vmatpush1.bf16.msra.mxu0 %v1155
      %1263 = vmatprep.subr.bf16.mxu0 0
      %1264 = vmatpush1.bf16.msra.mxu0 %v1156
      %1265 = vmatprep.subr.bf16.mxu0 0
      %1266 = vmatpush1.bf16.msra.mxu0 %v1157
      %1267 = vmatprep.subr.bf16.mxu0 0
      %1268 = vmatpush1.bf16.msra.mxu0 %v1158
      %1269 = vmatprep.subr.bf16.mxu0 0
      %1270 = vmatpush1.bf16.msra.mxu0 %v1159
      %1271 = vmatprep.subr.bf16.mxu0 0
      %1272 = vmatpush1.bf16.msra.mxu0 %v1160
      %1273 = vmatprep.subr.bf16.mxu0 0
      %1274 = vmatpush1.bf16.msra.mxu0 %v1161
      %1275 = vmatprep.subr.bf16.mxu0 0
      %1276 = vmatpush1.bf16.msra.mxu0 %v1162
      %1277 = vmatprep.subr.bf16.mxu0 0
      %1278 = vmatpush1.bf16.msra.mxu0 %v1163
      %1279 = vmatprep.subr.bf16.mxu0 0
      %1280 = vmatpush1.bf16.msra.mxu0 %v1164
      %1281 = vmatprep.mubr.bf16.mxu0 %v368
      %1282 = vmatmul.mubr.bf16.gmra.mrb[0].mxu0 %v367
      %v1283 = vpop.f32.mrb[0].mxu0
      %v1284 = vadd.f32 0.0, %v1283
      %v1285 = vpop.f32.mrb[0].mxu0
      %v1286 = vpop.f32.mrb[0].mxu0
      %v1287 = vadd.f32 0.0, %v1286
      %v1288 = vpop.f32.mrb[0].mxu0
      %1289 = vdwg.mxu0
      %1290 = vmatprep.subr.bf16.mxu0 0
      %1291 = vmatpush1.bf16.msra.mxu0 %v1165
      %1292 = vmatprep.subr.bf16.mxu0 0
      %1293 = vmatpush1.bf16.msra.mxu0 %v1166
      %1294 = vmatprep.subr.bf16.mxu0 0
      %1295 = vmatpush1.bf16.msra.mxu0 %v1167
      %1296 = vmatprep.subr.bf16.mxu0 0
      %1297 = vmatpush1.bf16.msra.mxu0 %v1168
      %1298 = vmatprep.subr.bf16.mxu0 0
      %1299 = vmatpush1.bf16.msra.mxu0 %v1169
      %1300 = vmatprep.subr.bf16.mxu0 0
      %1301 = vmatpush1.bf16.msra.mxu0 %v1170
      %1302 = vmatprep.subr.bf16.mxu0 0
      %1303 = vmatpush1.bf16.msra.mxu0 %v1171
      %1304 = vmatprep.subr.bf16.mxu0 0
      %1305 = vmatpush1.bf16.msra.mxu0 %v1172
      %1306 = vmatprep.subr.bf16.mxu0 0
      %1307 = vmatpush1.bf16.msra.mxu0 %v1173
      %1308 = vmatprep.subr.bf16.mxu0 0
      %1309 = vmatpush1.bf16.msra.mxu0 %v1174
      %1310 = vmatprep.subr.bf16.mxu0 0
      %1311 = vmatpush1.bf16.msra.mxu0 %v1175
      %1312 = vmatprep.subr.bf16.mxu0 0
      %1313 = vmatpush1.bf16.msra.mxu0 %v1176
      %1314 = vmatprep.subr.bf16.mxu0 0
      %1315 = vmatpush1.bf16.msra.mxu0 %v1177
      %1316 = vmatprep.subr.bf16.mxu0 0
      %1317 = vmatpush1.bf16.msra.mxu0 %v1178
      %1318 = vmatprep.subr.bf16.mxu0 0
      %1319 = vmatpush1.bf16.msra.mxu0 %v1179
      %1320 = vmatprep.subr.bf16.mxu0 0
      %1321 = vmatpush1.bf16.msra.mxu0 %v1180
      %1322 = vmatprep.mubr.bf16.mxu0 %v370
      %1323 = vmatmul.mubr.bf16.gmra.mrb[0].mxu0 %v369
      %v1324 = vpop.f32.mrb[0].mxu0
      %v1325 = vadd.f32 %v1284, %v1324
      %v1326 = vpop.f32.mrb[0].mxu0
      %v1327 = vpop.f32.mrb[0].mxu0
      %v1328 = vadd.f32 %v1287, %v1327
      %v1329 = vpop.f32.mrb[0].mxu0
      %1330 = vdwg.mxu0
      %1331 = vmatprep.subr.bf16.mxu0 0
      %1332 = vmatpush1.bf16.msra.mxu0 %v1181
      %1333 = vmatprep.subr.bf16.mxu0 0
      %1334 = vmatpush1.bf16.msra.mxu0 %v1182
      %1335 = vmatprep.subr.bf16.mxu0 0
      %1336 = vmatpush1.bf16.msra.mxu0 %v1183
      %1337 = vmatprep.subr.bf16.mxu0 0
      %1338 = vmatpush1.bf16.msra.mxu0 %v1184
      %1339 = vmatprep.subr.bf16.mxu0 0
      %1340 = vmatpush1.bf16.msra.mxu0 %v1185
      %1341 = vmatprep.subr.bf16.mxu0 0
      %1342 = vmatpush1.bf16.msra.mxu0 %v1186
      %1343 = vmatprep.subr.bf16.mxu0 0
      %1344 = vmatpush1.bf16.msra.mxu0 %v1187
      %1345 = vmatprep.subr.bf16.mxu0 0
      %1346 = vmatpush1.bf16.msra.mxu0 %v1188
      %1347 = vmatprep.subr.bf16.mxu0 0
      %1348 = vmatpush1.bf16.msra.mxu0 %v1189
      %1349 = vmatprep.subr.bf16.mxu0 0
      %1350 = vmatpush1.bf16.msra.mxu0 %v1190
      %1351 = vmatprep.subr.bf16.mxu0 0
      %1352 = vmatpush1.bf16.msra.mxu0 %v1191
      %1353 = vmatprep.subr.bf16.mxu0 0
      %1354 = vmatpush1.bf16.msra.mxu0 %v1192
      %1355 = vmatprep.subr.bf16.mxu0 0
      %1356 = vmatpush1.bf16.msra.mxu0 %v1193
      %1357 = vmatprep.subr.bf16.mxu0 0
      %1358 = vmatpush1.bf16.msra.mxu0 %v1194
      %1359 = vmatprep.subr.bf16.mxu0 0
      %1360 = vmatpush1.bf16.msra.mxu0 %v1195
      %1361 = vmatprep.subr.bf16.mxu0 0
      %1362 = vmatpush1.bf16.msra.mxu0 %v1196
      %1363 = vmatprep.mubr.bf16.mxu0 %v372
      %1364 = vmatmul.mubr.bf16.gmra.mrb[0].mxu0 %v371
      %v1365 = vpop.f32.mrb[0].mxu0
      %v1366 = vadd.f32 %v1325, %v1365
      %v1367 = vpop.f32.mrb[0].mxu0
      %v1368 = vpop.f32.mrb[0].mxu0
      %v1369 = vadd.f32 %v1328, %v1368
      %v1370 = vpop.f32.mrb[0].mxu0
      %1371 = vdwg.mxu0
      %1372 = vmatprep.subr.bf16.mxu0 0
      %1373 = vmatpush1.bf16.msra.mxu0 %v1197
      %1374 = vmatprep.subr.bf16.mxu0 0
      %1375 = vmatpush1.bf16.msra.mxu0 %v1198
      %1376 = vmatprep.subr.bf16.mxu0 0
      %1377 = vmatpush1.bf16.msra.mxu0 0
      %1378 = vmatprep.subr.bf16.mxu0 0
      %1379 = vmatpush1.bf16.msra.mxu0 0
      %1380 = vmatprep.subr.bf16.mxu0 0
      %1381 = vmatpush1.bf16.msra.mxu0 0
      %1382 = vmatprep.subr.bf16.mxu0 0
      %1383 = vmatpush1.bf16.msra.mxu0 0
      %1384 = vmatprep.subr.bf16.mxu0 0
      %1385 = vmatpush1.bf16.msra.mxu0 0
      %1386 = vmatprep.subr.bf16.mxu0 0
      %1387 = vmatpush1.bf16.msra.mxu0 0
      %1388 = vmatprep.subr.bf16.mxu0 0
      %1389 = vmatpush1.bf16.msra.mxu0 0
      %1390 = vmatprep.subr.bf16.mxu0 0
      %1391 = vmatpush1.bf16.msra.mxu0 0
      %1392 = vmatprep.subr.bf16.mxu0 0
      %1393 = vmatpush1.bf16.msra.mxu0 0
      %1394 = vmatprep.subr.bf16.mxu0 0
      %1395 = vmatpush1.bf16.msra.mxu0 0
      %1396 = vmatprep.subr.bf16.mxu0 0
      %1397 = vmatpush1.bf16.msra.mxu0 0
      %1398 = vmatprep.subr.bf16.mxu0 0
      %1399 = vmatpush1.bf16.msra.mxu0 0
      %1400 = vmatprep.subr.bf16.mxu0 0
      %1401 = vmatpush1.bf16.msra.mxu0 0
      %1402 = vmatprep.subr.bf16.mxu0 0
      %1403 = vmatpush1.bf16.msra.mxu0 0
      %1404 = vmatprep.mubr.bf16.mxu0 0
      %1405 = vmatmul.mubr.bf16.gmra.mrb[0].mxu0 %v682
      %v1406 = vpop.f32.mrb[0].mxu0
      %v1407 = vadd.f32 %v1366, %v1406
      %v1408 = vpop.f32.mrb[0].mxu0
      %v1409 = vpop.f32.mrb[0].mxu0
      %v1410 = vadd.f32 %v1369, %v1409
      %v1411 = vpop.f32.mrb[0].mxu0
      %1412 = vdwg.mxu0
      %s1413 = scalar_lea.vmem %s226, 800
      %v1414 = vld [vmem:[%s1413] sm:$0xf]
      %v1415 = vld [vmem:[%s1413 + $0x4] sm:$0xf]
      %v1416 = vld [vmem:[%s1413 + $0x8] sm:$0xf]
      %v1417 = vld [vmem:[%s1413 + $0xc] sm:$0xf]
      %v1418 = vld [vmem:[%s1413 + $0x10] sm:$0xf]
      %v1419 = vld [vmem:[%s1413 + $0x14] sm:$0xf]
      %v1420 = vld [vmem:[%s1413 + $0x18] sm:$0xf]
      %v1421 = vld [vmem:[%s1413 + $0x1c] sm:$0xf]
      %v1422 = vld [vmem:[%s1413 + $0x20] sm:$0xf]
      %v1423 = vld [vmem:[%s1413 + $0x24] sm:$0xf]
      %v1424 = vld [vmem:[%s1413 + $0x28] sm:$0xf]
      %v1425 = vld [vmem:[%s1413 + $0x2c] sm:$0xf]
      %v1426 = vld [vmem:[%s1413 + $0x30] sm:$0xf]
      %v1427 = vld [vmem:[%s1413 + $0x34] sm:$0xf]
      %v1428 = vld [vmem:[%s1413 + $0x38] sm:$0xf]
      %v1429 = vld [vmem:[%s1413 + $0x3c] sm:$0xf]
      %v1430 = vld [vmem:[%s1413 + $0x40] sm:$0xf]
      %v1431 = vld [vmem:[%s1413 + $0x44] sm:$0xf]
      %v1432 = vld [vmem:[%s1413 + $0x48] sm:$0xf]
      %v1433 = vld [vmem:[%s1413 + $0x4c] sm:$0xf]
      %v1434 = vld [vmem:[%s1413 + $0x50] sm:$0xf]
      %v1435 = vld [vmem:[%s1413 + $0x54] sm:$0xf]
      %v1436 = vld [vmem:[%s1413 + $0x58] sm:$0xf]
      %v1437 = vld [vmem:[%s1413 + $0x5c] sm:$0xf]
      %v1438 = vld [vmem:[%s1413 + $0x60] sm:$0xf]
      %v1439 = vld [vmem:[%s1413 + $0x64] sm:$0xf]
      %v1440 = vld [vmem:[%s1413 + $0x68] sm:$0xf]
      %v1441 = vld [vmem:[%s1413 + $0x6c] sm:$0xf]
      %v1442 = vld [vmem:[%s1413 + $0x70] sm:$0xf]
      %v1443 = vld [vmem:[%s1413 + $0x74] sm:$0xf]
      %v1444 = vld [vmem:[%s1413 + $0x78] sm:$0xf]
      %v1445 = vld [vmem:[%s1413 + $0x7c] sm:$0xf]
      %v1446 = vld [vmem:[%s1413 + $0x80] sm:$0xf]
      %v1447 = vld [vmem:[%s1413 + $0x84] sm:$0xf]
      %v1448 = vld [vmem:[%s1413 + $0x88] sm:$0xf]
      %v1449 = vld [vmem:[%s1413 + $0x8c] sm:$0xf]
      %v1450 = vld [vmem:[%s1413 + $0x90] sm:$0xf]
      %v1451 = vld [vmem:[%s1413 + $0x94] sm:$0xf]
      %v1452 = vld [vmem:[%s1413 + $0x98] sm:$0xf]
      %v1453 = vld [vmem:[%s1413 + $0x9c] sm:$0xf]
      %v1454 = vld [vmem:[%s1413 + $0xa0] sm:$0xf]
      %v1455 = vld [vmem:[%s1413 + $0xa4] sm:$0xf]
      %v1456 = vld [vmem:[%s1413 + $0xa8] sm:$0xf]
      %v1457 = vld [vmem:[%s1413 + $0xac] sm:$0xf]
      %v1458 = vld [vmem:[%s1413 + $0xb0] sm:$0xf]
      %v1459 = vld [vmem:[%s1413 + $0xb4] sm:$0xf]
      %v1460 = vld [vmem:[%s1413 + $0xb8] sm:$0xf]
      %v1461 = vld [vmem:[%s1413 + $0xbc] sm:$0xf]
      %v1462 = vld [vmem:[%s1413 + $0xc0] sm:$0xf]
      %v1463 = vld [vmem:[%s1413 + $0xc4] sm:$0xf]
      %v1464 = vld [vmem:[%s1413 + $0xc8] sm:$0xf]
      %v1465 = vld [vmem:[%s1413 + $0xcc] sm:$0xf]
      %v1466 = vld [vmem:[%s1413 + $0xd0] sm:$0xf]
      %v1467 = vld [vmem:[%s1413 + $0xd4] sm:$0xf]
      %v1468 = vld [vmem:[%s1413 + $0xd8] sm:$0xf]
      %v1469 = vld [vmem:[%s1413 + $0xdc] sm:$0xf]
      %v1470 = vld [vmem:[%s1413 + $0xe0] sm:$0xf]
      %v1471 = vld [vmem:[%s1413 + $0xe4] sm:$0xf]
      %v1472 = vld [vmem:[%s1413 + $0xe8] sm:$0xf]
      %v1473 = vld [vmem:[%s1413 + $0xec] sm:$0xf]
      %v1474 = vld [vmem:[%s1413 + $0xf0] sm:$0xf]
      %v1475 = vld [vmem:[%s1413 + $0xf4] sm:$0xf]
      %v1476 = vld [vmem:[%s1413 + $0xf8] sm:$0xf]
      %v1477 = vld [vmem:[%s1413 + $0xfc] sm:$0xf]
      %v1478 = vld [vmem:[%s1413 + $0x100] sm:$0xf]
      %v1479 = vld [vmem:[%s1413 + $0x104] sm:$0xf]
      %v1480 = vld [vmem:[%s1413 + $0x108] sm:$0xf]
      %v1481 = vld [vmem:[%s1413 + $0x10c] sm:$0xf]
      %v1482 = vld [vmem:[%s1413 + $0x110] sm:$0xf]
      %v1483 = vld [vmem:[%s1413 + $0x114] sm:$0xf]
      %v1484 = vld [vmem:[%s1413 + $0x118] sm:$0xf]
      %v1485 = vld [vmem:[%s1413 + $0x11c] sm:$0xf]
      %v1486 = vld [vmem:[%s1413 + $0x120] sm:$0xf]
      %v1487 = vld [vmem:[%s1413 + $0x124] sm:$0xf]
      %v1488 = vld [vmem:[%s1413 + $0x128] sm:$0xf]
      %v1489 = vld [vmem:[%s1413 + $0x12c] sm:$0xf]
      %v1490 = vld [vmem:[%s1413 + $0x130] sm:$0xf]
      %v1491 = vld [vmem:[%s1413 + $0x134] sm:$0xf]
      %v1492 = vld [vmem:[%s1413 + $0x138] sm:$0xf]
      %v1493 = vld [vmem:[%s1413 + $0x13c] sm:$0xf]
      %v1494 = vld [vmem:[%s1413 + $0x140] sm:$0xf]
      %v1495 = vld [vmem:[%s1413 + $0x144] sm:$0xf]
      %v1496 = vld [vmem:[%s1413 + $0x148] sm:$0xf]
      %v1497 = vld [vmem:[%s1413 + $0x14c] sm:$0xf]
      %v1498 = vld [vmem:[%s1413 + $0x150] sm:$0xf]
      %v1499 = vld [vmem:[%s1413 + $0x154] sm:$0xf]
      %v1500 = vld [vmem:[%s1413 + $0x158] sm:$0xf]
      %v1501 = vld [vmem:[%s1413 + $0x15c] sm:$0xf]
      %v1502 = vld [vmem:[%s1413 + $0x160] sm:$0xf]
      %v1503 = vld [vmem:[%s1413 + $0x164] sm:$0xf]
      %v1504 = vld [vmem:[%s1413 + $0x168] sm:$0xf]
      %v1505 = vld [vmem:[%s1413 + $0x16c] sm:$0xf]
      %v1506 = vld [vmem:[%s1413 + $0x170] sm:$0xf]
      %v1507 = vld [vmem:[%s1413 + $0x174] sm:$0xf]
      %v1508 = vld [vmem:[%s1413 + $0x178] sm:$0xf]
      %v1509 = vld [vmem:[%s1413 + $0x17c] sm:$0xf]
      %v1510 = vld [vmem:[%s1413 + $0x180] sm:$0xf]
      %v1511 = vld [vmem:[%s1413 + $0x184] sm:$0xf]
      %v1512 = vld [vmem:[%s1413 + $0x188] sm:$0xf]
      %v1513 = vld [vmem:[%s1413 + $0x18c] sm:$0xf]
      %v1614 = vunpack.c.l.b16 %v1414
      %v1615 = vunpack.c.l.b16 %v1415
      %v1616 = vunpack.c.l.b16 %v1416
      %v1617 = vunpack.c.l.b16 %v1417
      %v1618 = vunpack.c.l.b16 %v1418
      %v1619 = vunpack.c.l.b16 %v1419
      %v1620 = vunpack.c.l.b16 %v1420
      %v1621 = vunpack.c.l.b16 %v1421
      %v1622 = vunpack.c.l.b16 %v1422
      %v1623 = vunpack.c.l.b16 %v1423
      %v1624 = vunpack.c.l.b16 %v1424
      %v1625 = vunpack.c.l.b16 %v1425
      %v1626 = vunpack.c.l.b16 %v1426
      %v1627 = vunpack.c.l.b16 %v1427
      %v1628 = vunpack.c.l.b16 %v1428
      %v1629 = vunpack.c.l.b16 %v1429
      %v1630 = vunpack.c.l.b16 %v1430
      %v1631 = vunpack.c.l.b16 %v1431
      %v1632 = vunpack.c.l.b16 %v1432
      %v1633 = vunpack.c.l.b16 %v1433
      %v1634 = vunpack.c.l.b16 %v1434
      %v1635 = vunpack.c.l.b16 %v1435
      %v1636 = vunpack.c.l.b16 %v1436
      %v1637 = vunpack.c.l.b16 %v1437
      %v1638 = vunpack.c.l.b16 %v1438
      %v1639 = vunpack.c.l.b16 %v1439
      %v1640 = vunpack.c.l.b16 %v1440
      %v1641 = vunpack.c.l.b16 %v1441
      %v1642 = vunpack.c.l.b16 %v1442
      %v1643 = vunpack.c.l.b16 %v1443
      %v1644 = vunpack.c.l.b16 %v1444
      %v1645 = vunpack.c.l.b16 %v1445
      %v1646 = vunpack.c.l.b16 %v1446
      %v1647 = vunpack.c.l.b16 %v1447
      %v1648 = vunpack.c.l.b16 %v1448
      %v1649 = vunpack.c.l.b16 %v1449
      %v1650 = vunpack.c.l.b16 %v1450
      %v1651 = vunpack.c.l.b16 %v1451
      %v1652 = vunpack.c.l.b16 %v1452
      %v1653 = vunpack.c.l.b16 %v1453
      %v1654 = vunpack.c.l.b16 %v1454
      %v1655 = vunpack.c.l.b16 %v1455
      %v1656 = vunpack.c.l.b16 %v1456
      %v1657 = vunpack.c.l.b16 %v1457
      %v1658 = vunpack.c.l.b16 %v1458
      %v1659 = vunpack.c.l.b16 %v1459
      %v1660 = vunpack.c.l.b16 %v1460
      %v1661 = vunpack.c.l.b16 %v1461
      %v1662 = vunpack.c.l.b16 %v1462
      %v1663 = vunpack.c.l.b16 %v1463
      %v1664 = vunpack.c.l.b16 %v1464
      %v1665 = vunpack.c.l.b16 %v1465
      %v1666 = vunpack.c.l.b16 %v1466
      %v1667 = vunpack.c.l.b16 %v1467
      %v1668 = vunpack.c.l.b16 %v1468
      %v1669 = vunpack.c.l.b16 %v1469
      %v1670 = vunpack.c.l.b16 %v1470
      %v1671 = vunpack.c.l.b16 %v1471
      %v1672 = vunpack.c.l.b16 %v1472
      %v1673 = vunpack.c.l.b16 %v1473
      %v1674 = vunpack.c.l.b16 %v1474
      %v1675 = vunpack.c.l.b16 %v1475
      %v1676 = vunpack.c.l.b16 %v1476
      %v1677 = vunpack.c.l.b16 %v1477
      %v1678 = vunpack.c.l.b16 %v1478
      %v1679 = vunpack.c.l.b16 %v1479
      %v1680 = vunpack.c.l.b16 %v1480
      %v1681 = vunpack.c.l.b16 %v1481
      %v1682 = vunpack.c.l.b16 %v1482
      %v1683 = vunpack.c.l.b16 %v1483
      %v1684 = vunpack.c.l.b16 %v1484
      %v1685 = vunpack.c.l.b16 %v1485
      %v1686 = vunpack.c.l.b16 %v1486
      %v1687 = vunpack.c.l.b16 %v1487
      %v1688 = vunpack.c.l.b16 %v1488
      %v1689 = vunpack.c.l.b16 %v1489
      %v1690 = vunpack.c.l.b16 %v1490
      %v1691 = vunpack.c.l.b16 %v1491
      %v1692 = vunpack.c.l.b16 %v1492
      %v1693 = vunpack.c.l.b16 %v1493
      %v1694 = vunpack.c.l.b16 %v1494
      %v1695 = vunpack.c.l.b16 %v1495
      %v1696 = vunpack.c.l.b16 %v1496
      %v1697 = vunpack.c.l.b16 %v1497
      %v1698 = vunpack.c.l.b16 %v1498
      %v1699 = vunpack.c.l.b16 %v1499
      %v1700 = vunpack.c.l.b16 %v1500
      %v1701 = vunpack.c.l.b16 %v1501
      %v1702 = vunpack.c.l.b16 %v1502
      %v1703 = vunpack.c.l.b16 %v1503
      %v1704 = vunpack.c.l.b16 %v1504
      %v1705 = vunpack.c.l.b16 %v1505
      %v1706 = vunpack.c.l.b16 %v1506
      %v1707 = vunpack.c.l.b16 %v1507
      %v1708 = vunpack.c.l.b16 %v1508
      %v1709 = vunpack.c.l.b16 %v1509
      %v1710 = vunpack.c.l.b16 %v1510
      %v1711 = vunpack.c.l.b16 %v1511
      %v1712 = vunpack.c.l.b16 %v1512
      %v1713 = vunpack.c.l.b16 %v1513
      %v1714 = vpack.c.b16 %v1615, %v1614
      %v1715 = vpack.c.b16 %v1617, %v1616
      %v1716 = vpack.c.b16 %v1619, %v1618
      %v1717 = vpack.c.b16 %v1621, %v1620
      %v1718 = vpack.c.b16 %v1623, %v1622
      %v1719 = vpack.c.b16 %v1625, %v1624
      %v1720 = vpack.c.b16 %v1627, %v1626
      %v1721 = vpack.c.b16 %v1629, %v1628
      %v1722 = vpack.c.b16 %v1631, %v1630
      %v1723 = vpack.c.b16 %v1633, %v1632
      %v1724 = vpack.c.b16 %v1635, %v1634
      %v1725 = vpack.c.b16 %v1637, %v1636
      %v1726 = vpack.c.b16 %v1639, %v1638
      %v1727 = vpack.c.b16 %v1641, %v1640
      %v1728 = vpack.c.b16 %v1643, %v1642
      %v1729 = vpack.c.b16 %v1645, %v1644
      %v1730 = vpack.c.b16 %v1647, %v1646
      %v1731 = vpack.c.b16 %v1649, %v1648
      %v1732 = vpack.c.b16 %v1651, %v1650
      %v1733 = vpack.c.b16 %v1653, %v1652
      %v1734 = vpack.c.b16 %v1655, %v1654
      %v1735 = vpack.c.b16 %v1657, %v1656
      %v1736 = vpack.c.b16 %v1659, %v1658
      %v1737 = vpack.c.b16 %v1661, %v1660
      %v1738 = vpack.c.b16 %v1663, %v1662
      %v1739 = vpack.c.b16 %v1665, %v1664
      %v1740 = vpack.c.b16 %v1667, %v1666
      %v1741 = vpack.c.b16 %v1669, %v1668
      %v1742 = vpack.c.b16 %v1671, %v1670
      %v1743 = vpack.c.b16 %v1673, %v1672
      %v1744 = vpack.c.b16 %v1675, %v1674
      %v1745 = vpack.c.b16 %v1677, %v1676
      %v1746 = vpack.c.b16 %v1679, %v1678
      %v1747 = vpack.c.b16 %v1681, %v1680
      %v1748 = vpack.c.b16 %v1683, %v1682
      %v1749 = vpack.c.b16 %v1685, %v1684
      %v1750 = vpack.c.b16 %v1687, %v1686
      %v1751 = vpack.c.b16 %v1689, %v1688
      %v1752 = vpack.c.b16 %v1691, %v1690
      %v1753 = vpack.c.b16 %v1693, %v1692
      %v1754 = vpack.c.b16 %v1695, %v1694
      %v1755 = vpack.c.b16 %v1697, %v1696
      %v1756 = vpack.c.b16 %v1699, %v1698
      %v1757 = vpack.c.b16 %v1701, %v1700
      %v1758 = vpack.c.b16 %v1703, %v1702
      %v1759 = vpack.c.b16 %v1705, %v1704
      %v1760 = vpack.c.b16 %v1707, %v1706
      %v1761 = vpack.c.b16 %v1709, %v1708
      %v1762 = vpack.c.b16 %v1711, %v1710
      %v1763 = vpack.c.b16 %v1713, %v1712
      %1814 = vmatprep.subr.bf16.mxu0 0
      %1815 = vmatpush1.bf16.msra.mxu0 %v1714
      %1816 = vmatprep.subr.bf16.mxu0 0
      %1817 = vmatpush1.bf16.msra.mxu0 %v1715
      %1818 = vmatprep.subr.bf16.mxu0 0
      %1819 = vmatpush1.bf16.msra.mxu0 %v1716
      %1820 = vmatprep.subr.bf16.mxu0 0
      %1821 = vmatpush1.bf16.msra.mxu0 %v1717
      %1822 = vmatprep.subr.bf16.mxu0 0
      %1823 = vmatpush1.bf16.msra.mxu0 %v1718
      %1824 = vmatprep.subr.bf16.mxu0 0
      %1825 = vmatpush1.bf16.msra.mxu0 %v1719
      %1826 = vmatprep.subr.bf16.mxu0 0
      %1827 = vmatpush1.bf16.msra.mxu0 %v1720
      %1828 = vmatprep.subr.bf16.mxu0 0
      %1829 = vmatpush1.bf16.msra.mxu0 %v1721
      %1830 = vmatprep.subr.bf16.mxu0 0
      %1831 = vmatpush1.bf16.msra.mxu0 %v1722
      %1832 = vmatprep.subr.bf16.mxu0 0
      %1833 = vmatpush1.bf16.msra.mxu0 %v1723
      %1834 = vmatprep.subr.bf16.mxu0 0
      %1835 = vmatpush1.bf16.msra.mxu0 %v1724
      %1836 = vmatprep.subr.bf16.mxu0 0
      %1837 = vmatpush1.bf16.msra.mxu0 %v1725
      %1838 = vmatprep.subr.bf16.mxu0 0
      %1839 = vmatpush1.bf16.msra.mxu0 %v1726
      %1840 = vmatprep.subr.bf16.mxu0 0
      %1841 = vmatpush1.bf16.msra.mxu0 %v1727
      %1842 = vmatprep.subr.bf16.mxu0 0
      %1843 = vmatpush1.bf16.msra.mxu0 %v1728
      %1844 = vmatprep.subr.bf16.mxu0 0
      %1845 = vmatpush1.bf16.msra.mxu0 %v1729
      %1846 = vmatprep.mubr.bf16.mxu0 %v368
      %1847 = vmatmul.mubr.bf16.gmra.mrb[0].mxu0 %v367
      %v1848 = vpop.f32.mrb[0].mxu0
      %v1849 = vadd.f32 0.0, %v1848
      %v1850 = vpop.f32.mrb[0].mxu0
      %v1851 = vpop.f32.mrb[0].mxu0
      %v1852 = vadd.f32 0.0, %v1851
      %v1853 = vpop.f32.mrb[0].mxu0
      %1854 = vdwg.mxu0
      %1855 = vmatprep.subr.bf16.mxu0 0
      %1856 = vmatpush1.bf16.msra.mxu0 %v1730
      %1857 = vmatprep.subr.bf16.mxu0 0
      %1858 = vmatpush1.bf16.msra.mxu0 %v1731
      %1859 = vmatprep.subr.bf16.mxu0 0
      %1860 = vmatpush1.bf16.msra.mxu0 %v1732
      %1861 = vmatprep.subr.bf16.mxu0 0
      %1862 = vmatpush1.bf16.msra.mxu0 %v1733
      %1863 = vmatprep.subr.bf16.mxu0 0
      %1864 = vmatpush1.bf16.msra.mxu0 %v1734
      %1865 = vmatprep.subr.bf16.mxu0 0
      %1866 = vmatpush1.bf16.msra.mxu0 %v1735
      %1867 = vmatprep.subr.bf16.mxu0 0
      %1868 = vmatpush1.bf16.msra.mxu0 %v1736
      %1869 = vmatprep.subr.bf16.mxu0 0
      %1870 = vmatpush1.bf16.msra.mxu0 %v1737
      %1871 = vmatprep.subr.bf16.mxu0 0
      %1872 = vmatpush1.bf16.msra.mxu0 %v1738
      %1873 = vmatprep.subr.bf16.mxu0 0
      %1874 = vmatpush1.bf16.msra.mxu0 %v1739
      %1875 = vmatprep.subr.bf16.mxu0 0
      %1876 = vmatpush1.bf16.msra.mxu0 %v1740
      %1877 = vmatprep.subr.bf16.mxu0 0
      %1878 = vmatpush1.bf16.msra.mxu0 %v1741
      %1879 = vmatprep.subr.bf16.mxu0 0
      %1880 = vmatpush1.bf16.msra.mxu0 %v1742
      %1881 = vmatprep.subr.bf16.mxu0 0
      %1882 = vmatpush1.bf16.msra.mxu0 %v1743
      %1883 = vmatprep.subr.bf16.mxu0 0
      %1884 = vmatpush1.bf16.msra.mxu0 %v1744
      %1885 = vmatprep.subr.bf16.mxu0 0
      %1886 = vmatpush1.bf16.msra.mxu0 %v1745
      %1887 = vmatprep.mubr.bf16.mxu0 %v370
      %1888 = vmatmul.mubr.bf16.gmra.mrb[0].mxu0 %v369
      %v1889 = vpop.f32.mrb[0].mxu0
      %v1890 = vadd.f32 %v1849, %v1889
      %v1891 = vpop.f32.mrb[0].mxu0
      %v1892 = vpop.f32.mrb[0].mxu0
      %v1893 = vadd.f32 %v1852, %v1892
      %v1894 = vpop.f32.mrb[0].mxu0
      %1895 = vdwg.mxu0
      %1896 = vmatprep.subr.bf16.mxu0 0
      %1897 = vmatpush1.bf16.msra.mxu0 %v1746
      %1898 = vmatprep.subr.bf16.mxu0 0
      %1899 = vmatpush1.bf16.msra.mxu0 %v1747
      %1900 = vmatprep.subr.bf16.mxu0 0
      %1901 = vmatpush1.bf16.msra.mxu0 %v1748
      %1902 = vmatprep.subr.bf16.mxu0 0
      %1903 = vmatpush1.bf16.msra.mxu0 %v1749
      %1904 = vmatprep.subr.bf16.mxu0 0
      %1905 = vmatpush1.bf16.msra.mxu0 %v1750
      %1906 = vmatprep.subr.bf16.mxu0 0
      %1907 = vmatpush1.bf16.msra.mxu0 %v1751
      %1908 = vmatprep.subr.bf16.mxu0 0
      %1909 = vmatpush1.bf16.msra.mxu0 %v1752
      %1910 = vmatprep.subr.bf16.mxu0 0
      %1911 = vmatpush1.bf16.msra.mxu0 %v1753
      %1912 = vmatprep.subr.bf16.mxu0 0
      %1913 = vmatpush1.bf16.msra.mxu0 %v1754
      %1914 = vmatprep.subr.bf16.mxu0 0
      %1915 = vmatpush1.bf16.msra.mxu0 %v1755
      %1916 = vmatprep.subr.bf16.mxu0 0
      %1917 = vmatpush1.bf16.msra.mxu0 %v1756
      %1918 = vmatprep.subr.bf16.mxu0 0
      %1919 = vmatpush1.bf16.msra.mxu0 %v1757
      %1920 = vmatprep.subr.bf16.mxu0 0
      %1921 = vmatpush1.bf16.msra.mxu0 %v1758
      %1922 = vmatprep.subr.bf16.mxu0 0
      %1923 = vmatpush1.bf16.msra.mxu0 %v1759
      %1924 = vmatprep.subr.bf16.mxu0 0
      %1925 = vmatpush1.bf16.msra.mxu0 %v1760
      %1926 = vmatprep.subr.bf16.mxu0 0
      %1927 = vmatpush1.bf16.msra.mxu0 %v1761
      %1928 = vmatprep.mubr.bf16.mxu0 %v372
      %1929 = vmatmul.mubr.bf16.gmra.mrb[0].mxu0 %v371
      %v1930 = vpop.f32.mrb[0].mxu0
      %v1931 = vadd.f32 %v1890, %v1930
      %v1932 = vpop.f32.mrb[0].mxu0
      %v1933 = vpop.f32.mrb[0].mxu0
      %v1934 = vadd.f32 %v1893, %v1933
      %v1935 = vpop.f32.mrb[0].mxu0
      %1936 = vdwg.mxu0
      %1937 = vmatprep.subr.bf16.mxu0 0
      %1938 = vmatpush1.bf16.msra.mxu0 %v1762
      %1939 = vmatprep.subr.bf16.mxu0 0
      %1940 = vmatpush1.bf16.msra.mxu0 %v1763
      %1941 = vmatprep.subr.bf16.mxu0 0
      %1942 = vmatpush1.bf16.msra.mxu0 0
      %1943 = vmatprep.subr.bf16.mxu0 0
      %1944 = vmatpush1.bf16.msra.mxu0 0
      %1945 = vmatprep.subr.bf16.mxu0 0
      %1946 = vmatpush1.bf16.msra.mxu0 0
      %1947 = vmatprep.subr.bf16.mxu0 0
      %1948 = vmatpush1.bf16.msra.mxu0 0
      %1949 = vmatprep.subr.bf16.mxu0 0
      %1950 = vmatpush1.bf16.msra.mxu0 0
      %1951 = vmatprep.subr.bf16.mxu0 0
      %1952 = vmatpush1.bf16.msra.mxu0 0
      %1953 = vmatprep.subr.bf16.mxu0 0
      %1954 = vmatpush1.bf16.msra.mxu0 0
      %1955 = vmatprep.subr.bf16.mxu0 0
      %1956 = vmatpush1.bf16.msra.mxu0 0
      %1957 = vmatprep.subr.bf16.mxu0 0
      %1958 = vmatpush1.bf16.msra.mxu0 0
      %1959 = vmatprep.subr.bf16.mxu0 0
      %1960 = vmatpush1.bf16.msra.mxu0 0
      %1961 = vmatprep.subr.bf16.mxu0 0
      %1962 = vmatpush1.bf16.msra.mxu0 0
      %1963 = vmatprep.subr.bf16.mxu0 0
      %1964 = vmatpush1.bf16.msra.mxu0 0
      %1965 = vmatprep.subr.bf16.mxu0 0
      %1966 = vmatpush1.bf16.msra.mxu0 0
      %1967 = vmatprep.subr.bf16.mxu0 0
      %1968 = vmatpush1.bf16.msra.mxu0 0
      %1969 = vmatprep.mubr.bf16.mxu0 0
      %1970 = vmatmul.mubr.bf16.gmra.mrb[0].mxu0 %v682
      %v1971 = vpop.f32.mrb[0].mxu0
      %v1972 = vadd.f32 %v1931, %v1971
      %v1973 = vpop.f32.mrb[0].mxu0
      %v1974 = vpop.f32.mrb[0].mxu0
      %v1975 = vadd.f32 %v1934, %v1974
      %v1976 = vpop.f32.mrb[0].mxu0
      %1977 = vdwg.mxu0
      %s1978 = scalar_lea.vmem %s226, 1200
      %v1979 = vld [vmem:[%s1978] sm:$0xf]
      %v1980 = vld [vmem:[%s1978 + $0x4] sm:$0xf]
      %v1981 = vld [vmem:[%s1978 + $0x8] sm:$0xf]
      %v1982 = vld [vmem:[%s1978 + $0xc] sm:$0xf]
      %v1983 = vld [vmem:[%s1978 + $0x10] sm:$0xf]
      %v1984 = vld [vmem:[%s1978 + $0x14] sm:$0xf]
      %v1985 = vld [vmem:[%s1978 + $0x18] sm:$0xf]
      %v1986 = vld [vmem:[%s1978 + $0x1c] sm:$0xf]
      %v1987 = vld [vmem:[%s1978 + $0x20] sm:$0xf]
      %v1988 = vld [vmem:[%s1978 + $0x24] sm:$0xf]
      %v1989 = vld [vmem:[%s1978 + $0x28] sm:$0xf]
      %v1990 = vld [vmem:[%s1978 + $0x2c] sm:$0xf]
      %v1991 = vld [vmem:[%s1978 + $0x30] sm:$0xf]
      %v1992 = vld [vmem:[%s1978 + $0x34] sm:$0xf]
      %v1993 = vld [vmem:[%s1978 + $0x38] sm:$0xf]
      %v1994 = vld [vmem:[%s1978 + $0x3c] sm:$0xf]
      %v1995 = vld [vmem:[%s1978 + $0x40] sm:$0xf]
      %v1996 = vld [vmem:[%s1978 + $0x44] sm:$0xf]
      %v1997 = vld [vmem:[%s1978 + $0x48] sm:$0xf]
      %v1998 = vld [vmem:[%s1978 + $0x4c] sm:$0xf]
      %v1999 = vld [vmem:[%s1978 + $0x50] sm:$0xf]
      %v2000 = vld [vmem:[%s1978 + $0x54] sm:$0xf]
      %v2001 = vld [vmem:[%s1978 + $0x58] sm:$0xf]
      %v2002 = vld [vmem:[%s1978 + $0x5c] sm:$0xf]
      %v2003 = vld [vmem:[%s1978 + $0x60] sm:$0xf]
      %v2004 = vld [vmem:[%s1978 + $0x64] sm:$0xf]
      %v2005 = vld [vmem:[%s1978 + $0x68] sm:$0xf]
      %v2006 = vld [vmem:[%s1978 + $0x6c] sm:$0xf]
      %v2007 = vld [vmem:[%s1978 + $0x70] sm:$0xf]
      %v2008 = vld [vmem:[%s1978 + $0x74] sm:$0xf]
      %v2009 = vld [vmem:[%s1978 + $0x78] sm:$0xf]
      %v2010 = vld [vmem:[%s1978 + $0x7c] sm:$0xf]
      %v2011 = vld [vmem:[%s1978 + $0x80] sm:$0xf]
      %v2012 = vld [vmem:[%s1978 + $0x84] sm:$0xf]
      %v2013 = vld [vmem:[%s1978 + $0x88] sm:$0xf]
      %v2014 = vld [vmem:[%s1978 + $0x8c] sm:$0xf]
      %v2015 = vld [vmem:[%s1978 + $0x90] sm:$0xf]
      %v2016 = vld [vmem:[%s1978 + $0x94] sm:$0xf]
      %v2017 = vld [vmem:[%s1978 + $0x98] sm:$0xf]
      %v2018 = vld [vmem:[%s1978 + $0x9c] sm:$0xf]
      %v2019 = vld [vmem:[%s1978 + $0xa0] sm:$0xf]
      %v2020 = vld [vmem:[%s1978 + $0xa4] sm:$0xf]
      %v2021 = vld [vmem:[%s1978 + $0xa8] sm:$0xf]
      %v2022 = vld [vmem:[%s1978 + $0xac] sm:$0xf]
      %v2023 = vld [vmem:[%s1978 + $0xb0] sm:$0xf]
      %v2024 = vld [vmem:[%s1978 + $0xb4] sm:$0xf]
      %v2025 = vld [vmem:[%s1978 + $0xb8] sm:$0xf]
      %v2026 = vld [vmem:[%s1978 + $0xbc] sm:$0xf]
      %v2027 = vld [vmem:[%s1978 + $0xc0] sm:$0xf]
      %v2028 = vld [vmem:[%s1978 + $0xc4] sm:$0xf]
      %v2029 = vld [vmem:[%s1978 + $0xc8] sm:$0xf]
      %v2030 = vld [vmem:[%s1978 + $0xcc] sm:$0xf]
      %v2031 = vld [vmem:[%s1978 + $0xd0] sm:$0xf]
      %v2032 = vld [vmem:[%s1978 + $0xd4] sm:$0xf]
      %v2033 = vld [vmem:[%s1978 + $0xd8] sm:$0xf]
      %v2034 = vld [vmem:[%s1978 + $0xdc] sm:$0xf]
      %v2035 = vld [vmem:[%s1978 + $0xe0] sm:$0xf]
      %v2036 = vld [vmem:[%s1978 + $0xe4] sm:$0xf]
      %v2037 = vld [vmem:[%s1978 + $0xe8] sm:$0xf]
      %v2038 = vld [vmem:[%s1978 + $0xec] sm:$0xf]
      %v2039 = vld [vmem:[%s1978 + $0xf0] sm:$0xf]
      %v2040 = vld [vmem:[%s1978 + $0xf4] sm:$0xf]
      %v2041 = vld [vmem:[%s1978 + $0xf8] sm:$0xf]
      %v2042 = vld [vmem:[%s1978 + $0xfc] sm:$0xf]
      %v2043 = vld [vmem:[%s1978 + $0x100] sm:$0xf]
      %v2044 = vld [vmem:[%s1978 + $0x104] sm:$0xf]
      %v2045 = vld [vmem:[%s1978 + $0x108] sm:$0xf]
      %v2046 = vld [vmem:[%s1978 + $0x10c] sm:$0xf]
      %v2047 = vld [vmem:[%s1978 + $0x110] sm:$0xf]
      %v2048 = vld [vmem:[%s1978 + $0x114] sm:$0xf]
      %v2049 = vld [vmem:[%s1978 + $0x118] sm:$0xf]
      %v2050 = vld [vmem:[%s1978 + $0x11c] sm:$0xf]
      %v2051 = vld [vmem:[%s1978 + $0x120] sm:$0xf]
      %v2052 = vld [vmem:[%s1978 + $0x124] sm:$0xf]
      %v2053 = vld [vmem:[%s1978 + $0x128] sm:$0xf]
      %v2054 = vld [vmem:[%s1978 + $0x12c] sm:$0xf]
      %v2055 = vld [vmem:[%s1978 + $0x130] sm:$0xf]
      %v2056 = vld [vmem:[%s1978 + $0x134] sm:$0xf]
      %v2057 = vld [vmem:[%s1978 + $0x138] sm:$0xf]
      %v2058 = vld [vmem:[%s1978 + $0x13c] sm:$0xf]
      %v2059 = vld [vmem:[%s1978 + $0x140] sm:$0xf]
      %v2060 = vld [vmem:[%s1978 + $0x144] sm:$0xf]
      %v2061 = vld [vmem:[%s1978 + $0x148] sm:$0xf]
      %v2062 = vld [vmem:[%s1978 + $0x14c] sm:$0xf]
      %v2063 = vld [vmem:[%s1978 + $0x150] sm:$0xf]
      %v2064 = vld [vmem:[%s1978 + $0x154] sm:$0xf]
      %v2065 = vld [vmem:[%s1978 + $0x158] sm:$0xf]
      %v2066 = vld [vmem:[%s1978 + $0x15c] sm:$0xf]
      %v2067 = vld [vmem:[%s1978 + $0x160] sm:$0xf]
      %v2068 = vld [vmem:[%s1978 + $0x164] sm:$0xf]
      %v2069 = vld [vmem:[%s1978 + $0x168] sm:$0xf]
      %v2070 = vld [vmem:[%s1978 + $0x16c] sm:$0xf]
      %v2071 = vld [vmem:[%s1978 + $0x170] sm:$0xf]
      %v2072 = vld [vmem:[%s1978 + $0x174] sm:$0xf]
      %v2073 = vld [vmem:[%s1978 + $0x178] sm:$0xf]
      %v2074 = vld [vmem:[%s1978 + $0x17c] sm:$0xf]
      %v2075 = vld [vmem:[%s1978 + $0x180] sm:$0xf]
      %v2076 = vld [vmem:[%s1978 + $0x184] sm:$0xf]
      %v2077 = vld [vmem:[%s1978 + $0x188] sm:$0xf]
      %v2078 = vld [vmem:[%s1978 + $0x18c] sm:$0xf]
      %v2179 = vunpack.c.l.b16 %v1979
      %v2180 = vunpack.c.l.b16 %v1980
      %v2181 = vunpack.c.l.b16 %v1981
      %v2182 = vunpack.c.l.b16 %v1982
      %v2183 = vunpack.c.l.b16 %v1983
      %v2184 = vunpack.c.l.b16 %v1984
      %v2185 = vunpack.c.l.b16 %v1985
      %v2186 = vunpack.c.l.b16 %v1986
      %v2187 = vunpack.c.l.b16 %v1987
      %v2188 = vunpack.c.l.b16 %v1988
      %v2189 = vunpack.c.l.b16 %v1989
      %v2190 = vunpack.c.l.b16 %v1990
      %v2191 = vunpack.c.l.b16 %v1991
      %v2192 = vunpack.c.l.b16 %v1992
      %v2193 = vunpack.c.l.b16 %v1993
      %v2194 = vunpack.c.l.b16 %v1994
      %v2195 = vunpack.c.l.b16 %v1995
      %v2196 = vunpack.c.l.b16 %v1996
      %v2197 = vunpack.c.l.b16 %v1997
      %v2198 = vunpack.c.l.b16 %v1998
      %v2199 = vunpack.c.l.b16 %v1999
      %v2200 = vunpack.c.l.b16 %v2000
      %v2201 = vunpack.c.l.b16 %v2001
      %v2202 = vunpack.c.l.b16 %v2002
      %v2203 = vunpack.c.l.b16 %v2003
      %v2204 = vunpack.c.l.b16 %v2004
      %v2205 = vunpack.c.l.b16 %v2005
      %v2206 = vunpack.c.l.b16 %v2006
      %v2207 = vunpack.c.l.b16 %v2007
      %v2208 = vunpack.c.l.b16 %v2008
      %v2209 = vunpack.c.l.b16 %v2009
      %v2210 = vunpack.c.l.b16 %v2010
      %v2211 = vunpack.c.l.b16 %v2011
      %v2212 = vunpack.c.l.b16 %v2012
      %v2213 = vunpack.c.l.b16 %v2013
      %v2214 = vunpack.c.l.b16 %v2014
      %v2215 = vunpack.c.l.b16 %v2015
      %v2216 = vunpack.c.l.b16 %v2016
      %v2217 = vunpack.c.l.b16 %v2017
      %v2218 = vunpack.c.l.b16 %v2018
      %v2219 = vunpack.c.l.b16 %v2019
      %v2220 = vunpack.c.l.b16 %v2020
      %v2221 = vunpack.c.l.b16 %v2021
      %v2222 = vunpack.c.l.b16 %v2022
      %v2223 = vunpack.c.l.b16 %v2023
      %v2224 = vunpack.c.l.b16 %v2024
      %v2225 = vunpack.c.l.b16 %v2025
      %v2226 = vunpack.c.l.b16 %v2026
      %v2227 = vunpack.c.l.b16 %v2027
      %v2228 = vunpack.c.l.b16 %v2028
      %v2229 = vunpack.c.l.b16 %v2029
      %v2230 = vunpack.c.l.b16 %v2030
      %v2231 = vunpack.c.l.b16 %v2031
      %v2232 = vunpack.c.l.b16 %v2032
      %v2233 = vunpack.c.l.b16 %v2033
      %v2234 = vunpack.c.l.b16 %v2034
      %v2235 = vunpack.c.l.b16 %v2035
      %v2236 = vunpack.c.l.b16 %v2036
      %v2237 = vunpack.c.l.b16 %v2037
      %v2238 = vunpack.c.l.b16 %v2038
      %v2239 = vunpack.c.l.b16 %v2039
      %v2240 = vunpack.c.l.b16 %v2040
      %v2241 = vunpack.c.l.b16 %v2041
      %v2242 = vunpack.c.l.b16 %v2042
      %v2243 = vunpack.c.l.b16 %v2043
      %v2244 = vunpack.c.l.b16 %v2044
      %v2245 = vunpack.c.l.b16 %v2045
      %v2246 = vunpack.c.l.b16 %v2046
      %v2247 = vunpack.c.l.b16 %v2047
      %v2248 = vunpack.c.l.b16 %v2048
      %v2249 = vunpack.c.l.b16 %v2049
      %v2250 = vunpack.c.l.b16 %v2050
      %v2251 = vunpack.c.l.b16 %v2051
      %v2252 = vunpack.c.l.b16 %v2052
      %v2253 = vunpack.c.l.b16 %v2053
      %v2254 = vunpack.c.l.b16 %v2054
      %v2255 = vunpack.c.l.b16 %v2055
      %v2256 = vunpack.c.l.b16 %v2056
      %v2257 = vunpack.c.l.b16 %v2057
      %v2258 = vunpack.c.l.b16 %v2058
      %v2259 = vunpack.c.l.b16 %v2059
      %v2260 = vunpack.c.l.b16 %v2060
      %v2261 = vunpack.c.l.b16 %v2061
      %v2262 = vunpack.c.l.b16 %v2062
      %v2263 = vunpack.c.l.b16 %v2063
      %v2264 = vunpack.c.l.b16 %v2064
      %v2265 = vunpack.c.l.b16 %v2065
      %v2266 = vunpack.c.l.b16 %v2066
      %v2267 = vunpack.c.l.b16 %v2067
      %v2268 = vunpack.c.l.b16 %v2068
      %v2269 = vunpack.c.l.b16 %v2069
      %v2270 = vunpack.c.l.b16 %v2070
      %v2271 = vunpack.c.l.b16 %v2071
      %v2272 = vunpack.c.l.b16 %v2072
      %v2273 = vunpack.c.l.b16 %v2073
      %v2274 = vunpack.c.l.b16 %v2074
      %v2275 = vunpack.c.l.b16 %v2075
      %v2276 = vunpack.c.l.b16 %v2076
      %v2277 = vunpack.c.l.b16 %v2077
      %v2278 = vunpack.c.l.b16 %v2078
      %v2279 = vpack.c.b16 %v2180, %v2179
      %v2280 = vpack.c.b16 %v2182, %v2181
      %v2281 = vpack.c.b16 %v2184, %v2183
      %v2282 = vpack.c.b16 %v2186, %v2185
      %v2283 = vpack.c.b16 %v2188, %v2187
      %v2284 = vpack.c.b16 %v2190, %v2189
      %v2285 = vpack.c.b16 %v2192, %v2191
      %v2286 = vpack.c.b16 %v2194, %v2193
      %v2287 = vpack.c.b16 %v2196, %v2195
      %v2288 = vpack.c.b16 %v2198, %v2197
      %v2289 = vpack.c.b16 %v2200, %v2199
      %v2290 = vpack.c.b16 %v2202, %v2201
      %v2291 = vpack.c.b16 %v2204, %v2203
      %v2292 = vpack.c.b16 %v2206, %v2205
      %v2293 = vpack.c.b16 %v2208, %v2207
      %v2294 = vpack.c.b16 %v2210, %v2209
      %v2295 = vpack.c.b16 %v2212, %v2211
      %v2296 = vpack.c.b16 %v2214, %v2213
      %v2297 = vpack.c.b16 %v2216, %v2215
      %v2298 = vpack.c.b16 %v2218, %v2217
      %v2299 = vpack.c.b16 %v2220, %v2219
      %v2300 = vpack.c.b16 %v2222, %v2221
      %v2301 = vpack.c.b16 %v2224, %v2223
      %v2302 = vpack.c.b16 %v2226, %v2225
      %v2303 = vpack.c.b16 %v2228, %v2227
      %v2304 = vpack.c.b16 %v2230, %v2229
      %v2305 = vpack.c.b16 %v2232, %v2231
      %v2306 = vpack.c.b16 %v2234, %v2233
      %v2307 = vpack.c.b16 %v2236, %v2235
      %v2308 = vpack.c.b16 %v2238, %v2237
      %v2309 = vpack.c.b16 %v2240, %v2239
      %v2310 = vpack.c.b16 %v2242, %v2241
      %v2311 = vpack.c.b16 %v2244, %v2243
      %v2312 = vpack.c.b16 %v2246, %v2245
      %v2313 = vpack.c.b16 %v2248, %v2247
      %v2314 = vpack.c.b16 %v2250, %v2249
      %v2315 = vpack.c.b16 %v2252, %v2251
      %v2316 = vpack.c.b16 %v2254, %v2253
      %v2317 = vpack.c.b16 %v2256, %v2255
      %v2318 = vpack.c.b16 %v2258, %v2257
      %v2319 = vpack.c.b16 %v2260, %v2259
      %v2320 = vpack.c.b16 %v2262, %v2261
      %v2321 = vpack.c.b16 %v2264, %v2263
      %v2322 = vpack.c.b16 %v2266, %v2265
      %v2323 = vpack.c.b16 %v2268, %v2267
      %v2324 = vpack.c.b16 %v2270, %v2269
      %v2325 = vpack.c.b16 %v2272, %v2271
      %v2326 = vpack.c.b16 %v2274, %v2273
      %v2327 = vpack.c.b16 %v2276, %v2275
      %v2328 = vpack.c.b16 %v2278, %v2277
      %2379 = vmatprep.subr.bf16.mxu0 0
      %2380 = vmatpush1.bf16.msra.mxu0 %v2279
      %2381 = vmatprep.subr.bf16.mxu0 0
      %2382 = vmatpush1.bf16.msra.mxu0 %v2280
      %2383 = vmatprep.subr.bf16.mxu0 0
      %2384 = vmatpush1.bf16.msra.mxu0 %v2281
      %2385 = vmatprep.subr.bf16.mxu0 0
      %2386 = vmatpush1.bf16.msra.mxu0 %v2282
      %2387 = vmatprep.subr.bf16.mxu0 0
      %2388 = vmatpush1.bf16.msra.mxu0 %v2283
      %2389 = vmatprep.subr.bf16.mxu0 0
      %2390 = vmatpush1.bf16.msra.mxu0 %v2284
      %2391 = vmatprep.subr.bf16.mxu0 0
      %2392 = vmatpush1.bf16.msra.mxu0 %v2285
      %2393 = vmatprep.subr.bf16.mxu0 0
      %2394 = vmatpush1.bf16.msra.mxu0 %v2286
      %2395 = vmatprep.subr.bf16.mxu0 0
      %2396 = vmatpush1.bf16.msra.mxu0 %v2287
      %2397 = vmatprep.subr.bf16.mxu0 0
      %2398 = vmatpush1.bf16.msra.mxu0 %v2288
      %2399 = vmatprep.subr.bf16.mxu0 0
      %2400 = vmatpush1.bf16.msra.mxu0 %v2289
      %2401 = vmatprep.subr.bf16.mxu0 0
      %2402 = vmatpush1.bf16.msra.mxu0 %v2290
      %2403 = vmatprep.subr.bf16.mxu0 0
      %2404 = vmatpush1.bf16.msra.mxu0 %v2291
      %2405 = vmatprep.subr.bf16.mxu0 0
      %2406 = vmatpush1.bf16.msra.mxu0 %v2292
      %2407 = vmatprep.subr.bf16.mxu0 0
      %2408 = vmatpush1.bf16.msra.mxu0 %v2293
      %2409 = vmatprep.subr.bf16.mxu0 0
      %2410 = vmatpush1.bf16.msra.mxu0 %v2294
      %2411 = vmatprep.mubr.bf16.mxu0 %v368
      %2412 = vmatmul.mubr.bf16.gmra.mrb[0].mxu0 %v367
      %v2413 = vpop.f32.mrb[0].mxu0
      %v2414 = vadd.f32 0.0, %v2413
      %v2415 = vpop.f32.mrb[0].mxu0
      %v2416 = vpop.f32.mrb[0].mxu0
      %v2417 = vadd.f32 0.0, %v2416
      %v2418 = vpop.f32.mrb[0].mxu0
      %2419 = vdwg.mxu0
      %2420 = vmatprep.subr.bf16.mxu0 0
      %2421 = vmatpush1.bf16.msra.mxu0 %v2295
      %2422 = vmatprep.subr.bf16.mxu0 0
      %2423 = vmatpush1.bf16.msra.mxu0 %v2296
      %2424 = vmatprep.subr.bf16.mxu0 0
      %2425 = vmatpush1.bf16.msra.mxu0 %v2297
      %2426 = vmatprep.subr.bf16.mxu0 0
      %2427 = vmatpush1.bf16.msra.mxu0 %v2298
      %2428 = vmatprep.subr.bf16.mxu0 0
      %2429 = vmatpush1.bf16.msra.mxu0 %v2299
      %2430 = vmatprep.subr.bf16.mxu0 0
      %2431 = vmatpush1.bf16.msra.mxu0 %v2300
      %2432 = vmatprep.subr.bf16.mxu0 0
      %2433 = vmatpush1.bf16.msra.mxu0 %v2301
      %2434 = vmatprep.subr.bf16.mxu0 0
      %2435 = vmatpush1.bf16.msra.mxu0 %v2302
      %2436 = vmatprep.subr.bf16.mxu0 0
      %2437 = vmatpush1.bf16.msra.mxu0 %v2303
      %2438 = vmatprep.subr.bf16.mxu0 0
      %2439 = vmatpush1.bf16.msra.mxu0 %v2304
      %2440 = vmatprep.subr.bf16.mxu0 0
      %2441 = vmatpush1.bf16.msra.mxu0 %v2305
      %2442 = vmatprep.subr.bf16.mxu0 0
      %2443 = vmatpush1.bf16.msra.mxu0 %v2306
      %2444 = vmatprep.subr.bf16.mxu0 0
      %2445 = vmatpush1.bf16.msra.mxu0 %v2307
      %2446 = vmatprep.subr.bf16.mxu0 0
      %2447 = vmatpush1.bf16.msra.mxu0 %v2308
      %2448 = vmatprep.subr.bf16.mxu0 0
      %2449 = vmatpush1.bf16.msra.mxu0 %v2309
      %2450 = vmatprep.subr.bf16.mxu0 0
      %2451 = vmatpush1.bf16.msra.mxu0 %v2310
      %2452 = vmatprep.mubr.bf16.mxu0 %v370
      %2453 = vmatmul.mubr.bf16.gmra.mrb[0].mxu0 %v369
      %v2454 = vpop.f32.mrb[0].mxu0
      %v2455 = vadd.f32 %v2414, %v2454
      %v2456 = vpop.f32.mrb[0].mxu0
      %v2457 = vpop.f32.mrb[0].mxu0
      %v2458 = vadd.f32 %v2417, %v2457
      %v2459 = vpop.f32.mrb[0].mxu0
      %2460 = vdwg.mxu0
      %2461 = vmatprep.subr.bf16.mxu0 0
      %2462 = vmatpush1.bf16.msra.mxu0 %v2311
      %2463 = vmatprep.subr.bf16.mxu0 0
      %2464 = vmatpush1.bf16.msra.mxu0 %v2312
      %2465 = vmatprep.subr.bf16.mxu0 0
      %2466 = vmatpush1.bf16.msra.mxu0 %v2313
      %2467 = vmatprep.subr.bf16.mxu0 0
      %2468 = vmatpush1.bf16.msra.mxu0 %v2314
      %2469 = vmatprep.subr.bf16.mxu0 0
      %2470 = vmatpush1.bf16.msra.mxu0 %v2315
      %2471 = vmatprep.subr.bf16.mxu0 0
      %2472 = vmatpush1.bf16.msra.mxu0 %v2316
      %2473 = vmatprep.subr.bf16.mxu0 0
      %2474 = vmatpush1.bf16.msra.mxu0 %v2317
      %2475 = vmatprep.subr.bf16.mxu0 0
      %2476 = vmatpush1.bf16.msra.mxu0 %v2318
      %2477 = vmatprep.subr.bf16.mxu0 0
      %2478 = vmatpush1.bf16.msra.mxu0 %v2319
      %2479 = vmatprep.subr.bf16.mxu0 0
      %2480 = vmatpush1.bf16.msra.mxu0 %v2320
      %2481 = vmatprep.subr.bf16.mxu0 0
      %2482 = vmatpush1.bf16.msra.mxu0 %v2321
      %2483 = vmatprep.subr.bf16.mxu0 0
      %2484 = vmatpush1.bf16.msra.mxu0 %v2322
      %2485 = vmatprep.subr.bf16.mxu0 0
      %2486 = vmatpush1.bf16.msra.mxu0 %v2323
      %2487 = vmatprep.subr.bf16.mxu0 0
      %2488 = vmatpush1.bf16.msra.mxu0 %v2324
      %2489 = vmatprep.subr.bf16.mxu0 0
      %2490 = vmatpush1.bf16.msra.mxu0 %v2325
      %2491 = vmatprep.subr.bf16.mxu0 0
      %2492 = vmatpush1.bf16.msra.mxu0 %v2326
      %2493 = vmatprep.mubr.bf16.mxu0 %v372
      %2494 = vmatmul.mubr.bf16.gmra.mrb[0].mxu0 %v371
      %v2495 = vpop.f32.mrb[0].mxu0
      %v2496 = vadd.f32 %v2455, %v2495
      %v2497 = vpop.f32.mrb[0].mxu0
      %v2498 = vpop.f32.mrb[0].mxu0
      %v2499 = vadd.f32 %v2458, %v2498
      %v2500 = vpop.f32.mrb[0].mxu0
      %2501 = vdwg.mxu0
      %2502 = vmatprep.subr.bf16.mxu0 0
      %2503 = vmatpush1.bf16.msra.mxu0 %v2327
      %2504 = vmatprep.subr.bf16.mxu0 0
      %2505 = vmatpush1.bf16.msra.mxu0 %v2328
      %2506 = vmatprep.subr.bf16.mxu0 0
      %2507 = vmatpush1.bf16.msra.mxu0 0
      %2508 = vmatprep.subr.bf16.mxu0 0
      %2509 = vmatpush1.bf16.msra.mxu0 0
      %2510 = vmatprep.subr.bf16.mxu0 0
      %2511 = vmatpush1.bf16.msra.mxu0 0
      %2512 = vmatprep.subr.bf16.mxu0 0
      %2513 = vmatpush1.bf16.msra.mxu0 0
      %2514 = vmatprep.subr.bf16.mxu0 0
      %2515 = vmatpush1.bf16.msra.mxu0 0
      %2516 = vmatprep.subr.bf16.mxu0 0
      %2517 = vmatpush1.bf16.msra.mxu0 0
      %2518 = vmatprep.subr.bf16.mxu0 0
      %2519 = vmatpush1.bf16.msra.mxu0 0
      %2520 = vmatprep.subr.bf16.mxu0 0
      %2521 = vmatpush1.bf16.msra.mxu0 0
      %2522 = vmatprep.subr.bf16.mxu0 0
      %2523 = vmatpush1.bf16.msra.mxu0 0
      %2524 = vmatprep.subr.bf16.mxu0 0
      %2525 = vmatpush1.bf16.msra.mxu0 0
      %2526 = vmatprep.subr.bf16.mxu0 0
      %2527 = vmatpush1.bf16.msra.mxu0 0
      %2528 = vmatprep.subr.bf16.mxu0 0
      %2529 = vmatpush1.bf16.msra.mxu0 0
      %2530 = vmatprep.subr.bf16.mxu0 0
      %2531 = vmatpush1.bf16.msra.mxu0 0
      %2532 = vmatprep.subr.bf16.mxu0 0
      %2533 = vmatpush1.bf16.msra.mxu0 0
      %2534 = vmatprep.mubr.bf16.mxu0 0
      %2535 = vmatmul.mubr.bf16.gmra.mrb[0].mxu0 %v682
      %v2536 = vpop.f32.mrb[0].mxu0
      %v2537 = vadd.f32 %v2496, %v2536
      %v2538 = vpop.f32.mrb[0].mxu0
      %v2539 = vpop.f32.mrb[0].mxu0
      %v2540 = vadd.f32 %v2499, %v2539
      %v2541 = vpop.f32.mrb[0].mxu0
      %2542 = vdwg.mxu0
      %v2543 = vmax.f32 %v842, %v1407
      %v2544 = vmax.f32 %v845, %v1410
      %v2545 = vmax.f32 %v1972, %v2537
      %v2546 = vmax.f32 %v1975, %v2540
      %v2547 = vmax.f32 %v2543, %v2545
      %v2548 = vmax.f32 %v2544, %v2546
      %v2549 = vld [vmem:[%s221] sm:$0xff]
      %v2550 = vld [vmem:[%s221 + $0x8] sm:$0xff]
      %2552 = vset.pattern.permute.xlu0 0
      %2553 = vperm.xlu0 %2552, %v2549
      %v2554 = vpop.permute.xlu0 %2553
      %2557 = vset.pattern.permute.xlu0 0
      %2558 = vperm.xlu0 %2557, %v2550
      %v2559 = vpop.permute.xlu0 %2558
      %v2561 = vadd.f32 %v2547, %v2554
      %v2562 = vadd.f32 %v2548, %v2559
      %v2563 = vpack.c.bf16 %v2562, %v2561
      %v2565 = vunpack.c.l.b16 %v2563
      %v2566 = vunpack.c.h.b16 %v2563
      %v2567 = vpack.c.b16 %v2565, %v2565
      %v2568 = vpack.c.b16 %v2566, %v2566
      %2571 = vst [vmem:[%s234] sm:$0xf] %v2567
      %2572 = vst [vmem:[%s234 + $0x4] sm:$0xf] %v2568
      %s2573 = smul.u32 2, %s18
      %p2574 = scmp.lt.s32.totalorder %s2573, 3
      %s2575 = scalar_select %p2574, %s2573, 3
      %p2576 = scmp.lt.s32.totalorder %s19, 0
      %s2577 = scalar_select %p2576, %s19, 0
      %s2578 = sadd.s32 %s2577, %s2575
      %s2579 = smul.addr %s2578, 4
      %s2580 = scalar_lea.vmem %s3, %s2579
      // Predicated region
      $region33: #{cx_forward.5} parent=31 // pred_check
        %p2581 = pneg %p124
      $region34: #{cx_forward.5} parent=31 // pred_check_branch
        %2583 = sbr.rel (%p2581) target = $region36
      $region35: #{cx_forward.5} parent=31 // pred_region
        %s2584 = smul.u32 2, %s18
      $region36: #{cx_forward.5} parent=31 // pred_fallthru
        _
    $region32: #{cx_forward.5} parent=5 // pred_fallthru
      _
    %p2585 = scmp.le.s32.totalorder 2, %s9
    // Predicated region
    $region37: #{cx_forward.5} parent=5 // pred_check
      %p2586 = pneg %p2585
    $region38: #{cx_forward.5} parent=5 // pred_check_branch
      %2588 = sbr.rel (%p2586) target = $region40
    $region39: #{cx_forward.5} parent=5 // pred_region
      %s2589 = ssub.s32 %s9, 2
      // Predicated region
      $region41: #{cx_forward.5} parent=39 // pred_check
        %p2590 = pneg %p130
      $region42: #{cx_forward.5} parent=39 // pred_check_branch
        %2592 = sbr.rel (%p2590) target = $region44
      $region43: #{cx_forward.5} parent=39 // pred_region
        %s2593 = smul.u32 2, %s20
        %p2594 = scmp.lt.s32.totalorder %s2593, 3
        %s2595 = scalar_select %p2594, %s2593, 3
        %p2596 = scmp.lt.s32.totalorder %s21, 0
        %s2597 = scalar_select %p2596, %s21, 0
        %s2598 = sadd.s32 %s2597, %s2595
        %s2599 = smul.addr %s2598, 4
        %s2600 = scalar_lea.vmem %s3, %s2599
      $region44: #{cx_forward.5} parent=39 // pred_fallthru
        _
    $region40: #{cx_forward.5} parent=5 // pred_fallthru
      _
  $region6: #{cx_forward.5} parent=0 // loop_footer
    %s13 = sadd.s32 1, %s9
  $region7: #{cx_forward.5} parent=0 // loop_footer_branch
    %8 = sbr.rel target = $region3
  $region8: #{cx_forward.5} parent=0 // loop_exit
    _

// kernel: cx_forward.6
$region0: #{cx_forward.6}
  #allocation0 [shape = 'u32[]', space=smem, size = 0x4, offset = 0x4, fixed_abs, tag = 'smem constant byte address 0x4 - core index']
  #allocation1 [shape = 'u32[144,128]{1,0:T(1,128)}', space=vmem, size = 0x12000, scoped, tag = 'internal scratch']
  %s0 = inlined_call_operand.vmem [shape: bf16[64,800], index: 0, kind: input, shape index: {}]
  %s1 = inlined_call_operand.vmem [shape: f32[64,1], index: 1, kind: input, shape index: {}]
  %s2 = inlined_call_operand.vmem [shape: bf16[4,800,32], index: 2, kind: input, shape index: {}]
  %s3 = inlined_call_operand.vmem [shape: bf16[64,32], index: 3, kind: output, shape index: {}]
  %s4 = sld [smem:[#allocation0]]
  $region45: #{cx_forward.6} parent=0
    _
  %s6 = ssub.s32 1, %s4
  %s7 = scalar_select 0, %s6, %s4
  loop: start=0, step=1, limit=4
  $region2: #{cx_forward.6} parent=0 // loop_pre_header
    _
  $region3: #{cx_forward.6} parent=0 // loop_header
    %s9 = sphi 0, %s13
    %p10 = scmp.ge.s32.totalorder %s9, 4
    %s16 = sphi 0, %s28
    %s17 = sphi 0, %s24
    %s18 = sphi 0, %s16
    %s19 = sphi 0, %s17
    %s20 = sphi 0, %s18
    %s21 = sphi 0, %s19
    %s31 = sphi 0, %s33
    %s34 = sphi 0, %s31
    %s35 = sphi 0, %s34
    %s51 = sphi 0, %s35
    %s57 = sphi 0, %s59
    %s60 = sphi 0, %s57
    %s61 = sphi 0, %s60
    %s77 = sphi 0, %s61
    %s83 = sphi 0, %s85
    %s86 = sphi 0, %s83
    %s87 = sphi 0, %s86
    %s103 = sphi 0, %s87
    %s111 = sphi 0, %s113
    %s114 = sphi 0, %s111
    %s115 = sphi 0, %s114
    %s131 = sphi 0, %s115
  $region4: #{cx_forward.6} parent=0 // loop_header_branch
    %12 = sbr.rel (%p10) target = $region8
  $region5: #{cx_forward.6} parent=0 // loop_body
    %s14 = ssub.s32 %s9, 1
    %s15 = ssub.s32 %s9, 2
    %s22 = sadd.s32 1, %s17
    %p23 = scmp.ge.s32.totalorder %s22, 1
    %s24 = scalar_select %p23, 0, %s22
    %s25 = sadd.s32 1, %s16
    %s26 = scalar_select %p23, %s25, %s16
    %p27 = scmp.ge.s32.totalorder %s26, 2
    %s28 = scalar_select %p27, 0, %s26
    %s29 = ssub.s32 %s16, %s28
    %p30 = scmp.eq.s32.totalorder %s29, 0
    %s32 = sadd.s32 %s31, 1
    %s33 = scalar_select %p30, %s31, %s32
    %p36 = pneg %p30
    %p37 = scmp.eq.s32.totalorder %s9, 1
    %p38 = por %p36, %p37
    %p39 = scmp.ne.s32.totalorder %s31, %s34
    %p40 = scmp.eq.s32.totalorder %s9, 0
    %p41 = por %p39, %p40
    %p42 = scmp.ne.s32.totalorder %s31, %s34
    %p43 = scmp.eq.s32.totalorder %s14, 1
    %p44 = por %p42, %p43
    %p45 = scmp.ne.s32.totalorder %s34, %s35
    %p46 = scmp.eq.s32.totalorder %s14, 0
    %p47 = por %p45, %p46
    %p48 = scmp.ne.s32.totalorder %s34, %s35
    %p49 = scmp.eq.s32.totalorder %s15, 1
    %p50 = por %p48, %p49
    %p52 = scmp.ne.s32.totalorder %s35, %s51
    %p53 = scmp.eq.s32.totalorder %s15, 0
    %p54 = por %p52, %p53
    %s55 = ssub.s32 %s16, %s28
    %p56 = scmp.eq.s32.totalorder %s55, 0
    %s58 = sadd.s32 %s57, 1
    %s59 = scalar_select %p56, %s57, %s58
    %p62 = pneg %p56
    %p63 = scmp.eq.s32.totalorder %s9, 1
    %p64 = por %p62, %p63
    %p65 = scmp.ne.s32.totalorder %s57, %s60
    %p66 = scmp.eq.s32.totalorder %s9, 0
    %p67 = por %p65, %p66
    %p68 = scmp.ne.s32.totalorder %s57, %s60
    %p69 = scmp.eq.s32.totalorder %s14, 1
    %p70 = por %p68, %p69
    %p71 = scmp.ne.s32.totalorder %s60, %s61
    %p72 = scmp.eq.s32.totalorder %s14, 0
    %p73 = por %p71, %p72
    %p74 = scmp.ne.s32.totalorder %s60, %s61
    %p75 = scmp.eq.s32.totalorder %s15, 1
    %p76 = por %p74, %p75
    %p78 = scmp.ne.s32.totalorder %s61, %s77
    %p79 = scmp.eq.s32.totalorder %s15, 0
    %p80 = por %p78, %p79
    %s81 = ssub.s32 %s17, %s24
    %p82 = scmp.eq.s32.totalorder %s81, 0
    %s84 = sadd.s32 %s83, 1
    %s85 = scalar_select %p82, %s83, %s84
    %p88 = pneg %p82
    %p89 = scmp.eq.s32.totalorder %s9, 1
    %p90 = por %p88, %p89
    %p91 = scmp.ne.s32.totalorder %s83, %s86
    %p92 = scmp.eq.s32.totalorder %s9, 0
    %p93 = por %p91, %p92
    %p94 = scmp.ne.s32.totalorder %s83, %s86
    %p95 = scmp.eq.s32.totalorder %s14, 1
    %p96 = por %p94, %p95
    %p97 = scmp.ne.s32.totalorder %s86, %s87
    %p98 = scmp.eq.s32.totalorder %s14, 0
    %p99 = por %p97, %p98
    %p100 = scmp.ne.s32.totalorder %s86, %s87
    %p101 = scmp.eq.s32.totalorder %s15, 1
    %p102 = por %p100, %p101
    %p104 = scmp.ne.s32.totalorder %s87, %s103
    %p105 = scmp.eq.s32.totalorder %s15, 0
    %p106 = por %p104, %p105
    %s107 = ssub.s32 %s16, %s28
    %s108 = ssub.s32 %s17, %s24
    %s109 = sor.u32 %s107, %s108
    %p110 = scmp.eq.s32.totalorder %s109, 0
    %s112 = sadd.s32 %s111, 1
    %s113 = scalar_select %p110, %s111, %s112
    %p116 = pneg %p110
    %p117 = scmp.eq.s32.totalorder %s9, 1
    %p118 = por %p116, %p117
    %p119 = scmp.ne.s32.totalorder %s111, %s114
    %p120 = scmp.eq.s32.totalorder %s9, 0
    %p121 = por %p119, %p120
    %p122 = scmp.ne.s32.totalorder %s111, %s114
    %p123 = scmp.eq.s32.totalorder %s14, 1
    %p124 = por %p122, %p123
    %p125 = scmp.ne.s32.totalorder %s114, %s115
    %p126 = scmp.eq.s32.totalorder %s14, 0
    %p127 = por %p125, %p126
    %p128 = scmp.ne.s32.totalorder %s114, %s115
    %p129 = scmp.eq.s32.totalorder %s15, 1
    %p130 = por %p128, %p129
    %p132 = scmp.ne.s32.totalorder %s115, %s131
    %p133 = scmp.eq.s32.totalorder %s15, 0
    %p134 = por %p132, %p133
    %p135 = scmp.le.s32.totalorder 1, %s9
    %p136 = scmp.lt.s32.totalorder %s9, 3
    %p137 = pnand %p135, %p136
    %p138 = pneg %p137
    // Predicated region
    $region9: #{cx_forward.6} parent=5 // pred_check
      _
    $region10: #{cx_forward.6} parent=5 // pred_check_branch
      %140 = sbr.rel (%p137) target = $region12
    $region11: #{cx_forward.6} parent=5 // pred_region
      %s141 = ssub.s32 %s9, 1
      // Predicated region
      $region13: #{cx_forward.6} parent=11 // pred_check
        %p142 = pneg %p99
      $region14: #{cx_forward.6} parent=11 // pred_check_branch
        %144 = sbr.rel (%p142) target = $region16
      $region15: #{cx_forward.6} parent=11 // pred_region
        %p145 = scmp.lt.s32.totalorder %s19, 0
        %s146 = scalar_select %p145, %s19, 0
        %s147 = smul.addr %s146, 4
        %s148 = scalar_lea.vmem %s2, %s147
      $region16: #{cx_forward.6} parent=11 // pred_fallthru
        _
    $region12: #{cx_forward.6} parent=5 // pred_fallthru
      _
    %p149 = scmp.lt.s32.totalorder %s9, 2
    // Predicated region
    $region17: #{cx_forward.6} parent=5 // pred_check
      %p150 = pneg %p149
    $region18: #{cx_forward.6} parent=5 // pred_check_branch
      %152 = sbr.rel (%p150) target = $region20
    $region19: #{cx_forward.6} parent=5 // pred_region
      // Predicated region
      $region21: #{cx_forward.6} parent=19 // pred_check
        %p153 = pneg %p41
      $region22: #{cx_forward.6} parent=19 // pred_check_branch
        %155 = sbr.rel (%p153) target = $region24
      $region23: #{cx_forward.6} parent=19 // pred_region
        %s156 = smul.u32 4, %s16
        %p157 = scmp.lt.s32.totalorder %s156, 7
        %s158 = scalar_select %p157, %s156, 7
        %s159 = smul.addr %s158, 7
        %s160 = smul.addr %s159, 4
        %s161 = scalar_lea.vmem %s0, %s160
        %s162 = smul.u32 4, %s16
      $region24: #{cx_forward.6} parent=19 // pred_fallthru
        _
      // Predicated region
      $region25: #{cx_forward.6} parent=19 // pred_check
        %p163 = pneg %p67
      $region26: #{cx_forward.6} parent=19 // pred_check_branch
        %165 = sbr.rel (%p163) target = $region28
      $region27: #{cx_forward.6} parent=19 // pred_region
        %s166 = smul.u32 4, %s16
        %p167 = scmp.lt.s32.totalorder %s166, 7
        %s168 = scalar_select %p167, %s166, 7
        %s169 = smul.addr %s168, 8
        %s170 = scalar_lea.vmem %s1, %s169
        %s171 = smul.u32 4, %s16
      $region28: #{cx_forward.6} parent=19 // pred_fallthru
        _
    $region20: #{cx_forward.6} parent=5 // pred_fallthru
      _
    %p172 = scmp.le.s32.totalorder 1, %s9
    %p173 = scmp.lt.s32.totalorder %s9, 3
    %p174 = pnand %p172, %p173
    %p175 = pneg %p174
    // Predicated region
    $region29: #{cx_forward.6} parent=5 // pred_check
      _
    $region30: #{cx_forward.6} parent=5 // pred_check_branch
      %177 = sbr.rel (%p174) target = $region32
    $region31: #{cx_forward.6} parent=5 // pred_region
      %s178 = ssub.s32 %s9, 1
      %s179 = smul.u32 4, %s18
      %p180 = scmp.lt.s32.totalorder %s179, 7
      %s181 = scalar_select %p180, %s179, 7
      %s182 = smul.addr %s181, 7
      %s183 = smul.addr %s182, 4
      %s184 = scalar_lea.vmem %s0, %s183
      %p185 = pneg %p47
      %p186 = pneg %p44
      %s187 = smul.u32 4, %s18
      %p188 = scmp.lt.s32.totalorder %s187, 7
      %s189 = scalar_select %p188, %s187, 7
      %s190 = smul.addr %s189, 8
      %s191 = scalar_lea.vmem %s1, %s190
      %p192 = pneg %p73
      %p193 = pneg %p70
      %p194 = scmp.lt.s32.totalorder %s19, 0
      %s195 = scalar_select %p194, %s19, 0
      %s196 = smul.addr %s195, 4
      %s197 = scalar_lea.vmem %s2, %s196
      %p198 = pneg %p99
      %p199 = pneg %p96
      %p200 = pneg %p127
      %p201 = pneg %p124
      %s202 = smul.u32 4, %s18
      %p203 = scmp.lt.s32.totalorder %s202, 7
      %s204 = scalar_select %p203, %s202, 7
      %p205 = scmp.lt.s32.totalorder %s19, 0
      %s206 = scalar_select %p205, %s19, 0
      %s207 = sadd.s32 %s206, %s204
      %s208 = smul.addr %s207, 4
      %s209 = scalar_lea.vmem %s3, %s208
      %s210 = smul.u32 4, %s18
      %p211 = scmp.lt.s32.totalorder %s210, 7
      %s212 = scalar_select %p211, %s210, 7
      %s213 = smul.addr %s212, 7
      %s214 = smul.addr %s213, 4
      %s215 = scalar_lea.vmem %s0, %s214
      %s216 = smul.u32 4, %s18
      %s217 = smul.u32 4, %s18
      %p218 = scmp.lt.s32.totalorder %s217, 7
      %s219 = scalar_select %p218, %s217, 7
      %s220 = smul.addr %s219, 8
      %s221 = scalar_lea.vmem %s1, %s220
      %s222 = smul.u32 4, %s18
      %p223 = scmp.lt.s32.totalorder %s19, 0
      %s224 = scalar_select %p223, %s19, 0
      %s225 = smul.addr %s224, 4
      %s226 = scalar_lea.vmem %s2, %s225
      %s227 = smul.u32 4, %s18
      %p228 = scmp.lt.s32.totalorder %s227, 7
      %s229 = scalar_select %p228, %s227, 7
      %p230 = scmp.lt.s32.totalorder %s19, 0
      %s231 = scalar_select %p230, %s19, 0
      %s232 = sadd.s32 %s231, %s229
      %s233 = smul.addr %s232, 4
      %s234 = scalar_lea.vmem %s3, %s233
      %s235 = smul.u32 4, %s18
      %v237 = vld [vmem:[%s215] sm:$0xff]
      %v238 = vld [vmem:[%s215 + $0x8] sm:$0xff]
      %v239 = vld [vmem:[%s215 + $0x10] sm:$0xff]
      %v240 = vld [vmem:[%s215 + $0x18] sm:$0xf]
      %v241 = vld [vmem:[%s215 + $0x1c] sm:$0xff]
      %v242 = vld [vmem:[%s215 + $0x24] sm:$0xff]
      %v243 = vld [vmem:[%s215 + $0x2c] sm:$0xff]
      %v244 = vld [vmem:[%s215 + $0x34] sm:$0xf]
      %v245 = vld [vmem:[%s215 + $0x38] sm:$0xff]
      %v246 = vld [vmem:[%s215 + $0x40] sm:$0xff]
      %v247 = vld [vmem:[%s215 + $0x48] sm:$0xff]
      %v248 = vld [vmem:[%s215 + $0x50] sm:$0xf]
      %v249 = vld [vmem:[%s215 + $0x54] sm:$0xff]
      %v250 = vld [vmem:[%s215 + $0x5c] sm:$0xff]
      %v251 = vld [vmem:[%s215 + $0x64] sm:$0xff]
      %v252 = vld [vmem:[%s215 + $0x6c] sm:$0xf]
      %v253 = vld [vmem:[%s226] sm:$0xf]
      %v254 = vld [vmem:[%s226 + $0x4] sm:$0xf]
      %v255 = vld [vmem:[%s226 + $0x8] sm:$0xf]
      %v256 = vld [vmem:[%s226 + $0xc] sm:$0xf]
      %v257 = vld [vmem:[%s226 + $0x10] sm:$0xf]
      %v258 = vld [vmem:[%s226 + $0x14] sm:$0xf]
      %v259 = vld [vmem:[%s226 + $0x18] sm:$0xf]
      %v260 = vld [vmem:[%s226 + $0x1c] sm:$0xf]
      %v261 = vld [vmem:[%s226 + $0x20] sm:$0xf]
      %v262 = vld [vmem:[%s226 + $0x24] sm:$0xf]
      %v263 = vld [vmem:[%s226 + $0x28] sm:$0xf]
      %v264 = vld [vmem:[%s226 + $0x2c] sm:$0xf]
      %v265 = vld [vmem:[%s226 + $0x30] sm:$0xf]
      %v266 = vld [vmem:[%s226 + $0x34] sm:$0xf]
      %v267 = vld [vmem:[%s226 + $0x38] sm:$0xf]
      %v268 = vld [vmem:[%s226 + $0x3c] sm:$0xf]
      %v269 = vld [vmem:[%s226 + $0x40] sm:$0xf]
      %v270 = vld [vmem:[%s226 + $0x44] sm:$0xf]
      %v271 = vld [vmem:[%s226 + $0x48] sm:$0xf]
      %v272 = vld [vmem:[%s226 + $0x4c] sm:$0xf]
      %v273 = vld [vmem:[%s226 + $0x50] sm:$0xf]
      %v274 = vld [vmem:[%s226 + $0x54] sm:$0xf]
      %v275 = vld [vmem:[%s226 + $0x58] sm:$0xf]
      %v276 = vld [vmem:[%s226 + $0x5c] sm:$0xf]
      %v277 = vld [vmem:[%s226 + $0x60] sm:$0xf]
      %v278 = vld [vmem:[%s226 + $0x64] sm:$0xf]
      %v279 = vld [vmem:[%s226 + $0x68] sm:$0xf]
      %v280 = vld [vmem:[%s226 + $0x6c] sm:$0xf]
      %v281 = vld [vmem:[%s226 + $0x70] sm:$0xf]
      %v282 = vld [vmem:[%s226 + $0x74] sm:$0xf]
      %v283 = vld [vmem:[%s226 + $0x78] sm:$0xf]
      %v284 = vld [vmem:[%s226 + $0x7c] sm:$0xf]
      %v285 = vld [vmem:[%s226 + $0x80] sm:$0xf]
      %v286 = vld [vmem:[%s226 + $0x84] sm:$0xf]
      %v287 = vld [vmem:[%s226 + $0x88] sm:$0xf]
      %v288 = vld [vmem:[%s226 + $0x8c] sm:$0xf]
      %v289 = vld [vmem:[%s226 + $0x90] sm:$0xf]
      %v290 = vld [vmem:[%s226 + $0x94] sm:$0xf]
      %v291 = vld [vmem:[%s226 + $0x98] sm:$0xf]
      %v292 = vld [vmem:[%s226 + $0x9c] sm:$0xf]
      %v293 = vld [vmem:[%s226 + $0xa0] sm:$0xf]
      %v294 = vld [vmem:[%s226 + $0xa4] sm:$0xf]
      %v295 = vld [vmem:[%s226 + $0xa8] sm:$0xf]
      %v296 = vld [vmem:[%s226 + $0xac] sm:$0xf]
      %v297 = vld [vmem:[%s226 + $0xb0] sm:$0xf]
      %v298 = vld [vmem:[%s226 + $0xb4] sm:$0xf]
      %v299 = vld [vmem:[%s226 + $0xb8] sm:$0xf]
      %v300 = vld [vmem:[%s226 + $0xbc] sm:$0xf]
      %v301 = vld [vmem:[%s226 + $0xc0] sm:$0xf]
      %v302 = vld [vmem:[%s226 + $0xc4] sm:$0xf]
      %v303 = vld [vmem:[%s226 + $0xc8] sm:$0xf]
      %v304 = vld [vmem:[%s226 + $0xcc] sm:$0xf]
      %v305 = vld [vmem:[%s226 + $0xd0] sm:$0xf]
      %v306 = vld [vmem:[%s226 + $0xd4] sm:$0xf]
      %v307 = vld [vmem:[%s226 + $0xd8] sm:$0xf]
      %v308 = vld [vmem:[%s226 + $0xdc] sm:$0xf]
      %v309 = vld [vmem:[%s226 + $0xe0] sm:$0xf]
      %v310 = vld [vmem:[%s226 + $0xe4] sm:$0xf]
      %v311 = vld [vmem:[%s226 + $0xe8] sm:$0xf]
      %v312 = vld [vmem:[%s226 + $0xec] sm:$0xf]
      %v313 = vld [vmem:[%s226 + $0xf0] sm:$0xf]
      %v314 = vld [vmem:[%s226 + $0xf4] sm:$0xf]
      %v315 = vld [vmem:[%s226 + $0xf8] sm:$0xf]
      %v316 = vld [vmem:[%s226 + $0xfc] sm:$0xf]
      %v317 = vld [vmem:[%s226 + $0x100] sm:$0xf]
      %v318 = vld [vmem:[%s226 + $0x104] sm:$0xf]
      %v319 = vld [vmem:[%s226 + $0x108] sm:$0xf]
      %v320 = vld [vmem:[%s226 + $0x10c] sm:$0xf]
      %v321 = vld [vmem:[%s226 + $0x110] sm:$0xf]
      %v322 = vld [vmem:[%s226 + $0x114] sm:$0xf]
      %v323 = vld [vmem:[%s226 + $0x118] sm:$0xf]
      %v324 = vld [vmem:[%s226 + $0x11c] sm:$0xf]
      %v325 = vld [vmem:[%s226 + $0x120] sm:$0xf]
      %v326 = vld [vmem:[%s226 + $0x124] sm:$0xf]
      %v327 = vld [vmem:[%s226 + $0x128] sm:$0xf]
      %v328 = vld [vmem:[%s226 + $0x12c] sm:$0xf]
      %v329 = vld [vmem:[%s226 + $0x130] sm:$0xf]
      %v330 = vld [vmem:[%s226 + $0x134] sm:$0xf]
      %v331 = vld [vmem:[%s226 + $0x138] sm:$0xf]
      %v332 = vld [vmem:[%s226 + $0x13c] sm:$0xf]
      %v333 = vld [vmem:[%s226 + $0x140] sm:$0xf]
      %v334 = vld [vmem:[%s226 + $0x144] sm:$0xf]
      %v335 = vld [vmem:[%s226 + $0x148] sm:$0xf]
      %v336 = vld [vmem:[%s226 + $0x14c] sm:$0xf]
      %v337 = vld [vmem:[%s226 + $0x150] sm:$0xf]
      %v338 = vld [vmem:[%s226 + $0x154] sm:$0xf]
      %v339 = vld [vmem:[%s226 + $0x158] sm:$0xf]
      %v340 = vld [vmem:[%s226 + $0x15c] sm:$0xf]
      %v341 = vld [vmem:[%s226 + $0x160] sm:$0xf]
      %v342 = vld [vmem:[%s226 + $0x164] sm:$0xf]
      %v343 = vld [vmem:[%s226 + $0x168] sm:$0xf]
      %v344 = vld [vmem:[%s226 + $0x16c] sm:$0xf]
      %v345 = vld [vmem:[%s226 + $0x170] sm:$0xf]
      %v346 = vld [vmem:[%s226 + $0x174] sm:$0xf]
      %v347 = vld [vmem:[%s226 + $0x178] sm:$0xf]
      %v348 = vld [vmem:[%s226 + $0x17c] sm:$0xf]
      %v349 = vld [vmem:[%s226 + $0x180] sm:$0xf]
      %v350 = vld [vmem:[%s226 + $0x184] sm:$0xf]
      %v351 = vld [vmem:[%s226 + $0x188] sm:$0xf]
      %v352 = vld [vmem:[%s226 + $0x18c] sm:$0xf]
      %v369 = vunpack.c.l.b16 %v237
      %v370 = vunpack.c.h.b16 %v237
      %v371 = vunpack.c.l.b16 %v238
      %v372 = vunpack.c.h.b16 %v238
      %v373 = vunpack.c.l.b16 %v239
      %v374 = vunpack.c.h.b16 %v239
      %v375 = vunpack.c.l.b16 %v240
      %v376 = vunpack.c.l.b16 %v241
      %v377 = vunpack.c.h.b16 %v241
      %v378 = vunpack.c.l.b16 %v242
      %v379 = vunpack.c.h.b16 %v242
      %v380 = vunpack.c.l.b16 %v243
      %v381 = vunpack.c.h.b16 %v243
      %v382 = vunpack.c.l.b16 %v244
      %v383 = vunpack.c.l.b16 %v245
      %v384 = vunpack.c.h.b16 %v245
      %v385 = vunpack.c.l.b16 %v246
      %v386 = vunpack.c.h.b16 %v246
      %v387 = vunpack.c.l.b16 %v247
      %v388 = vunpack.c.h.b16 %v247
      %v389 = vunpack.c.l.b16 %v248
      %v390 = vunpack.c.l.b16 %v249
      %v391 = vunpack.c.h.b16 %v249
      %v392 = vunpack.c.l.b16 %v250
      %v393 = vunpack.c.h.b16 %v250
      %v394 = vunpack.c.l.b16 %v251
      %v395 = vunpack.c.h.b16 %v251
      %v396 = vunpack.c.l.b16 %v252
      %v397 = vpack.c.b16 %v376, %v369
      %v398 = vpack.c.b16 %v377, %v370
      %v399 = vpack.c.b16 %v378, %v371
      %v400 = vpack.c.b16 %v379, %v372
      %v401 = vpack.c.b16 %v380, %v373
      %v402 = vpack.c.b16 %v381, %v374
      %v403 = vpack.c.b16 %v382, %v375
      %v404 = vpack.c.b16 %v390, %v383
      %v405 = vpack.c.b16 %v391, %v384
      %v406 = vpack.c.b16 %v392, %v385
      %v407 = vpack.c.b16 %v393, %v386
      %v408 = vpack.c.b16 %v394, %v387
      %v409 = vpack.c.b16 %v395, %v388
      %v410 = vpack.c.b16 %v396, %v389
      %v523 = vunpack.c.l.b16 %v253
      %v524 = vunpack.c.l.b16 %v254
      %v525 = vunpack.c.l.b16 %v255
      %v526 = vunpack.c.l.b16 %v256
      %v527 = vunpack.c.l.b16 %v257
      %v528 = vunpack.c.l.b16 %v258
      %v529 = vunpack.c.l.b16 %v259
      %v530 = vunpack.c.l.b16 %v260
      %v531 = vunpack.c.l.b16 %v261
      %v532 = vunpack.c.l.b16 %v262
      %v533 = vunpack.c.l.b16 %v263
      %v534 = vunpack.c.l.b16 %v264
      %v535 = vunpack.c.l.b16 %v265
      %v536 = vunpack.c.l.b16 %v266
      %v537 = vunpack.c.l.b16 %v267
      %v538 = vunpack.c.l.b16 %v268
      %v539 = vunpack.c.l.b16 %v269
      %v540 = vunpack.c.l.b16 %v270
      %v541 = vunpack.c.l.b16 %v271
      %v542 = vunpack.c.l.b16 %v272
      %v543 = vunpack.c.l.b16 %v273
      %v544 = vunpack.c.l.b16 %v274
      %v545 = vunpack.c.l.b16 %v275
      %v546 = vunpack.c.l.b16 %v276
      %v547 = vunpack.c.l.b16 %v277
      %v548 = vunpack.c.l.b16 %v278
      %v549 = vunpack.c.l.b16 %v279
      %v550 = vunpack.c.l.b16 %v280
      %v551 = vunpack.c.l.b16 %v281
      %v552 = vunpack.c.l.b16 %v282
      %v553 = vunpack.c.l.b16 %v283
      %v554 = vunpack.c.l.b16 %v284
      %v555 = vunpack.c.l.b16 %v285
      %v556 = vunpack.c.l.b16 %v286
      %v557 = vunpack.c.l.b16 %v287
      %v558 = vunpack.c.l.b16 %v288
      %v559 = vunpack.c.l.b16 %v289
      %v560 = vunpack.c.l.b16 %v290
      %v561 = vunpack.c.l.b16 %v291
      %v562 = vunpack.c.l.b16 %v292
      %v563 = vunpack.c.l.b16 %v293
      %v564 = vunpack.c.l.b16 %v294
      %v565 = vunpack.c.l.b16 %v295
      %v566 = vunpack.c.l.b16 %v296
      %v567 = vunpack.c.l.b16 %v297
      %v568 = vunpack.c.l.b16 %v298
      %v569 = vunpack.c.l.b16 %v299
      %v570 = vunpack.c.l.b16 %v300
      %v571 = vunpack.c.l.b16 %v301
      %v572 = vunpack.c.l.b16 %v302
      %v573 = vunpack.c.l.b16 %v303
      %v574 = vunpack.c.l.b16 %v304
      %v575 = vunpack.c.l.b16 %v305
      %v576 = vunpack.c.l.b16 %v306
      %v577 = vunpack.c.l.b16 %v307
      %v578 = vunpack.c.l.b16 %v308
      %v579 = vunpack.c.l.b16 %v309
      %v580 = vunpack.c.l.b16 %v310
      %v581 = vunpack.c.l.b16 %v311
      %v582 = vunpack.c.l.b16 %v312
      %v583 = vunpack.c.l.b16 %v313
      %v584 = vunpack.c.l.b16 %v314
      %v585 = vunpack.c.l.b16 %v315
      %v586 = vunpack.c.l.b16 %v316
      %v587 = vunpack.c.l.b16 %v317
      %v588 = vunpack.c.l.b16 %v318
      %v589 = vunpack.c.l.b16 %v319
      %v590 = vunpack.c.l.b16 %v320
      %v591 = vunpack.c.l.b16 %v321
      %v592 = vunpack.c.l.b16 %v322
      %v593 = vunpack.c.l.b16 %v323
      %v594 = vunpack.c.l.b16 %v324
      %v595 = vunpack.c.l.b16 %v325
      %v596 = vunpack.c.l.b16 %v326
      %v597 = vunpack.c.l.b16 %v327
      %v598 = vunpack.c.l.b16 %v328
      %v599 = vunpack.c.l.b16 %v329
      %v600 = vunpack.c.l.b16 %v330
      %v601 = vunpack.c.l.b16 %v331
      %v602 = vunpack.c.l.b16 %v332
      %v603 = vunpack.c.l.b16 %v333
      %v604 = vunpack.c.l.b16 %v334
      %v605 = vunpack.c.l.b16 %v335
      %v606 = vunpack.c.l.b16 %v336
      %v607 = vunpack.c.l.b16 %v337
      %v608 = vunpack.c.l.b16 %v338
      %v609 = vunpack.c.l.b16 %v339
      %v610 = vunpack.c.l.b16 %v340
      %v611 = vunpack.c.l.b16 %v341
      %v612 = vunpack.c.l.b16 %v342
      %v613 = vunpack.c.l.b16 %v343
      %v614 = vunpack.c.l.b16 %v344
      %v615 = vunpack.c.l.b16 %v345
      %v616 = vunpack.c.l.b16 %v346
      %v617 = vunpack.c.l.b16 %v347
      %v618 = vunpack.c.l.b16 %v348
      %v619 = vunpack.c.l.b16 %v349
      %v620 = vunpack.c.l.b16 %v350
      %v621 = vunpack.c.l.b16 %v351
      %v622 = vunpack.c.l.b16 %v352
      %v623 = vpack.c.b16 %v524, %v523
      %v624 = vpack.c.b16 %v526, %v525
      %v625 = vpack.c.b16 %v528, %v527
      %v626 = vpack.c.b16 %v530, %v529
      %v627 = vpack.c.b16 %v532, %v531
      %v628 = vpack.c.b16 %v534, %v533
      %v629 = vpack.c.b16 %v536, %v535
      %v630 = vpack.c.b16 %v538, %v537
      %v631 = vpack.c.b16 %v540, %v539
      %v632 = vpack.c.b16 %v542, %v541
      %v633 = vpack.c.b16 %v544, %v543
      %v634 = vpack.c.b16 %v546, %v545
      %v635 = vpack.c.b16 %v548, %v547
      %v636 = vpack.c.b16 %v550, %v549
      %v637 = vpack.c.b16 %v552, %v551
      %v638 = vpack.c.b16 %v554, %v553
      %v639 = vpack.c.b16 %v556, %v555
      %v640 = vpack.c.b16 %v558, %v557
      %v641 = vpack.c.b16 %v560, %v559
      %v642 = vpack.c.b16 %v562, %v561
      %v643 = vpack.c.b16 %v564, %v563
      %v644 = vpack.c.b16 %v566, %v565
      %v645 = vpack.c.b16 %v568, %v567
      %v646 = vpack.c.b16 %v570, %v569
      %v647 = vpack.c.b16 %v572, %v571
      %v648 = vpack.c.b16 %v574, %v573
      %v649 = vpack.c.b16 %v576, %v575
      %v650 = vpack.c.b16 %v578, %v577
      %v651 = vpack.c.b16 %v580, %v579
      %v652 = vpack.c.b16 %v582, %v581
      %v653 = vpack.c.b16 %v584, %v583
      %v654 = vpack.c.b16 %v586, %v585
      %v655 = vpack.c.b16 %v588, %v587
      %v656 = vpack.c.b16 %v590, %v589
      %v657 = vpack.c.b16 %v592, %v591
      %v658 = vpack.c.b16 %v594, %v593
      %v659 = vpack.c.b16 %v596, %v595
      %v660 = vpack.c.b16 %v598, %v597
      %v661 = vpack.c.b16 %v600, %v599
      %v662 = vpack.c.b16 %v602, %v601
      %v663 = vpack.c.b16 %v604, %v603
      %v664 = vpack.c.b16 %v606, %v605
      %v665 = vpack.c.b16 %v608, %v607
      %v666 = vpack.c.b16 %v610, %v609
      %v667 = vpack.c.b16 %v612, %v611
      %v668 = vpack.c.b16 %v614, %v613
      %v669 = vpack.c.b16 %v616, %v615
      %v670 = vpack.c.b16 %v618, %v617
      %v671 = vpack.c.b16 %v620, %v619
      %v672 = vpack.c.b16 %v622, %v621
      %vm723 = vcmask 261120
      %v725 = vsel %vm723, %v403, 0
      %v728 = vsel %vm723, %v410, 0
      %730 = vmatprep.subr.bf16.mxu0 0
      %731 = vmatpush1.bf16.msra.mxu0 %v623
      %732 = vmatprep.subr.bf16.mxu0 0
      %733 = vmatpush1.bf16.msra.mxu0 %v624
      %734 = vmatprep.subr.bf16.mxu0 0
      %735 = vmatpush1.bf16.msra.mxu0 %v625
      %736 = vmatprep.subr.bf16.mxu0 0
      %737 = vmatpush1.bf16.msra.mxu0 %v626
      %738 = vmatprep.subr.bf16.mxu0 0
      %739 = vmatpush1.bf16.msra.mxu0 %v627
      %740 = vmatprep.subr.bf16.mxu0 0
      %741 = vmatpush1.bf16.msra.mxu0 %v628
      %742 = vmatprep.subr.bf16.mxu0 0
      %743 = vmatpush1.bf16.msra.mxu0 %v629
      %744 = vmatprep.subr.bf16.mxu0 0
      %745 = vmatpush1.bf16.msra.mxu0 %v630
      %746 = vmatprep.subr.bf16.mxu0 0
      %747 = vmatpush1.bf16.msra.mxu0 %v631
      %748 = vmatprep.subr.bf16.mxu0 0
      %749 = vmatpush1.bf16.msra.mxu0 %v632
      %750 = vmatprep.subr.bf16.mxu0 0
      %751 = vmatpush1.bf16.msra.mxu0 %v633
      %752 = vmatprep.subr.bf16.mxu0 0
      %753 = vmatpush1.bf16.msra.mxu0 %v634
      %754 = vmatprep.subr.bf16.mxu0 0
      %755 = vmatpush1.bf16.msra.mxu0 %v635
      %756 = vmatprep.subr.bf16.mxu0 0
      %757 = vmatpush1.bf16.msra.mxu0 %v636
      %758 = vmatprep.subr.bf16.mxu0 0
      %759 = vmatpush1.bf16.msra.mxu0 %v637
      %760 = vmatprep.subr.bf16.mxu0 0
      %761 = vmatpush1.bf16.msra.mxu0 %v638
      %762 = vmatprep.mubr.bf16.mxu0 %v398
      %763 = vmatmul.mubr.bf16.gmra.mrb[0].mxu0 %v397
      %v764 = vpop.f32.mrb[0].mxu0
      %v765 = vadd.f32 0.0, %v764
      %v766 = vpop.f32.mrb[0].mxu0
      %v767 = vpop.f32.mrb[0].mxu0
      %v768 = vadd.f32 0.0, %v767
      %v769 = vpop.f32.mrb[0].mxu0
      %770 = vmatprep.mubr.bf16.mxu0 %v405
      %771 = vmatmul.mubr.bf16.gmra.mrb[0].mxu0 %v404
      %v772 = vpop.f32.mrb[0].mxu0
      %v773 = vadd.f32 0.0, %v772
      %v774 = vpop.f32.mrb[0].mxu0
      %v775 = vpop.f32.mrb[0].mxu0
      %v776 = vadd.f32 0.0, %v775
      %v777 = vpop.f32.mrb[0].mxu0
      %778 = vdwg.mxu0
      %779 = vmatprep.subr.bf16.mxu0 0
      %780 = vmatpush1.bf16.msra.mxu0 %v639
      %781 = vmatprep.subr.bf16.mxu0 0
      %782 = vmatpush1.bf16.msra.mxu0 %v640
      %783 = vmatprep.subr.bf16.mxu0 0
      %784 = vmatpush1.bf16.msra.mxu0 %v641
      %785 = vmatprep.subr.bf16.mxu0 0
      %786 = vmatpush1.bf16.msra.mxu0 %v642
      %787 = vmatprep.subr.bf16.mxu0 0
      %788 = vmatpush1.bf16.msra.mxu0 %v643
      %789 = vmatprep.subr.bf16.mxu0 0
      %790 = vmatpush1.bf16.msra.mxu0 %v644
      %791 = vmatprep.subr.bf16.mxu0 0
      %792 = vmatpush1.bf16.msra.mxu0 %v645
      %793 = vmatprep.subr.bf16.mxu0 0
      %794 = vmatpush1.bf16.msra.mxu0 %v646
      %795 = vmatprep.subr.bf16.mxu0 0
      %796 = vmatpush1.bf16.msra.mxu0 %v647
      %797 = vmatprep.subr.bf16.mxu0 0
      %798 = vmatpush1.bf16.msra.mxu0 %v648
      %799 = vmatprep.subr.bf16.mxu0 0
      %800 = vmatpush1.bf16.msra.mxu0 %v649
      %801 = vmatprep.subr.bf16.mxu0 0
      %802 = vmatpush1.bf16.msra.mxu0 %v650
      %803 = vmatprep.subr.bf16.mxu0 0
      %804 = vmatpush1.bf16.msra.mxu0 %v651
      %805 = vmatprep.subr.bf16.mxu0 0
      %806 = vmatpush1.bf16.msra.mxu0 %v652
      %807 = vmatprep.subr.bf16.mxu0 0
      %808 = vmatpush1.bf16.msra.mxu0 %v653
      %809 = vmatprep.subr.bf16.mxu0 0
      %810 = vmatpush1.bf16.msra.mxu0 %v654
      %811 = vmatprep.mubr.bf16.mxu0 %v400
      %812 = vmatmul.mubr.bf16.gmra.mrb[0].mxu0 %v399
      %v813 = vpop.f32.mrb[0].mxu0
      %v814 = vadd.f32 %v765, %v813
      %v815 = vpop.f32.mrb[0].mxu0
      %v816 = vpop.f32.mrb[0].mxu0
      %v817 = vadd.f32 %v768, %v816
      %v818 = vpop.f32.mrb[0].mxu0
      %819 = vmatprep.mubr.bf16.mxu0 %v407
      %820 = vmatmul.mubr.bf16.gmra.mrb[0].mxu0 %v406
      %v821 = vpop.f32.mrb[0].mxu0
      %v822 = vadd.f32 %v773, %v821
      %v823 = vpop.f32.mrb[0].mxu0
      %v824 = vpop.f32.mrb[0].mxu0
      %v825 = vadd.f32 %v776, %v824
      %v826 = vpop.f32.mrb[0].mxu0
      %827 = vdwg.mxu0
      %828 = vmatprep.subr.bf16.mxu0 0
      %829 = vmatpush1.bf16.msra.mxu0 %v655
      %830 = vmatprep.subr.bf16.mxu0 0
      %831 = vmatpush1.bf16.msra.mxu0 %v656
      %832 = vmatprep.subr.bf16.mxu0 0
      %833 = vmatpush1.bf16.msra.mxu0 %v657
      %834 = vmatprep.subr.bf16.mxu0 0
      %835 = vmatpush1.bf16.msra.mxu0 %v658
      %836 = vmatprep.subr.bf16.mxu0 0
      %837 = vmatpush1.bf16.msra.mxu0 %v659
      %838 = vmatprep.subr.bf16.mxu0 0
      %839 = vmatpush1.bf16.msra.mxu0 %v660
      %840 = vmatprep.subr.bf16.mxu0 0
      %841 = vmatpush1.bf16.msra.mxu0 %v661
      %842 = vmatprep.subr.bf16.mxu0 0
      %843 = vmatpush1.bf16.msra.mxu0 %v662
      %844 = vmatprep.subr.bf16.mxu0 0
      %845 = vmatpush1.bf16.msra.mxu0 %v663
      %846 = vmatprep.subr.bf16.mxu0 0
      %847 = vmatpush1.bf16.msra.mxu0 %v664
      %848 = vmatprep.subr.bf16.mxu0 0
      %849 = vmatpush1.bf16.msra.mxu0 %v665
      %850 = vmatprep.subr.bf16.mxu0 0
      %851 = vmatpush1.bf16.msra.mxu0 %v666
      %852 = vmatprep.subr.bf16.mxu0 0
      %853 = vmatpush1.bf16.msra.mxu0 %v667
      %854 = vmatprep.subr.bf16.mxu0 0
      %855 = vmatpush1.bf16.msra.mxu0 %v668
      %856 = vmatprep.subr.bf16.mxu0 0
      %857 = vmatpush1.bf16.msra.mxu0 %v669
      %858 = vmatprep.subr.bf16.mxu0 0
      %859 = vmatpush1.bf16.msra.mxu0 %v670
      %860 = vmatprep.mubr.bf16.mxu0 %v402
      %861 = vmatmul.mubr.bf16.gmra.mrb[0].mxu0 %v401
      %v862 = vpop.f32.mrb[0].mxu0
      %v863 = vadd.f32 %v814, %v862
      %v864 = vpop.f32.mrb[0].mxu0
      %v865 = vpop.f32.mrb[0].mxu0
      %v866 = vadd.f32 %v817, %v865
      %v867 = vpop.f32.mrb[0].mxu0
      %868 = vmatprep.mubr.bf16.mxu0 %v409
      %869 = vmatmul.mubr.bf16.gmra.mrb[0].mxu0 %v408
      %v870 = vpop.f32.mrb[0].mxu0
      %v871 = vadd.f32 %v822, %v870
      %v872 = vpop.f32.mrb[0].mxu0
      %v873 = vpop.f32.mrb[0].mxu0
      %v874 = vadd.f32 %v825, %v873
      %v875 = vpop.f32.mrb[0].mxu0
      %876 = vdwg.mxu0
      %877 = vmatprep.subr.bf16.mxu0 0
      %878 = vmatpush1.bf16.msra.mxu0 %v671
      %879 = vmatprep.subr.bf16.mxu0 0
      %880 = vmatpush1.bf16.msra.mxu0 %v672
      %881 = vmatprep.subr.bf16.mxu0 0
      %882 = vmatpush1.bf16.msra.mxu0 0
      %883 = vmatprep.subr.bf16.mxu0 0
      %884 = vmatpush1.bf16.msra.mxu0 0
      %885 = vmatprep.subr.bf16.mxu0 0
      %886 = vmatpush1.bf16.msra.mxu0 0
      %887 = vmatprep.subr.bf16.mxu0 0
      %888 = vmatpush1.bf16.msra.mxu0 0
      %889 = vmatprep.subr.bf16.mxu0 0
      %890 = vmatpush1.bf16.msra.mxu0 0
      %891 = vmatprep.subr.bf16.mxu0 0
      %892 = vmatpush1.bf16.msra.mxu0 0
      %893 = vmatprep.subr.bf16.mxu0 0
      %894 = vmatpush1.bf16.msra.mxu0 0
      %895 = vmatprep.subr.bf16.mxu0 0
      %896 = vmatpush1.bf16.msra.mxu0 0
      %897 = vmatprep.subr.bf16.mxu0 0
      %898 = vmatpush1.bf16.msra.mxu0 0
      %899 = vmatprep.subr.bf16.mxu0 0
      %900 = vmatpush1.bf16.msra.mxu0 0
      %901 = vmatprep.subr.bf16.mxu0 0
      %902 = vmatpush1.bf16.msra.mxu0 0
      %903 = vmatprep.subr.bf16.mxu0 0
      %904 = vmatpush1.bf16.msra.mxu0 0
      %905 = vmatprep.subr.bf16.mxu0 0
      %906 = vmatpush1.bf16.msra.mxu0 0
      %907 = vmatprep.subr.bf16.mxu0 0
      %908 = vmatpush1.bf16.msra.mxu0 0
      %909 = vmatprep.mubr.bf16.mxu0 0
      %910 = vmatmul.mubr.bf16.gmra.mrb[0].mxu0 %v725
      %v911 = vpop.f32.mrb[0].mxu0
      %v912 = vadd.f32 %v863, %v911
      %v913 = vpop.f32.mrb[0].mxu0
      %v914 = vpop.f32.mrb[0].mxu0
      %v915 = vadd.f32 %v866, %v914
      %v916 = vpop.f32.mrb[0].mxu0
      %917 = vmatprep.mubr.bf16.mxu0 0
      %918 = vmatmul.mubr.bf16.gmra.mrb[0].mxu0 %v728
      %v919 = vpop.f32.mrb[0].mxu0
      %v920 = vadd.f32 %v871, %v919
      %v921 = vpop.f32.mrb[0].mxu0
      %v922 = vpop.f32.mrb[0].mxu0
      %v923 = vadd.f32 %v874, %v922
      %v924 = vpop.f32.mrb[0].mxu0
      %925 = vdwg.mxu0
      %s926 = scalar_lea.vmem %s226, 400
      %v927 = vld [vmem:[%s926] sm:$0xf]
      %v928 = vld [vmem:[%s926 + $0x4] sm:$0xf]
      %v929 = vld [vmem:[%s926 + $0x8] sm:$0xf]
      %v930 = vld [vmem:[%s926 + $0xc] sm:$0xf]
      %v931 = vld [vmem:[%s926 + $0x10] sm:$0xf]
      %v932 = vld [vmem:[%s926 + $0x14] sm:$0xf]
      %v933 = vld [vmem:[%s926 + $0x18] sm:$0xf]
      %v934 = vld [vmem:[%s926 + $0x1c] sm:$0xf]
      %v935 = vld [vmem:[%s926 + $0x20] sm:$0xf]
      %v936 = vld [vmem:[%s926 + $0x24] sm:$0xf]
      %v937 = vld [vmem:[%s926 + $0x28] sm:$0xf]
      %v938 = vld [vmem:[%s926 + $0x2c] sm:$0xf]
      %v939 = vld [vmem:[%s926 + $0x30] sm:$0xf]
      %v940 = vld [vmem:[%s926 + $0x34] sm:$0xf]
      %v941 = vld [vmem:[%s926 + $0x38] sm:$0xf]
      %v942 = vld [vmem:[%s926 + $0x3c] sm:$0xf]
      %v943 = vld [vmem:[%s926 + $0x40] sm:$0xf]
      %v944 = vld [vmem:[%s926 + $0x44] sm:$0xf]
      %v945 = vld [vmem:[%s926 + $0x48] sm:$0xf]
      %v946 = vld [vmem:[%s926 + $0x4c] sm:$0xf]
      %v947 = vld [vmem:[%s926 + $0x50] sm:$0xf]
      %v948 = vld [vmem:[%s926 + $0x54] sm:$0xf]
      %v949 = vld [vmem:[%s926 + $0x58] sm:$0xf]
      %v950 = vld [vmem:[%s926 + $0x5c] sm:$0xf]
      %v951 = vld [vmem:[%s926 + $0x60] sm:$0xf]
      %v952 = vld [vmem:[%s926 + $0x64] sm:$0xf]
      %v953 = vld [vmem:[%s926 + $0x68] sm:$0xf]
      %v954 = vld [vmem:[%s926 + $0x6c] sm:$0xf]
      %v955 = vld [vmem:[%s926 + $0x70] sm:$0xf]
      %v956 = vld [vmem:[%s926 + $0x74] sm:$0xf]
      %v957 = vld [vmem:[%s926 + $0x78] sm:$0xf]
      %v958 = vld [vmem:[%s926 + $0x7c] sm:$0xf]
      %v959 = vld [vmem:[%s926 + $0x80] sm:$0xf]
      %v960 = vld [vmem:[%s926 + $0x84] sm:$0xf]
      %v961 = vld [vmem:[%s926 + $0x88] sm:$0xf]
      %v962 = vld [vmem:[%s926 + $0x8c] sm:$0xf]
      %v963 = vld [vmem:[%s926 + $0x90] sm:$0xf]
      %v964 = vld [vmem:[%s926 + $0x94] sm:$0xf]
      %v965 = vld [vmem:[%s926 + $0x98] sm:$0xf]
      %v966 = vld [vmem:[%s926 + $0x9c] sm:$0xf]
      %v967 = vld [vmem:[%s926 + $0xa0] sm:$0xf]
      %v968 = vld [vmem:[%s926 + $0xa4] sm:$0xf]
      %v969 = vld [vmem:[%s926 + $0xa8] sm:$0xf]
      %v970 = vld [vmem:[%s926 + $0xac] sm:$0xf]
      %v971 = vld [vmem:[%s926 + $0xb0] sm:$0xf]
      %v972 = vld [vmem:[%s926 + $0xb4] sm:$0xf]
      %v973 = vld [vmem:[%s926 + $0xb8] sm:$0xf]
      %v974 = vld [vmem:[%s926 + $0xbc] sm:$0xf]
      %v975 = vld [vmem:[%s926 + $0xc0] sm:$0xf]
      %v976 = vld [vmem:[%s926 + $0xc4] sm:$0xf]
      %v977 = vld [vmem:[%s926 + $0xc8] sm:$0xf]
      %v978 = vld [vmem:[%s926 + $0xcc] sm:$0xf]
      %v979 = vld [vmem:[%s926 + $0xd0] sm:$0xf]
      %v980 = vld [vmem:[%s926 + $0xd4] sm:$0xf]
      %v981 = vld [vmem:[%s926 + $0xd8] sm:$0xf]
      %v982 = vld [vmem:[%s926 + $0xdc] sm:$0xf]
      %v983 = vld [vmem:[%s926 + $0xe0] sm:$0xf]
      %v984 = vld [vmem:[%s926 + $0xe4] sm:$0xf]
      %v985 = vld [vmem:[%s926 + $0xe8] sm:$0xf]
      %v986 = vld [vmem:[%s926 + $0xec] sm:$0xf]
      %v987 = vld [vmem:[%s926 + $0xf0] sm:$0xf]
      %v988 = vld [vmem:[%s926 + $0xf4] sm:$0xf]
      %v989 = vld [vmem:[%s926 + $0xf8] sm:$0xf]
      %v990 = vld [vmem:[%s926 + $0xfc] sm:$0xf]
      %v991 = vld [vmem:[%s926 + $0x100] sm:$0xf]
      %v992 = vld [vmem:[%s926 + $0x104] sm:$0xf]
      %v993 = vld [vmem:[%s926 + $0x108] sm:$0xf]
      %v994 = vld [vmem:[%s926 + $0x10c] sm:$0xf]
      %v995 = vld [vmem:[%s926 + $0x110] sm:$0xf]
      %v996 = vld [vmem:[%s926 + $0x114] sm:$0xf]
      %v997 = vld [vmem:[%s926 + $0x118] sm:$0xf]
      %v998 = vld [vmem:[%s926 + $0x11c] sm:$0xf]
      %v999 = vld [vmem:[%s926 + $0x120] sm:$0xf]
      %v1000 = vld [vmem:[%s926 + $0x124] sm:$0xf]
      %v1001 = vld [vmem:[%s926 + $0x128] sm:$0xf]
      %v1002 = vld [vmem:[%s926 + $0x12c] sm:$0xf]
      %v1003 = vld [vmem:[%s926 + $0x130] sm:$0xf]
      %v1004 = vld [vmem:[%s926 + $0x134] sm:$0xf]
      %v1005 = vld [vmem:[%s926 + $0x138] sm:$0xf]
      %v1006 = vld [vmem:[%s926 + $0x13c] sm:$0xf]
      %v1007 = vld [vmem:[%s926 + $0x140] sm:$0xf]
      %v1008 = vld [vmem:[%s926 + $0x144] sm:$0xf]
      %v1009 = vld [vmem:[%s926 + $0x148] sm:$0xf]
      %v1010 = vld [vmem:[%s926 + $0x14c] sm:$0xf]
      %v1011 = vld [vmem:[%s926 + $0x150] sm:$0xf]
      %v1012 = vld [vmem:[%s926 + $0x154] sm:$0xf]
      %v1013 = vld [vmem:[%s926 + $0x158] sm:$0xf]
      %v1014 = vld [vmem:[%s926 + $0x15c] sm:$0xf]
      %v1015 = vld [vmem:[%s926 + $0x160] sm:$0xf]
      %v1016 = vld [vmem:[%s926 + $0x164] sm:$0xf]
      %v1017 = vld [vmem:[%s926 + $0x168] sm:$0xf]
      %v1018 = vld [vmem:[%s926 + $0x16c] sm:$0xf]
      %v1019 = vld [vmem:[%s926 + $0x170] sm:$0xf]
      %v1020 = vld [vmem:[%s926 + $0x174] sm:$0xf]
      %v1021 = vld [vmem:[%s926 + $0x178] sm:$0xf]
      %v1022 = vld [vmem:[%s926 + $0x17c] sm:$0xf]
      %v1023 = vld [vmem:[%s926 + $0x180] sm:$0xf]
      %v1024 = vld [vmem:[%s926 + $0x184] sm:$0xf]
      %v1025 = vld [vmem:[%s926 + $0x188] sm:$0xf]
      %v1026 = vld [vmem:[%s926 + $0x18c] sm:$0xf]
      %v1127 = vunpack.c.l.b16 %v927
      %v1128 = vunpack.c.l.b16 %v928
      %v1129 = vunpack.c.l.b16 %v929
      %v1130 = vunpack.c.l.b16 %v930
      %v1131 = vunpack.c.l.b16 %v931
      %v1132 = vunpack.c.l.b16 %v932
      %v1133 = vunpack.c.l.b16 %v933
      %v1134 = vunpack.c.l.b16 %v934
      %v1135 = vunpack.c.l.b16 %v935
      %v1136 = vunpack.c.l.b16 %v936
      %v1137 = vunpack.c.l.b16 %v937
      %v1138 = vunpack.c.l.b16 %v938
      %v1139 = vunpack.c.l.b16 %v939
      %v1140 = vunpack.c.l.b16 %v940
      %v1141 = vunpack.c.l.b16 %v941
      %v1142 = vunpack.c.l.b16 %v942
      %v1143 = vunpack.c.l.b16 %v943
      %v1144 = vunpack.c.l.b16 %v944
      %v1145 = vunpack.c.l.b16 %v945
      %v1146 = vunpack.c.l.b16 %v946
      %v1147 = vunpack.c.l.b16 %v947
      %v1148 = vunpack.c.l.b16 %v948
      %v1149 = vunpack.c.l.b16 %v949
      %v1150 = vunpack.c.l.b16 %v950
      %v1151 = vunpack.c.l.b16 %v951
      %v1152 = vunpack.c.l.b16 %v952
      %v1153 = vunpack.c.l.b16 %v953
      %v1154 = vunpack.c.l.b16 %v954
      %v1155 = vunpack.c.l.b16 %v955
      %v1156 = vunpack.c.l.b16 %v956
      %v1157 = vunpack.c.l.b16 %v957
      %v1158 = vunpack.c.l.b16 %v958
      %v1159 = vunpack.c.l.b16 %v959
      %v1160 = vunpack.c.l.b16 %v960
      %v1161 = vunpack.c.l.b16 %v961
      %v1162 = vunpack.c.l.b16 %v962
      %v1163 = vunpack.c.l.b16 %v963
      %v1164 = vunpack.c.l.b16 %v964
      %v1165 = vunpack.c.l.b16 %v965
      %v1166 = vunpack.c.l.b16 %v966
      %v1167 = vunpack.c.l.b16 %v967
      %v1168 = vunpack.c.l.b16 %v968
      %v1169 = vunpack.c.l.b16 %v969
      %v1170 = vunpack.c.l.b16 %v970
      %v1171 = vunpack.c.l.b16 %v971
      %v1172 = vunpack.c.l.b16 %v972
      %v1173 = vunpack.c.l.b16 %v973
      %v1174 = vunpack.c.l.b16 %v974
      %v1175 = vunpack.c.l.b16 %v975
      %v1176 = vunpack.c.l.b16 %v976
      %v1177 = vunpack.c.l.b16 %v977
      %v1178 = vunpack.c.l.b16 %v978
      %v1179 = vunpack.c.l.b16 %v979
      %v1180 = vunpack.c.l.b16 %v980
      %v1181 = vunpack.c.l.b16 %v981
      %v1182 = vunpack.c.l.b16 %v982
      %v1183 = vunpack.c.l.b16 %v983
      %v1184 = vunpack.c.l.b16 %v984
      %v1185 = vunpack.c.l.b16 %v985
      %v1186 = vunpack.c.l.b16 %v986
      %v1187 = vunpack.c.l.b16 %v987
      %v1188 = vunpack.c.l.b16 %v988
      %v1189 = vunpack.c.l.b16 %v989
      %v1190 = vunpack.c.l.b16 %v990
      %v1191 = vunpack.c.l.b16 %v991
      %v1192 = vunpack.c.l.b16 %v992
      %v1193 = vunpack.c.l.b16 %v993
      %v1194 = vunpack.c.l.b16 %v994
      %v1195 = vunpack.c.l.b16 %v995
      %v1196 = vunpack.c.l.b16 %v996
      %v1197 = vunpack.c.l.b16 %v997
      %v1198 = vunpack.c.l.b16 %v998
      %v1199 = vunpack.c.l.b16 %v999
      %v1200 = vunpack.c.l.b16 %v1000
      %v1201 = vunpack.c.l.b16 %v1001
      %v1202 = vunpack.c.l.b16 %v1002
      %v1203 = vunpack.c.l.b16 %v1003
      %v1204 = vunpack.c.l.b16 %v1004
      %v1205 = vunpack.c.l.b16 %v1005
      %v1206 = vunpack.c.l.b16 %v1006
      %v1207 = vunpack.c.l.b16 %v1007
      %v1208 = vunpack.c.l.b16 %v1008
      %v1209 = vunpack.c.l.b16 %v1009
      %v1210 = vunpack.c.l.b16 %v1010
      %v1211 = vunpack.c.l.b16 %v1011
      %v1212 = vunpack.c.l.b16 %v1012
      %v1213 = vunpack.c.l.b16 %v1013
      %v1214 = vunpack.c.l.b16 %v1014
      %v1215 = vunpack.c.l.b16 %v1015
      %v1216 = vunpack.c.l.b16 %v1016
      %v1217 = vunpack.c.l.b16 %v1017
      %v1218 = vunpack.c.l.b16 %v1018
      %v1219 = vunpack.c.l.b16 %v1019
      %v1220 = vunpack.c.l.b16 %v1020
      %v1221 = vunpack.c.l.b16 %v1021
      %v1222 = vunpack.c.l.b16 %v1022
      %v1223 = vunpack.c.l.b16 %v1023
      %v1224 = vunpack.c.l.b16 %v1024
      %v1225 = vunpack.c.l.b16 %v1025
      %v1226 = vunpack.c.l.b16 %v1026
      %v1227 = vpack.c.b16 %v1128, %v1127
      %v1228 = vpack.c.b16 %v1130, %v1129
      %v1229 = vpack.c.b16 %v1132, %v1131
      %v1230 = vpack.c.b16 %v1134, %v1133
      %v1231 = vpack.c.b16 %v1136, %v1135
      %v1232 = vpack.c.b16 %v1138, %v1137
      %v1233 = vpack.c.b16 %v1140, %v1139
      %v1234 = vpack.c.b16 %v1142, %v1141
      %v1235 = vpack.c.b16 %v1144, %v1143
      %v1236 = vpack.c.b16 %v1146, %v1145
      %v1237 = vpack.c.b16 %v1148, %v1147
      %v1238 = vpack.c.b16 %v1150, %v1149
      %v1239 = vpack.c.b16 %v1152, %v1151
      %v1240 = vpack.c.b16 %v1154, %v1153
      %v1241 = vpack.c.b16 %v1156, %v1155
      %v1242 = vpack.c.b16 %v1158, %v1157
      %v1243 = vpack.c.b16 %v1160, %v1159
      %v1244 = vpack.c.b16 %v1162, %v1161
      %v1245 = vpack.c.b16 %v1164, %v1163
      %v1246 = vpack.c.b16 %v1166, %v1165
      %v1247 = vpack.c.b16 %v1168, %v1167
      %v1248 = vpack.c.b16 %v1170, %v1169
      %v1249 = vpack.c.b16 %v1172, %v1171
      %v1250 = vpack.c.b16 %v1174, %v1173
      %v1251 = vpack.c.b16 %v1176, %v1175
      %v1252 = vpack.c.b16 %v1178, %v1177
      %v1253 = vpack.c.b16 %v1180, %v1179
      %v1254 = vpack.c.b16 %v1182, %v1181
      %v1255 = vpack.c.b16 %v1184, %v1183
      %v1256 = vpack.c.b16 %v1186, %v1185
      %v1257 = vpack.c.b16 %v1188, %v1187
      %v1258 = vpack.c.b16 %v1190, %v1189
      %v1259 = vpack.c.b16 %v1192, %v1191
      %v1260 = vpack.c.b16 %v1194, %v1193
      %v1261 = vpack.c.b16 %v1196, %v1195
      %v1262 = vpack.c.b16 %v1198, %v1197
      %v1263 = vpack.c.b16 %v1200, %v1199
      %v1264 = vpack.c.b16 %v1202, %v1201
      %v1265 = vpack.c.b16 %v1204, %v1203
      %v1266 = vpack.c.b16 %v1206, %v1205
      %v1267 = vpack.c.b16 %v1208, %v1207
      %v1268 = vpack.c.b16 %v1210, %v1209
      %v1269 = vpack.c.b16 %v1212, %v1211
      %v1270 = vpack.c.b16 %v1214, %v1213
      %v1271 = vpack.c.b16 %v1216, %v1215
      %v1272 = vpack.c.b16 %v1218, %v1217
      %v1273 = vpack.c.b16 %v1220, %v1219
      %v1274 = vpack.c.b16 %v1222, %v1221
      %v1275 = vpack.c.b16 %v1224, %v1223
      %v1276 = vpack.c.b16 %v1226, %v1225
      %1327 = vmatprep.subr.bf16.mxu0 0
      %1328 = vmatpush1.bf16.msra.mxu0 %v1227
      %1329 = vmatprep.subr.bf16.mxu0 0
      %1330 = vmatpush1.bf16.msra.mxu0 %v1228
      %1331 = vmatprep.subr.bf16.mxu0 0
      %1332 = vmatpush1.bf16.msra.mxu0 %v1229
      %1333 = vmatprep.subr.bf16.mxu0 0
      %1334 = vmatpush1.bf16.msra.mxu0 %v1230
      %1335 = vmatprep.subr.bf16.mxu0 0
      %1336 = vmatpush1.bf16.msra.mxu0 %v1231
      %1337 = vmatprep.subr.bf16.mxu0 0
      %1338 = vmatpush1.bf16.msra.mxu0 %v1232
      %1339 = vmatprep.subr.bf16.mxu0 0
      %1340 = vmatpush1.bf16.msra.mxu0 %v1233
      %1341 = vmatprep.subr.bf16.mxu0 0
      %1342 = vmatpush1.bf16.msra.mxu0 %v1234
      %1343 = vmatprep.subr.bf16.mxu0 0
      %1344 = vmatpush1.bf16.msra.mxu0 %v1235
      %1345 = vmatprep.subr.bf16.mxu0 0
      %1346 = vmatpush1.bf16.msra.mxu0 %v1236
      %1347 = vmatprep.subr.bf16.mxu0 0
      %1348 = vmatpush1.bf16.msra.mxu0 %v1237
      %1349 = vmatprep.subr.bf16.mxu0 0
      %1350 = vmatpush1.bf16.msra.mxu0 %v1238
      %1351 = vmatprep.subr.bf16.mxu0 0
      %1352 = vmatpush1.bf16.msra.mxu0 %v1239
      %1353 = vmatprep.subr.bf16.mxu0 0
      %1354 = vmatpush1.bf16.msra.mxu0 %v1240
      %1355 = vmatprep.subr.bf16.mxu0 0
      %1356 = vmatpush1.bf16.msra.mxu0 %v1241
      %1357 = vmatprep.subr.bf16.mxu0 0
      %1358 = vmatpush1.bf16.msra.mxu0 %v1242
      %1359 = vmatprep.mubr.bf16.mxu0 %v398
      %1360 = vmatmul.mubr.bf16.gmra.mrb[0].mxu0 %v397
      %v1361 = vpop.f32.mrb[0].mxu0
      %v1362 = vadd.f32 0.0, %v1361
      %v1363 = vpop.f32.mrb[0].mxu0
      %v1364 = vpop.f32.mrb[0].mxu0
      %v1365 = vadd.f32 0.0, %v1364
      %v1366 = vpop.f32.mrb[0].mxu0
      %1367 = vmatprep.mubr.bf16.mxu0 %v405
      %1368 = vmatmul.mubr.bf16.gmra.mrb[0].mxu0 %v404
      %v1369 = vpop.f32.mrb[0].mxu0
      %v1370 = vadd.f32 0.0, %v1369
      %v1371 = vpop.f32.mrb[0].mxu0
      %v1372 = vpop.f32.mrb[0].mxu0
      %v1373 = vadd.f32 0.0, %v1372
      %v1374 = vpop.f32.mrb[0].mxu0
      %1375 = vdwg.mxu0
      %1376 = vmatprep.subr.bf16.mxu0 0
      %1377 = vmatpush1.bf16.msra.mxu0 %v1243
      %1378 = vmatprep.subr.bf16.mxu0 0
      %1379 = vmatpush1.bf16.msra.mxu0 %v1244
      %1380 = vmatprep.subr.bf16.mxu0 0
      %1381 = vmatpush1.bf16.msra.mxu0 %v1245
      %1382 = vmatprep.subr.bf16.mxu0 0
      %1383 = vmatpush1.bf16.msra.mxu0 %v1246
      %1384 = vmatprep.subr.bf16.mxu0 0
      %1385 = vmatpush1.bf16.msra.mxu0 %v1247
      %1386 = vmatprep.subr.bf16.mxu0 0
      %1387 = vmatpush1.bf16.msra.mxu0 %v1248
      %1388 = vmatprep.subr.bf16.mxu0 0
      %1389 = vmatpush1.bf16.msra.mxu0 %v1249
      %1390 = vmatprep.subr.bf16.mxu0 0
      %1391 = vmatpush1.bf16.msra.mxu0 %v1250
      %1392 = vmatprep.subr.bf16.mxu0 0
      %1393 = vmatpush1.bf16.msra.mxu0 %v1251
      %1394 = vmatprep.subr.bf16.mxu0 0
      %1395 = vmatpush1.bf16.msra.mxu0 %v1252
      %1396 = vmatprep.subr.bf16.mxu0 0
      %1397 = vmatpush1.bf16.msra.mxu0 %v1253
      %1398 = vmatprep.subr.bf16.mxu0 0
      %1399 = vmatpush1.bf16.msra.mxu0 %v1254
      %1400 = vmatprep.subr.bf16.mxu0 0
      %1401 = vmatpush1.bf16.msra.mxu0 %v1255
      %1402 = vmatprep.subr.bf16.mxu0 0
      %1403 = vmatpush1.bf16.msra.mxu0 %v1256
      %1404 = vmatprep.subr.bf16.mxu0 0
      %1405 = vmatpush1.bf16.msra.mxu0 %v1257
      %1406 = vmatprep.subr.bf16.mxu0 0
      %1407 = vmatpush1.bf16.msra.mxu0 %v1258
      %1408 = vmatprep.mubr.bf16.mxu0 %v400
      %1409 = vmatmul.mubr.bf16.gmra.mrb[0].mxu0 %v399
      %v1410 = vpop.f32.mrb[0].mxu0
      %v1411 = vadd.f32 %v1362, %v1410
      %v1412 = vpop.f32.mrb[0].mxu0
      %v1413 = vpop.f32.mrb[0].mxu0
      %v1414 = vadd.f32 %v1365, %v1413
      %v1415 = vpop.f32.mrb[0].mxu0
      %1416 = vmatprep.mubr.bf16.mxu0 %v407
      %1417 = vmatmul.mubr.bf16.gmra.mrb[0].mxu0 %v406
      %v1418 = vpop.f32.mrb[0].mxu0
      %v1419 = vadd.f32 %v1370, %v1418
      %v1420 = vpop.f32.mrb[0].mxu0
      %v1421 = vpop.f32.mrb[0].mxu0
      %v1422 = vadd.f32 %v1373, %v1421
      %v1423 = vpop.f32.mrb[0].mxu0
      %1424 = vdwg.mxu0
      %1425 = vmatprep.subr.bf16.mxu0 0
      %1426 = vmatpush1.bf16.msra.mxu0 %v1259
      %1427 = vmatprep.subr.bf16.mxu0 0
      %1428 = vmatpush1.bf16.msra.mxu0 %v1260
      %1429 = vmatprep.subr.bf16.mxu0 0
      %1430 = vmatpush1.bf16.msra.mxu0 %v1261
      %1431 = vmatprep.subr.bf16.mxu0 0
      %1432 = vmatpush1.bf16.msra.mxu0 %v1262
      %1433 = vmatprep.subr.bf16.mxu0 0
      %1434 = vmatpush1.bf16.msra.mxu0 %v1263
      %1435 = vmatprep.subr.bf16.mxu0 0
      %1436 = vmatpush1.bf16.msra.mxu0 %v1264
      %1437 = vmatprep.subr.bf16.mxu0 0
      %1438 = vmatpush1.bf16.msra.mxu0 %v1265
      %1439 = vmatprep.subr.bf16.mxu0 0
      %1440 = vmatpush1.bf16.msra.mxu0 %v1266
      %1441 = vmatprep.subr.bf16.mxu0 0
      %1442 = vmatpush1.bf16.msra.mxu0 %v1267
      %1443 = vmatprep.subr.bf16.mxu0 0
      %1444 = vmatpush1.bf16.msra.mxu0 %v1268
      %1445 = vmatprep.subr.bf16.mxu0 0
      %1446 = vmatpush1.bf16.msra.mxu0 %v1269
      %1447 = vmatprep.subr.bf16.mxu0 0
      %1448 = vmatpush1.bf16.msra.mxu0 %v1270
      %1449 = vmatprep.subr.bf16.mxu0 0
      %1450 = vmatpush1.bf16.msra.mxu0 %v1271
      %1451 = vmatprep.subr.bf16.mxu0 0
      %1452 = vmatpush1.bf16.msra.mxu0 %v1272
      %1453 = vmatprep.subr.bf16.mxu0 0
      %1454 = vmatpush1.bf16.msra.mxu0 %v1273
      %1455 = vmatprep.subr.bf16.mxu0 0
      %1456 = vmatpush1.bf16.msra.mxu0 %v1274
      %1457 = vmatprep.mubr.bf16.mxu0 %v402
      %1458 = vmatmul.mubr.bf16.gmra.mrb[0].mxu0 %v401
      %v1459 = vpop.f32.mrb[0].mxu0
      %v1460 = vadd.f32 %v1411, %v1459
      %v1461 = vpop.f32.mrb[0].mxu0
      %v1462 = vpop.f32.mrb[0].mxu0
      %v1463 = vadd.f32 %v1414, %v1462
      %v1464 = vpop.f32.mrb[0].mxu0
      %1465 = vmatprep.mubr.bf16.mxu0 %v409
      %1466 = vmatmul.mubr.bf16.gmra.mrb[0].mxu0 %v408
      %v1467 = vpop.f32.mrb[0].mxu0
      %v1468 = vadd.f32 %v1419, %v1467
      %v1469 = vpop.f32.mrb[0].mxu0
      %v1470 = vpop.f32.mrb[0].mxu0
      %v1471 = vadd.f32 %v1422, %v1470
      %v1472 = vpop.f32.mrb[0].mxu0
      %1473 = vdwg.mxu0
      %1474 = vmatprep.subr.bf16.mxu0 0
      %1475 = vmatpush1.bf16.msra.mxu0 %v1275
      %1476 = vmatprep.subr.bf16.mxu0 0
      %1477 = vmatpush1.bf16.msra.mxu0 %v1276
      %1478 = vmatprep.subr.bf16.mxu0 0
      %1479 = vmatpush1.bf16.msra.mxu0 0
      %1480 = vmatprep.subr.bf16.mxu0 0
      %1481 = vmatpush1.bf16.msra.mxu0 0
      %1482 = vmatprep.subr.bf16.mxu0 0
      %1483 = vmatpush1.bf16.msra.mxu0 0
      %1484 = vmatprep.subr.bf16.mxu0 0
      %1485 = vmatpush1.bf16.msra.mxu0 0
      %1486 = vmatprep.subr.bf16.mxu0 0
      %1487 = vmatpush1.bf16.msra.mxu0 0
      %1488 = vmatprep.subr.bf16.mxu0 0
      %1489 = vmatpush1.bf16.msra.mxu0 0
      %1490 = vmatprep.subr.bf16.mxu0 0
      %1491 = vmatpush1.bf16.msra.mxu0 0
      %1492 = vmatprep.subr.bf16.mxu0 0
      %1493 = vmatpush1.bf16.msra.mxu0 0
      %1494 = vmatprep.subr.bf16.mxu0 0
      %1495 = vmatpush1.bf16.msra.mxu0 0
      %1496 = vmatprep.subr.bf16.mxu0 0
      %1497 = vmatpush1.bf16.msra.mxu0 0
      %1498 = vmatprep.subr.bf16.mxu0 0
      %1499 = vmatpush1.bf16.msra.mxu0 0
      %1500 = vmatprep.subr.bf16.mxu0 0
      %1501 = vmatpush1.bf16.msra.mxu0 0
      %1502 = vmatprep.subr.bf16.mxu0 0
      %1503 = vmatpush1.bf16.msra.mxu0 0
      %1504 = vmatprep.subr.bf16.mxu0 0
      %1505 = vmatpush1.bf16.msra.mxu0 0
      %1506 = vmatprep.mubr.bf16.mxu0 0
      %1507 = vmatmul.mubr.bf16.gmra.mrb[0].mxu0 %v725
      %v1508 = vpop.f32.mrb[0].mxu0
      %v1509 = vadd.f32 %v1460, %v1508
      %v1510 = vpop.f32.mrb[0].mxu0
      %v1511 = vpop.f32.mrb[0].mxu0
      %v1512 = vadd.f32 %v1463, %v1511
      %v1513 = vpop.f32.mrb[0].mxu0
      %1514 = vmatprep.mubr.bf16.mxu0 0
      %1515 = vmatmul.mubr.bf16.gmra.mrb[0].mxu0 %v728
      %v1516 = vpop.f32.mrb[0].mxu0
      %v1517 = vadd.f32 %v1468, %v1516
      %v1518 = vpop.f32.mrb[0].mxu0
      %v1519 = vpop.f32.mrb[0].mxu0
      %v1520 = vadd.f32 %v1471, %v1519
      %v1521 = vpop.f32.mrb[0].mxu0
      %1522 = vdwg.mxu0
      %s1523 = scalar_lea.vmem %s226, 800
      %v1524 = vld [vmem:[%s1523] sm:$0xf]
      %v1525 = vld [vmem:[%s1523 + $0x4] sm:$0xf]
      %v1526 = vld [vmem:[%s1523 + $0x8] sm:$0xf]
      %v1527 = vld [vmem:[%s1523 + $0xc] sm:$0xf]
      %v1528 = vld [vmem:[%s1523 + $0x10] sm:$0xf]
      %v1529 = vld [vmem:[%s1523 + $0x14] sm:$0xf]
      %v1530 = vld [vmem:[%s1523 + $0x18] sm:$0xf]
      %v1531 = vld [vmem:[%s1523 + $0x1c] sm:$0xf]
      %v1532 = vld [vmem:[%s1523 + $0x20] sm:$0xf]
      %v1533 = vld [vmem:[%s1523 + $0x24] sm:$0xf]
      %v1534 = vld [vmem:[%s1523 + $0x28] sm:$0xf]
      %v1535 = vld [vmem:[%s1523 + $0x2c] sm:$0xf]
      %v1536 = vld [vmem:[%s1523 + $0x30] sm:$0xf]
      %v1537 = vld [vmem:[%s1523 + $0x34] sm:$0xf]
      %v1538 = vld [vmem:[%s1523 + $0x38] sm:$0xf]
      %v1539 = vld [vmem:[%s1523 + $0x3c] sm:$0xf]
      %v1540 = vld [vmem:[%s1523 + $0x40] sm:$0xf]
      %v1541 = vld [vmem:[%s1523 + $0x44] sm:$0xf]
      %v1542 = vld [vmem:[%s1523 + $0x48] sm:$0xf]
      %v1543 = vld [vmem:[%s1523 + $0x4c] sm:$0xf]
      %v1544 = vld [vmem:[%s1523 + $0x50] sm:$0xf]
      %v1545 = vld [vmem:[%s1523 + $0x54] sm:$0xf]
      %v1546 = vld [vmem:[%s1523 + $0x58] sm:$0xf]
      %v1547 = vld [vmem:[%s1523 + $0x5c] sm:$0xf]
      %v1548 = vld [vmem:[%s1523 + $0x60] sm:$0xf]
      %v1549 = vld [vmem:[%s1523 + $0x64] sm:$0xf]
      %v1550 = vld [vmem:[%s1523 + $0x68] sm:$0xf]
      %v1551 = vld [vmem:[%s1523 + $0x6c] sm:$0xf]
      %v1552 = vld [vmem:[%s1523 + $0x70] sm:$0xf]
      %v1553 = vld [vmem:[%s1523 + $0x74] sm:$0xf]
      %v1554 = vld [vmem:[%s1523 + $0x78] sm:$0xf]
      %v1555 = vld [vmem:[%s1523 + $0x7c] sm:$0xf]
      %v1556 = vld [vmem:[%s1523 + $0x80] sm:$0xf]
      %v1557 = vld [vmem:[%s1523 + $0x84] sm:$0xf]
      %v1558 = vld [vmem:[%s1523 + $0x88] sm:$0xf]
      %v1559 = vld [vmem:[%s1523 + $0x8c] sm:$0xf]
      %v1560 = vld [vmem:[%s1523 + $0x90] sm:$0xf]
      %v1561 = vld [vmem:[%s1523 + $0x94] sm:$0xf]
      %v1562 = vld [vmem:[%s1523 + $0x98] sm:$0xf]
      %v1563 = vld [vmem:[%s1523 + $0x9c] sm:$0xf]
      %v1564 = vld [vmem:[%s1523 + $0xa0] sm:$0xf]
      %v1565 = vld [vmem:[%s1523 + $0xa4] sm:$0xf]
      %v1566 = vld [vmem:[%s1523 + $0xa8] sm:$0xf]
      %v1567 = vld [vmem:[%s1523 + $0xac] sm:$0xf]
      %v1568 = vld [vmem:[%s1523 + $0xb0] sm:$0xf]
      %v1569 = vld [vmem:[%s1523 + $0xb4] sm:$0xf]
      %v1570 = vld [vmem:[%s1523 + $0xb8] sm:$0xf]
      %v1571 = vld [vmem:[%s1523 + $0xbc] sm:$0xf]
      %v1572 = vld [vmem:[%s1523 + $0xc0] sm:$0xf]
      %v1573 = vld [vmem:[%s1523 + $0xc4] sm:$0xf]
      %v1574 = vld [vmem:[%s1523 + $0xc8] sm:$0xf]
      %v1575 = vld [vmem:[%s1523 + $0xcc] sm:$0xf]
      %v1576 = vld [vmem:[%s1523 + $0xd0] sm:$0xf]
      %v1577 = vld [vmem:[%s1523 + $0xd4] sm:$0xf]
      %v1578 = vld [vmem:[%s1523 + $0xd8] sm:$0xf]
      %v1579 = vld [vmem:[%s1523 + $0xdc] sm:$0xf]
      %v1580 = vld [vmem:[%s1523 + $0xe0] sm:$0xf]
      %v1581 = vld [vmem:[%s1523 + $0xe4] sm:$0xf]
      %v1582 = vld [vmem:[%s1523 + $0xe8] sm:$0xf]
      %v1583 = vld [vmem:[%s1523 + $0xec] sm:$0xf]
      %v1584 = vld [vmem:[%s1523 + $0xf0] sm:$0xf]
      %v1585 = vld [vmem:[%s1523 + $0xf4] sm:$0xf]
      %v1586 = vld [vmem:[%s1523 + $0xf8] sm:$0xf]
      %v1587 = vld [vmem:[%s1523 + $0xfc] sm:$0xf]
      %v1588 = vld [vmem:[%s1523 + $0x100] sm:$0xf]
      %v1589 = vld [vmem:[%s1523 + $0x104] sm:$0xf]
      %v1590 = vld [vmem:[%s1523 + $0x108] sm:$0xf]
      %v1591 = vld [vmem:[%s1523 + $0x10c] sm:$0xf]
      %v1592 = vld [vmem:[%s1523 + $0x110] sm:$0xf]
      %v1593 = vld [vmem:[%s1523 + $0x114] sm:$0xf]
      %v1594 = vld [vmem:[%s1523 + $0x118] sm:$0xf]
      %v1595 = vld [vmem:[%s1523 + $0x11c] sm:$0xf]
      %v1596 = vld [vmem:[%s1523 + $0x120] sm:$0xf]
      %v1597 = vld [vmem:[%s1523 + $0x124] sm:$0xf]
      %v1598 = vld [vmem:[%s1523 + $0x128] sm:$0xf]
      %v1599 = vld [vmem:[%s1523 + $0x12c] sm:$0xf]
      %v1600 = vld [vmem:[%s1523 + $0x130] sm:$0xf]
      %v1601 = vld [vmem:[%s1523 + $0x134] sm:$0xf]
      %v1602 = vld [vmem:[%s1523 + $0x138] sm:$0xf]
      %v1603 = vld [vmem:[%s1523 + $0x13c] sm:$0xf]
      %v1604 = vld [vmem:[%s1523 + $0x140] sm:$0xf]
      %v1605 = vld [vmem:[%s1523 + $0x144] sm:$0xf]
      %v1606 = vld [vmem:[%s1523 + $0x148] sm:$0xf]
      %v1607 = vld [vmem:[%s1523 + $0x14c] sm:$0xf]
      %v1608 = vld [vmem:[%s1523 + $0x150] sm:$0xf]
      %v1609 = vld [vmem:[%s1523 + $0x154] sm:$0xf]
      %v1610 = vld [vmem:[%s1523 + $0x158] sm:$0xf]
      %v1611 = vld [vmem:[%s1523 + $0x15c] sm:$0xf]
      %v1612 = vld [vmem:[%s1523 + $0x160] sm:$0xf]
      %v1613 = vld [vmem:[%s1523 + $0x164] sm:$0xf]
      %v1614 = vld [vmem:[%s1523 + $0x168] sm:$0xf]
      %v1615 = vld [vmem:[%s1523 + $0x16c] sm:$0xf]
      %v1616 = vld [vmem:[%s1523 + $0x170] sm:$0xf]
      %v1617 = vld [vmem:[%s1523 + $0x174] sm:$0xf]
      %v1618 = vld [vmem:[%s1523 + $0x178] sm:$0xf]
      %v1619 = vld [vmem:[%s1523 + $0x17c] sm:$0xf]
      %v1620 = vld [vmem:[%s1523 + $0x180] sm:$0xf]
      %v1621 = vld [vmem:[%s1523 + $0x184] sm:$0xf]
      %v1622 = vld [vmem:[%s1523 + $0x188] sm:$0xf]
      %v1623 = vld [vmem:[%s1523 + $0x18c] sm:$0xf]
      %v1724 = vunpack.c.l.b16 %v1524
      %v1725 = vunpack.c.l.b16 %v1525
      %v1726 = vunpack.c.l.b16 %v1526
      %v1727 = vunpack.c.l.b16 %v1527
      %v1728 = vunpack.c.l.b16 %v1528
      %v1729 = vunpack.c.l.b16 %v1529
      %v1730 = vunpack.c.l.b16 %v1530
      %v1731 = vunpack.c.l.b16 %v1531
      %v1732 = vunpack.c.l.b16 %v1532
      %v1733 = vunpack.c.l.b16 %v1533
      %v1734 = vunpack.c.l.b16 %v1534
      %v1735 = vunpack.c.l.b16 %v1535
      %v1736 = vunpack.c.l.b16 %v1536
      %v1737 = vunpack.c.l.b16 %v1537
      %v1738 = vunpack.c.l.b16 %v1538
      %v1739 = vunpack.c.l.b16 %v1539
      %v1740 = vunpack.c.l.b16 %v1540
      %v1741 = vunpack.c.l.b16 %v1541
      %v1742 = vunpack.c.l.b16 %v1542
      %v1743 = vunpack.c.l.b16 %v1543
      %v1744 = vunpack.c.l.b16 %v1544
      %v1745 = vunpack.c.l.b16 %v1545
      %v1746 = vunpack.c.l.b16 %v1546
      %v1747 = vunpack.c.l.b16 %v1547
      %v1748 = vunpack.c.l.b16 %v1548
      %v1749 = vunpack.c.l.b16 %v1549
      %v1750 = vunpack.c.l.b16 %v1550
      %v1751 = vunpack.c.l.b16 %v1551
      %v1752 = vunpack.c.l.b16 %v1552
      %v1753 = vunpack.c.l.b16 %v1553
      %v1754 = vunpack.c.l.b16 %v1554
      %v1755 = vunpack.c.l.b16 %v1555
      %v1756 = vunpack.c.l.b16 %v1556
      %v1757 = vunpack.c.l.b16 %v1557
      %v1758 = vunpack.c.l.b16 %v1558
      %v1759 = vunpack.c.l.b16 %v1559
      %v1760 = vunpack.c.l.b16 %v1560
      %v1761 = vunpack.c.l.b16 %v1561
      %v1762 = vunpack.c.l.b16 %v1562
      %v1763 = vunpack.c.l.b16 %v1563
      %v1764 = vunpack.c.l.b16 %v1564
      %v1765 = vunpack.c.l.b16 %v1565
      %v1766 = vunpack.c.l.b16 %v1566
      %v1767 = vunpack.c.l.b16 %v1567
      %v1768 = vunpack.c.l.b16 %v1568
      %v1769 = vunpack.c.l.b16 %v1569
      %v1770 = vunpack.c.l.b16 %v1570
      %v1771 = vunpack.c.l.b16 %v1571
      %v1772 = vunpack.c.l.b16 %v1572
      %v1773 = vunpack.c.l.b16 %v1573
      %v1774 = vunpack.c.l.b16 %v1574
      %v1775 = vunpack.c.l.b16 %v1575
      %v1776 = vunpack.c.l.b16 %v1576
      %v1777 = vunpack.c.l.b16 %v1577
      %v1778 = vunpack.c.l.b16 %v1578
      %v1779 = vunpack.c.l.b16 %v1579
      %v1780 = vunpack.c.l.b16 %v1580
      %v1781 = vunpack.c.l.b16 %v1581
      %v1782 = vunpack.c.l.b16 %v1582
      %v1783 = vunpack.c.l.b16 %v1583
      %v1784 = vunpack.c.l.b16 %v1584
      %v1785 = vunpack.c.l.b16 %v1585
      %v1786 = vunpack.c.l.b16 %v1586
      %v1787 = vunpack.c.l.b16 %v1587
      %v1788 = vunpack.c.l.b16 %v1588
      %v1789 = vunpack.c.l.b16 %v1589
      %v1790 = vunpack.c.l.b16 %v1590
      %v1791 = vunpack.c.l.b16 %v1591
      %v1792 = vunpack.c.l.b16 %v1592
      %v1793 = vunpack.c.l.b16 %v1593
      %v1794 = vunpack.c.l.b16 %v1594
      %v1795 = vunpack.c.l.b16 %v1595
      %v1796 = vunpack.c.l.b16 %v1596
      %v1797 = vunpack.c.l.b16 %v1597
      %v1798 = vunpack.c.l.b16 %v1598
      %v1799 = vunpack.c.l.b16 %v1599
      %v1800 = vunpack.c.l.b16 %v1600
      %v1801 = vunpack.c.l.b16 %v1601
      %v1802 = vunpack.c.l.b16 %v1602
      %v1803 = vunpack.c.l.b16 %v1603
      %v1804 = vunpack.c.l.b16 %v1604
      %v1805 = vunpack.c.l.b16 %v1605
      %v1806 = vunpack.c.l.b16 %v1606
      %v1807 = vunpack.c.l.b16 %v1607
      %v1808 = vunpack.c.l.b16 %v1608
      %v1809 = vunpack.c.l.b16 %v1609
      %v1810 = vunpack.c.l.b16 %v1610
      %v1811 = vunpack.c.l.b16 %v1611
      %v1812 = vunpack.c.l.b16 %v1612
      %v1813 = vunpack.c.l.b16 %v1613
      %v1814 = vunpack.c.l.b16 %v1614
      %v1815 = vunpack.c.l.b16 %v1615
      %v1816 = vunpack.c.l.b16 %v1616
      %v1817 = vunpack.c.l.b16 %v1617
      %v1818 = vunpack.c.l.b16 %v1618
      %v1819 = vunpack.c.l.b16 %v1619
      %v1820 = vunpack.c.l.b16 %v1620
      %v1821 = vunpack.c.l.b16 %v1621
      %v1822 = vunpack.c.l.b16 %v1622
      %v1823 = vunpack.c.l.b16 %v1623
      %v1824 = vpack.c.b16 %v1725, %v1724
      %v1825 = vpack.c.b16 %v1727, %v1726
      %v1826 = vpack.c.b16 %v1729, %v1728
      %v1827 = vpack.c.b16 %v1731, %v1730
      %v1828 = vpack.c.b16 %v1733, %v1732
      %v1829 = vpack.c.b16 %v1735, %v1734
      %v1830 = vpack.c.b16 %v1737, %v1736
      %v1831 = vpack.c.b16 %v1739, %v1738
      %v1832 = vpack.c.b16 %v1741, %v1740
      %v1833 = vpack.c.b16 %v1743, %v1742
      %v1834 = vpack.c.b16 %v1745, %v1744
      %v1835 = vpack.c.b16 %v1747, %v1746
      %v1836 = vpack.c.b16 %v1749, %v1748
      %v1837 = vpack.c.b16 %v1751, %v1750
      %v1838 = vpack.c.b16 %v1753, %v1752
      %v1839 = vpack.c.b16 %v1755, %v1754
      %v1840 = vpack.c.b16 %v1757, %v1756
      %v1841 = vpack.c.b16 %v1759, %v1758
      %v1842 = vpack.c.b16 %v1761, %v1760
      %v1843 = vpack.c.b16 %v1763, %v1762
      %v1844 = vpack.c.b16 %v1765, %v1764
      %v1845 = vpack.c.b16 %v1767, %v1766
      %v1846 = vpack.c.b16 %v1769, %v1768
      %v1847 = vpack.c.b16 %v1771, %v1770
      %v1848 = vpack.c.b16 %v1773, %v1772
      %v1849 = vpack.c.b16 %v1775, %v1774
      %v1850 = vpack.c.b16 %v1777, %v1776
      %v1851 = vpack.c.b16 %v1779, %v1778
      %v1852 = vpack.c.b16 %v1781, %v1780
      %v1853 = vpack.c.b16 %v1783, %v1782
      %v1854 = vpack.c.b16 %v1785, %v1784
      %v1855 = vpack.c.b16 %v1787, %v1786
      %v1856 = vpack.c.b16 %v1789, %v1788
      %v1857 = vpack.c.b16 %v1791, %v1790
      %v1858 = vpack.c.b16 %v1793, %v1792
      %v1859 = vpack.c.b16 %v1795, %v1794
      %v1860 = vpack.c.b16 %v1797, %v1796
      %v1861 = vpack.c.b16 %v1799, %v1798
      %v1862 = vpack.c.b16 %v1801, %v1800
      %v1863 = vpack.c.b16 %v1803, %v1802
      %v1864 = vpack.c.b16 %v1805, %v1804
      %v1865 = vpack.c.b16 %v1807, %v1806
      %v1866 = vpack.c.b16 %v1809, %v1808
      %v1867 = vpack.c.b16 %v1811, %v1810
      %v1868 = vpack.c.b16 %v1813, %v1812
      %v1869 = vpack.c.b16 %v1815, %v1814
      %v1870 = vpack.c.b16 %v1817, %v1816
      %v1871 = vpack.c.b16 %v1819, %v1818
      %v1872 = vpack.c.b16 %v1821, %v1820
      %v1873 = vpack.c.b16 %v1823, %v1822
      %1924 = vmatprep.subr.bf16.mxu0 0
      %1925 = vmatpush1.bf16.msra.mxu0 %v1824
      %1926 = vmatprep.subr.bf16.mxu0 0
      %1927 = vmatpush1.bf16.msra.mxu0 %v1825
      %1928 = vmatprep.subr.bf16.mxu0 0
      %1929 = vmatpush1.bf16.msra.mxu0 %v1826
      %1930 = vmatprep.subr.bf16.mxu0 0
      %1931 = vmatpush1.bf16.msra.mxu0 %v1827
      %1932 = vmatprep.subr.bf16.mxu0 0
      %1933 = vmatpush1.bf16.msra.mxu0 %v1828
      %1934 = vmatprep.subr.bf16.mxu0 0
      %1935 = vmatpush1.bf16.msra.mxu0 %v1829
      %1936 = vmatprep.subr.bf16.mxu0 0
      %1937 = vmatpush1.bf16.msra.mxu0 %v1830
      %1938 = vmatprep.subr.bf16.mxu0 0
      %1939 = vmatpush1.bf16.msra.mxu0 %v1831
      %1940 = vmatprep.subr.bf16.mxu0 0
      %1941 = vmatpush1.bf16.msra.mxu0 %v1832
      %1942 = vmatprep.subr.bf16.mxu0 0
      %1943 = vmatpush1.bf16.msra.mxu0 %v1833
      %1944 = vmatprep.subr.bf16.mxu0 0
      %1945 = vmatpush1.bf16.msra.mxu0 %v1834
      %1946 = vmatprep.subr.bf16.mxu0 0
      %1947 = vmatpush1.bf16.msra.mxu0 %v1835
      %1948 = vmatprep.subr.bf16.mxu0 0
      %1949 = vmatpush1.bf16.msra.mxu0 %v1836
      %1950 = vmatprep.subr.bf16.mxu0 0
      %1951 = vmatpush1.bf16.msra.mxu0 %v1837
      %1952 = vmatprep.subr.bf16.mxu0 0
      %1953 = vmatpush1.bf16.msra.mxu0 %v1838
      %1954 = vmatprep.subr.bf16.mxu0 0
      %1955 = vmatpush1.bf16.msra.mxu0 %v1839
      %1956 = vmatprep.mubr.bf16.mxu0 %v398
      %1957 = vmatmul.mubr.bf16.gmra.mrb[0].mxu0 %v397
      %v1958 = vpop.f32.mrb[0].mxu0
      %v1959 = vadd.f32 0.0, %v1958
      %v1960 = vpop.f32.mrb[0].mxu0
      %v1961 = vpop.f32.mrb[0].mxu0
      %v1962 = vadd.f32 0.0, %v1961
      %v1963 = vpop.f32.mrb[0].mxu0
      %1964 = vmatprep.mubr.bf16.mxu0 %v405
      %1965 = vmatmul.mubr.bf16.gmra.mrb[0].mxu0 %v404
      %v1966 = vpop.f32.mrb[0].mxu0
      %v1967 = vadd.f32 0.0, %v1966
      %v1968 = vpop.f32.mrb[0].mxu0
      %v1969 = vpop.f32.mrb[0].mxu0
      %v1970 = vadd.f32 0.0, %v1969
      %v1971 = vpop.f32.mrb[0].mxu0
      %1972 = vdwg.mxu0
      %1973 = vmatprep.subr.bf16.mxu0 0
      %1974 = vmatpush1.bf16.msra.mxu0 %v1840
      %1975 = vmatprep.subr.bf16.mxu0 0
      %1976 = vmatpush1.bf16.msra.mxu0 %v1841
      %1977 = vmatprep.subr.bf16.mxu0 0
      %1978 = vmatpush1.bf16.msra.mxu0 %v1842
      %1979 = vmatprep.subr.bf16.mxu0 0
      %1980 = vmatpush1.bf16.msra.mxu0 %v1843
      %1981 = vmatprep.subr.bf16.mxu0 0
      %1982 = vmatpush1.bf16.msra.mxu0 %v1844
      %1983 = vmatprep.subr.bf16.mxu0 0
      %1984 = vmatpush1.bf16.msra.mxu0 %v1845
      %1985 = vmatprep.subr.bf16.mxu0 0
      %1986 = vmatpush1.bf16.msra.mxu0 %v1846
      %1987 = vmatprep.subr.bf16.mxu0 0
      %1988 = vmatpush1.bf16.msra.mxu0 %v1847
      %1989 = vmatprep.subr.bf16.mxu0 0
      %1990 = vmatpush1.bf16.msra.mxu0 %v1848
      %1991 = vmatprep.subr.bf16.mxu0 0
      %1992 = vmatpush1.bf16.msra.mxu0 %v1849
      %1993 = vmatprep.subr.bf16.mxu0 0
      %1994 = vmatpush1.bf16.msra.mxu0 %v1850
      %1995 = vmatprep.subr.bf16.mxu0 0
      %1996 = vmatpush1.bf16.msra.mxu0 %v1851
      %1997 = vmatprep.subr.bf16.mxu0 0
      %1998 = vmatpush1.bf16.msra.mxu0 %v1852
      %1999 = vmatprep.subr.bf16.mxu0 0
      %2000 = vmatpush1.bf16.msra.mxu0 %v1853
      %2001 = vmatprep.subr.bf16.mxu0 0
      %2002 = vmatpush1.bf16.msra.mxu0 %v1854
      %2003 = vmatprep.subr.bf16.mxu0 0
      %2004 = vmatpush1.bf16.msra.mxu0 %v1855
      %2005 = vmatprep.mubr.bf16.mxu0 %v400
      %2006 = vmatmul.mubr.bf16.gmra.mrb[0].mxu0 %v399
      %v2007 = vpop.f32.mrb[0].mxu0
      %v2008 = vadd.f32 %v1959, %v2007
      %v2009 = vpop.f32.mrb[0].mxu0
      %v2010 = vpop.f32.mrb[0].mxu0
      %v2011 = vadd.f32 %v1962, %v2010
      %v2012 = vpop.f32.mrb[0].mxu0
      %2013 = vmatprep.mubr.bf16.mxu0 %v407
      %2014 = vmatmul.mubr.bf16.gmra.mrb[0].mxu0 %v406
      %v2015 = vpop.f32.mrb[0].mxu0
      %v2016 = vadd.f32 %v1967, %v2015
      %v2017 = vpop.f32.mrb[0].mxu0
      %v2018 = vpop.f32.mrb[0].mxu0
      %v2019 = vadd.f32 %v1970, %v2018
      %v2020 = vpop.f32.mrb[0].mxu0
      %2021 = vdwg.mxu0
      %2022 = vmatprep.subr.bf16.mxu0 0
      %2023 = vmatpush1.bf16.msra.mxu0 %v1856
      %2024 = vmatprep.subr.bf16.mxu0 0
      %2025 = vmatpush1.bf16.msra.mxu0 %v1857
      %2026 = vmatprep.subr.bf16.mxu0 0
      %2027 = vmatpush1.bf16.msra.mxu0 %v1858
      %2028 = vmatprep.subr.bf16.mxu0 0
      %2029 = vmatpush1.bf16.msra.mxu0 %v1859
      %2030 = vmatprep.subr.bf16.mxu0 0
      %2031 = vmatpush1.bf16.msra.mxu0 %v1860
      %2032 = vmatprep.subr.bf16.mxu0 0
      %2033 = vmatpush1.bf16.msra.mxu0 %v1861
      %2034 = vmatprep.subr.bf16.mxu0 0
      %2035 = vmatpush1.bf16.msra.mxu0 %v1862
      %2036 = vmatprep.subr.bf16.mxu0 0
      %2037 = vmatpush1.bf16.msra.mxu0 %v1863
      %2038 = vmatprep.subr.bf16.mxu0 0
      %2039 = vmatpush1.bf16.msra.mxu0 %v1864
      %2040 = vmatprep.subr.bf16.mxu0 0
      %2041 = vmatpush1.bf16.msra.mxu0 %v1865
      %2042 = vmatprep.subr.bf16.mxu0 0
      %2043 = vmatpush1.bf16.msra.mxu0 %v1866
      %2044 = vmatprep.subr.bf16.mxu0 0
      %2045 = vmatpush1.bf16.msra.mxu0 %v1867
      %2046 = vmatprep.subr.bf16.mxu0 0
      %2047 = vmatpush1.bf16.msra.mxu0 %v1868
      %2048 = vmatprep.subr.bf16.mxu0 0
      %2049 = vmatpush1.bf16.msra.mxu0 %v1869
      %2050 = vmatprep.subr.bf16.mxu0 0
      %2051 = vmatpush1.bf16.msra.mxu0 %v1870
      %2052 = vmatprep.subr.bf16.mxu0 0
      %2053 = vmatpush1.bf16.msra.mxu0 %v1871
      %2054 = vmatprep.mubr.bf16.mxu0 %v402
      %2055 = vmatmul.mubr.bf16.gmra.mrb[0].mxu0 %v401
      %v2056 = vpop.f32.mrb[0].mxu0
      %v2057 = vadd.f32 %v2008, %v2056
      %v2058 = vpop.f32.mrb[0].mxu0
      %v2059 = vpop.f32.mrb[0].mxu0
      %v2060 = vadd.f32 %v2011, %v2059
      %v2061 = vpop.f32.mrb[0].mxu0
      %2062 = vmatprep.mubr.bf16.mxu0 %v409
      %2063 = vmatmul.mubr.bf16.gmra.mrb[0].mxu0 %v408
      %v2064 = vpop.f32.mrb[0].mxu0
      %v2065 = vadd.f32 %v2016, %v2064
      %v2066 = vpop.f32.mrb[0].mxu0
      %v2067 = vpop.f32.mrb[0].mxu0
      %v2068 = vadd.f32 %v2019, %v2067
      %v2069 = vpop.f32.mrb[0].mxu0
      %2070 = vdwg.mxu0
      %2071 = vmatprep.subr.bf16.mxu0 0
      %2072 = vmatpush1.bf16.msra.mxu0 %v1872
      %2073 = vmatprep.subr.bf16.mxu0 0
      %2074 = vmatpush1.bf16.msra.mxu0 %v1873
      %2075 = vmatprep.subr.bf16.mxu0 0
      %2076 = vmatpush1.bf16.msra.mxu0 0
      %2077 = vmatprep.subr.bf16.mxu0 0
      %2078 = vmatpush1.bf16.msra.mxu0 0
      %2079 = vmatprep.subr.bf16.mxu0 0
      %2080 = vmatpush1.bf16.msra.mxu0 0
      %2081 = vmatprep.subr.bf16.mxu0 0
      %2082 = vmatpush1.bf16.msra.mxu0 0
      %2083 = vmatprep.subr.bf16.mxu0 0
      %2084 = vmatpush1.bf16.msra.mxu0 0
      %2085 = vmatprep.subr.bf16.mxu0 0
      %2086 = vmatpush1.bf16.msra.mxu0 0
      %2087 = vmatprep.subr.bf16.mxu0 0
      %2088 = vmatpush1.bf16.msra.mxu0 0
      %2089 = vmatprep.subr.bf16.mxu0 0
      %2090 = vmatpush1.bf16.msra.mxu0 0
      %2091 = vmatprep.subr.bf16.mxu0 0
      %2092 = vmatpush1.bf16.msra.mxu0 0
      %2093 = vmatprep.subr.bf16.mxu0 0
      %2094 = vmatpush1.bf16.msra.mxu0 0
      %2095 = vmatprep.subr.bf16.mxu0 0
      %2096 = vmatpush1.bf16.msra.mxu0 0
      %2097 = vmatprep.subr.bf16.mxu0 0
      %2098 = vmatpush1.bf16.msra.mxu0 0
      %2099 = vmatprep.subr.bf16.mxu0 0
      %2100 = vmatpush1.bf16.msra.mxu0 0
      %2101 = vmatprep.subr.bf16.mxu0 0
      %2102 = vmatpush1.bf16.msra.mxu0 0
      %2103 = vmatprep.mubr.bf16.mxu0 0
      %2104 = vmatmul.mubr.bf16.gmra.mrb[0].mxu0 %v725
      %v2105 = vpop.f32.mrb[0].mxu0
      %v2106 = vadd.f32 %v2057, %v2105
      %v2107 = vpop.f32.mrb[0].mxu0
      %v2108 = vpop.f32.mrb[0].mxu0
      %v2109 = vadd.f32 %v2060, %v2108
      %v2110 = vpop.f32.mrb[0].mxu0
      %2111 = vmatprep.mubr.bf16.mxu0 0
      %2112 = vmatmul.mubr.bf16.gmra.mrb[0].mxu0 %v728
      %v2113 = vpop.f32.mrb[0].mxu0
      %v2114 = vadd.f32 %v2065, %v2113
      %v2115 = vpop.f32.mrb[0].mxu0
      %v2116 = vpop.f32.mrb[0].mxu0
      %v2117 = vadd.f32 %v2068, %v2116
      %v2118 = vpop.f32.mrb[0].mxu0
      %2119 = vdwg.mxu0
      %s2120 = scalar_lea.vmem %s226, 1200
      %v2121 = vld [vmem:[%s2120] sm:$0xf]
      %v2122 = vld [vmem:[%s2120 + $0x4] sm:$0xf]
      %v2123 = vld [vmem:[%s2120 + $0x8] sm:$0xf]
      %v2124 = vld [vmem:[%s2120 + $0xc] sm:$0xf]
      %v2125 = vld [vmem:[%s2120 + $0x10] sm:$0xf]
      %v2126 = vld [vmem:[%s2120 + $0x14] sm:$0xf]
      %v2127 = vld [vmem:[%s2120 + $0x18] sm:$0xf]
      %v2128 = vld [vmem:[%s2120 + $0x1c] sm:$0xf]
      %v2129 = vld [vmem:[%s2120 + $0x20] sm:$0xf]
      %v2130 = vld [vmem:[%s2120 + $0x24] sm:$0xf]
      %v2131 = vld [vmem:[%s2120 + $0x28] sm:$0xf]
      %v2132 = vld [vmem:[%s2120 + $0x2c] sm:$0xf]
      %v2133 = vld [vmem:[%s2120 + $0x30] sm:$0xf]
      %v2134 = vld [vmem:[%s2120 + $0x34] sm:$0xf]
      %v2135 = vld [vmem:[%s2120 + $0x38] sm:$0xf]
      %v2136 = vld [vmem:[%s2120 + $0x3c] sm:$0xf]
      %v2137 = vld [vmem:[%s2120 + $0x40] sm:$0xf]
      %v2138 = vld [vmem:[%s2120 + $0x44] sm:$0xf]
      %v2139 = vld [vmem:[%s2120 + $0x48] sm:$0xf]
      %v2140 = vld [vmem:[%s2120 + $0x4c] sm:$0xf]
      %v2141 = vld [vmem:[%s2120 + $0x50] sm:$0xf]
      %v2142 = vld [vmem:[%s2120 + $0x54] sm:$0xf]
      %v2143 = vld [vmem:[%s2120 + $0x58] sm:$0xf]
      %v2144 = vld [vmem:[%s2120 + $0x5c] sm:$0xf]
      %v2145 = vld [vmem:[%s2120 + $0x60] sm:$0xf]
      %v2146 = vld [vmem:[%s2120 + $0x64] sm:$0xf]
      %v2147 = vld [vmem:[%s2120 + $0x68] sm:$0xf]
      %v2148 = vld [vmem:[%s2120 + $0x6c] sm:$0xf]
      %v2149 = vld [vmem:[%s2120 + $0x70] sm:$0xf]
      %v2150 = vld [vmem:[%s2120 + $0x74] sm:$0xf]
      %v2151 = vld [vmem:[%s2120 + $0x78] sm:$0xf]
      %v2152 = vld [vmem:[%s2120 + $0x7c] sm:$0xf]
      %v2153 = vld [vmem:[%s2120 + $0x80] sm:$0xf]
      %v2154 = vld [vmem:[%s2120 + $0x84] sm:$0xf]
      %v2155 = vld [vmem:[%s2120 + $0x88] sm:$0xf]
      %v2156 = vld [vmem:[%s2120 + $0x8c] sm:$0xf]
      %v2157 = vld [vmem:[%s2120 + $0x90] sm:$0xf]
      %v2158 = vld [vmem:[%s2120 + $0x94] sm:$0xf]
      %v2159 = vld [vmem:[%s2120 + $0x98] sm:$0xf]
      %v2160 = vld [vmem:[%s2120 + $0x9c] sm:$0xf]
      %v2161 = vld [vmem:[%s2120 + $0xa0] sm:$0xf]
      %v2162 = vld [vmem:[%s2120 + $0xa4] sm:$0xf]
      %v2163 = vld [vmem:[%s2120 + $0xa8] sm:$0xf]
      %v2164 = vld [vmem:[%s2120 + $0xac] sm:$0xf]
      %v2165 = vld [vmem:[%s2120 + $0xb0] sm:$0xf]
      %v2166 = vld [vmem:[%s2120 + $0xb4] sm:$0xf]
      %v2167 = vld [vmem:[%s2120 + $0xb8] sm:$0xf]
      %v2168 = vld [vmem:[%s2120 + $0xbc] sm:$0xf]
      %v2169 = vld [vmem:[%s2120 + $0xc0] sm:$0xf]
      %v2170 = vld [vmem:[%s2120 + $0xc4] sm:$0xf]
      %v2171 = vld [vmem:[%s2120 + $0xc8] sm:$0xf]
      %v2172 = vld [vmem:[%s2120 + $0xcc] sm:$0xf]
      %v2173 = vld [vmem:[%s2120 + $0xd0] sm:$0xf]
      %v2174 = vld [vmem:[%s2120 + $0xd4] sm:$0xf]
      %v2175 = vld [vmem:[%s2120 + $0xd8] sm:$0xf]
      %v2176 = vld [vmem:[%s2120 + $0xdc] sm:$0xf]
      %v2177 = vld [vmem:[%s2120 + $0xe0] sm:$0xf]
      %v2178 = vld [vmem:[%s2120 + $0xe4] sm:$0xf]
      %v2179 = vld [vmem:[%s2120 + $0xe8] sm:$0xf]
      %v2180 = vld [vmem:[%s2120 + $0xec] sm:$0xf]
      %v2181 = vld [vmem:[%s2120 + $0xf0] sm:$0xf]
      %v2182 = vld [vmem:[%s2120 + $0xf4] sm:$0xf]
      %v2183 = vld [vmem:[%s2120 + $0xf8] sm:$0xf]
      %v2184 = vld [vmem:[%s2120 + $0xfc] sm:$0xf]
      %v2185 = vld [vmem:[%s2120 + $0x100] sm:$0xf]
      %v2186 = vld [vmem:[%s2120 + $0x104] sm:$0xf]
      %v2187 = vld [vmem:[%s2120 + $0x108] sm:$0xf]
      %v2188 = vld [vmem:[%s2120 + $0x10c] sm:$0xf]
      %v2189 = vld [vmem:[%s2120 + $0x110] sm:$0xf]
      %v2190 = vld [vmem:[%s2120 + $0x114] sm:$0xf]
      %v2191 = vld [vmem:[%s2120 + $0x118] sm:$0xf]
      %v2192 = vld [vmem:[%s2120 + $0x11c] sm:$0xf]
      %v2193 = vld [vmem:[%s2120 + $0x120] sm:$0xf]
      %v2194 = vld [vmem:[%s2120 + $0x124] sm:$0xf]
      %v2195 = vld [vmem:[%s2120 + $0x128] sm:$0xf]
      %v2196 = vld [vmem:[%s2120 + $0x12c] sm:$0xf]
      %v2197 = vld [vmem:[%s2120 + $0x130] sm:$0xf]
      %v2198 = vld [vmem:[%s2120 + $0x134] sm:$0xf]
      %v2199 = vld [vmem:[%s2120 + $0x138] sm:$0xf]
      %v2200 = vld [vmem:[%s2120 + $0x13c] sm:$0xf]
      %v2201 = vld [vmem:[%s2120 + $0x140] sm:$0xf]
      %v2202 = vld [vmem:[%s2120 + $0x144] sm:$0xf]
      %v2203 = vld [vmem:[%s2120 + $0x148] sm:$0xf]
      %v2204 = vld [vmem:[%s2120 + $0x14c] sm:$0xf]
      %v2205 = vld [vmem:[%s2120 + $0x150] sm:$0xf]
      %v2206 = vld [vmem:[%s2120 + $0x154] sm:$0xf]
      %v2207 = vld [vmem:[%s2120 + $0x158] sm:$0xf]
      %v2208 = vld [vmem:[%s2120 + $0x15c] sm:$0xf]
      %v2209 = vld [vmem:[%s2120 + $0x160] sm:$0xf]
      %v2210 = vld [vmem:[%s2120 + $0x164] sm:$0xf]
      %v2211 = vld [vmem:[%s2120 + $0x168] sm:$0xf]
      %v2212 = vld [vmem:[%s2120 + $0x16c] sm:$0xf]
      %v2213 = vld [vmem:[%s2120 + $0x170] sm:$0xf]
      %v2214 = vld [vmem:[%s2120 + $0x174] sm:$0xf]
      %v2215 = vld [vmem:[%s2120 + $0x178] sm:$0xf]
      %v2216 = vld [vmem:[%s2120 + $0x17c] sm:$0xf]
      %v2217 = vld [vmem:[%s2120 + $0x180] sm:$0xf]
      %v2218 = vld [vmem:[%s2120 + $0x184] sm:$0xf]
      %v2219 = vld [vmem:[%s2120 + $0x188] sm:$0xf]
      %v2220 = vld [vmem:[%s2120 + $0x18c] sm:$0xf]
      %v2321 = vunpack.c.l.b16 %v2121
      %v2322 = vunpack.c.l.b16 %v2122
      %v2323 = vunpack.c.l.b16 %v2123
      %v2324 = vunpack.c.l.b16 %v2124
      %v2325 = vunpack.c.l.b16 %v2125
      %v2326 = vunpack.c.l.b16 %v2126
      %v2327 = vunpack.c.l.b16 %v2127
      %v2328 = vunpack.c.l.b16 %v2128
      %v2329 = vunpack.c.l.b16 %v2129
      %v2330 = vunpack.c.l.b16 %v2130
      %v2331 = vunpack.c.l.b16 %v2131
      %v2332 = vunpack.c.l.b16 %v2132
      %v2333 = vunpack.c.l.b16 %v2133
      %v2334 = vunpack.c.l.b16 %v2134
      %v2335 = vunpack.c.l.b16 %v2135
      %v2336 = vunpack.c.l.b16 %v2136
      %v2337 = vunpack.c.l.b16 %v2137
      %v2338 = vunpack.c.l.b16 %v2138
      %v2339 = vunpack.c.l.b16 %v2139
      %v2340 = vunpack.c.l.b16 %v2140
      %v2341 = vunpack.c.l.b16 %v2141
      %v2342 = vunpack.c.l.b16 %v2142
      %v2343 = vunpack.c.l.b16 %v2143
      %v2344 = vunpack.c.l.b16 %v2144
      %v2345 = vunpack.c.l.b16 %v2145
      %v2346 = vunpack.c.l.b16 %v2146
      %v2347 = vunpack.c.l.b16 %v2147
      %v2348 = vunpack.c.l.b16 %v2148
      %v2349 = vunpack.c.l.b16 %v2149
      %v2350 = vunpack.c.l.b16 %v2150
      %v2351 = vunpack.c.l.b16 %v2151
      %v2352 = vunpack.c.l.b16 %v2152
      %v2353 = vunpack.c.l.b16 %v2153
      %v2354 = vunpack.c.l.b16 %v2154
      %v2355 = vunpack.c.l.b16 %v2155
      %v2356 = vunpack.c.l.b16 %v2156
      %v2357 = vunpack.c.l.b16 %v2157
      %v2358 = vunpack.c.l.b16 %v2158
      %v2359 = vunpack.c.l.b16 %v2159
      %v2360 = vunpack.c.l.b16 %v2160
      %v2361 = vunpack.c.l.b16 %v2161
      %v2362 = vunpack.c.l.b16 %v2162
      %v2363 = vunpack.c.l.b16 %v2163
      %v2364 = vunpack.c.l.b16 %v2164
      %v2365 = vunpack.c.l.b16 %v2165
      %v2366 = vunpack.c.l.b16 %v2166
      %v2367 = vunpack.c.l.b16 %v2167
      %v2368 = vunpack.c.l.b16 %v2168
      %v2369 = vunpack.c.l.b16 %v2169
      %v2370 = vunpack.c.l.b16 %v2170
      %v2371 = vunpack.c.l.b16 %v2171
      %v2372 = vunpack.c.l.b16 %v2172
      %v2373 = vunpack.c.l.b16 %v2173
      %v2374 = vunpack.c.l.b16 %v2174
      %v2375 = vunpack.c.l.b16 %v2175
      %v2376 = vunpack.c.l.b16 %v2176
      %v2377 = vunpack.c.l.b16 %v2177
      %v2378 = vunpack.c.l.b16 %v2178
      %v2379 = vunpack.c.l.b16 %v2179
      %v2380 = vunpack.c.l.b16 %v2180
      %v2381 = vunpack.c.l.b16 %v2181
      %v2382 = vunpack.c.l.b16 %v2182
      %v2383 = vunpack.c.l.b16 %v2183
      %v2384 = vunpack.c.l.b16 %v2184
      %v2385 = vunpack.c.l.b16 %v2185
      %v2386 = vunpack.c.l.b16 %v2186
      %v2387 = vunpack.c.l.b16 %v2187
      %v2388 = vunpack.c.l.b16 %v2188
      %v2389 = vunpack.c.l.b16 %v2189
      %v2390 = vunpack.c.l.b16 %v2190
      %v2391 = vunpack.c.l.b16 %v2191
      %v2392 = vunpack.c.l.b16 %v2192
      %v2393 = vunpack.c.l.b16 %v2193
      %v2394 = vunpack.c.l.b16 %v2194
      %v2395 = vunpack.c.l.b16 %v2195
      %v2396 = vunpack.c.l.b16 %v2196
      %v2397 = vunpack.c.l.b16 %v2197
      %v2398 = vunpack.c.l.b16 %v2198
      %v2399 = vunpack.c.l.b16 %v2199
      %v2400 = vunpack.c.l.b16 %v2200
      %v2401 = vunpack.c.l.b16 %v2201
      %v2402 = vunpack.c.l.b16 %v2202
      %v2403 = vunpack.c.l.b16 %v2203
      %v2404 = vunpack.c.l.b16 %v2204
      %v2405 = vunpack.c.l.b16 %v2205
      %v2406 = vunpack.c.l.b16 %v2206
      %v2407 = vunpack.c.l.b16 %v2207
      %v2408 = vunpack.c.l.b16 %v2208
      %v2409 = vunpack.c.l.b16 %v2209
      %v2410 = vunpack.c.l.b16 %v2210
      %v2411 = vunpack.c.l.b16 %v2211
      %v2412 = vunpack.c.l.b16 %v2212
      %v2413 = vunpack.c.l.b16 %v2213
      %v2414 = vunpack.c.l.b16 %v2214
      %v2415 = vunpack.c.l.b16 %v2215
      %v2416 = vunpack.c.l.b16 %v2216
      %v2417 = vunpack.c.l.b16 %v2217
      %v2418 = vunpack.c.l.b16 %v2218
      %v2419 = vunpack.c.l.b16 %v2219
      %v2420 = vunpack.c.l.b16 %v2220
      %v2421 = vpack.c.b16 %v2322, %v2321
      %v2422 = vpack.c.b16 %v2324, %v2323
      %v2423 = vpack.c.b16 %v2326, %v2325
      %v2424 = vpack.c.b16 %v2328, %v2327
      %v2425 = vpack.c.b16 %v2330, %v2329
      %v2426 = vpack.c.b16 %v2332, %v2331
      %v2427 = vpack.c.b16 %v2334, %v2333
      %v2428 = vpack.c.b16 %v2336, %v2335
      %v2429 = vpack.c.b16 %v2338, %v2337
      %v2430 = vpack.c.b16 %v2340, %v2339
      %v2431 = vpack.c.b16 %v2342, %v2341
      %v2432 = vpack.c.b16 %v2344, %v2343
      %v2433 = vpack.c.b16 %v2346, %v2345
      %v2434 = vpack.c.b16 %v2348, %v2347
      %v2435 = vpack.c.b16 %v2350, %v2349
      %v2436 = vpack.c.b16 %v2352, %v2351
      %v2437 = vpack.c.b16 %v2354, %v2353
      %v2438 = vpack.c.b16 %v2356, %v2355
      %v2439 = vpack.c.b16 %v2358, %v2357
      %v2440 = vpack.c.b16 %v2360, %v2359
      %v2441 = vpack.c.b16 %v2362, %v2361
      %v2442 = vpack.c.b16 %v2364, %v2363
      %v2443 = vpack.c.b16 %v2366, %v2365
      %v2444 = vpack.c.b16 %v2368, %v2367
      %v2445 = vpack.c.b16 %v2370, %v2369
      %v2446 = vpack.c.b16 %v2372, %v2371
      %v2447 = vpack.c.b16 %v2374, %v2373
      %v2448 = vpack.c.b16 %v2376, %v2375
      %v2449 = vpack.c.b16 %v2378, %v2377
      %v2450 = vpack.c.b16 %v2380, %v2379
      %v2451 = vpack.c.b16 %v2382, %v2381
      %v2452 = vpack.c.b16 %v2384, %v2383
      %v2453 = vpack.c.b16 %v2386, %v2385
      %v2454 = vpack.c.b16 %v2388, %v2387
      %v2455 = vpack.c.b16 %v2390, %v2389
      %v2456 = vpack.c.b16 %v2392, %v2391
      %v2457 = vpack.c.b16 %v2394, %v2393
      %v2458 = vpack.c.b16 %v2396, %v2395
      %v2459 = vpack.c.b16 %v2398, %v2397
      %v2460 = vpack.c.b16 %v2400, %v2399
      %v2461 = vpack.c.b16 %v2402, %v2401
      %v2462 = vpack.c.b16 %v2404, %v2403
      %v2463 = vpack.c.b16 %v2406, %v2405
      %v2464 = vpack.c.b16 %v2408, %v2407
      %v2465 = vpack.c.b16 %v2410, %v2409
      %v2466 = vpack.c.b16 %v2412, %v2411
      %v2467 = vpack.c.b16 %v2414, %v2413
      %v2468 = vpack.c.b16 %v2416, %v2415
      %v2469 = vpack.c.b16 %v2418, %v2417
      %v2470 = vpack.c.b16 %v2420, %v2419
      %2521 = vmatprep.subr.bf16.mxu0 0
      %2522 = vmatpush1.bf16.msra.mxu0 %v2421
      %2523 = vmatprep.subr.bf16.mxu0 0
      %2524 = vmatpush1.bf16.msra.mxu0 %v2422
      %2525 = vmatprep.subr.bf16.mxu0 0
      %2526 = vmatpush1.bf16.msra.mxu0 %v2423
      %2527 = vmatprep.subr.bf16.mxu0 0
      %2528 = vmatpush1.bf16.msra.mxu0 %v2424
      %2529 = vmatprep.subr.bf16.mxu0 0
      %2530 = vmatpush1.bf16.msra.mxu0 %v2425
      %2531 = vmatprep.subr.bf16.mxu0 0
      %2532 = vmatpush1.bf16.msra.mxu0 %v2426
      %2533 = vmatprep.subr.bf16.mxu0 0
      %2534 = vmatpush1.bf16.msra.mxu0 %v2427
      %2535 = vmatprep.subr.bf16.mxu0 0
      %2536 = vmatpush1.bf16.msra.mxu0 %v2428
      %2537 = vmatprep.subr.bf16.mxu0 0
      %2538 = vmatpush1.bf16.msra.mxu0 %v2429
      %2539 = vmatprep.subr.bf16.mxu0 0
      %2540 = vmatpush1.bf16.msra.mxu0 %v2430
      %2541 = vmatprep.subr.bf16.mxu0 0
      %2542 = vmatpush1.bf16.msra.mxu0 %v2431
      %2543 = vmatprep.subr.bf16.mxu0 0
      %2544 = vmatpush1.bf16.msra.mxu0 %v2432
      %2545 = vmatprep.subr.bf16.mxu0 0
      %2546 = vmatpush1.bf16.msra.mxu0 %v2433
      %2547 = vmatprep.subr.bf16.mxu0 0
      %2548 = vmatpush1.bf16.msra.mxu0 %v2434
      %2549 = vmatprep.subr.bf16.mxu0 0
      %2550 = vmatpush1.bf16.msra.mxu0 %v2435
      %2551 = vmatprep.subr.bf16.mxu0 0
      %2552 = vmatpush1.bf16.msra.mxu0 %v2436
      %2553 = vmatprep.mubr.bf16.mxu0 %v398
      %2554 = vmatmul.mubr.bf16.gmra.mrb[0].mxu0 %v397
      %v2555 = vpop.f32.mrb[0].mxu0
      %v2556 = vadd.f32 0.0, %v2555
      %v2557 = vpop.f32.mrb[0].mxu0
      %v2558 = vpop.f32.mrb[0].mxu0
      %v2559 = vadd.f32 0.0, %v2558
      %v2560 = vpop.f32.mrb[0].mxu0
      %2561 = vmatprep.mubr.bf16.mxu0 %v405
      %2562 = vmatmul.mubr.bf16.gmra.mrb[0].mxu0 %v404
      %v2563 = vpop.f32.mrb[0].mxu0
      %v2564 = vadd.f32 0.0, %v2563
      %v2565 = vpop.f32.mrb[0].mxu0
      %v2566 = vpop.f32.mrb[0].mxu0
      %v2567 = vadd.f32 0.0, %v2566
      %v2568 = vpop.f32.mrb[0].mxu0
      %2569 = vdwg.mxu0
      %2570 = vmatprep.subr.bf16.mxu0 0
      %2571 = vmatpush1.bf16.msra.mxu0 %v2437
      %2572 = vmatprep.subr.bf16.mxu0 0
      %2573 = vmatpush1.bf16.msra.mxu0 %v2438
      %2574 = vmatprep.subr.bf16.mxu0 0
      %2575 = vmatpush1.bf16.msra.mxu0 %v2439
      %2576 = vmatprep.subr.bf16.mxu0 0
      %2577 = vmatpush1.bf16.msra.mxu0 %v2440
      %2578 = vmatprep.subr.bf16.mxu0 0
      %2579 = vmatpush1.bf16.msra.mxu0 %v2441
      %2580 = vmatprep.subr.bf16.mxu0 0
      %2581 = vmatpush1.bf16.msra.mxu0 %v2442
      %2582 = vmatprep.subr.bf16.mxu0 0
      %2583 = vmatpush1.bf16.msra.mxu0 %v2443
      %2584 = vmatprep.subr.bf16.mxu0 0
      %2585 = vmatpush1.bf16.msra.mxu0 %v2444
      %2586 = vmatprep.subr.bf16.mxu0 0
      %2587 = vmatpush1.bf16.msra.mxu0 %v2445
      %2588 = vmatprep.subr.bf16.mxu0 0
      %2589 = vmatpush1.bf16.msra.mxu0 %v2446
      %2590 = vmatprep.subr.bf16.mxu0 0
      %2591 = vmatpush1.bf16.msra.mxu0 %v2447
      %2592 = vmatprep.subr.bf16.mxu0 0
      %2593 = vmatpush1.bf16.msra.mxu0 %v2448
      %2594 = vmatprep.subr.bf16.mxu0 0
      %2595 = vmatpush1.bf16.msra.mxu0 %v2449
      %2596 = vmatprep.subr.bf16.mxu0 0
      %2597 = vmatpush1.bf16.msra.mxu0 %v2450
      %2598 = vmatprep.subr.bf16.mxu0 0
      %2599 = vmatpush1.bf16.msra.mxu0 %v2451
      %2600 = vmatprep.subr.bf16.mxu0 0
      %2601 = vmatpush1.bf16.msra.mxu0 %v2452
      %2602 = vmatprep.mubr.bf16.mxu0 %v400
      %2603 = vmatmul.mubr.bf16.gmra.mrb[0].mxu0 %v399
      %v2604 = vpop.f32.mrb[0].mxu0
      %v2605 = vadd.f32 %v2556, %v2604
      %v2606 = vpop.f32.mrb[0].mxu0
      %v2607 = vpop.f32.mrb[0].mxu0
      %v2608 = vadd.f32 %v2559, %v2607
      %v2609 = vpop.f32.mrb[0].mxu0
      %2610 = vmatprep.mubr.bf16.mxu0 %v407
      %2611 = vmatmul.mubr.bf16.gmra.mrb[0].mxu0 %v406
      %v2612 = vpop.f32.mrb[0].mxu0
      %v2613 = vadd.f32 %v2564, %v2612
      %v2614 = vpop.f32.mrb[0].mxu0
      %v2615 = vpop.f32.mrb[0].mxu0
      %v2616 = vadd.f32 %v2567, %v2615
      %v2617 = vpop.f32.mrb[0].mxu0
      %2618 = vdwg.mxu0
      %2619 = vmatprep.subr.bf16.mxu0 0
      %2620 = vmatpush1.bf16.msra.mxu0 %v2453
      %2621 = vmatprep.subr.bf16.mxu0 0
      %2622 = vmatpush1.bf16.msra.mxu0 %v2454
      %2623 = vmatprep.subr.bf16.mxu0 0
      %2624 = vmatpush1.bf16.msra.mxu0 %v2455
      %2625 = vmatprep.subr.bf16.mxu0 0
      %2626 = vmatpush1.bf16.msra.mxu0 %v2456
      %2627 = vmatprep.subr.bf16.mxu0 0
      %2628 = vmatpush1.bf16.msra.mxu0 %v2457
      %2629 = vmatprep.subr.bf16.mxu0 0
      %2630 = vmatpush1.bf16.msra.mxu0 %v2458
      %2631 = vmatprep.subr.bf16.mxu0 0
      %2632 = vmatpush1.bf16.msra.mxu0 %v2459
      %2633 = vmatprep.subr.bf16.mxu0 0
      %2634 = vmatpush1.bf16.msra.mxu0 %v2460
      %2635 = vmatprep.subr.bf16.mxu0 0
      %2636 = vmatpush1.bf16.msra.mxu0 %v2461
      %2637 = vmatprep.subr.bf16.mxu0 0
      %2638 = vmatpush1.bf16.msra.mxu0 %v2462
      %2639 = vmatprep.subr.bf16.mxu0 0
      %2640 = vmatpush1.bf16.msra.mxu0 %v2463
      %2641 = vmatprep.subr.bf16.mxu0 0
      %2642 = vmatpush1.bf16.msra.mxu0 %v2464
      %2643 = vmatprep.subr.bf16.mxu0 0
      %2644 = vmatpush1.bf16.msra.mxu0 %v2465
      %2645 = vmatprep.subr.bf16.mxu0 0
      %2646 = vmatpush1.bf16.msra.mxu0 %v2466
      %2647 = vmatprep.subr.bf16.mxu0 0
      %2648 = vmatpush1.bf16.msra.mxu0 %v2467
      %2649 = vmatprep.subr.bf16.mxu0 0
      %2650 = vmatpush1.bf16.msra.mxu0 %v2468
      %2651 = vmatprep.mubr.bf16.mxu0 %v402
      %2652 = vmatmul.mubr.bf16.gmra.mrb[0].mxu0 %v401
      %v2653 = vpop.f32.mrb[0].mxu0
      %v2654 = vadd.f32 %v2605, %v2653
      %v2655 = vpop.f32.mrb[0].mxu0
      %v2656 = vpop.f32.mrb[0].mxu0
      %v2657 = vadd.f32 %v2608, %v2656
      %v2658 = vpop.f32.mrb[0].mxu0
      %2659 = vmatprep.mubr.bf16.mxu0 %v409
      %2660 = vmatmul.mubr.bf16.gmra.mrb[0].mxu0 %v408
      %v2661 = vpop.f32.mrb[0].mxu0
      %v2662 = vadd.f32 %v2613, %v2661
      %v2663 = vpop.f32.mrb[0].mxu0
      %v2664 = vpop.f32.mrb[0].mxu0
      %v2665 = vadd.f32 %v2616, %v2664
      %v2666 = vpop.f32.mrb[0].mxu0
      %2667 = vdwg.mxu0
      %2668 = vmatprep.subr.bf16.mxu0 0
      %2669 = vmatpush1.bf16.msra.mxu0 %v2469
      %2670 = vmatprep.subr.bf16.mxu0 0
      %2671 = vmatpush1.bf16.msra.mxu0 %v2470
      %2672 = vmatprep.subr.bf16.mxu0 0
      %2673 = vmatpush1.bf16.msra.mxu0 0
      %2674 = vmatprep.subr.bf16.mxu0 0
      %2675 = vmatpush1.bf16.msra.mxu0 0
      %2676 = vmatprep.subr.bf16.mxu0 0
      %2677 = vmatpush1.bf16.msra.mxu0 0
      %2678 = vmatprep.subr.bf16.mxu0 0
      %2679 = vmatpush1.bf16.msra.mxu0 0
      %2680 = vmatprep.subr.bf16.mxu0 0
      %2681 = vmatpush1.bf16.msra.mxu0 0
      %2682 = vmatprep.subr.bf16.mxu0 0
      %2683 = vmatpush1.bf16.msra.mxu0 0
      %2684 = vmatprep.subr.bf16.mxu0 0
      %2685 = vmatpush1.bf16.msra.mxu0 0
      %2686 = vmatprep.subr.bf16.mxu0 0
      %2687 = vmatpush1.bf16.msra.mxu0 0
      %2688 = vmatprep.subr.bf16.mxu0 0
      %2689 = vmatpush1.bf16.msra.mxu0 0
      %2690 = vmatprep.subr.bf16.mxu0 0
      %2691 = vmatpush1.bf16.msra.mxu0 0
      %2692 = vmatprep.subr.bf16.mxu0 0
      %2693 = vmatpush1.bf16.msra.mxu0 0
      %2694 = vmatprep.subr.bf16.mxu0 0
      %2695 = vmatpush1.bf16.msra.mxu0 0
      %2696 = vmatprep.subr.bf16.mxu0 0
      %2697 = vmatpush1.bf16.msra.mxu0 0
      %2698 = vmatprep.subr.bf16.mxu0 0
      %2699 = vmatpush1.bf16.msra.mxu0 0
      %2700 = vmatprep.mubr.bf16.mxu0 0
      %2701 = vmatmul.mubr.bf16.gmra.mrb[0].mxu0 %v725
      %v2702 = vpop.f32.mrb[0].mxu0
      %v2703 = vadd.f32 %v2654, %v2702
      %v2704 = vpop.f32.mrb[0].mxu0
      %v2705 = vpop.f32.mrb[0].mxu0
      %v2706 = vadd.f32 %v2657, %v2705
      %v2707 = vpop.f32.mrb[0].mxu0
      %2708 = vmatprep.mubr.bf16.mxu0 0
      %2709 = vmatmul.mubr.bf16.gmra.mrb[0].mxu0 %v728
      %v2710 = vpop.f32.mrb[0].mxu0
      %v2711 = vadd.f32 %v2662, %v2710
      %v2712 = vpop.f32.mrb[0].mxu0
      %v2713 = vpop.f32.mrb[0].mxu0
      %v2714 = vadd.f32 %v2665, %v2713
      %v2715 = vpop.f32.mrb[0].mxu0
      %2716 = vdwg.mxu0
      %v2717 = vmax.f32 %v912, %v1509
      %v2718 = vmax.f32 %v915, %v1512
      %v2719 = vmax.f32 %v920, %v1517
      %v2720 = vmax.f32 %v923, %v1520
      %v2721 = vmax.f32 %v2106, %v2703
      %v2722 = vmax.f32 %v2109, %v2706
      %v2723 = vmax.f32 %v2114, %v2711
      %v2724 = vmax.f32 %v2117, %v2714
      %v2725 = vmax.f32 %v2717, %v2721
      %v2726 = vmax.f32 %v2718, %v2722
      %v2727 = vmax.f32 %v2719, %v2723
      %v2728 = vmax.f32 %v2720, %v2724
      %v2729 = vld [vmem:[%s221] sm:$0xff]
      %v2730 = vld [vmem:[%s221 + $0x8] sm:$0xff]
      %v2731 = vld [vmem:[%s221 + $0x10] sm:$0xff]
      %v2732 = vld [vmem:[%s221 + $0x18] sm:$0xff]
      %2734 = vset.pattern.permute.xlu0 0
      %2735 = vperm.xlu0 %2734, %v2729
      %v2736 = vpop.permute.xlu0 %2735
      %2739 = vset.pattern.permute.xlu0 0
      %2740 = vperm.xlu0 %2739, %v2730
      %v2741 = vpop.permute.xlu0 %2740
      %2744 = vset.pattern.permute.xlu0 0
      %2745 = vperm.xlu0 %2744, %v2731
      %v2746 = vpop.permute.xlu0 %2745
      %2749 = vset.pattern.permute.xlu0 0
      %2750 = vperm.xlu0 %2749, %v2732
      %v2751 = vpop.permute.xlu0 %2750
      %v2753 = vadd.f32 %v2725, %v2736
      %v2754 = vadd.f32 %v2726, %v2741
      %v2755 = vadd.f32 %v2727, %v2746
      %v2756 = vadd.f32 %v2728, %v2751
      %v2757 = vpack.c.bf16 %v2754, %v2753
      %v2758 = vpack.c.bf16 %v2756, %v2755
      %v2761 = vunpack.c.l.b16 %v2757
      %v2762 = vunpack.c.h.b16 %v2757
      %v2763 = vunpack.c.l.b16 %v2758
      %v2764 = vunpack.c.h.b16 %v2758
      %v2765 = vpack.c.b16 %v2761, %v2761
      %v2766 = vpack.c.b16 %v2762, %v2762
      %v2767 = vpack.c.b16 %v2763, %v2763
      %v2768 = vpack.c.b16 %v2764, %v2764
      %vm2773 = vcmask 257024
      %2774 = vst.msk [vmem:[%s234] sm:$0xf] %vm2773, %v2765
      %2775 = vst.msk [vmem:[%s234 + $0x4] sm:$0xf] %vm2773, %v2766
      %2776 = vst.msk [vmem:[%s234 + $0x8] sm:$0xf] %vm2773, %v2767
      %2777 = vst.msk [vmem:[%s234 + $0xc] sm:$0xf] %vm2773, %v2768
      %s2778 = smul.u32 4, %s18
      %p2779 = scmp.lt.s32.totalorder %s2778, 7
      %s2780 = scalar_select %p2779, %s2778, 7
      %p2781 = scmp.lt.s32.totalorder %s19, 0
      %s2782 = scalar_select %p2781, %s19, 0
      %s2783 = sadd.s32 %s2782, %s2780
      %s2784 = smul.addr %s2783, 4
      %s2785 = scalar_lea.vmem %s3, %s2784
      // Predicated region
      $region33: #{cx_forward.6} parent=31 // pred_check
        %p2786 = pneg %p124
      $region34: #{cx_forward.6} parent=31 // pred_check_branch
        %2788 = sbr.rel (%p2786) target = $region36
      $region35: #{cx_forward.6} parent=31 // pred_region
        %s2789 = smul.u32 4, %s18
      $region36: #{cx_forward.6} parent=31 // pred_fallthru
        _
    $region32: #{cx_forward.6} parent=5 // pred_fallthru
      _
    %p2790 = scmp.le.s32.totalorder 2, %s9
    // Predicated region
    $region37: #{cx_forward.6} parent=5 // pred_check
      %p2791 = pneg %p2790
    $region38: #{cx_forward.6} parent=5 // pred_check_branch
      %2793 = sbr.rel (%p2791) target = $region40
    $region39: #{cx_forward.6} parent=5 // pred_region
      %s2794 = ssub.s32 %s9, 2
      // Predicated region
      $region41: #{cx_forward.6} parent=39 // pred_check
        %p2795 = pneg %p130
      $region42: #{cx_forward.6} parent=39 // pred_check_branch
        %2797 = sbr.rel (%p2795) target = $region44
      $region43: #{cx_forward.6} parent=39 // pred_region
        %s2798 = smul.u32 4, %s20
        %p2799 = scmp.lt.s32.totalorder %s2798, 7
        %s2800 = scalar_select %p2799, %s2798, 7
        %p2801 = scmp.lt.s32.totalorder %s21, 0
        %s2802 = scalar_select %p2801, %s21, 0
        %s2803 = sadd.s32 %s2802, %s2800
        %s2804 = smul.addr %s2803, 4
        %s2805 = scalar_lea.vmem %s3, %s2804
      $region44: #{cx_forward.6} parent=39 // pred_fallthru
        _
    $region40: #{cx_forward.6} parent=5 // pred_fallthru
      _
  $region6: #{cx_forward.6} parent=0 // loop_footer
    %s13 = sadd.s32 1, %s9
  $region7: #{cx_forward.6} parent=0 // loop_footer_branch
    %8 = sbr.rel target = $region3
  $region8: #{cx_forward.6} parent=0 // loop_exit
    _

// kernel: cx_forward.7
$region0: #{cx_forward.7}
  #allocation0 [shape = 'u32[]', space=smem, size = 0x4, offset = 0x4, fixed_abs, tag = 'smem constant byte address 0x4 - core index']
  #allocation1 [shape = 'u32[144,128]{1,0:T(1,128)}', space=vmem, size = 0x12000, scoped, tag = 'internal scratch']
  %s0 = inlined_call_operand.vmem [shape: bf16[2,1024], index: 0, kind: input, shape index: {}]
  %s1 = inlined_call_operand.vmem [shape: bf16[1024,64], index: 1, kind: input, shape index: {}]
  %s2 = inlined_call_operand.vmem [shape: f32[1,64], index: 2, kind: input, shape index: {}]
  %s3 = inlined_call_operand.vmem [shape: bf16[64,10], index: 3, kind: input, shape index: {}]
  %s4 = inlined_call_operand.vmem [shape: f32[1,10], index: 4, kind: input, shape index: {}]
  %s5 = inlined_call_operand.hbm [shape: f32[2,10], index: 5, kind: output, shape index: {}]
  %s6 = sld [smem:[#allocation0]]
  $region30: #{cx_forward.7} parent=0
    _
  %s8 = ssub.s32 1, %s6
  %s9 = scalar_select 0, %s8, %s6
  $region1: #{cx_forward.7} parent=0
    #allocation2 [shape = 'u8[1024]{0}', space=vmem, size = 0x400, scoped, tag = 'output window, operand 0, single buffered']
    #allocation3 [shape = 's32[1]{0}', space=sflag, size = 0x4, scoped, tag = 'scoped memory for cx_forward.7']
    %10 = vsyncpa [#allocation3], 0
    // Predicated region
    $region2: #{cx_forward.7} parent=1 // pred_check
      _
    $region3: #{cx_forward.7} parent=1 // pred_check_branch
      %12 = sbr.rel (0) target = $region5
    $region4: #{cx_forward.7} parent=1 // pred_region
      _
    $region5: #{cx_forward.7} parent=1 // pred_fallthru
      _
    // Predicated region
    $region6: #{cx_forward.7} parent=1 // pred_check
      _
    $region7: #{cx_forward.7} parent=1 // pred_check_branch
      %14 = sbr.rel (0) target = $region9
    $region8: #{cx_forward.7} parent=1 // pred_region
      _
    $region9: #{cx_forward.7} parent=1 // pred_fallthru
      _
    // Predicated region
    $region10: #{cx_forward.7} parent=1 // pred_check
      _
    $region11: #{cx_forward.7} parent=1 // pred_check_branch
      %16 = sbr.rel (0) target = $region13
    $region12: #{cx_forward.7} parent=1 // pred_region
      _
    $region13: #{cx_forward.7} parent=1 // pred_fallthru
      _
    // Predicated region
    $region14: #{cx_forward.7} parent=1 // pred_check
      _
    $region15: #{cx_forward.7} parent=1 // pred_check_branch
      %18 = sbr.rel (0) target = $region17
    $region16: #{cx_forward.7} parent=1 // pred_region
      _
    $region17: #{cx_forward.7} parent=1 // pred_fallthru
      _
    // Predicated region
    $region18: #{cx_forward.7} parent=1 // pred_check
      _
    $region19: #{cx_forward.7} parent=1 // pred_check_branch
      %20 = sbr.rel (0) target = $region21
    $region20: #{cx_forward.7} parent=1 // pred_region
      _
    $region21: #{cx_forward.7} parent=1 // pred_fallthru
      _
    %v22 = vld [vmem:[%s0] sm:$0xff]
    %v23 = vld [vmem:[%s1] sm:$0xf]
    %v24 = vld [vmem:[%s1 + $0x4] sm:$0xf]
    %v25 = vld [vmem:[%s1 + $0x8] sm:$0xf]
    %v26 = vld [vmem:[%s1 + $0xc] sm:$0xf]
    %v27 = vld [vmem:[%s1 + $0x10] sm:$0xf]
    %v28 = vld [vmem:[%s1 + $0x14] sm:$0xf]
    %v29 = vld [vmem:[%s1 + $0x18] sm:$0xf]
    %v30 = vld [vmem:[%s1 + $0x1c] sm:$0xf]
    %v31 = vld [vmem:[%s1 + $0x20] sm:$0xf]
    %v32 = vld [vmem:[%s1 + $0x24] sm:$0xf]
    %v33 = vld [vmem:[%s1 + $0x28] sm:$0xf]
    %v34 = vld [vmem:[%s1 + $0x2c] sm:$0xf]
    %v35 = vld [vmem:[%s1 + $0x30] sm:$0xf]
    %v36 = vld [vmem:[%s1 + $0x34] sm:$0xf]
    %v37 = vld [vmem:[%s1 + $0x38] sm:$0xf]
    %v38 = vld [vmem:[%s1 + $0x3c] sm:$0xf]
    %v39 = vld [vmem:[%s1 + $0x40] sm:$0xf]
    %v40 = vld [vmem:[%s1 + $0x44] sm:$0xf]
    %v41 = vld [vmem:[%s1 + $0x48] sm:$0xf]
    %v42 = vld [vmem:[%s1 + $0x4c] sm:$0xf]
    %v43 = vld [vmem:[%s1 + $0x50] sm:$0xf]
    %v44 = vld [vmem:[%s1 + $0x54] sm:$0xf]
    %v45 = vld [vmem:[%s1 + $0x58] sm:$0xf]
    %v46 = vld [vmem:[%s1 + $0x5c] sm:$0xf]
    %v47 = vld [vmem:[%s1 + $0x60] sm:$0xf]
    %v48 = vld [vmem:[%s1 + $0x64] sm:$0xf]
    %v49 = vld [vmem:[%s1 + $0x68] sm:$0xf]
    %v50 = vld [vmem:[%s1 + $0x6c] sm:$0xf]
    %v51 = vld [vmem:[%s1 + $0x70] sm:$0xf]
    %v52 = vld [vmem:[%s1 + $0x74] sm:$0xf]
    %v53 = vld [vmem:[%s1 + $0x78] sm:$0xf]
    %v54 = vld [vmem:[%s1 + $0x7c] sm:$0xf]
    %v55 = vld [vmem:[%s1 + $0x80] sm:$0xf]
    %v56 = vld [vmem:[%s1 + $0x84] sm:$0xf]
    %v57 = vld [vmem:[%s1 + $0x88] sm:$0xf]
    %v58 = vld [vmem:[%s1 + $0x8c] sm:$0xf]
    %v59 = vld [vmem:[%s1 + $0x90] sm:$0xf]
    %v60 = vld [vmem:[%s1 + $0x94] sm:$0xf]
    %v61 = vld [vmem:[%s1 + $0x98] sm:$0xf]
    %v62 = vld [vmem:[%s1 + $0x9c] sm:$0xf]
    %v63 = vld [vmem:[%s1 + $0xa0] sm:$0xf]
    %v64 = vld [vmem:[%s1 + $0xa4] sm:$0xf]
    %v65 = vld [vmem:[%s1 + $0xa8] sm:$0xf]
    %v66 = vld [vmem:[%s1 + $0xac] sm:$0xf]
    %v67 = vld [vmem:[%s1 + $0xb0] sm:$0xf]
    %v68 = vld [vmem:[%s1 + $0xb4] sm:$0xf]
    %v69 = vld [vmem:[%s1 + $0xb8] sm:$0xf]
    %v70 = vld [vmem:[%s1 + $0xbc] sm:$0xf]
    %v71 = vld [vmem:[%s1 + $0xc0] sm:$0xf]
    %v72 = vld [vmem:[%s1 + $0xc4] sm:$0xf]
    %v73 = vld [vmem:[%s1 + $0xc8] sm:$0xf]
    %v74 = vld [vmem:[%s1 + $0xcc] sm:$0xf]
    %v75 = vld [vmem:[%s1 + $0xd0] sm:$0xf]
    %v76 = vld [vmem:[%s1 + $0xd4] sm:$0xf]
    %v77 = vld [vmem:[%s1 + $0xd8] sm:$0xf]
    %v78 = vld [vmem:[%s1 + $0xdc] sm:$0xf]
    %v79 = vld [vmem:[%s1 + $0xe0] sm:$0xf]
    %v80 = vld [vmem:[%s1 + $0xe4] sm:$0xf]
    %v81 = vld [vmem:[%s1 + $0xe8] sm:$0xf]
    %v82 = vld [vmem:[%s1 + $0xec] sm:$0xf]
    %v83 = vld [vmem:[%s1 + $0xf0] sm:$0xf]
    %v84 = vld [vmem:[%s1 + $0xf4] sm:$0xf]
    %v85 = vld [vmem:[%s1 + $0xf8] sm:$0xf]
    %v86 = vld [vmem:[%s1 + $0xfc] sm:$0xf]
    %v87 = vld [vmem:[%s1 + $0x100] sm:$0xf]
    %v88 = vld [vmem:[%s1 + $0x104] sm:$0xf]
    %v89 = vld [vmem:[%s1 + $0x108] sm:$0xf]
    %v90 = vld [vmem:[%s1 + $0x10c] sm:$0xf]
    %v91 = vld [vmem:[%s1 + $0x110] sm:$0xf]
    %v92 = vld [vmem:[%s1 + $0x114] sm:$0xf]
    %v93 = vld [vmem:[%s1 + $0x118] sm:$0xf]
    %v94 = vld [vmem:[%s1 + $0x11c] sm:$0xf]
    %v95 = vld [vmem:[%s1 + $0x120] sm:$0xf]
    %v96 = vld [vmem:[%s1 + $0x124] sm:$0xf]
    %v97 = vld [vmem:[%s1 + $0x128] sm:$0xf]
    %v98 = vld [vmem:[%s1 + $0x12c] sm:$0xf]
    %v99 = vld [vmem:[%s1 + $0x130] sm:$0xf]
    %v100 = vld [vmem:[%s1 + $0x134] sm:$0xf]
    %v101 = vld [vmem:[%s1 + $0x138] sm:$0xf]
    %v102 = vld [vmem:[%s1 + $0x13c] sm:$0xf]
    %v103 = vld [vmem:[%s1 + $0x140] sm:$0xf]
    %v104 = vld [vmem:[%s1 + $0x144] sm:$0xf]
    %v105 = vld [vmem:[%s1 + $0x148] sm:$0xf]
    %v106 = vld [vmem:[%s1 + $0x14c] sm:$0xf]
    %v107 = vld [vmem:[%s1 + $0x150] sm:$0xf]
    %v108 = vld [vmem:[%s1 + $0x154] sm:$0xf]
    %v109 = vld [vmem:[%s1 + $0x158] sm:$0xf]
    %v110 = vld [vmem:[%s1 + $0x15c] sm:$0xf]
    %v111 = vld [vmem:[%s1 + $0x160] sm:$0xf]
    %v112 = vld [vmem:[%s1 + $0x164] sm:$0xf]
    %v113 = vld [vmem:[%s1 + $0x168] sm:$0xf]
    %v114 = vld [vmem:[%s1 + $0x16c] sm:$0xf]
    %v115 = vld [vmem:[%s1 + $0x170] sm:$0xf]
    %v116 = vld [vmem:[%s1 + $0x174] sm:$0xf]
    %v117 = vld [vmem:[%s1 + $0x178] sm:$0xf]
    %v118 = vld [vmem:[%s1 + $0x17c] sm:$0xf]
    %v119 = vld [vmem:[%s1 + $0x180] sm:$0xf]
    %v120 = vld [vmem:[%s1 + $0x184] sm:$0xf]
    %v121 = vld [vmem:[%s1 + $0x188] sm:$0xf]
    %v122 = vld [vmem:[%s1 + $0x18c] sm:$0xf]
    %v123 = vld [vmem:[%s1 + $0x190] sm:$0xf]
    %v124 = vld [vmem:[%s1 + $0x194] sm:$0xf]
    %v125 = vld [vmem:[%s1 + $0x198] sm:$0xf]
    %v126 = vld [vmem:[%s1 + $0x19c] sm:$0xf]
    %v127 = vld [vmem:[%s1 + $0x1a0] sm:$0xf]
    %v128 = vld [vmem:[%s1 + $0x1a4] sm:$0xf]
    %v129 = vld [vmem:[%s1 + $0x1a8] sm:$0xf]
    %v130 = vld [vmem:[%s1 + $0x1ac] sm:$0xf]
    %v131 = vld [vmem:[%s1 + $0x1b0] sm:$0xf]
    %v132 = vld [vmem:[%s1 + $0x1b4] sm:$0xf]
    %v133 = vld [vmem:[%s1 + $0x1b8] sm:$0xf]
    %v134 = vld [vmem:[%s1 + $0x1bc] sm:$0xf]
    %v135 = vld [vmem:[%s1 + $0x1c0] sm:$0xf]
    %v136 = vld [vmem:[%s1 + $0x1c4] sm:$0xf]
    %v137 = vld [vmem:[%s1 + $0x1c8] sm:$0xf]
    %v138 = vld [vmem:[%s1 + $0x1cc] sm:$0xf]
    %v139 = vld [vmem:[%s1 + $0x1d0] sm:$0xf]
    %v140 = vld [vmem:[%s1 + $0x1d4] sm:$0xf]
    %v141 = vld [vmem:[%s1 + $0x1d8] sm:$0xf]
    %v142 = vld [vmem:[%s1 + $0x1dc] sm:$0xf]
    %v143 = vld [vmem:[%s1 + $0x1e0] sm:$0xf]
    %v144 = vld [vmem:[%s1 + $0x1e4] sm:$0xf]
    %v145 = vld [vmem:[%s1 + $0x1e8] sm:$0xf]
    %v146 = vld [vmem:[%s1 + $0x1ec] sm:$0xf]
    %v147 = vld [vmem:[%s1 + $0x1f0] sm:$0xf]
    %v148 = vld [vmem:[%s1 + $0x1f4] sm:$0xf]
    %v149 = vld [vmem:[%s1 + $0x1f8] sm:$0xf]
    %v150 = vld [vmem:[%s1 + $0x1fc] sm:$0xf]
    %v151 = vld [vmem:[%s2] sm:$0x1]
    %v153 = vlaneseq
    %v154 = vshrl.u32 %v153, 7
    %v155 = vsub.s32 0, %v154
    %v156 = vrot.slane %v151, %v155
    %v159 = vcombine.high %v22, %v22
    %v161 = vunpack.c.l.s4 1966171168
    %v162 = vunpack.c.0.s8 %v161
    %v163 = vlaneseq
    %v164 = vshrl.u32 %v163, 7
    %v165 = vsub.s32 %v162, %v164
    %v166 = vrot.slane %v22, %v165
    %v168 = vunpack.c.l.s4 1966171168
    %v169 = vunpack.c.0.s8 %v168
    %v170 = vlaneseq
    %v171 = vshrl.u32 %v170, 7
    %v172 = vsub.s32 %v169, %v171
    %v173 = vrot.slane %v159, %v172
    %v174 = vcombine.high %v166, %v166
    %v175 = vcombine.high %v173, %v173
    %v177 = vunpack.c.l.s4 1966171168
    %v178 = vunpack.c.0.s8 %v177
    %v179 = vlaneseq
    %v180 = vshrl.u32 %v179, 7
    %v181 = vsub.s32 %v178, %v180
    %v182 = vrot.slane %v166, %v181
    %v184 = vunpack.c.l.s4 1966171168
    %v185 = vunpack.c.0.s8 %v184
    %v186 = vlaneseq
    %v187 = vshrl.u32 %v186, 7
    %v188 = vsub.s32 %v185, %v187
    %v189 = vrot.slane %v173, %v188
    %v191 = vunpack.c.l.s4 1966171168
    %v192 = vunpack.c.0.s8 %v191
    %v193 = vlaneseq
    %v194 = vshrl.u32 %v193, 7
    %v195 = vsub.s32 %v192, %v194
    %v196 = vrot.slane %v174, %v195
    %v198 = vunpack.c.l.s4 1966171168
    %v199 = vunpack.c.0.s8 %v198
    %v200 = vlaneseq
    %v201 = vshrl.u32 %v200, 7
    %v202 = vsub.s32 %v199, %v201
    %v203 = vrot.slane %v175, %v202
    %v204 = vcombine.high %v182, %v182
    %v205 = vcombine.high %v189, %v189
    %v206 = vcombine.high %v196, %v196
    %v207 = vcombine.high %v203, %v203
    %v344 = vunpack.c.l.b16 %v23
    %v345 = vunpack.c.l.b16 %v24
    %v346 = vunpack.c.l.b16 %v25
    %v347 = vunpack.c.l.b16 %v26
    %v348 = vunpack.c.l.b16 %v27
    %v349 = vunpack.c.l.b16 %v28
    %v350 = vunpack.c.l.b16 %v29
    %v351 = vunpack.c.l.b16 %v30
    %v352 = vunpack.c.l.b16 %v31
    %v353 = vunpack.c.l.b16 %v32
    %v354 = vunpack.c.l.b16 %v33
    %v355 = vunpack.c.l.b16 %v34
    %v356 = vunpack.c.l.b16 %v35
    %v357 = vunpack.c.l.b16 %v36
    %v358 = vunpack.c.l.b16 %v37
    %v359 = vunpack.c.l.b16 %v38
    %v360 = vunpack.c.l.b16 %v39
    %v361 = vunpack.c.l.b16 %v40
    %v362 = vunpack.c.l.b16 %v41
    %v363 = vunpack.c.l.b16 %v42
    %v364 = vunpack.c.l.b16 %v43
    %v365 = vunpack.c.l.b16 %v44
    %v366 = vunpack.c.l.b16 %v45
    %v367 = vunpack.c.l.b16 %v46
    %v368 = vunpack.c.l.b16 %v47
    %v369 = vunpack.c.l.b16 %v48
    %v370 = vunpack.c.l.b16 %v49
    %v371 = vunpack.c.l.b16 %v50
    %v372 = vunpack.c.l.b16 %v51
    %v373 = vunpack.c.l.b16 %v52
    %v374 = vunpack.c.l.b16 %v53
    %v375 = vunpack.c.l.b16 %v54
    %v376 = vunpack.c.l.b16 %v55
    %v377 = vunpack.c.l.b16 %v56
    %v378 = vunpack.c.l.b16 %v57
    %v379 = vunpack.c.l.b16 %v58
    %v380 = vunpack.c.l.b16 %v59
    %v381 = vunpack.c.l.b16 %v60
    %v382 = vunpack.c.l.b16 %v61
    %v383 = vunpack.c.l.b16 %v62
    %v384 = vunpack.c.l.b16 %v63
    %v385 = vunpack.c.l.b16 %v64
    %v386 = vunpack.c.l.b16 %v65
    %v387 = vunpack.c.l.b16 %v66
    %v388 = vunpack.c.l.b16 %v67
    %v389 = vunpack.c.l.b16 %v68
    %v390 = vunpack.c.l.b16 %v69
    %v391 = vunpack.c.l.b16 %v70
    %v392 = vunpack.c.l.b16 %v71
    %v393 = vunpack.c.l.b16 %v72
    %v394 = vunpack.c.l.b16 %v73
    %v395 = vunpack.c.l.b16 %v74
    %v396 = vunpack.c.l.b16 %v75
    %v397 = vunpack.c.l.b16 %v76
    %v398 = vunpack.c.l.b16 %v77
    %v399 = vunpack.c.l.b16 %v78
    %v400 = vunpack.c.l.b16 %v79
    %v401 = vunpack.c.l.b16 %v80
    %v402 = vunpack.c.l.b16 %v81
    %v403 = vunpack.c.l.b16 %v82
    %v404 = vunpack.c.l.b16 %v83
    %v405 = vunpack.c.l.b16 %v84
    %v406 = vunpack.c.l.b16 %v85
    %v407 = vunpack.c.l.b16 %v86
    %v408 = vunpack.c.l.b16 %v87
    %v409 = vunpack.c.l.b16 %v88
    %v410 = vunpack.c.l.b16 %v89
    %v411 = vunpack.c.l.b16 %v90
    %v412 = vunpack.c.l.b16 %v91
    %v413 = vunpack.c.l.b16 %v92
    %v414 = vunpack.c.l.b16 %v93
    %v415 = vunpack.c.l.b16 %v94
    %v416 = vunpack.c.l.b16 %v95
    %v417 = vunpack.c.l.b16 %v96
    %v418 = vunpack.c.l.b16 %v97
    %v419 = vunpack.c.l.b16 %v98
    %v420 = vunpack.c.l.b16 %v99
    %v421 = vunpack.c.l.b16 %v100
    %v422 = vunpack.c.l.b16 %v101
    %v423 = vunpack.c.l.b16 %v102
    %v424 = vunpack.c.l.b16 %v103
    %v425 = vunpack.c.l.b16 %v104
    %v426 = vunpack.c.l.b16 %v105
    %v427 = vunpack.c.l.b16 %v106
    %v428 = vunpack.c.l.b16 %v107
    %v429 = vunpack.c.l.b16 %v108
    %v430 = vunpack.c.l.b16 %v109
    %v431 = vunpack.c.l.b16 %v110
    %v432 = vunpack.c.l.b16 %v111
    %v433 = vunpack.c.l.b16 %v112
    %v434 = vunpack.c.l.b16 %v113
    %v435 = vunpack.c.l.b16 %v114
    %v436 = vunpack.c.l.b16 %v115
    %v437 = vunpack.c.l.b16 %v116
    %v438 = vunpack.c.l.b16 %v117
    %v439 = vunpack.c.l.b16 %v118
    %v440 = vunpack.c.l.b16 %v119
    %v441 = vunpack.c.l.b16 %v120
    %v442 = vunpack.c.l.b16 %v121
    %v443 = vunpack.c.l.b16 %v122
    %v444 = vunpack.c.l.b16 %v123
    %v445 = vunpack.c.l.b16 %v124
    %v446 = vunpack.c.l.b16 %v125
    %v447 = vunpack.c.l.b16 %v126
    %v448 = vunpack.c.l.b16 %v127
    %v449 = vunpack.c.l.b16 %v128
    %v450 = vunpack.c.l.b16 %v129
    %v451 = vunpack.c.l.b16 %v130
    %v452 = vunpack.c.l.b16 %v131
    %v453 = vunpack.c.l.b16 %v132
    %v454 = vunpack.c.l.b16 %v133
    %v455 = vunpack.c.l.b16 %v134
    %v456 = vunpack.c.l.b16 %v135
    %v457 = vunpack.c.l.b16 %v136
    %v458 = vunpack.c.l.b16 %v137
    %v459 = vunpack.c.l.b16 %v138
    %v460 = vunpack.c.l.b16 %v139
    %v461 = vunpack.c.l.b16 %v140
    %v462 = vunpack.c.l.b16 %v141
    %v463 = vunpack.c.l.b16 %v142
    %v464 = vunpack.c.l.b16 %v143
    %v465 = vunpack.c.l.b16 %v144
    %v466 = vunpack.c.l.b16 %v145
    %v467 = vunpack.c.l.b16 %v146
    %v468 = vunpack.c.l.b16 %v147
    %v469 = vunpack.c.l.b16 %v148
    %v470 = vunpack.c.l.b16 %v149
    %v471 = vunpack.c.l.b16 %v150
    %v472 = vpack.c.b16 %v345, %v344
    %v473 = vpack.c.b16 %v347, %v346
    %v474 = vpack.c.b16 %v349, %v348
    %v475 = vpack.c.b16 %v351, %v350
    %v476 = vpack.c.b16 %v353, %v352
    %v477 = vpack.c.b16 %v355, %v354
    %v478 = vpack.c.b16 %v357, %v356
    %v479 = vpack.c.b16 %v359, %v358
    %v480 = vpack.c.b16 %v361, %v360
    %v481 = vpack.c.b16 %v363, %v362
    %v482 = vpack.c.b16 %v365, %v364
    %v483 = vpack.c.b16 %v367, %v366
    %v484 = vpack.c.b16 %v369, %v368
    %v485 = vpack.c.b16 %v371, %v370
    %v486 = vpack.c.b16 %v373, %v372
    %v487 = vpack.c.b16 %v375, %v374
    %v488 = vpack.c.b16 %v377, %v376
    %v489 = vpack.c.b16 %v379, %v378
    %v490 = vpack.c.b16 %v381, %v380
    %v491 = vpack.c.b16 %v383, %v382
    %v492 = vpack.c.b16 %v385, %v384
    %v493 = vpack.c.b16 %v387, %v386
    %v494 = vpack.c.b16 %v389, %v388
    %v495 = vpack.c.b16 %v391, %v390
    %v496 = vpack.c.b16 %v393, %v392
    %v497 = vpack.c.b16 %v395, %v394
    %v498 = vpack.c.b16 %v397, %v396
    %v499 = vpack.c.b16 %v399, %v398
    %v500 = vpack.c.b16 %v401, %v400
    %v501 = vpack.c.b16 %v403, %v402
    %v502 = vpack.c.b16 %v405, %v404
    %v503 = vpack.c.b16 %v407, %v406
    %v504 = vpack.c.b16 %v409, %v408
    %v505 = vpack.c.b16 %v411, %v410
    %v506 = vpack.c.b16 %v413, %v412
    %v507 = vpack.c.b16 %v415, %v414
    %v508 = vpack.c.b16 %v417, %v416
    %v509 = vpack.c.b16 %v419, %v418
    %v510 = vpack.c.b16 %v421, %v420
    %v511 = vpack.c.b16 %v423, %v422
    %v512 = vpack.c.b16 %v425, %v424
    %v513 = vpack.c.b16 %v427, %v426
    %v514 = vpack.c.b16 %v429, %v428
    %v515 = vpack.c.b16 %v431, %v430
    %v516 = vpack.c.b16 %v433, %v432
    %v517 = vpack.c.b16 %v435, %v434
    %v518 = vpack.c.b16 %v437, %v436
    %v519 = vpack.c.b16 %v439, %v438
    %v520 = vpack.c.b16 %v441, %v440
    %v521 = vpack.c.b16 %v443, %v442
    %v522 = vpack.c.b16 %v445, %v444
    %v523 = vpack.c.b16 %v447, %v446
    %v524 = vpack.c.b16 %v449, %v448
    %v525 = vpack.c.b16 %v451, %v450
    %v526 = vpack.c.b16 %v453, %v452
    %v527 = vpack.c.b16 %v455, %v454
    %v528 = vpack.c.b16 %v457, %v456
    %v529 = vpack.c.b16 %v459, %v458
    %v530 = vpack.c.b16 %v461, %v460
    %v531 = vpack.c.b16 %v463, %v462
    %v532 = vpack.c.b16 %v465, %v464
    %v533 = vpack.c.b16 %v467, %v466
    %v534 = vpack.c.b16 %v469, %v468
    %v535 = vpack.c.b16 %v471, %v470
    %600 = vmatprep.subr.bf16.mxu0 0
    %601 = vmatpush1.bf16.msra.mxu0 %v472
    %602 = vmatprep.subr.bf16.mxu0 0
    %603 = vmatpush1.bf16.msra.mxu0 %v473
    %604 = vmatprep.subr.bf16.mxu0 0
    %605 = vmatpush1.bf16.msra.mxu0 %v474
    %606 = vmatprep.subr.bf16.mxu0 0
    %607 = vmatpush1.bf16.msra.mxu0 %v475
    %608 = vmatprep.subr.bf16.mxu0 0
    %609 = vmatpush1.bf16.msra.mxu0 %v476
    %610 = vmatprep.subr.bf16.mxu0 0
    %611 = vmatpush1.bf16.msra.mxu0 %v477
    %612 = vmatprep.subr.bf16.mxu0 0
    %613 = vmatpush1.bf16.msra.mxu0 %v478
    %614 = vmatprep.subr.bf16.mxu0 0
    %615 = vmatpush1.bf16.msra.mxu0 %v479
    %616 = vmatprep.subr.bf16.mxu0 0
    %617 = vmatpush1.bf16.msra.mxu0 %v480
    %618 = vmatprep.subr.bf16.mxu0 0
    %619 = vmatpush1.bf16.msra.mxu0 %v481
    %620 = vmatprep.subr.bf16.mxu0 0
    %621 = vmatpush1.bf16.msra.mxu0 %v482
    %622 = vmatprep.subr.bf16.mxu0 0
    %623 = vmatpush1.bf16.msra.mxu0 %v483
    %624 = vmatprep.subr.bf16.mxu0 0
    %625 = vmatpush1.bf16.msra.mxu0 %v484
    %626 = vmatprep.subr.bf16.mxu0 0
    %627 = vmatpush1.bf16.msra.mxu0 %v485
    %628 = vmatprep.subr.bf16.mxu0 0
    %629 = vmatpush1.bf16.msra.mxu0 %v486
    %630 = vmatprep.subr.bf16.mxu0 0
    %631 = vmatpush1.bf16.msra.mxu0 %v487
    %632 = vmatprep.mubr.bf16.mxu0 %v196
    %633 = vmatmul.mubr.bf16.gmra.mrb[0].mxu0 %v182
    %v634 = vpop.f32.mrb[0].mxu0
    %v635 = vadd.f32 %v156, %v634
    %v636 = vpop.f32.mrb[0].mxu0
    %v637 = vpop.f32.mrb[0].mxu0
    %v638 = vpop.f32.mrb[0].mxu0
    %639 = vdwg.mxu0
    %640 = vmatprep.subr.bf16.mxu0 0
    %641 = vmatpush1.bf16.msra.mxu0 %v488
    %642 = vmatprep.subr.bf16.mxu0 0
    %643 = vmatpush1.bf16.msra.mxu0 %v489
    %644 = vmatprep.subr.bf16.mxu0 0
    %645 = vmatpush1.bf16.msra.mxu0 %v490
    %646 = vmatprep.subr.bf16.mxu0 0
    %647 = vmatpush1.bf16.msra.mxu0 %v491
    %648 = vmatprep.subr.bf16.mxu0 0
    %649 = vmatpush1.bf16.msra.mxu0 %v492
    %650 = vmatprep.subr.bf16.mxu0 0
    %651 = vmatpush1.bf16.msra.mxu0 %v493
    %652 = vmatprep.subr.bf16.mxu0 0
    %653 = vmatpush1.bf16.msra.mxu0 %v494
    %654 = vmatprep.subr.bf16.mxu0 0
    %655 = vmatpush1.bf16.msra.mxu0 %v495
    %656 = vmatprep.subr.bf16.mxu0 0
    %657 = vmatpush1.bf16.msra.mxu0 %v496
    %658 = vmatprep.subr.bf16.mxu0 0
    %659 = vmatpush1.bf16.msra.mxu0 %v497
    %660 = vmatprep.subr.bf16.mxu0 0
    %661 = vmatpush1.bf16.msra.mxu0 %v498
    %662 = vmatprep.subr.bf16.mxu0 0
    %663 = vmatpush1.bf16.msra.mxu0 %v499
    %664 = vmatprep.subr.bf16.mxu0 0
    %665 = vmatpush1.bf16.msra.mxu0 %v500
    %666 = vmatprep.subr.bf16.mxu0 0
    %667 = vmatpush1.bf16.msra.mxu0 %v501
    %668 = vmatprep.subr.bf16.mxu0 0
    %669 = vmatpush1.bf16.msra.mxu0 %v502
    %670 = vmatprep.subr.bf16.mxu0 0
    %671 = vmatpush1.bf16.msra.mxu0 %v503
    %672 = vmatprep.mubr.bf16.mxu0 %v206
    %673 = vmatmul.mubr.bf16.gmra.mrb[0].mxu0 %v204
    %v674 = vpop.f32.mrb[0].mxu0
    %v675 = vadd.f32 %v635, %v674
    %v676 = vpop.f32.mrb[0].mxu0
    %v677 = vpop.f32.mrb[0].mxu0
    %v678 = vpop.f32.mrb[0].mxu0
    %679 = vdwg.mxu0
    %680 = vmatprep.subr.bf16.mxu0 0
    %681 = vmatpush1.bf16.msra.mxu0 %v504
    %682 = vmatprep.subr.bf16.mxu0 0
    %683 = vmatpush1.bf16.msra.mxu0 %v505
    %684 = vmatprep.subr.bf16.mxu0 0
    %685 = vmatpush1.bf16.msra.mxu0 %v506
    %686 = vmatprep.subr.bf16.mxu0 0
    %687 = vmatpush1.bf16.msra.mxu0 %v507
    %688 = vmatprep.subr.bf16.mxu0 0
    %689 = vmatpush1.bf16.msra.mxu0 %v508
    %690 = vmatprep.subr.bf16.mxu0 0
    %691 = vmatpush1.bf16.msra.mxu0 %v509
    %692 = vmatprep.subr.bf16.mxu0 0
    %693 = vmatpush1.bf16.msra.mxu0 %v510
    %694 = vmatprep.subr.bf16.mxu0 0
    %695 = vmatpush1.bf16.msra.mxu0 %v511
    %696 = vmatprep.subr.bf16.mxu0 0
    %697 = vmatpush1.bf16.msra.mxu0 %v512
    %698 = vmatprep.subr.bf16.mxu0 0
    %699 = vmatpush1.bf16.msra.mxu0 %v513
    %700 = vmatprep.subr.bf16.mxu0 0
    %701 = vmatpush1.bf16.msra.mxu0 %v514
    %702 = vmatprep.subr.bf16.mxu0 0
    %703 = vmatpush1.bf16.msra.mxu0 %v515
    %704 = vmatprep.subr.bf16.mxu0 0
    %705 = vmatpush1.bf16.msra.mxu0 %v516
    %706 = vmatprep.subr.bf16.mxu0 0
    %707 = vmatpush1.bf16.msra.mxu0 %v517
    %708 = vmatprep.subr.bf16.mxu0 0
    %709 = vmatpush1.bf16.msra.mxu0 %v518
    %710 = vmatprep.subr.bf16.mxu0 0
    %711 = vmatpush1.bf16.msra.mxu0 %v519
    %712 = vmatprep.mubr.bf16.mxu0 %v203
    %713 = vmatmul.mubr.bf16.gmra.mrb[0].mxu0 %v189
    %v714 = vpop.f32.mrb[0].mxu0
    %v715 = vadd.f32 %v675, %v714
    %v716 = vpop.f32.mrb[0].mxu0
    %v717 = vpop.f32.mrb[0].mxu0
    %v718 = vpop.f32.mrb[0].mxu0
    %719 = vdwg.mxu0
    %720 = vmatprep.subr.bf16.mxu0 0
    %721 = vmatpush1.bf16.msra.mxu0 %v520
    %722 = vmatprep.subr.bf16.mxu0 0
    %723 = vmatpush1.bf16.msra.mxu0 %v521
    %724 = vmatprep.subr.bf16.mxu0 0
    %725 = vmatpush1.bf16.msra.mxu0 %v522
    %726 = vmatprep.subr.bf16.mxu0 0
    %727 = vmatpush1.bf16.msra.mxu0 %v523
    %728 = vmatprep.subr.bf16.mxu0 0
    %729 = vmatpush1.bf16.msra.mxu0 %v524
    %730 = vmatprep.subr.bf16.mxu0 0
    %731 = vmatpush1.bf16.msra.mxu0 %v525
    %732 = vmatprep.subr.bf16.mxu0 0
    %733 = vmatpush1.bf16.msra.mxu0 %v526
    %734 = vmatprep.subr.bf16.mxu0 0
    %735 = vmatpush1.bf16.msra.mxu0 %v527
    %736 = vmatprep.subr.bf16.mxu0 0
    %737 = vmatpush1.bf16.msra.mxu0 %v528
    %738 = vmatprep.subr.bf16.mxu0 0
    %739 = vmatpush1.bf16.msra.mxu0 %v529
    %740 = vmatprep.subr.bf16.mxu0 0
    %741 = vmatpush1.bf16.msra.mxu0 %v530
    %742 = vmatprep.subr.bf16.mxu0 0
    %743 = vmatpush1.bf16.msra.mxu0 %v531
    %744 = vmatprep.subr.bf16.mxu0 0
    %745 = vmatpush1.bf16.msra.mxu0 %v532
    %746 = vmatprep.subr.bf16.mxu0 0
    %747 = vmatpush1.bf16.msra.mxu0 %v533
    %748 = vmatprep.subr.bf16.mxu0 0
    %749 = vmatpush1.bf16.msra.mxu0 %v534
    %750 = vmatprep.subr.bf16.mxu0 0
    %751 = vmatpush1.bf16.msra.mxu0 %v535
    %752 = vmatprep.mubr.bf16.mxu0 %v207
    %753 = vmatmul.mubr.bf16.gmra.mrb[0].mxu0 %v205
    %v754 = vpop.f32.mrb[0].mxu0
    %v755 = vadd.f32 %v715, %v754
    %v756 = vpop.f32.mrb[0].mxu0
    %v757 = vpop.f32.mrb[0].mxu0
    %v758 = vpop.f32.mrb[0].mxu0
    %759 = vdwg.mxu0
    %v760 = vpack.c.bf16 %v755, %v755
    %v761 = vld [vmem:[%s3] sm:$0xf]
    %v762 = vld [vmem:[%s3 + $0x4] sm:$0xf]
    %v763 = vld [vmem:[%s3 + $0x8] sm:$0xf]
    %v764 = vld [vmem:[%s3 + $0xc] sm:$0xf]
    %v765 = vld [vmem:[%s3 + $0x10] sm:$0xf]
    %v766 = vld [vmem:[%s3 + $0x14] sm:$0xf]
    %v767 = vld [vmem:[%s3 + $0x18] sm:$0xf]
    %v768 = vld [vmem:[%s3 + $0x1c] sm:$0xf]
    %v769 = vld [vmem:[%s4] sm:$0x1]
    %v771 = vlaneseq
    %v772 = vshrl.u32 %v771, 7
    %v773 = vsub.s32 0, %v772
    %v774 = vrot.slane %v769, %v773
    %v784 = vunpack.c.l.b16 %v761
    %v785 = vunpack.c.l.b16 %v762
    %v786 = vunpack.c.l.b16 %v763
    %v787 = vunpack.c.l.b16 %v764
    %v788 = vunpack.c.l.b16 %v765
    %v789 = vunpack.c.l.b16 %v766
    %v790 = vunpack.c.l.b16 %v767
    %v791 = vunpack.c.l.b16 %v768
    %v792 = vpack.c.b16 %v785, %v784
    %v793 = vpack.c.b16 %v787, %v786
    %v794 = vpack.c.b16 %v789, %v788
    %v795 = vpack.c.b16 %v791, %v790
    %vm800 = vcmask 523264
    %v802 = vsel %vm800, %v760, 0
    %804 = vmatprep.subr.bf16.mxu0 0
    %805 = vmatpush1.bf16.msra.mxu0 %v792
    %806 = vmatprep.subr.bf16.mxu0 0
    %807 = vmatpush1.bf16.msra.mxu0 %v793
    %808 = vmatprep.subr.bf16.mxu0 0
    %809 = vmatpush1.bf16.msra.mxu0 %v794
    %810 = vmatprep.subr.bf16.mxu0 0
    %811 = vmatpush1.bf16.msra.mxu0 %v795
    %812 = vmatprep.subr.bf16.mxu0 0
    %813 = vmatpush1.bf16.msra.mxu0 0
    %814 = vmatprep.subr.bf16.mxu0 0
    %815 = vmatpush1.bf16.msra.mxu0 0
    %816 = vmatprep.subr.bf16.mxu0 0
    %817 = vmatpush1.bf16.msra.mxu0 0
    %818 = vmatprep.subr.bf16.mxu0 0
    %819 = vmatpush1.bf16.msra.mxu0 0
    %820 = vmatprep.subr.bf16.mxu0 0
    %821 = vmatpush1.bf16.msra.mxu0 0
    %822 = vmatprep.subr.bf16.mxu0 0
    %823 = vmatpush1.bf16.msra.mxu0 0
    %824 = vmatprep.subr.bf16.mxu0 0
    %825 = vmatpush1.bf16.msra.mxu0 0
    %826 = vmatprep.subr.bf16.mxu0 0
    %827 = vmatpush1.bf16.msra.mxu0 0
    %828 = vmatprep.subr.bf16.mxu0 0
    %829 = vmatpush1.bf16.msra.mxu0 0
    %830 = vmatprep.subr.bf16.mxu0 0
    %831 = vmatpush1.bf16.msra.mxu0 0
    %832 = vmatprep.subr.bf16.mxu0 0
    %833 = vmatpush1.bf16.msra.mxu0 0
    %834 = vmatprep.subr.bf16.mxu0 0
    %835 = vmatpush1.bf16.msra.mxu0 0
    %836 = vmatprep.mubr.bf16.mxu0 0
    %837 = vmatmul.mubr.bf16.gmra.mrb[0].mxu0 %v802
    %v838 = vpop.f32.mrb[0].mxu0
    %v839 = vadd.f32 %v774, %v838
    %v840 = vpop.f32.mrb[0].mxu0
    %v841 = vpop.f32.mrb[0].mxu0
    %v842 = vpop.f32.mrb[0].mxu0
    %843 = vdwg.mxu0
    %vm844 = vcmask 74752
    %845 = vst.msk [vmem:[#allocation2] sm:$0x3] %vm844, %v839
    // Predicated region
    $region22: #{cx_forward.7} parent=1 // pred_check
      _
    $region23: #{cx_forward.7} parent=1 // pred_check_branch
      %847 = sbr.rel (0) target = $region25
    $region24: #{cx_forward.7} parent=1 // pred_region
      %s849 = ssub.s32 32, 32
      %850 = vsyncadd [#allocation3], %s849
      %s852 = sshll.u32 [#allocation2], 4
      %s853 = int_to_ptr.vmem [resolvable:$true] %s852
      %855 = dma.vmem_to_hbm [thread:$0]  %s853, 32, %s5, [#allocation3]
    $region25: #{cx_forward.7} parent=1 // pred_fallthru
      _
    // Predicated region
    $region26: #{cx_forward.7} parent=1 // pred_check
      _
    $region27: #{cx_forward.7} parent=1 // pred_check_branch
      %857 = sbr.rel (0) target = $region29
    $region28: #{cx_forward.7} parent=1 // pred_region
      %858 = dma.done [#allocation3], 32
    $region29: #{cx_forward.7} parent=1 // pred_fallthru
      _
    %859 = vsyncpa [#allocation3], 1

</llo_original>
